<compile_context>
chip_gen: v7x
topology: tpu7x:2x2x1
jax: 0.10.0
libtpu: 0.0.40
codegen_flags: <defaults>
</compile_context>

<pallas_src>
import functools
import math
from typing import NamedTuple

import jax
import jax.numpy as jnp
from jax.experimental import pallas as pl
from jax.experimental.pallas import tpu as pltpu

EPS_LN = 1e-12       # BertLayerNorm eps
NEG_INF = -1e9       # additive attention mask value
LANE = 128           # TPU lane width
SUB = 8              # TPU sublane width

_WEIGHT_ORDER = (
    "e_wqkv", "e_bqkv", "e_wo", "e_bo", "e_ln1", "e_w1", "e_b1", "e_w2", "e_b2", "e_ln2",
    "d_swqkv", "d_sbqkv", "d_swo", "d_sbo", "d_lns",
    "d_cwq", "d_cbq", "d_cwkv", "d_cbkv", "d_cwo", "d_cbo", "d_lnc",
    "d_w1", "d_b1", "d_w2", "d_b2", "d_lnf",
    "wp", "bp",
)


def _round_up(x, m):
    return (x + m - 1) // m * m


class Config(NamedTuple):
    src_voc_size: int
    tgt_voc_size: int
    max_src_len: int
    max_tgt_len: int
    d_model: int
    d_model2: int
    nhead: int
    enc_num_layers: int
    dec_num_layers: int
    intermediate_size: int
    end_idx: int
    src_pad: int
    tgt_pad: int
    tgt_cls: int
    decoder_start_token_id: int


def make_config(src_voc_size=50, tgt_voc_size=8, max_src_len=16, max_tgt_len=15,
                d_model=24, d_model2=96, nhead=4, enc_num_layers=2, dec_num_layers=2,
                intermediate_size=64):
    return Config(
        src_voc_size=src_voc_size, tgt_voc_size=tgt_voc_size,
        max_src_len=max_src_len, max_tgt_len=max_tgt_len,
        d_model=d_model, d_model2=d_model2, nhead=nhead,
        enc_num_layers=enc_num_layers, dec_num_layers=dec_num_layers,
        intermediate_size=intermediate_size,
        end_idx=int(math.sqrt(tgt_voc_size)),
        src_pad=src_voc_size - 1, tgt_pad=tgt_voc_size - 1, tgt_cls=tgt_voc_size,
        decoder_start_token_id=tgt_voc_size - 2,
    )


# ----------------------------------------------------------------------------
# In-kernel helpers (traced inside the Pallas kernel)
# ----------------------------------------------------------------------------
def _layernorm_pad(x, gamma, beta, d_valid):
    """LayerNorm over the first d_valid feature columns.

    Invariant: padded columns of x / gamma / beta are zero, so full-lane sums
    equal sums over the valid columns and padded output columns stay zero.
    """
    inv_d = 1.0 / d_valid
    mu = jnp.sum(x, axis=-1, keepdims=True) * inv_d
    ex2 = jnp.sum(x * x, axis=-1, keepdims=True) * inv_d
    var = jnp.maximum(ex2 - mu * mu, 0.0)
    return (x - mu) * jax.lax.rsqrt(var + EPS_LN) * gamma + beta


def _gelu(x):
    # TODO(synk): BERT default is exact erf-GELU; tanh approximation used for robust Mosaic lowering.
    c = math.sqrt(2.0 / math.pi)
    return 0.5 * x * (1.0 + jnp.tanh(c * (x + 0.044715 * x * x * x)))


def _head_feature_mask(nhead, head_dim, width):
    """(nhead, width) f32: 1.0 where feature column belongs to head h."""
    h = jax.lax.broadcasted_iota(jnp.int32, (nhead, width), 0)
    c = jax.lax.broadcasted_iota(jnp.int32, (nhead, width), 1)
    return jnp.logical_and(c >= h * head_dim, c < (h + 1) * head_dim).astype(jnp.float32)


def _head_sel_masks(nhead, mk):
    """nhead boolean (1, nhead*mk) lane masks selecting each head's score block."""
    col = jax.lax.broadcasted_iota(jnp.int32, (1, nhead * mk), 1)
    return tuple(jnp.logical_and(col >= h * mk, col < (h + 1) * mk) for h in range(nhead))


def _mha(q, k, v, bias_rep, sel_masks, head_mask, wo, bo, scale):
    """All heads at once via block-diagonal head-masked K/V tiles (pure 2-D GEMMs).

    q:(Mq,W)  k,v:(Mk,W)  bias_rep:(Mq,nhead*Mk)  head_mask:(nhead,W)  wo:(W,Dp)  bo:(1,Dp)
    Row block h of the masked K/V keeps only head h's feature columns, so
    s[:, h*Mk + t] is exactly the head-h score of key t and the context GEMM
    lands each head's output in its own (already concatenated) feature columns.
    """
    nhead = head_mask.shape[0]
    mk, width = k.shape
    hm = head_mask[:, None, :]                                        # (nhead, 1, W)
    kw = (k[None, :, :] * hm).reshape(nhead * mk, width)              # broadcast-and-mask (no concat)
    vw = (v[None, :, :] * hm).reshape(nhead * mk, width)
    s = jax.lax.dot_general(q, kw, (((1,), (1,)), ((), ())),
                            preferred_element_type=jnp.float32)       # (Mq, nhead*Mk)
    s = s * scale + bias_rep
    # segmented (per-head) softmax along the flat lane axis -- fixes the
    # global-max underflow concern and needs no block_ones matmul.
    m_full = jnp.zeros_like(s)
    for sel in sel_masks:
        m_h = jnp.max(jnp.where(sel, s, -1e30), axis=-1, keepdims=True)
        m_full = jnp.where(sel, m_h, m_full)
    p = jnp.exp(s - m_full)
    inv = jnp.zeros_like(s)
    for sel in sel_masks:
        d_h = jnp.sum(jnp.where(sel, p, 0.0), axis=-1, keepdims=True)
        inv = jnp.where(sel, pl.reciprocal(jnp.maximum(d_h, 1e-30), approx=True), inv)
    p = p * inv
    ctx = jnp.dot(p, vw, preferred_element_type=jnp.float32)          # (Mq, W), heads already in place
    return jnp.dot(ctx, wo, preferred_element_type=jnp.float32) + bo


# ----------------------------------------------------------------------------
# Fused encoder + decoder + epilogue Pallas kernel (single launch)
# ----------------------------------------------------------------------------
def _fused_stack_kernel(L_enc, L_dec, nhead, d_model, head_dim, scale, n_batch, Sp, Tp, T,
                        enc_h_ref, dec_h_ref, ebias_ref, sbias_ref, cbias_ref,
                        e_wqkv, e_bqkv, e_wo, e_bo, e_ln1, e_w1, e_b1, e_w2, e_b2, e_ln2,
                        d_swqkv, d_sbqkv, d_swo, d_sbo, d_lns,
                        d_cwq, d_cbq, d_cwkv, d_cbkv, d_cwo, d_cbo, d_lnc,
                        d_w1, d_b1, d_w2, d_b2, d_lnf,
                        wp_ref, bp_ref,
                        dec_o_ref, g_ref):
    Dp = enc_h_ref.shape[1]          # padded model width == per-projection lane slot width (128)
    Me = n_batch * Sp                # encoder rows (batch folded into GEMM M)
    Md = n_batch * Tp                # decoder rows

    # Layer-invariant constants, built once (hoisted out of the layer loops).
    head_mask = _head_feature_mask(nhead, head_dim, Dp)               # (nhead, Dp)
    esel = _head_sel_masks(nhead, Me)                                 # enc self-attn & cross-attn keys
    dsel = _head_sel_masks(nhead, Md)                                 # dec self-attn keys
    ebias_rep = jnp.concatenate([ebias_ref[...]] * nhead, axis=1)     # (Me, nhead*Me)
    sbias_rep = jnp.concatenate([sbias_ref[...]] * nhead, axis=1)     # (Md, nhead*Md)
    cbias_rep = jnp.concatenate([cbias_ref[...]] * nhead, axis=1)     # (Md, nhead*Me)

    # ---- encoder stack (static unroll over layers; L is small) ----
    h = enc_h_ref[...]
    for l in range(L_enc):
        qkv = jnp.dot(h, e_wqkv[l], preferred_element_type=jnp.float32) + e_bqkv[l]
        q = qkv[:, 0:Dp]
        k = qkv[:, Dp:2 * Dp]
        v = qkv[:, 2 * Dp:3 * Dp]
        attn = _mha(q, k, v, ebias_rep, esel, head_mask, e_wo[l], e_bo[l], scale)
        ln = e_ln1[l]
        h = _layernorm_pad(h + attn, ln[0:1, :], ln[1:2, :], d_model)
        ff = jnp.dot(_gelu(jnp.dot(h, e_w1[l], preferred_element_type=jnp.float32) + e_b1[l]),
                     e_w2[l], preferred_element_type=jnp.float32) + e_b2[l]
        ln = e_ln2[l]
        h = _layernorm_pad(h + ff, ln[0:1, :], ln[1:2, :], d_model)
    enc = h                                                            # stays in VMEM/registers

    # ---- decoder stack (consumes `enc` directly; no HBM round trip) ----
    h = dec_h_ref[...]
    for l in range(L_dec):
        # causal self-attention (fused QKV GEMM, lane-aligned slots)
        qkv = jnp.dot(h, d_swqkv[l], preferred_element_type=jnp.float32) + d_sbqkv[l]
        q = qkv[:, 0:Dp]
        k = qkv[:, Dp:2 * Dp]
        v = qkv[:, 2 * Dp:3 * Dp]
        attn = _mha(q, k, v, sbias_rep, dsel, head_mask, d_swo[l], d_sbo[l], scale)
        ln = d_lns[l]
        h = _layernorm_pad(h + attn, ln[0:1, :], ln[1:2, :], d_model)
        # cross-attention over the encoder output (fused KV GEMM)
        q = jnp.dot(h, d_cwq[l], preferred_element_type=jnp.float32) + d_cbq[l]
        kv = jnp.dot(enc, d_cwkv[l], preferred_element_type=jnp.float32) + d_cbkv[l]
        k = kv[:, 0:Dp]
        v = kv[:, Dp:2 * Dp]
        cattn = _mha(q, k, v, cbias_rep, esel, head_mask, d_cwo[l], d_cbo[l], scale)
        ln = d_lnc[l]
        h = _layernorm_pad(h + cattn, ln[0:1, :], ln[1:2, :], d_model)
        # feed-forward
        ff = jnp.dot(_gelu(jnp.dot(h, d_w1[l], preferred_element_type=jnp.float32) + d_b1[l]),
                     d_w2[l], preferred_element_type=jnp.float32) + d_b2[l]
        ln = d_lnf[l]
        h = _layernorm_pad(h + ff, ln[0:1, :], ln[1:2, :], d_model)
    dec_o_ref[...] = h

    # ---- epilogue: last-token row per batch -> F.normalize -> fc_proj1 ----
    # One-hot select GEMM instead of per-batch slices+concat (no relayouts).
    ridx = jax.lax.broadcasted_iota(jnp.int32, (n_batch, Md), 0)
    cidx = jax.lax.broadcasted_iota(jnp.int32, (n_batch, Md), 1)
    sel = (cidx == ridx * Tp + (T - 1)).astype(jnp.float32)            # (B, B*Tp)
    g = jnp.dot(sel, h, preferred_element_type=jnp.float32)            # (B, Dp), padded cols are 0
    ss = jnp.sum(g * g, axis=-1, keepdims=True)
    g = g * jax.lax.rsqrt(jnp.maximum(ss, 1e-24))                      # F.normalize (rsqrt on EUP)
    g_ref[...] = jnp.dot(g, wp_ref[...], preferred_element_type=jnp.float32) + bp_ref[...]


def fused_encdec_forward(enc_h0, dec_h0, ebias, sbias, cbias, packed, *,
                         nhead, d_model, n_batch, Sp, Tp, T, L_enc, L_dec):
    Dp = enc_h0.shape[1]
    d2p = packed["bp"].shape[1]
    head_dim = d_model // nhead
    scale = 1.0 / math.sqrt(head_dim)
    kernel = functools.partial(_fused_stack_kernel, L_enc, L_dec, nhead, d_model, head_dim,
                               scale, n_batch, Sp, Tp, T)
    weight_args = [packed[k] for k in _WEIGHT_ORDER]
    # Gridless, everything resident in VMEM (~2.5 MB of weights at this size).
    # TODO(synk): when B*S scales, add a batch-group grid axis with dimension_semantics=("parallel",)
    #             (v7x second TensorCore) and re-derive tiling against 64 MiB VMEM.
    return pl.pallas_call(
        kernel,
        out_shape=(jax.ShapeDtypeStruct((n_batch * Tp, Dp), jnp.float32),
                   jax.ShapeDtypeStruct((n_batch, d2p), jnp.float32)),
        compiler_params=pltpu.CompilerParams(vmem_limit_bytes=64 * 1024 * 1024),
    )(enc_h0, dec_h0, ebias, sbias, cbias, *weight_args)


# ----------------------------------------------------------------------------
# JAX glue: embeddings, masks, losses (outside the kernel)
# ----------------------------------------------------------------------------
def bert_embeddings(token_ids, word_emb, pos_emb, type_emb, ln_g, ln_b):
    S = token_ids.shape[1]
    e = word_emb[token_ids] + pos_emb[None, :S, :] + type_emb[None, 0:1, :]
    mu = jnp.mean(e, axis=-1, keepdims=True)
    var = jnp.mean((e - mu) ** 2, axis=-1, keepdims=True)
    return (e - mu) * jax.lax.rsqrt(var + EPS_LN) * ln_g + ln_b


def _cross_entropy(logits, labels):
    logits = logits.astype(jnp.float32)
    lse = jax.nn.logsumexp(logits, axis=-1)
    picked = jnp.take_along_axis(logits, labels[:, None].astype(jnp.int32), axis=-1)[:, 0]
    return jnp.mean(lse - picked)


def _pad_hidden(h, Sp, Dp):
    """(B, S, D) -> (B*Sp, Dp) zero-padded."""
    B, S, D = h.shape
    h = jnp.pad(h, ((0, 0), (0, Sp - S), (0, Dp - D)))
    return h.reshape(B * Sp, Dp)


def _self_attn_bias(key_mask_p, causal):
    """(B*Sp, B*Sp): 0 if same batch, key not pad (and causal), else -1e9.  NOT tiled by nhead."""
    Bn, Sp = key_mask_p.shape
    bidx = jnp.repeat(jnp.arange(Bn), Sp)
    same = bidx[:, None] == bidx[None, :]
    kvalid = key_mask_p.reshape(-1)[None, :] > 0.5
    ok = jnp.logical_and(same, kvalid)
    if causal:
        pos = jnp.tile(jnp.arange(Sp), Bn)
        ok = jnp.logical_and(ok, pos[:, None] >= pos[None, :])
    return jnp.where(ok, 0.0, NEG_INF).astype(jnp.float32)


def _cross_attn_bias(Bq, Tq, key_mask_p):
    """(Bq*Tq, Bk*Sk) additive bias for cross-attention (same batch + key not pad)."""
    Bk, Sk = key_mask_p.shape
    qb = jnp.repeat(jnp.arange(Bq), Tq)
    kb = jnp.repeat(jnp.arange(Bk), Sk)
    same = qb[:, None] == kb[None, :]
    kvalid = key_mask_p.reshape(-1)[None, :] > 0.5
    return jnp.where(jnp.logical_and(same, kvalid), 0.0, NEG_INF).astype(jnp.float32)


# ----------------------------------------------------------------------------
# Weight packing (done ONCE at init; lane-aligned 128-wide projection slots)
# ----------------------------------------------------------------------------
def pack_params(cfg, params):
    D, I = cfg.d_model, cfg.intermediate_size
    Dp = _round_up(D, LANE)
    Ip = _round_up(I, LANE)
    d2p = _round_up(cfg.d_model2, LANE)

    def z(r, c):
        return jnp.zeros((r, c), jnp.float32)

    def put(dst, mat, r0, c0):
        return dst.at[r0:r0 + mat.shape[0], c0:c0 + mat.shape[1]].set(mat)

    def pack_qkv(wq, wk, wv, bq, bk, bv):
        w = put(put(put(z(Dp, 3 * Dp), wq, 0, 0), wk, 0, Dp), wv, 0, 2 * Dp)
        b = put(put(put(z(1, 3 * Dp), bq[None, :], 0, 0), bk[None, :], 0, Dp), bv[None, :], 0, 2 * Dp)
        return w, b

    def pack_proj(wo, bo):
        return put(z(Dp, Dp), wo, 0, 0), put(z(1, Dp), bo[None, :], 0, 0)

    def pack_ffn(w1, b1, w2, b2):
        return (put(z(Dp, Ip), w1, 0, 0), put(z(1, Ip), b1, 0, 0),
                put(z(Ip, Dp), w2, 0, 0), put(z(1, Dp), b2, 0, 0))

    def pack_ln(ln):               # padded gamma/beta stay zero -> padded cols stay zero
        return put(z(2, Dp), ln, 0, 0)

    e = dict(wqkv=[], bqkv=[], wo=[], bo=[], ln1=[], w1=[], b1=[], w2=[], b2=[], ln2=[])
    for p in params["enc_layers"]:
        w, b = pack_qkv(p["qkvo_w"][0], p["qkvo_w"][1], p["qkvo_w"][2],
                        p["qkvo_b"][0], p["qkvo_b"][1], p["qkvo_b"][2])
        e["wqkv"].append(w); e["bqkv"].append(b)
        ow, ob = pack_proj(p["qkvo_w"][3], p["qkvo_b"][3])
        e["wo"].append(ow); e["bo"].append(ob)
        e["ln1"].append(pack_ln(p["ln_attn"]))
        f1, fb1, f2, fb2 = pack_ffn(p["w1"], p["b1"], p["w2"], p["b2"])
        e["w1"].append(f1); e["b1"].append(fb1); e["w2"].append(f2); e["b2"].append(fb2)
        e["ln2"].append(pack_ln(p["ln_ffn"]))
    packed = {f"e_{k}": jnp.stack(v) for k, v in e.items()}

    d = dict(swqkv=[], sbqkv=[], swo=[], sbo=[], lns=[], cwq=[], cbq=[], cwkv=[], cbkv=[],
             cwo=[], cbo=[], lnc=[], w1=[], b1=[], w2=[], b2=[], lnf=[])
    for p in params["dec_layers"]:
        w, b = pack_qkv(p["self_qkvo_w"][0], p["self_qkvo_w"][1], p["self_qkvo_w"][2],
                        p["self_qkvo_b"][0], p["self_qkvo_b"][1], p["self_qkvo_b"][2])
        d["swqkv"].append(w); d["sbqkv"].append(b)
        ow, ob = pack_proj(p["self_qkvo_w"][3], p["self_qkvo_b"][3])
        d["swo"].append(ow); d["sbo"].append(ob)
        d["lns"].append(pack_ln(p["ln_self"]))
        d["cwq"].append(put(z(Dp, Dp), p["cross_qkvo_w"][0], 0, 0))
        d["cbq"].append(put(z(1, Dp), p["cross_qkvo_b"][0][None, :], 0, 0))
        ckv = put(put(z(Dp, 2 * Dp), p["cross_qkvo_w"][1], 0, 0), p["cross_qkvo_w"][2], 0, Dp)
        ckvb = put(put(z(1, 2 * Dp), p["cross_qkvo_b"][1][None, :], 0, 0),
                   p["cross_qkvo_b"][2][None, :], 0, Dp)
        d["cwkv"].append(ckv); d["cbkv"].append(ckvb)
        cow, cob = pack_proj(p["cross_qkvo_w"][3], p["cross_qkvo_b"][3])
        d["cwo"].append(cow); d["cbo"].append(cob)
        d["lnc"].append(pack_ln(p["ln_cross"]))
        f1, fb1, f2, fb2 = pack_ffn(p["w1"], p["b1"], p["w2"], p["b2"])
        d["w1"].append(f1); d["b1"].append(fb1); d["w2"].append(f2); d["b2"].append(fb2)
        d["lnf"].append(pack_ln(p["ln_ffn"]))
    packed.update({f"d_{k}": jnp.stack(v) for k, v in d.items()})

    packed["wp"] = put(z(Dp, d2p), params["fc_proj1_w"], 0, 0)
    packed["bp"] = put(z(1, d2p), params["fc_proj1_b"][None, :], 0, 0)
    return packed


# ----------------------------------------------------------------------------
# Parameter construction (deterministic, BERT-like init)
# ----------------------------------------------------------------------------
def init_params(cfg, seed=42):
    keys = iter(jax.random.split(jax.random.PRNGKey(seed), 256))
    D, I = cfg.d_model, cfg.intermediate_size

    def nrm(shape, std=0.02):
        return std * jax.random.normal(next(keys), shape, jnp.float32)

    def ln_pair():
        return jnp.stack([jnp.ones((D,), jnp.float32), jnp.zeros((D,), jnp.float32)])

    def enc_layer():
        return dict(qkvo_w=nrm((4, D, D)), qkvo_b=jnp.zeros((4, D), jnp.float32),
                    ln_attn=ln_pair(),
                    w1=nrm((D, I)), b1=jnp.zeros((1, I), jnp.float32),
                    w2=nrm((I, D)), b2=jnp.zeros((1, D), jnp.float32),
                    ln_ffn=ln_pair())

    def dec_layer():
        return dict(self_qkvo_w=nrm((4, D, D)), self_qkvo_b=jnp.zeros((4, D), jnp.float32),
                    ln_self=ln_pair(),
                    cross_qkvo_w=nrm((4, D, D)), cross_qkvo_b=jnp.zeros((4, D), jnp.float32),
                    ln_cross=ln_pair(),
                    w1=nrm((D, I)), b1=jnp.zeros((1, I), jnp.float32),
                    w2=nrm((I, D)), b2=jnp.zeros((1, D), jnp.float32),
                    ln_ffn=ln_pair())

    enc_word = nrm((cfg.src_voc_size + 2, D)).at[cfg.src_pad].set(0.0)   # padding_idx row
    dec_word = nrm((cfg.tgt_voc_size + 1, D)).at[cfg.tgt_pad].set(0.0)

    return dict(
        enc_word_emb=enc_word,
        enc_pos_emb=nrm((cfg.max_src_len + 1, D)),
        enc_type_emb=nrm((2, D)),
        enc_emb_ln_g=jnp.ones((D,), jnp.float32),
        enc_emb_ln_b=jnp.zeros((D,), jnp.float32),
        dec_word_emb=dec_word,
        dec_pos_emb=nrm((cfg.max_tgt_len + 2, D)),
        dec_type_emb=nrm((2, D)),
        dec_emb_ln_g=jnp.ones((D,), jnp.float32),
        dec_emb_ln_b=jnp.zeros((D,), jnp.float32),
        enc_layers=[enc_layer() for _ in range(cfg.enc_num_layers)],
        dec_layers=[dec_layer() for _ in range(cfg.dec_num_layers)],
        fc_proj1_w=nrm((D, cfg.d_model2)),
        fc_proj1_b=jnp.zeros((cfg.d_model2,), jnp.float32),
    )


# ----------------------------------------------------------------------------
# Forward pass (default path: type=0, use_con=False, use_guide=False)
# ----------------------------------------------------------------------------
def hf_transformer_forward(cfg, params, packed, batch_x, seq_x, batch_y, data_emb, orig_y):
    nhead = cfg.nhead
    end_idx = cfg.end_idx
    D = cfg.d_model
    Dp = _round_up(D, LANE)
    B, S = batch_x.shape
    y = batch_y.astype(jnp.int32)

    # --- prompt construction ------------------------------------------------
    prompt_y = y.at[:, -1].set(y[:, 0] * end_idx + y[:, -1] + end_idx)
    prompt_y = jnp.concatenate(
        [jnp.full((B, 1), cfg.decoder_start_token_id, jnp.int32),
         prompt_y,
         jnp.full((B, 1), cfg.tgt_cls, jnp.int32)], axis=-1)
    T = prompt_y.shape[1]
    Sp = _round_up(S, SUB)
    Tp = _round_up(T, SUB)

    src_mask = (batch_x != cfg.src_pad).astype(jnp.float32)
    tgt_mask = (prompt_y != cfg.tgt_pad).astype(jnp.float32)
    src_mask_p = jnp.pad(src_mask, ((0, 0), (0, Sp - S)))
    tgt_mask_p = jnp.pad(tgt_mask, ((0, 0), (0, Tp - T)))
    _identifier_x = (seq_x[:, :, 0] * end_idx + seq_x[:, :, 1] + end_idx).astype(jnp.int32)  # unused (as in ref)
    emb_x = batch_x  # type == 0 path

    # --- embeddings + padded hidden states ----------------------------------
    enc_e = bert_embeddings(emb_x, params["enc_word_emb"], params["enc_pos_emb"],
                            params["enc_type_emb"], params["enc_emb_ln_g"], params["enc_emb_ln_b"])
    dec_e = bert_embeddings(prompt_y, params["dec_word_emb"], params["dec_pos_emb"],
                            params["dec_type_emb"], params["dec_emb_ln_g"], params["dec_emb_ln_b"])
    enc_h0 = _pad_hidden(enc_e, Sp, Dp)                      # (B*Sp, Dp)
    dec_h0 = _pad_hidden(dec_e, Tp, Dp)                      # (B*Tp, Dp)

    # --- additive attention biases (NOT nhead-tiled; replicated in-kernel) ---
    ebias = _self_attn_bias(src_mask_p, causal=False)        # (B*Sp, B*Sp)
    sbias = _self_attn_bias(tgt_mask_p, causal=True)         # (B*Tp, B*Tp)
    cbias = _cross_attn_bias(B, Tp, src_mask_p)              # (B*Tp, B*Sp)

    # --- ONE fused Pallas launch: encoder + decoder + normalize/fc_proj1 -----
    dec_out, gfeat_p = fused_encdec_forward(
        enc_h0, dec_h0, ebias, sbias, cbias, packed,
        nhead=nhead, d_model=D, n_batch=B, Sp=Sp, Tp=Tp, T=T,
        L_enc=cfg.enc_num_layers, L_dec=cfg.dec_num_layers)

    final_hidden = dec_out.reshape(B, Tp, Dp)[:, :T, :D]     # (B, T, D)
    global_feat = gfeat_p[:, :cfg.d_model2]                  # (B, d_model2)

    # --- tied-embedding logits + loss ----------------------------------------
    dec_emb = params["dec_word_emb"][:-3]
    dec_emb_l1 = dec_emb[:end_idx]                                           # (end_idx, D)
    dec_emb_l2 = dec_emb[end_idx:].reshape(end_idx, end_idx, -1)[y[:, 0]]    # (B, end_idx, D)
    logits1 = jnp.einsum("btd,cd->btc", final_hidden, dec_emb_l1)
    logits2 = jnp.einsum("btd,bcd->btc", final_hidden, dec_emb_l2)
    loss1 = _cross_entropy(logits1[:, 0, :], y[:, 0])
    loss2 = _cross_entropy(logits2[:, 1, :], y[:, 1])
    loss = (loss1 + loss2) / 2.0

    _positive_emb = data_emb[orig_y]   # no_grad in reference; only consumed when use_con=True
    # TODO(synk): torch.randperm negative sampling + info_nce skipped (only used when use_con=True).
    recon_loss = jnp.float32(0.0)      # use_guide=False path
    z = dict(loss=loss, decoder_hidden_state=final_hidden, logits1=logits1, logits2=logits2)
    return z, recon_loss, global_feat


# ----------------------------------------------------------------------------
if __name__ == "__main__":
    cfg = make_config(src_voc_size=50, tgt_voc_size=8, max_src_len=16, max_tgt_len=15,
                      d_model=24, d_model2=96, nhead=4, enc_num_layers=2, dec_num_layers=2,
                      intermediate_size=64)
    params = init_params(cfg, seed=42)
    packed = pack_params(cfg, params)          # packing hoisted out of the forward (done once)

    B, S = 2, 8
    k1, k2, k3, k4, k5 = jax.random.split(jax.random.PRNGKey(0), 5)
    batch_x = jax.random.randint(k1, (B, S), 0, cfg.src_voc_size - 1, dtype=jnp.int32)
    batch_x = batch_x.at[:, -2:].set(cfg.src_voc_size - 1)     # pad tail tokens
    seq_x = jax.random.randint(k2, (B, S, 2), 0, cfg.end_idx, dtype=jnp.int32)
    batch_y = jax.random.randint(k3, (B, 2), 0, cfg.end_idx, dtype=jnp.int32)
    data_emb = jax.random.normal(k4, (32, cfg.d_model2), jnp.float32)
    orig_y = jax.random.randint(k5, (B,), 0, 32, dtype=jnp.int32)

    forward = jax.jit(hf_transformer_forward, static_argnums=(0,))
    z, recon_loss, global_feat = forward(cfg, params, packed, batch_x, seq_x, batch_y,
                                         data_emb, orig_y)
    jax.block_until_ready((z["loss"], z["decoder_hidden_state"], recon_loss, global_feat))
    print("KERNEL_OK")
</pallas_src>

<mosaic_0001>
module attributes {stable_mosaic.version = 11 : i64} {
  func.func @_fused_stack_kernel(%arg0: memref<16x128xf32, #tpu.memory_space<vmem>>, %arg1: memref<16x128xf32, #tpu.memory_space<vmem>>, %arg2: memref<16x16xf32, #tpu.memory_space<vmem>>, %arg3: memref<16x16xf32, #tpu.memory_space<vmem>>, %arg4: memref<16x16xf32, #tpu.memory_space<vmem>>, %arg5: memref<2x128x384xf32, #tpu.memory_space<vmem>>, %arg6: memref<2x1x384xf32, #tpu.memory_space<vmem>>, %arg7: memref<2x128x128xf32, #tpu.memory_space<vmem>>, %arg8: memref<2x1x128xf32, #tpu.memory_space<vmem>>, %arg9: memref<2x2x128xf32, #tpu.memory_space<vmem>>, %arg10: memref<2x128x128xf32, #tpu.memory_space<vmem>>, %arg11: memref<2x1x128xf32, #tpu.memory_space<vmem>>, %arg12: memref<2x128x128xf32, #tpu.memory_space<vmem>>, %arg13: memref<2x1x128xf32, #tpu.memory_space<vmem>>, %arg14: memref<2x2x128xf32, #tpu.memory_space<vmem>>, %arg15: memref<2x128x384xf32, #tpu.memory_space<vmem>>, %arg16: memref<2x1x384xf32, #tpu.memory_space<vmem>>, %arg17: memref<2x128x128xf32, #tpu.memory_space<vmem>>, %arg18: memref<2x1x128xf32, #tpu.memory_space<vmem>>, %arg19: memref<2x2x128xf32, #tpu.memory_space<vmem>>, %arg20: memref<2x128x128xf32, #tpu.memory_space<vmem>>, %arg21: memref<2x1x128xf32, #tpu.memory_space<vmem>>, %arg22: memref<2x128x256xf32, #tpu.memory_space<vmem>>, %arg23: memref<2x1x256xf32, #tpu.memory_space<vmem>>, %arg24: memref<2x128x128xf32, #tpu.memory_space<vmem>>, %arg25: memref<2x1x128xf32, #tpu.memory_space<vmem>>, %arg26: memref<2x2x128xf32, #tpu.memory_space<vmem>>, %arg27: memref<2x128x128xf32, #tpu.memory_space<vmem>>, %arg28: memref<2x1x128xf32, #tpu.memory_space<vmem>>, %arg29: memref<2x128x128xf32, #tpu.memory_space<vmem>>, %arg30: memref<2x1x128xf32, #tpu.memory_space<vmem>>, %arg31: memref<2x2x128xf32, #tpu.memory_space<vmem>>, %arg32: memref<128x128xf32, #tpu.memory_space<vmem>>, %arg33: memref<1x128xf32, #tpu.memory_space<vmem>>, %arg34: memref<16x128xf32, #tpu.memory_space<vmem>>, %arg35: memref<2x128xf32, #tpu.memory_space<vmem>>) attributes {dimension_semantics = [], scalar_prefetch = 0 : i64, scratch_operands = 0 : i64, tpu.core_type = #tpu.core_type<tc>} {
    %0 = tpu.iota {dimensions = array<i32: 0>} : vector<4x128xi32>
    %1 = tpu.iota {dimensions = array<i32: 1>} : vector<4x128xi32>
    %c6_i32 = arith.constant 6 : i32
    %2 = vector.broadcast %c6_i32 : i32 to vector<4x128xi32>
    %3 = arith.muli %0, %2 : vector<4x128xi32>
    %4 = arith.cmpi sge, %1, %3 : vector<4x128xi32>
    %c1_i32 = arith.constant 1 : i32
    %5 = vector.broadcast %c1_i32 : i32 to vector<4x128xi32>
    %6 = arith.addi %0, %5 : vector<4x128xi32>
    %c6_i32_0 = arith.constant 6 : i32
    %7 = vector.broadcast %c6_i32_0 : i32 to vector<4x128xi32>
    %8 = arith.muli %6, %7 : vector<4x128xi32>
    %9 = arith.cmpi slt, %1, %8 : vector<4x128xi32>
    %10 = arith.andi %4, %9 : vector<4x128xi1>
    %11 = arith.extui %10 : vector<4x128xi1> to vector<4x128xi32>
    %12 = arith.sitofp %11 : vector<4x128xi32> to vector<4x128xf32>
    %13 = tpu.iota {dimensions = array<i32: 1>} : vector<1x64xi32>
    %c0_i32 = arith.constant 0 : i32
    %14 = vector.broadcast %c0_i32 : i32 to vector<1x64xi32>
    %15 = arith.cmpi sge, %13, %14 : vector<1x64xi32>
    %c16_i32 = arith.constant 16 : i32
    %16 = vector.broadcast %c16_i32 : i32 to vector<1x64xi32>
    %17 = arith.cmpi slt, %13, %16 : vector<1x64xi32>
    %18 = arith.andi %15, %17 : vector<1x64xi1>
    %c16_i32_1 = arith.constant 16 : i32
    %19 = vector.broadcast %c16_i32_1 : i32 to vector<1x64xi32>
    %20 = arith.cmpi sge, %13, %19 : vector<1x64xi32>
    %c32_i32 = arith.constant 32 : i32
    %21 = vector.broadcast %c32_i32 : i32 to vector<1x64xi32>
    %22 = arith.cmpi slt, %13, %21 : vector<1x64xi32>
    %23 = arith.andi %20, %22 : vector<1x64xi1>
    %c32_i32_2 = arith.constant 32 : i32
    %24 = vector.broadcast %c32_i32_2 : i32 to vector<1x64xi32>
    %25 = arith.cmpi sge, %13, %24 : vector<1x64xi32>
    %c48_i32 = arith.constant 48 : i32
    %26 = vector.broadcast %c48_i32 : i32 to vector<1x64xi32>
    %27 = arith.cmpi slt, %13, %26 : vector<1x64xi32>
    %28 = arith.andi %25, %27 : vector<1x64xi1>
    %c48_i32_3 = arith.constant 48 : i32
    %29 = vector.broadcast %c48_i32_3 : i32 to vector<1x64xi32>
    %30 = arith.cmpi sge, %13, %29 : vector<1x64xi32>
    %c64_i32 = arith.constant 64 : i32
    %31 = vector.broadcast %c64_i32 : i32 to vector<1x64xi32>
    %32 = arith.cmpi slt, %13, %31 : vector<1x64xi32>
    %33 = arith.andi %30, %32 : vector<1x64xi1>
    %34 = tpu.iota {dimensions = array<i32: 1>} : vector<1x64xi32>
    %c0_i32_4 = arith.constant 0 : i32
    %35 = vector.broadcast %c0_i32_4 : i32 to vector<1x64xi32>
    %36 = arith.cmpi sge, %34, %35 : vector<1x64xi32>
    %c16_i32_5 = arith.constant 16 : i32
    %37 = vector.broadcast %c16_i32_5 : i32 to vector<1x64xi32>
    %38 = arith.cmpi slt, %34, %37 : vector<1x64xi32>
    %39 = arith.andi %36, %38 : vector<1x64xi1>
    %c16_i32_6 = arith.constant 16 : i32
    %40 = vector.broadcast %c16_i32_6 : i32 to vector<1x64xi32>
    %41 = arith.cmpi sge, %34, %40 : vector<1x64xi32>
    %c32_i32_7 = arith.constant 32 : i32
    %42 = vector.broadcast %c32_i32_7 : i32 to vector<1x64xi32>
    %43 = arith.cmpi slt, %34, %42 : vector<1x64xi32>
    %44 = arith.andi %41, %43 : vector<1x64xi1>
    %c32_i32_8 = arith.constant 32 : i32
    %45 = vector.broadcast %c32_i32_8 : i32 to vector<1x64xi32>
    %46 = arith.cmpi sge, %34, %45 : vector<1x64xi32>
    %c48_i32_9 = arith.constant 48 : i32
    %47 = vector.broadcast %c48_i32_9 : i32 to vector<1x64xi32>
    %48 = arith.cmpi slt, %34, %47 : vector<1x64xi32>
    %49 = arith.andi %46, %48 : vector<1x64xi1>
    %c48_i32_10 = arith.constant 48 : i32
    %50 = vector.broadcast %c48_i32_10 : i32 to vector<1x64xi32>
    %51 = arith.cmpi sge, %34, %50 : vector<1x64xi32>
    %c64_i32_11 = arith.constant 64 : i32
    %52 = vector.broadcast %c64_i32_11 : i32 to vector<1x64xi32>
    %53 = arith.cmpi slt, %34, %52 : vector<1x64xi32>
    %54 = arith.andi %51, %53 : vector<1x64xi1>
    %c0 = arith.constant 0 : index
    %c0_12 = arith.constant 0 : index
    %55 = vector.load %arg2[%c0, %c0_12] : memref<16x16xf32, #tpu.memory_space<vmem>>, vector<16x16xf32>
    %56 = tpu.concatenate %55, %55, %55, %55 in 1 : vector<16x16xf32>, vector<16x16xf32>, vector<16x16xf32>, vector<16x16xf32> -> vector<16x64xf32>
    %c0_13 = arith.constant 0 : index
    %c0_14 = arith.constant 0 : index
    %57 = vector.load %arg3[%c0_13, %c0_14] : memref<16x16xf32, #tpu.memory_space<vmem>>, vector<16x16xf32>
    %58 = tpu.concatenate %57, %57, %57, %57 in 1 : vector<16x16xf32>, vector<16x16xf32>, vector<16x16xf32>, vector<16x16xf32> -> vector<16x64xf32>
    %c0_15 = arith.constant 0 : index
    %c0_16 = arith.constant 0 : index
    %59 = vector.load %arg4[%c0_15, %c0_16] : memref<16x16xf32, #tpu.memory_space<vmem>>, vector<16x16xf32>
    %60 = tpu.concatenate %59, %59, %59, %59 in 1 : vector<16x16xf32>, vector<16x16xf32>, vector<16x16xf32>, vector<16x16xf32> -> vector<16x64xf32>
    %c0_17 = arith.constant 0 : index
    %c0_18 = arith.constant 0 : index
    %61 = vector.load %arg0[%c0_17, %c0_18] : memref<16x128xf32, #tpu.memory_space<vmem>>, vector<16x128xf32>
    %c0_19 = arith.constant 0 : index
    %c0_20 = arith.constant 0 : index
    %c0_21 = arith.constant 0 : index
    %62 = vector.load %arg5[%c0_19, %c0_20, %c0_21] : memref<2x128x384xf32, #tpu.memory_space<vmem>>, vector<1x128x384xf32>
    %63 = vector.shape_cast %62 : vector<1x128x384xf32> to vector<128x384xf32>
    %cst = arith.constant dense<0.000000e+00> : vector<16x384xf32>
    %64 = tpu.matmul %61, %63, %cst {dimension_numbers = #tpu.dot_dimension_numbers<[1], [0], [0], [1], [0, 0, 1, 1], [], []>} : vector<16x128xf32>, vector<128x384xf32>, vector<16x384xf32> -> vector<16x384xf32>
    %c0_22 = arith.constant 0 : index
    %c0_23 = arith.constant 0 : index
    %c0_24 = arith.constant 0 : index
    %65 = vector.load %arg6[%c0_22, %c0_23, %c0_24] : memref<2x1x384xf32, #tpu.memory_space<vmem>>, vector<1x1x384xf32>
    %66 = vector.shape_cast %65 : vector<1x1x384xf32> to vector<1x384xf32>
    %67 = vector.broadcast %66 : vector<1x384xf32> to vector<16x384xf32>
    %68 = arith.addf %64, %67 : vector<16x384xf32>
    %69 = vector.extract_strided_slice %68 {offsets = [0, 0], sizes = [16, 128], strides = [1, 1]} : vector<16x384xf32> to vector<16x128xf32>
    %70 = vector.extract_strided_slice %68 {offsets = [0, 128], sizes = [16, 128], strides = [1, 1]} : vector<16x384xf32> to vector<16x128xf32>
    %71 = vector.extract_strided_slice %68 {offsets = [0, 256], sizes = [16, 128], strides = [1, 1]} : vector<16x384xf32> to vector<16x128xf32>
    %c0_25 = arith.constant 0 : index
    %c0_26 = arith.constant 0 : index
    %c0_27 = arith.constant 0 : index
    %72 = vector.load %arg7[%c0_25, %c0_26, %c0_27] : memref<2x128x128xf32, #tpu.memory_space<vmem>>, vector<1x128x128xf32>
    %73 = vector.shape_cast %72 : vector<1x128x128xf32> to vector<128x128xf32>
    %c0_28 = arith.constant 0 : index
    %c0_29 = arith.constant 0 : index
    %c0_30 = arith.constant 0 : index
    %74 = vector.load %arg8[%c0_28, %c0_29, %c0_30] : memref<2x1x128xf32, #tpu.memory_space<vmem>>, vector<1x1x128xf32>
    %75 = vector.shape_cast %74 : vector<1x1x128xf32> to vector<1x128xf32>
    %76 = vector.shape_cast %12 : vector<4x128xf32> to vector<4x1x128xf32>
    %77 = vector.shape_cast %70 : vector<16x128xf32> to vector<1x16x128xf32>
    %78 = vector.broadcast %77 : vector<1x16x128xf32> to vector<4x16x128xf32>
    %79 = vector.broadcast %76 : vector<4x1x128xf32> to vector<4x16x128xf32>
    %80 = arith.mulf %78, %79 : vector<4x16x128xf32>
    %81 = vector.shape_cast %80 : vector<4x16x128xf32> to vector<64x128xf32>
    %82 = vector.shape_cast %71 : vector<16x128xf32> to vector<1x16x128xf32>
    %83 = vector.broadcast %82 : vector<1x16x128xf32> to vector<4x16x128xf32>
    %84 = vector.broadcast %76 : vector<4x1x128xf32> to vector<4x16x128xf32>
    %85 = arith.mulf %83, %84 : vector<4x16x128xf32>
    %86 = vector.shape_cast %85 : vector<4x16x128xf32> to vector<64x128xf32>
    %cst_31 = arith.constant dense<0.000000e+00> : vector<16x64xf32>
    %87 = tpu.matmul %69, %81, %cst_31 {dimension_numbers = #tpu.dot_dimension_numbers<[1], [1], [0], [0], [0, 0, 1, 0], [], []>} : vector<16x128xf32>, vector<64x128xf32>, vector<16x64xf32> -> vector<16x64xf32>
    %cst_32 = arith.constant 0.408248305 : f32
    %88 = vector.broadcast %cst_32 : f32 to vector<16x64xf32>
    %89 = arith.mulf %87, %88 : vector<16x64xf32>
    %90 = arith.addf %89, %56 : vector<16x64xf32>
    %cst_33 = arith.constant 0.000000e+00 : f32
    %91 = vector.broadcast %cst_33 : f32 to vector<16x64xf32>
    %cst_34 = arith.constant -1.000000e+30 : f32
    %92 = vector.shape_cast %18 : vector<1x64xi1> to vector<1x64xi1>
    %93 = vector.broadcast %92 : vector<1x64xi1> to vector<16x64xi1>
    %94 = vector.broadcast %cst_34 : f32 to vector<16x64xf32>
    %95 = arith.select %93, %90, %94 : vector<16x64xi1>, vector<16x64xf32>
    %cst_35 = arith.constant dense<0xFF800000> : vector<16xf32>
    %96 = vector.multi_reduction <maximumf>, %95, %cst_35 [1] : vector<16x64xf32> to vector<16xf32>
    %97 = vector.shape_cast %96 : vector<16xf32> to vector<16x1xf32>
    %98 = vector.shape_cast %18 : vector<1x64xi1> to vector<1x64xi1>
    %99 = vector.broadcast %98 : vector<1x64xi1> to vector<16x64xi1>
    %100 = vector.shape_cast %97 : vector<16x1xf32> to vector<16x1xf32>
    %101 = vector.broadcast %100 : vector<16x1xf32> to vector<16x64xf32>
    %102 = arith.select %99, %101, %91 : vector<16x64xi1>, vector<16x64xf32>
    %cst_36 = arith.constant -1.000000e+30 : f32
    %103 = vector.shape_cast %23 : vector<1x64xi1> to vector<1x64xi1>
    %104 = vector.broadcast %103 : vector<1x64xi1> to vector<16x64xi1>
    %105 = vector.broadcast %cst_36 : f32 to vector<16x64xf32>
    %106 = arith.select %104, %90, %105 : vector<16x64xi1>, vector<16x64xf32>
    %cst_37 = arith.constant dense<0xFF800000> : vector<16xf32>
    %107 = vector.multi_reduction <maximumf>, %106, %cst_37 [1] : vector<16x64xf32> to vector<16xf32>
    %108 = vector.shape_cast %107 : vector<16xf32> to vector<16x1xf32>
    %109 = vector.shape_cast %23 : vector<1x64xi1> to vector<1x64xi1>
    %110 = vector.broadcast %109 : vector<1x64xi1> to vector<16x64xi1>
    %111 = vector.shape_cast %108 : vector<16x1xf32> to vector<16x1xf32>
    %112 = vector.broadcast %111 : vector<16x1xf32> to vector<16x64xf32>
    %113 = arith.select %110, %112, %102 : vector<16x64xi1>, vector<16x64xf32>
    %cst_38 = arith.constant -1.000000e+30 : f32
    %114 = vector.shape_cast %28 : vector<1x64xi1> to vector<1x64xi1>
    %115 = vector.broadcast %114 : vector<1x64xi1> to vector<16x64xi1>
    %116 = vector.broadcast %cst_38 : f32 to vector<16x64xf32>
    %117 = arith.select %115, %90, %116 : vector<16x64xi1>, vector<16x64xf32>
    %cst_39 = arith.constant dense<0xFF800000> : vector<16xf32>
    %118 = vector.multi_reduction <maximumf>, %117, %cst_39 [1] : vector<16x64xf32> to vector<16xf32>
    %119 = vector.shape_cast %118 : vector<16xf32> to vector<16x1xf32>
    %120 = vector.shape_cast %28 : vector<1x64xi1> to vector<1x64xi1>
    %121 = vector.broadcast %120 : vector<1x64xi1> to vector<16x64xi1>
    %122 = vector.shape_cast %119 : vector<16x1xf32> to vector<16x1xf32>
    %123 = vector.broadcast %122 : vector<16x1xf32> to vector<16x64xf32>
    %124 = arith.select %121, %123, %113 : vector<16x64xi1>, vector<16x64xf32>
    %cst_40 = arith.constant -1.000000e+30 : f32
    %125 = vector.shape_cast %33 : vector<1x64xi1> to vector<1x64xi1>
    %126 = vector.broadcast %125 : vector<1x64xi1> to vector<16x64xi1>
    %127 = vector.broadcast %cst_40 : f32 to vector<16x64xf32>
    %128 = arith.select %126, %90, %127 : vector<16x64xi1>, vector<16x64xf32>
    %cst_41 = arith.constant dense<0xFF800000> : vector<16xf32>
    %129 = vector.multi_reduction <maximumf>, %128, %cst_41 [1] : vector<16x64xf32> to vector<16xf32>
    %130 = vector.shape_cast %129 : vector<16xf32> to vector<16x1xf32>
    %131 = vector.shape_cast %33 : vector<1x64xi1> to vector<1x64xi1>
    %132 = vector.broadcast %131 : vector<1x64xi1> to vector<16x64xi1>
    %133 = vector.shape_cast %130 : vector<16x1xf32> to vector<16x1xf32>
    %134 = vector.broadcast %133 : vector<16x1xf32> to vector<16x64xf32>
    %135 = arith.select %132, %134, %124 : vector<16x64xi1>, vector<16x64xf32>
    %136 = arith.subf %90, %135 : vector<16x64xf32>
    %137 = math.exp %136 : vector<16x64xf32>
    %cst_42 = arith.constant 0.000000e+00 : f32
    %138 = vector.broadcast %cst_42 : f32 to vector<16x64xf32>
    %cst_43 = arith.constant 0.000000e+00 : f32
    %139 = vector.shape_cast %18 : vector<1x64xi1> to vector<1x64xi1>
    %140 = vector.broadcast %139 : vector<1x64xi1> to vector<16x64xi1>
    %141 = vector.broadcast %cst_43 : f32 to vector<16x64xf32>
    %142 = arith.select %140, %137, %141 : vector<16x64xi1>, vector<16x64xf32>
    %cst_44 = arith.constant dense<0.000000e+00> : vector<16xf32>
    %143 = vector.multi_reduction <add>, %142, %cst_44 [1] : vector<16x64xf32> to vector<16xf32>
    %144 = vector.shape_cast %143 : vector<16xf32> to vector<16x1xf32>
    %cst_45 = arith.constant 1.000000e-30 : f32
    %145 = vector.broadcast %cst_45 : f32 to vector<16x1xf32>
    %146 = arith.maximumf %144, %145 : vector<16x1xf32>
    %147 = tpu.reciprocal %146 {approx = true} : vector<16x1xf32> -> vector<16x1xf32>
    %148 = vector.shape_cast %18 : vector<1x64xi1> to vector<1x64xi1>
    %149 = vector.broadcast %148 : vector<1x64xi1> to vector<16x64xi1>
    %150 = vector.shape_cast %147 : vector<16x1xf32> to vector<16x1xf32>
    %151 = vector.broadcast %150 : vector<16x1xf32> to vector<16x64xf32>
    %152 = arith.select %149, %151, %138 : vector<16x64xi1>, vector<16x64xf32>
    %cst_46 = arith.constant 0.000000e+00 : f32
    %153 = vector.shape_cast %23 : vector<1x64xi1> to vector<1x64xi1>
    %154 = vector.broadcast %153 : vector<1x64xi1> to vector<16x64xi1>
    %155 = vector.broadcast %cst_46 : f32 to vector<16x64xf32>
    %156 = arith.select %154, %137, %155 : vector<16x64xi1>, vector<16x64xf32>
    %cst_47 = arith.constant dense<0.000000e+00> : vector<16xf32>
    %157 = vector.multi_reduction <add>, %156, %cst_47 [1] : vector<16x64xf32> to vector<16xf32>
    %158 = vector.shape_cast %157 : vector<16xf32> to vector<16x1xf32>
    %cst_48 = arith.constant 1.000000e-30 : f32
    %159 = vector.broadcast %cst_48 : f32 to vector<16x1xf32>
    %160 = arith.maximumf %158, %159 : vector<16x1xf32>
    %161 = tpu.reciprocal %160 {approx = true} : vector<16x1xf32> -> vector<16x1xf32>
    %162 = vector.shape_cast %23 : vector<1x64xi1> to vector<1x64xi1>
    %163 = vector.broadcast %162 : vector<1x64xi1> to vector<16x64xi1>
    %164 = vector.shape_cast %161 : vector<16x1xf32> to vector<16x1xf32>
    %165 = vector.broadcast %164 : vector<16x1xf32> to vector<16x64xf32>
    %166 = arith.select %163, %165, %152 : vector<16x64xi1>, vector<16x64xf32>
    %cst_49 = arith.constant 0.000000e+00 : f32
    %167 = vector.shape_cast %28 : vector<1x64xi1> to vector<1x64xi1>
    %168 = vector.broadcast %167 : vector<1x64xi1> to vector<16x64xi1>
    %169 = vector.broadcast %cst_49 : f32 to vector<16x64xf32>
    %170 = arith.select %168, %137, %169 : vector<16x64xi1>, vector<16x64xf32>
    %cst_50 = arith.constant dense<0.000000e+00> : vector<16xf32>
    %171 = vector.multi_reduction <add>, %170, %cst_50 [1] : vector<16x64xf32> to vector<16xf32>
    %172 = vector.shape_cast %171 : vector<16xf32> to vector<16x1xf32>
    %cst_51 = arith.constant 1.000000e-30 : f32
    %173 = vector.broadcast %cst_51 : f32 to vector<16x1xf32>
    %174 = arith.maximumf %172, %173 : vector<16x1xf32>
    %175 = tpu.reciprocal %174 {approx = true} : vector<16x1xf32> -> vector<16x1xf32>
    %176 = vector.shape_cast %28 : vector<1x64xi1> to vector<1x64xi1>
    %177 = vector.broadcast %176 : vector<1x64xi1> to vector<16x64xi1>
    %178 = vector.shape_cast %175 : vector<16x1xf32> to vector<16x1xf32>
    %179 = vector.broadcast %178 : vector<16x1xf32> to vector<16x64xf32>
    %180 = arith.select %177, %179, %166 : vector<16x64xi1>, vector<16x64xf32>
    %cst_52 = arith.constant 0.000000e+00 : f32
    %181 = vector.shape_cast %33 : vector<1x64xi1> to vector<1x64xi1>
    %182 = vector.broadcast %181 : vector<1x64xi1> to vector<16x64xi1>
    %183 = vector.broadcast %cst_52 : f32 to vector<16x64xf32>
    %184 = arith.select %182, %137, %183 : vector<16x64xi1>, vector<16x64xf32>
    %cst_53 = arith.constant dense<0.000000e+00> : vector<16xf32>
    %185 = vector.multi_reduction <add>, %184, %cst_53 [1] : vector<16x64xf32> to vector<16xf32>
    %186 = vector.shape_cast %185 : vector<16xf32> to vector<16x1xf32>
    %cst_54 = arith.constant 1.000000e-30 : f32
    %187 = vector.broadcast %cst_54 : f32 to vector<16x1xf32>
    %188 = arith.maximumf %186, %187 : vector<16x1xf32>
    %189 = tpu.reciprocal %188 {approx = true} : vector<16x1xf32> -> vector<16x1xf32>
    %190 = vector.shape_cast %33 : vector<1x64xi1> to vector<1x64xi1>
    %191 = vector.broadcast %190 : vector<1x64xi1> to vector<16x64xi1>
    %192 = vector.shape_cast %189 : vector<16x1xf32> to vector<16x1xf32>
    %193 = vector.broadcast %192 : vector<16x1xf32> to vector<16x64xf32>
    %194 = arith.select %191, %193, %180 : vector<16x64xi1>, vector<16x64xf32>
    %195 = arith.mulf %137, %194 : vector<16x64xf32>
    %cst_55 = arith.constant dense<0.000000e+00> : vector<16x128xf32>
    %196 = tpu.matmul %195, %86, %cst_55 {dimension_numbers = #tpu.dot_dimension_numbers<[1], [0], [0], [1], [0, 0, 1, 1], [], []>} : vector<16x64xf32>, vector<64x128xf32>, vector<16x128xf32> -> vector<16x128xf32>
    %cst_56 = arith.constant dense<0.000000e+00> : vector<16x128xf32>
    %197 = tpu.matmul %196, %73, %cst_56 {dimension_numbers = #tpu.dot_dimension_numbers<[1], [0], [0], [1], [0, 0, 1, 1], [], []>} : vector<16x128xf32>, vector<128x128xf32>, vector<16x128xf32> -> vector<16x128xf32>
    %198 = vector.broadcast %75 : vector<1x128xf32> to vector<16x128xf32>
    %199 = arith.addf %197, %198 : vector<16x128xf32>
    %c0_57 = arith.constant 0 : index
    %c0_58 = arith.constant 0 : index
    %c0_59 = arith.constant 0 : index
    %200 = vector.load %arg9[%c0_57, %c0_58, %c0_59] : memref<2x2x128xf32, #tpu.memory_space<vmem>>, vector<1x2x128xf32>
    %201 = vector.shape_cast %200 : vector<1x2x128xf32> to vector<2x128xf32>
    %202 = arith.addf %61, %199 : vector<16x128xf32>
    %203 = vector.extract_strided_slice %201 {offsets = [0, 0], sizes = [1, 128], strides = [1, 1]} : vector<2x128xf32> to vector<1x128xf32>
    %204 = vector.extract_strided_slice %201 {offsets = [1, 0], sizes = [1, 128], strides = [1, 1]} : vector<2x128xf32> to vector<1x128xf32>
    %cst_60 = arith.constant dense<0.000000e+00> : vector<16xf32>
    %205 = vector.multi_reduction <add>, %202, %cst_60 [1] : vector<16x128xf32> to vector<16xf32>
    %206 = vector.shape_cast %205 : vector<16xf32> to vector<16x1xf32>
    %cst_61 = arith.constant 0.0416666679 : f32
    %207 = vector.broadcast %cst_61 : f32 to vector<16x1xf32>
    %208 = arith.mulf %206, %207 : vector<16x1xf32>
    %209 = arith.mulf %202, %202 : vector<16x128xf32>
    %cst_62 = arith.constant dense<0.000000e+00> : vector<16xf32>
    %210 = vector.multi_reduction <add>, %209, %cst_62 [1] : vector<16x128xf32> to vector<16xf32>
    %211 = vector.shape_cast %210 : vector<16xf32> to vector<16x1xf32>
    %cst_63 = arith.constant 0.0416666679 : f32
    %212 = vector.broadcast %cst_63 : f32 to vector<16x1xf32>
    %213 = arith.mulf %211, %212 : vector<16x1xf32>
    %214 = arith.mulf %208, %208 : vector<16x1xf32>
    %215 = arith.subf %213, %214 : vector<16x1xf32>
    %cst_64 = arith.constant 0.000000e+00 : f32
    %216 = vector.broadcast %cst_64 : f32 to vector<16x1xf32>
    %217 = arith.maximumf %215, %216 : vector<16x1xf32>
    %218 = vector.broadcast %208 : vector<16x1xf32> to vector<16x128xf32>
    %219 = arith.subf %202, %218 : vector<16x128xf32>
    %cst_65 = arith.constant 9.99999996E-13 : f32
    %220 = vector.broadcast %cst_65 : f32 to vector<16x1xf32>
    %221 = arith.addf %217, %220 : vector<16x1xf32>
    %222 = math.rsqrt %221 : vector<16x1xf32>
    %223 = vector.broadcast %222 : vector<16x1xf32> to vector<16x128xf32>
    %224 = arith.mulf %219, %223 : vector<16x128xf32>
    %225 = vector.broadcast %203 : vector<1x128xf32> to vector<16x128xf32>
    %226 = arith.mulf %224, %225 : vector<16x128xf32>
    %227 = vector.broadcast %204 : vector<1x128xf32> to vector<16x128xf32>
    %228 = arith.addf %226, %227 : vector<16x128xf32>
    %c0_66 = arith.constant 0 : index
    %c0_67 = arith.constant 0 : index
    %c0_68 = arith.constant 0 : index
    %229 = vector.load %arg10[%c0_66, %c0_67, %c0_68] : memref<2x128x128xf32, #tpu.memory_space<vmem>>, vector<1x128x128xf32>
    %230 = vector.shape_cast %229 : vector<1x128x128xf32> to vector<128x128xf32>
    %cst_69 = arith.constant dense<0.000000e+00> : vector<16x128xf32>
    %231 = tpu.matmul %228, %230, %cst_69 {dimension_numbers = #tpu.dot_dimension_numbers<[1], [0], [0], [1], [0, 0, 1, 1], [], []>} : vector<16x128xf32>, vector<128x128xf32>, vector<16x128xf32> -> vector<16x128xf32>
    %c0_70 = arith.constant 0 : index
    %c0_71 = arith.constant 0 : index
    %c0_72 = arith.constant 0 : index
    %232 = vector.load %arg11[%c0_70, %c0_71, %c0_72] : memref<2x1x128xf32, #tpu.memory_space<vmem>>, vector<1x1x128xf32>
    %233 = vector.shape_cast %232 : vector<1x1x128xf32> to vector<1x128xf32>
    %234 = vector.broadcast %233 : vector<1x128xf32> to vector<16x128xf32>
    %235 = arith.addf %231, %234 : vector<16x128xf32>
    %cst_73 = arith.constant 5.000000e-01 : f32
    %236 = vector.broadcast %cst_73 : f32 to vector<16x128xf32>
    %237 = arith.mulf %236, %235 : vector<16x128xf32>
    %cst_74 = arith.constant 4.471500e-02 : f32
    %238 = vector.broadcast %cst_74 : f32 to vector<16x128xf32>
    %239 = arith.mulf %238, %235 : vector<16x128xf32>
    %240 = arith.mulf %239, %235 : vector<16x128xf32>
    %241 = arith.mulf %240, %235 : vector<16x128xf32>
    %242 = arith.addf %235, %241 : vector<16x128xf32>
    %cst_75 = arith.constant 0.797884583 : f32
    %243 = vector.broadcast %cst_75 : f32 to vector<16x128xf32>
    %244 = arith.mulf %243, %242 : vector<16x128xf32>
    %245 = math.tanh %244 : vector<16x128xf32>
    %cst_76 = arith.constant 1.000000e+00 : f32
    %246 = vector.broadcast %cst_76 : f32 to vector<16x128xf32>
    %247 = arith.addf %246, %245 : vector<16x128xf32>
    %248 = arith.mulf %237, %247 : vector<16x128xf32>
    %c0_77 = arith.constant 0 : index
    %c0_78 = arith.constant 0 : index
    %c0_79 = arith.constant 0 : index
    %249 = vector.load %arg12[%c0_77, %c0_78, %c0_79] : memref<2x128x128xf32, #tpu.memory_space<vmem>>, vector<1x128x128xf32>
    %250 = vector.shape_cast %249 : vector<1x128x128xf32> to vector<128x128xf32>
    %cst_80 = arith.constant dense<0.000000e+00> : vector<16x128xf32>
    %251 = tpu.matmul %248, %250, %cst_80 {dimension_numbers = #tpu.dot_dimension_numbers<[1], [0], [0], [1], [0, 0, 1, 1], [], []>} : vector<16x128xf32>, vector<128x128xf32>, vector<16x128xf32> -> vector<16x128xf32>
    %c0_81 = arith.constant 0 : index
    %c0_82 = arith.constant 0 : index
    %c0_83 = arith.constant 0 : index
    %252 = vector.load %arg13[%c0_81, %c0_82, %c0_83] : memref<2x1x128xf32, #tpu.memory_space<vmem>>, vector<1x1x128xf32>
    %253 = vector.shape_cast %252 : vector<1x1x128xf32> to vector<1x128xf32>
    %254 = vector.broadcast %253 : vector<1x128xf32> to vector<16x128xf32>
    %255 = arith.addf %251, %254 : vector<16x128xf32>
    %c0_84 = arith.constant 0 : index
    %c0_85 = arith.constant 0 : index
    %c0_86 = arith.constant 0 : index
    %256 = vector.load %arg14[%c0_84, %c0_85, %c0_86] : memref<2x2x128xf32, #tpu.memory_space<vmem>>, vector<1x2x128xf32>
    %257 = vector.shape_cast %256 : vector<1x2x128xf32> to vector<2x128xf32>
    %258 = arith.addf %228, %255 : vector<16x128xf32>
    %259 = vector.extract_strided_slice %257 {offsets = [0, 0], sizes = [1, 128], strides = [1, 1]} : vector<2x128xf32> to vector<1x128xf32>
    %260 = vector.extract_strided_slice %257 {offsets = [1, 0], sizes = [1, 128], strides = [1, 1]} : vector<2x128xf32> to vector<1x128xf32>
    %cst_87 = arith.constant dense<0.000000e+00> : vector<16xf32>
    %261 = vector.multi_reduction <add>, %258, %cst_87 [1] : vector<16x128xf32> to vector<16xf32>
    %262 = vector.shape_cast %261 : vector<16xf32> to vector<16x1xf32>
    %cst_88 = arith.constant 0.0416666679 : f32
    %263 = vector.broadcast %cst_88 : f32 to vector<16x1xf32>
    %264 = arith.mulf %262, %263 : vector<16x1xf32>
    %265 = arith.mulf %258, %258 : vector<16x128xf32>
    %cst_89 = arith.constant dense<0.000000e+00> : vector<16xf32>
    %266 = vector.multi_reduction <add>, %265, %cst_89 [1] : vector<16x128xf32> to vector<16xf32>
    %267 = vector.shape_cast %266 : vector<16xf32> to vector<16x1xf32>
    %cst_90 = arith.constant 0.0416666679 : f32
    %268 = vector.broadcast %cst_90 : f32 to vector<16x1xf32>
    %269 = arith.mulf %267, %268 : vector<16x1xf32>
    %270 = arith.mulf %264, %264 : vector<16x1xf32>
    %271 = arith.subf %269, %270 : vector<16x1xf32>
    %cst_91 = arith.constant 0.000000e+00 : f32
    %272 = vector.broadcast %cst_91 : f32 to vector<16x1xf32>
    %273 = arith.maximumf %271, %272 : vector<16x1xf32>
    %274 = vector.broadcast %264 : vector<16x1xf32> to vector<16x128xf32>
    %275 = arith.subf %258, %274 : vector<16x128xf32>
    %cst_92 = arith.constant 9.99999996E-13 : f32
    %276 = vector.broadcast %cst_92 : f32 to vector<16x1xf32>
    %277 = arith.addf %273, %276 : vector<16x1xf32>
    %278 = math.rsqrt %277 : vector<16x1xf32>
    %279 = vector.broadcast %278 : vector<16x1xf32> to vector<16x128xf32>
    %280 = arith.mulf %275, %279 : vector<16x128xf32>
    %281 = vector.broadcast %259 : vector<1x128xf32> to vector<16x128xf32>
    %282 = arith.mulf %280, %281 : vector<16x128xf32>
    %283 = vector.broadcast %260 : vector<1x128xf32> to vector<16x128xf32>
    %284 = arith.addf %282, %283 : vector<16x128xf32>
    %c1 = arith.constant 1 : index
    %c0_93 = arith.constant 0 : index
    %c0_94 = arith.constant 0 : index
    %285 = vector.load %arg5[%c1, %c0_93, %c0_94] : memref<2x128x384xf32, #tpu.memory_space<vmem>>, vector<1x128x384xf32>
    %286 = vector.shape_cast %285 : vector<1x128x384xf32> to vector<128x384xf32>
    %cst_95 = arith.constant dense<0.000000e+00> : vector<16x384xf32>
    %287 = tpu.matmul %284, %286, %cst_95 {dimension_numbers = #tpu.dot_dimension_numbers<[1], [0], [0], [1], [0, 0, 1, 1], [], []>} : vector<16x128xf32>, vector<128x384xf32>, vector<16x384xf32> -> vector<16x384xf32>
    %c1_96 = arith.constant 1 : index
    %c0_97 = arith.constant 0 : index
    %c0_98 = arith.constant 0 : index
    %288 = vector.load %arg6[%c1_96, %c0_97, %c0_98] : memref<2x1x384xf32, #tpu.memory_space<vmem>>, vector<1x1x384xf32>
    %289 = vector.shape_cast %288 : vector<1x1x384xf32> to vector<1x384xf32>
    %290 = vector.broadcast %289 : vector<1x384xf32> to vector<16x384xf32>
    %291 = arith.addf %287, %290 : vector<16x384xf32>
    %292 = vector.extract_strided_slice %291 {offsets = [0, 0], sizes = [16, 128], strides = [1, 1]} : vector<16x384xf32> to vector<16x128xf32>
    %293 = vector.extract_strided_slice %291 {offsets = [0, 128], sizes = [16, 128], strides = [1, 1]} : vector<16x384xf32> to vector<16x128xf32>
    %294 = vector.extract_strided_slice %291 {offsets = [0, 256], sizes = [16, 128], strides = [1, 1]} : vector<16x384xf32> to vector<16x128xf32>
    %c1_99 = arith.constant 1 : index
    %c0_100 = arith.constant 0 : index
    %c0_101 = arith.constant 0 : index
    %295 = vector.load %arg7[%c1_99, %c0_100, %c0_101] : memref<2x128x128xf32, #tpu.memory_space<vmem>>, vector<1x128x128xf32>
    %296 = vector.shape_cast %295 : vector<1x128x128xf32> to vector<128x128xf32>
    %c1_102 = arith.constant 1 : index
    %c0_103 = arith.constant 0 : index
    %c0_104 = arith.constant 0 : index
    %297 = vector.load %arg8[%c1_102, %c0_103, %c0_104] : memref<2x1x128xf32, #tpu.memory_space<vmem>>, vector<1x1x128xf32>
    %298 = vector.shape_cast %297 : vector<1x1x128xf32> to vector<1x128xf32>
    %299 = vector.shape_cast %12 : vector<4x128xf32> to vector<4x1x128xf32>
    %300 = vector.shape_cast %293 : vector<16x128xf32> to vector<1x16x128xf32>
    %301 = vector.broadcast %300 : vector<1x16x128xf32> to vector<4x16x128xf32>
    %302 = vector.broadcast %299 : vector<4x1x128xf32> to vector<4x16x128xf32>
    %303 = arith.mulf %301, %302 : vector<4x16x128xf32>
    %304 = vector.shape_cast %303 : vector<4x16x128xf32> to vector<64x128xf32>
    %305 = vector.shape_cast %294 : vector<16x128xf32> to vector<1x16x128xf32>
    %306 = vector.broadcast %305 : vector<1x16x128xf32> to vector<4x16x128xf32>
    %307 = vector.broadcast %299 : vector<4x1x128xf32> to vector<4x16x128xf32>
    %308 = arith.mulf %306, %307 : vector<4x16x128xf32>
    %309 = vector.shape_cast %308 : vector<4x16x128xf32> to vector<64x128xf32>
    %cst_105 = arith.constant dense<0.000000e+00> : vector<16x64xf32>
    %310 = tpu.matmul %292, %304, %cst_105 {dimension_numbers = #tpu.dot_dimension_numbers<[1], [1], [0], [0], [0, 0, 1, 0], [], []>} : vector<16x128xf32>, vector<64x128xf32>, vector<16x64xf32> -> vector<16x64xf32>
    %cst_106 = arith.constant 0.408248305 : f32
    %311 = vector.broadcast %cst_106 : f32 to vector<16x64xf32>
    %312 = arith.mulf %310, %311 : vector<16x64xf32>
    %313 = arith.addf %312, %56 : vector<16x64xf32>
    %cst_107 = arith.constant 0.000000e+00 : f32
    %314 = vector.broadcast %cst_107 : f32 to vector<16x64xf32>
    %cst_108 = arith.constant -1.000000e+30 : f32
    %315 = vector.shape_cast %18 : vector<1x64xi1> to vector<1x64xi1>
    %316 = vector.broadcast %315 : vector<1x64xi1> to vector<16x64xi1>
    %317 = vector.broadcast %cst_108 : f32 to vector<16x64xf32>
    %318 = arith.select %316, %313, %317 : vector<16x64xi1>, vector<16x64xf32>
    %cst_109 = arith.constant dense<0xFF800000> : vector<16xf32>
    %319 = vector.multi_reduction <maximumf>, %318, %cst_109 [1] : vector<16x64xf32> to vector<16xf32>
    %320 = vector.shape_cast %319 : vector<16xf32> to vector<16x1xf32>
    %321 = vector.shape_cast %18 : vector<1x64xi1> to vector<1x64xi1>
    %322 = vector.broadcast %321 : vector<1x64xi1> to vector<16x64xi1>
    %323 = vector.shape_cast %320 : vector<16x1xf32> to vector<16x1xf32>
    %324 = vector.broadcast %323 : vector<16x1xf32> to vector<16x64xf32>
    %325 = arith.select %322, %324, %314 : vector<16x64xi1>, vector<16x64xf32>
    %cst_110 = arith.constant -1.000000e+30 : f32
    %326 = vector.shape_cast %23 : vector<1x64xi1> to vector<1x64xi1>
    %327 = vector.broadcast %326 : vector<1x64xi1> to vector<16x64xi1>
    %328 = vector.broadcast %cst_110 : f32 to vector<16x64xf32>
    %329 = arith.select %327, %313, %328 : vector<16x64xi1>, vector<16x64xf32>
    %cst_111 = arith.constant dense<0xFF800000> : vector<16xf32>
    %330 = vector.multi_reduction <maximumf>, %329, %cst_111 [1] : vector<16x64xf32> to vector<16xf32>
    %331 = vector.shape_cast %330 : vector<16xf32> to vector<16x1xf32>
    %332 = vector.shape_cast %23 : vector<1x64xi1> to vector<1x64xi1>
    %333 = vector.broadcast %332 : vector<1x64xi1> to vector<16x64xi1>
    %334 = vector.shape_cast %331 : vector<16x1xf32> to vector<16x1xf32>
    %335 = vector.broadcast %334 : vector<16x1xf32> to vector<16x64xf32>
    %336 = arith.select %333, %335, %325 : vector<16x64xi1>, vector<16x64xf32>
    %cst_112 = arith.constant -1.000000e+30 : f32
    %337 = vector.shape_cast %28 : vector<1x64xi1> to vector<1x64xi1>
    %338 = vector.broadcast %337 : vector<1x64xi1> to vector<16x64xi1>
    %339 = vector.broadcast %cst_112 : f32 to vector<16x64xf32>
    %340 = arith.select %338, %313, %339 : vector<16x64xi1>, vector<16x64xf32>
    %cst_113 = arith.constant dense<0xFF800000> : vector<16xf32>
    %341 = vector.multi_reduction <maximumf>, %340, %cst_113 [1] : vector<16x64xf32> to vector<16xf32>
    %342 = vector.shape_cast %341 : vector<16xf32> to vector<16x1xf32>
    %343 = vector.shape_cast %28 : vector<1x64xi1> to vector<1x64xi1>
    %344 = vector.broadcast %343 : vector<1x64xi1> to vector<16x64xi1>
    %345 = vector.shape_cast %342 : vector<16x1xf32> to vector<16x1xf32>
    %346 = vector.broadcast %345 : vector<16x1xf32> to vector<16x64xf32>
    %347 = arith.select %344, %346, %336 : vector<16x64xi1>, vector<16x64xf32>
    %cst_114 = arith.constant -1.000000e+30 : f32
    %348 = vector.shape_cast %33 : vector<1x64xi1> to vector<1x64xi1>
    %349 = vector.broadcast %348 : vector<1x64xi1> to vector<16x64xi1>
    %350 = vector.broadcast %cst_114 : f32 to vector<16x64xf32>
    %351 = arith.select %349, %313, %350 : vector<16x64xi1>, vector<16x64xf32>
    %cst_115 = arith.constant dense<0xFF800000> : vector<16xf32>
    %352 = vector.multi_reduction <maximumf>, %351, %cst_115 [1] : vector<16x64xf32> to vector<16xf32>
    %353 = vector.shape_cast %352 : vector<16xf32> to vector<16x1xf32>
    %354 = vector.shape_cast %33 : vector<1x64xi1> to vector<1x64xi1>
    %355 = vector.broadcast %354 : vector<1x64xi1> to vector<16x64xi1>
    %356 = vector.shape_cast %353 : vector<16x1xf32> to vector<16x1xf32>
    %357 = vector.broadcast %356 : vector<16x1xf32> to vector<16x64xf32>
    %358 = arith.select %355, %357, %347 : vector<16x64xi1>, vector<16x64xf32>
    %359 = arith.subf %313, %358 : vector<16x64xf32>
    %360 = math.exp %359 : vector<16x64xf32>
    %cst_116 = arith.constant 0.000000e+00 : f32
    %361 = vector.broadcast %cst_116 : f32 to vector<16x64xf32>
    %cst_117 = arith.constant 0.000000e+00 : f32
    %362 = vector.shape_cast %18 : vector<1x64xi1> to vector<1x64xi1>
    %363 = vector.broadcast %362 : vector<1x64xi1> to vector<16x64xi1>
    %364 = vector.broadcast %cst_117 : f32 to vector<16x64xf32>
    %365 = arith.select %363, %360, %364 : vector<16x64xi1>, vector<16x64xf32>
    %cst_118 = arith.constant dense<0.000000e+00> : vector<16xf32>
    %366 = vector.multi_reduction <add>, %365, %cst_118 [1] : vector<16x64xf32> to vector<16xf32>
    %367 = vector.shape_cast %366 : vector<16xf32> to vector<16x1xf32>
    %cst_119 = arith.constant 1.000000e-30 : f32
    %368 = vector.broadcast %cst_119 : f32 to vector<16x1xf32>
    %369 = arith.maximumf %367, %368 : vector<16x1xf32>
    %370 = tpu.reciprocal %369 {approx = true} : vector<16x1xf32> -> vector<16x1xf32>
    %371 = vector.shape_cast %18 : vector<1x64xi1> to vector<1x64xi1>
    %372 = vector.broadcast %371 : vector<1x64xi1> to vector<16x64xi1>
    %373 = vector.shape_cast %370 : vector<16x1xf32> to vector<16x1xf32>
    %374 = vector.broadcast %373 : vector<16x1xf32> to vector<16x64xf32>
    %375 = arith.select %372, %374, %361 : vector<16x64xi1>, vector<16x64xf32>
    %cst_120 = arith.constant 0.000000e+00 : f32
    %376 = vector.shape_cast %23 : vector<1x64xi1> to vector<1x64xi1>
    %377 = vector.broadcast %376 : vector<1x64xi1> to vector<16x64xi1>
    %378 = vector.broadcast %cst_120 : f32 to vector<16x64xf32>
    %379 = arith.select %377, %360, %378 : vector<16x64xi1>, vector<16x64xf32>
    %cst_121 = arith.constant dense<0.000000e+00> : vector<16xf32>
    %380 = vector.multi_reduction <add>, %379, %cst_121 [1] : vector<16x64xf32> to vector<16xf32>
    %381 = vector.shape_cast %380 : vector<16xf32> to vector<16x1xf32>
    %cst_122 = arith.constant 1.000000e-30 : f32
    %382 = vector.broadcast %cst_122 : f32 to vector<16x1xf32>
    %383 = arith.maximumf %381, %382 : vector<16x1xf32>
    %384 = tpu.reciprocal %383 {approx = true} : vector<16x1xf32> -> vector<16x1xf32>
    %385 = vector.shape_cast %23 : vector<1x64xi1> to vector<1x64xi1>
    %386 = vector.broadcast %385 : vector<1x64xi1> to vector<16x64xi1>
    %387 = vector.shape_cast %384 : vector<16x1xf32> to vector<16x1xf32>
    %388 = vector.broadcast %387 : vector<16x1xf32> to vector<16x64xf32>
    %389 = arith.select %386, %388, %375 : vector<16x64xi1>, vector<16x64xf32>
    %cst_123 = arith.constant 0.000000e+00 : f32
    %390 = vector.shape_cast %28 : vector<1x64xi1> to vector<1x64xi1>
    %391 = vector.broadcast %390 : vector<1x64xi1> to vector<16x64xi1>
    %392 = vector.broadcast %cst_123 : f32 to vector<16x64xf32>
    %393 = arith.select %391, %360, %392 : vector<16x64xi1>, vector<16x64xf32>
    %cst_124 = arith.constant dense<0.000000e+00> : vector<16xf32>
    %394 = vector.multi_reduction <add>, %393, %cst_124 [1] : vector<16x64xf32> to vector<16xf32>
    %395 = vector.shape_cast %394 : vector<16xf32> to vector<16x1xf32>
    %cst_125 = arith.constant 1.000000e-30 : f32
    %396 = vector.broadcast %cst_125 : f32 to vector<16x1xf32>
    %397 = arith.maximumf %395, %396 : vector<16x1xf32>
    %398 = tpu.reciprocal %397 {approx = true} : vector<16x1xf32> -> vector<16x1xf32>
    %399 = vector.shape_cast %28 : vector<1x64xi1> to vector<1x64xi1>
    %400 = vector.broadcast %399 : vector<1x64xi1> to vector<16x64xi1>
    %401 = vector.shape_cast %398 : vector<16x1xf32> to vector<16x1xf32>
    %402 = vector.broadcast %401 : vector<16x1xf32> to vector<16x64xf32>
    %403 = arith.select %400, %402, %389 : vector<16x64xi1>, vector<16x64xf32>
    %cst_126 = arith.constant 0.000000e+00 : f32
    %404 = vector.shape_cast %33 : vector<1x64xi1> to vector<1x64xi1>
    %405 = vector.broadcast %404 : vector<1x64xi1> to vector<16x64xi1>
    %406 = vector.broadcast %cst_126 : f32 to vector<16x64xf32>
    %407 = arith.select %405, %360, %406 : vector<16x64xi1>, vector<16x64xf32>
    %cst_127 = arith.constant dense<0.000000e+00> : vector<16xf32>
    %408 = vector.multi_reduction <add>, %407, %cst_127 [1] : vector<16x64xf32> to vector<16xf32>
    %409 = vector.shape_cast %408 : vector<16xf32> to vector<16x1xf32>
    %cst_128 = arith.constant 1.000000e-30 : f32
    %410 = vector.broadcast %cst_128 : f32 to vector<16x1xf32>
    %411 = arith.maximumf %409, %410 : vector<16x1xf32>
    %412 = tpu.reciprocal %411 {approx = true} : vector<16x1xf32> -> vector<16x1xf32>
    %413 = vector.shape_cast %33 : vector<1x64xi1> to vector<1x64xi1>
    %414 = vector.broadcast %413 : vector<1x64xi1> to vector<16x64xi1>
    %415 = vector.shape_cast %412 : vector<16x1xf32> to vector<16x1xf32>
    %416 = vector.broadcast %415 : vector<16x1xf32> to vector<16x64xf32>
    %417 = arith.select %414, %416, %403 : vector<16x64xi1>, vector<16x64xf32>
    %418 = arith.mulf %360, %417 : vector<16x64xf32>
    %cst_129 = arith.constant dense<0.000000e+00> : vector<16x128xf32>
    %419 = tpu.matmul %418, %309, %cst_129 {dimension_numbers = #tpu.dot_dimension_numbers<[1], [0], [0], [1], [0, 0, 1, 1], [], []>} : vector<16x64xf32>, vector<64x128xf32>, vector<16x128xf32> -> vector<16x128xf32>
    %cst_130 = arith.constant dense<0.000000e+00> : vector<16x128xf32>
    %420 = tpu.matmul %419, %296, %cst_130 {dimension_numbers = #tpu.dot_dimension_numbers<[1], [0], [0], [1], [0, 0, 1, 1], [], []>} : vector<16x128xf32>, vector<128x128xf32>, vector<16x128xf32> -> vector<16x128xf32>
    %421 = vector.broadcast %298 : vector<1x128xf32> to vector<16x128xf32>
    %422 = arith.addf %420, %421 : vector<16x128xf32>
    %c1_131 = arith.constant 1 : index
    %c0_132 = arith.constant 0 : index
    %c0_133 = arith.constant 0 : index
    %423 = vector.load %arg9[%c1_131, %c0_132, %c0_133] : memref<2x2x128xf32, #tpu.memory_space<vmem>>, vector<1x2x128xf32>
    %424 = vector.shape_cast %423 : vector<1x2x128xf32> to vector<2x128xf32>
    %425 = arith.addf %284, %422 : vector<16x128xf32>
    %426 = vector.extract_strided_slice %424 {offsets = [0, 0], sizes = [1, 128], strides = [1, 1]} : vector<2x128xf32> to vector<1x128xf32>
    %427 = vector.extract_strided_slice %424 {offsets = [1, 0], sizes = [1, 128], strides = [1, 1]} : vector<2x128xf32> to vector<1x128xf32>
    %cst_134 = arith.constant dense<0.000000e+00> : vector<16xf32>
    %428 = vector.multi_reduction <add>, %425, %cst_134 [1] : vector<16x128xf32> to vector<16xf32>
    %429 = vector.shape_cast %428 : vector<16xf32> to vector<16x1xf32>
    %cst_135 = arith.constant 0.0416666679 : f32
    %430 = vector.broadcast %cst_135 : f32 to vector<16x1xf32>
    %431 = arith.mulf %429, %430 : vector<16x1xf32>
    %432 = arith.mulf %425, %425 : vector<16x128xf32>
    %cst_136 = arith.constant dense<0.000000e+00> : vector<16xf32>
    %433 = vector.multi_reduction <add>, %432, %cst_136 [1] : vector<16x128xf32> to vector<16xf32>
    %434 = vector.shape_cast %433 : vector<16xf32> to vector<16x1xf32>
    %cst_137 = arith.constant 0.0416666679 : f32
    %435 = vector.broadcast %cst_137 : f32 to vector<16x1xf32>
    %436 = arith.mulf %434, %435 : vector<16x1xf32>
    %437 = arith.mulf %431, %431 : vector<16x1xf32>
    %438 = arith.subf %436, %437 : vector<16x1xf32>
    %cst_138 = arith.constant 0.000000e+00 : f32
    %439 = vector.broadcast %cst_138 : f32 to vector<16x1xf32>
    %440 = arith.maximumf %438, %439 : vector<16x1xf32>
    %441 = vector.broadcast %431 : vector<16x1xf32> to vector<16x128xf32>
    %442 = arith.subf %425, %441 : vector<16x128xf32>
    %cst_139 = arith.constant 9.99999996E-13 : f32
    %443 = vector.broadcast %cst_139 : f32 to vector<16x1xf32>
    %444 = arith.addf %440, %443 : vector<16x1xf32>
    %445 = math.rsqrt %444 : vector<16x1xf32>
    %446 = vector.broadcast %445 : vector<16x1xf32> to vector<16x128xf32>
    %447 = arith.mulf %442, %446 : vector<16x128xf32>
    %448 = vector.broadcast %426 : vector<1x128xf32> to vector<16x128xf32>
    %449 = arith.mulf %447, %448 : vector<16x128xf32>
    %450 = vector.broadcast %427 : vector<1x128xf32> to vector<16x128xf32>
    %451 = arith.addf %449, %450 : vector<16x128xf32>
    %c1_140 = arith.constant 1 : index
    %c0_141 = arith.constant 0 : index
    %c0_142 = arith.constant 0 : index
    %452 = vector.load %arg10[%c1_140, %c0_141, %c0_142] : memref<2x128x128xf32, #tpu.memory_space<vmem>>, vector<1x128x128xf32>
    %453 = vector.shape_cast %452 : vector<1x128x128xf32> to vector<128x128xf32>
    %cst_143 = arith.constant dense<0.000000e+00> : vector<16x128xf32>
    %454 = tpu.matmul %451, %453, %cst_143 {dimension_numbers = #tpu.dot_dimension_numbers<[1], [0], [0], [1], [0, 0, 1, 1], [], []>} : vector<16x128xf32>, vector<128x128xf32>, vector<16x128xf32> -> vector<16x128xf32>
    %c1_144 = arith.constant 1 : index
    %c0_145 = arith.constant 0 : index
    %c0_146 = arith.constant 0 : index
    %455 = vector.load %arg11[%c1_144, %c0_145, %c0_146] : memref<2x1x128xf32, #tpu.memory_space<vmem>>, vector<1x1x128xf32>
    %456 = vector.shape_cast %455 : vector<1x1x128xf32> to vector<1x128xf32>
    %457 = vector.broadcast %456 : vector<1x128xf32> to vector<16x128xf32>
    %458 = arith.addf %454, %457 : vector<16x128xf32>
    %cst_147 = arith.constant 5.000000e-01 : f32
    %459 = vector.broadcast %cst_147 : f32 to vector<16x128xf32>
    %460 = arith.mulf %459, %458 : vector<16x128xf32>
    %cst_148 = arith.constant 4.471500e-02 : f32
    %461 = vector.broadcast %cst_148 : f32 to vector<16x128xf32>
    %462 = arith.mulf %461, %458 : vector<16x128xf32>
    %463 = arith.mulf %462, %458 : vector<16x128xf32>
    %464 = arith.mulf %463, %458 : vector<16x128xf32>
    %465 = arith.addf %458, %464 : vector<16x128xf32>
    %cst_149 = arith.constant 0.797884583 : f32
    %466 = vector.broadcast %cst_149 : f32 to vector<16x128xf32>
    %467 = arith.mulf %466, %465 : vector<16x128xf32>
    %468 = math.tanh %467 : vector<16x128xf32>
    %cst_150 = arith.constant 1.000000e+00 : f32
    %469 = vector.broadcast %cst_150 : f32 to vector<16x128xf32>
    %470 = arith.addf %469, %468 : vector<16x128xf32>
    %471 = arith.mulf %460, %470 : vector<16x128xf32>
    %c1_151 = arith.constant 1 : index
    %c0_152 = arith.constant 0 : index
    %c0_153 = arith.constant 0 : index
    %472 = vector.load %arg12[%c1_151, %c0_152, %c0_153] : memref<2x128x128xf32, #tpu.memory_space<vmem>>, vector<1x128x128xf32>
    %473 = vector.shape_cast %472 : vector<1x128x128xf32> to vector<128x128xf32>
    %cst_154 = arith.constant dense<0.000000e+00> : vector<16x128xf32>
    %474 = tpu.matmul %471, %473, %cst_154 {dimension_numbers = #tpu.dot_dimension_numbers<[1], [0], [0], [1], [0, 0, 1, 1], [], []>} : vector<16x128xf32>, vector<128x128xf32>, vector<16x128xf32> -> vector<16x128xf32>
    %c1_155 = arith.constant 1 : index
    %c0_156 = arith.constant 0 : index
    %c0_157 = arith.constant 0 : index
    %475 = vector.load %arg13[%c1_155, %c0_156, %c0_157] : memref<2x1x128xf32, #tpu.memory_space<vmem>>, vector<1x1x128xf32>
    %476 = vector.shape_cast %475 : vector<1x1x128xf32> to vector<1x128xf32>
    %477 = vector.broadcast %476 : vector<1x128xf32> to vector<16x128xf32>
    %478 = arith.addf %474, %477 : vector<16x128xf32>
    %c1_158 = arith.constant 1 : index
    %c0_159 = arith.constant 0 : index
    %c0_160 = arith.constant 0 : index
    %479 = vector.load %arg14[%c1_158, %c0_159, %c0_160] : memref<2x2x128xf32, #tpu.memory_space<vmem>>, vector<1x2x128xf32>
    %480 = vector.shape_cast %479 : vector<1x2x128xf32> to vector<2x128xf32>
    %481 = arith.addf %451, %478 : vector<16x128xf32>
    %482 = vector.extract_strided_slice %480 {offsets = [0, 0], sizes = [1, 128], strides = [1, 1]} : vector<2x128xf32> to vector<1x128xf32>
    %483 = vector.extract_strided_slice %480 {offsets = [1, 0], sizes = [1, 128], strides = [1, 1]} : vector<2x128xf32> to vector<1x128xf32>
    %cst_161 = arith.constant dense<0.000000e+00> : vector<16xf32>
    %484 = vector.multi_reduction <add>, %481, %cst_161 [1] : vector<16x128xf32> to vector<16xf32>
    %485 = vector.shape_cast %484 : vector<16xf32> to vector<16x1xf32>
    %cst_162 = arith.constant 0.0416666679 : f32
    %486 = vector.broadcast %cst_162 : f32 to vector<16x1xf32>
    %487 = arith.mulf %485, %486 : vector<16x1xf32>
    %488 = arith.mulf %481, %481 : vector<16x128xf32>
    %cst_163 = arith.constant dense<0.000000e+00> : vector<16xf32>
    %489 = vector.multi_reduction <add>, %488, %cst_163 [1] : vector<16x128xf32> to vector<16xf32>
    %490 = vector.shape_cast %489 : vector<16xf32> to vector<16x1xf32>
    %cst_164 = arith.constant 0.0416666679 : f32
    %491 = vector.broadcast %cst_164 : f32 to vector<16x1xf32>
    %492 = arith.mulf %490, %491 : vector<16x1xf32>
    %493 = arith.mulf %487, %487 : vector<16x1xf32>
    %494 = arith.subf %492, %493 : vector<16x1xf32>
    %cst_165 = arith.constant 0.000000e+00 : f32
    %495 = vector.broadcast %cst_165 : f32 to vector<16x1xf32>
    %496 = arith.maximumf %494, %495 : vector<16x1xf32>
    %497 = vector.broadcast %487 : vector<16x1xf32> to vector<16x128xf32>
    %498 = arith.subf %481, %497 : vector<16x128xf32>
    %cst_166 = arith.constant 9.99999996E-13 : f32
    %499 = vector.broadcast %cst_166 : f32 to vector<16x1xf32>
    %500 = arith.addf %496, %499 : vector<16x1xf32>
    %501 = math.rsqrt %500 : vector<16x1xf32>
    %502 = vector.broadcast %501 : vector<16x1xf32> to vector<16x128xf32>
    %503 = arith.mulf %498, %502 : vector<16x128xf32>
    %504 = vector.broadcast %482 : vector<1x128xf32> to vector<16x128xf32>
    %505 = arith.mulf %503, %504 : vector<16x128xf32>
    %506 = vector.broadcast %483 : vector<1x128xf32> to vector<16x128xf32>
    %507 = arith.addf %505, %506 : vector<16x128xf32>
    %c0_167 = arith.constant 0 : index
    %c0_168 = arith.constant 0 : index
    %508 = vector.load %arg1[%c0_167, %c0_168] : memref<16x128xf32, #tpu.memory_space<vmem>>, vector<16x128xf32>
    %c0_169 = arith.constant 0 : index
    %c0_170 = arith.constant 0 : index
    %c0_171 = arith.constant 0 : index
    %509 = vector.load %arg15[%c0_169, %c0_170, %c0_171] : memref<2x128x384xf32, #tpu.memory_space<vmem>>, vector<1x128x384xf32>
    %510 = vector.shape_cast %509 : vector<1x128x384xf32> to vector<128x384xf32>
    %cst_172 = arith.constant dense<0.000000e+00> : vector<16x384xf32>
    %511 = tpu.matmul %508, %510, %cst_172 {dimension_numbers = #tpu.dot_dimension_numbers<[1], [0], [0], [1], [0, 0, 1, 1], [], []>} : vector<16x128xf32>, vector<128x384xf32>, vector<16x384xf32> -> vector<16x384xf32>
    %c0_173 = arith.constant 0 : index
    %c0_174 = arith.constant 0 : index
    %c0_175 = arith.constant 0 : index
    %512 = vector.load %arg16[%c0_173, %c0_174, %c0_175] : memref<2x1x384xf32, #tpu.memory_space<vmem>>, vector<1x1x384xf32>
    %513 = vector.shape_cast %512 : vector<1x1x384xf32> to vector<1x384xf32>
    %514 = vector.broadcast %513 : vector<1x384xf32> to vector<16x384xf32>
    %515 = arith.addf %511, %514 : vector<16x384xf32>
    %516 = vector.extract_strided_slice %515 {offsets = [0, 0], sizes = [16, 128], strides = [1, 1]} : vector<16x384xf32> to vector<16x128xf32>
    %517 = vector.extract_strided_slice %515 {offsets = [0, 128], sizes = [16, 128], strides = [1, 1]} : vector<16x384xf32> to vector<16x128xf32>
    %518 = vector.extract_strided_slice %515 {offsets = [0, 256], sizes = [16, 128], strides = [1, 1]} : vector<16x384xf32> to vector<16x128xf32>
    %c0_176 = arith.constant 0 : index
    %c0_177 = arith.constant 0 : index
    %c0_178 = arith.constant 0 : index
    %519 = vector.load %arg17[%c0_176, %c0_177, %c0_178] : memref<2x128x128xf32, #tpu.memory_space<vmem>>, vector<1x128x128xf32>
    %520 = vector.shape_cast %519 : vector<1x128x128xf32> to vector<128x128xf32>
    %c0_179 = arith.constant 0 : index
    %c0_180 = arith.constant 0 : index
    %c0_181 = arith.constant 0 : index
    %521 = vector.load %arg18[%c0_179, %c0_180, %c0_181] : memref<2x1x128xf32, #tpu.memory_space<vmem>>, vector<1x1x128xf32>
    %522 = vector.shape_cast %521 : vector<1x1x128xf32> to vector<1x128xf32>
    %523 = vector.shape_cast %12 : vector<4x128xf32> to vector<4x1x128xf32>
    %524 = vector.shape_cast %517 : vector<16x128xf32> to vector<1x16x128xf32>
    %525 = vector.broadcast %524 : vector<1x16x128xf32> to vector<4x16x128xf32>
    %526 = vector.broadcast %523 : vector<4x1x128xf32> to vector<4x16x128xf32>
    %527 = arith.mulf %525, %526 : vector<4x16x128xf32>
    %528 = vector.shape_cast %527 : vector<4x16x128xf32> to vector<64x128xf32>
    %529 = vector.shape_cast %518 : vector<16x128xf32> to vector<1x16x128xf32>
    %530 = vector.broadcast %529 : vector<1x16x128xf32> to vector<4x16x128xf32>
    %531 = vector.broadcast %523 : vector<4x1x128xf32> to vector<4x16x128xf32>
    %532 = arith.mulf %530, %531 : vector<4x16x128xf32>
    %533 = vector.shape_cast %532 : vector<4x16x128xf32> to vector<64x128xf32>
    %cst_182 = arith.constant dense<0.000000e+00> : vector<16x64xf32>
    %534 = tpu.matmul %516, %528, %cst_182 {dimension_numbers = #tpu.dot_dimension_numbers<[1], [1], [0], [0], [0, 0, 1, 0], [], []>} : vector<16x128xf32>, vector<64x128xf32>, vector<16x64xf32> -> vector<16x64xf32>
    %cst_183 = arith.constant 0.408248305 : f32
    %535 = vector.broadcast %cst_183 : f32 to vector<16x64xf32>
    %536 = arith.mulf %534, %535 : vector<16x64xf32>
    %537 = arith.addf %536, %58 : vector<16x64xf32>
    %cst_184 = arith.constant 0.000000e+00 : f32
    %538 = vector.broadcast %cst_184 : f32 to vector<16x64xf32>
    %cst_185 = arith.constant -1.000000e+30 : f32
    %539 = vector.shape_cast %39 : vector<1x64xi1> to vector<1x64xi1>
    %540 = vector.broadcast %539 : vector<1x64xi1> to vector<16x64xi1>
    %541 = vector.broadcast %cst_185 : f32 to vector<16x64xf32>
    %542 = arith.select %540, %537, %541 : vector<16x64xi1>, vector<16x64xf32>
    %cst_186 = arith.constant dense<0xFF800000> : vector<16xf32>
    %543 = vector.multi_reduction <maximumf>, %542, %cst_186 [1] : vector<16x64xf32> to vector<16xf32>
    %544 = vector.shape_cast %543 : vector<16xf32> to vector<16x1xf32>
    %545 = vector.shape_cast %39 : vector<1x64xi1> to vector<1x64xi1>
    %546 = vector.broadcast %545 : vector<1x64xi1> to vector<16x64xi1>
    %547 = vector.shape_cast %544 : vector<16x1xf32> to vector<16x1xf32>
    %548 = vector.broadcast %547 : vector<16x1xf32> to vector<16x64xf32>
    %549 = arith.select %546, %548, %538 : vector<16x64xi1>, vector<16x64xf32>
    %cst_187 = arith.constant -1.000000e+30 : f32
    %550 = vector.shape_cast %44 : vector<1x64xi1> to vector<1x64xi1>
    %551 = vector.broadcast %550 : vector<1x64xi1> to vector<16x64xi1>
    %552 = vector.broadcast %cst_187 : f32 to vector<16x64xf32>
    %553 = arith.select %551, %537, %552 : vector<16x64xi1>, vector<16x64xf32>
    %cst_188 = arith.constant dense<0xFF800000> : vector<16xf32>
    %554 = vector.multi_reduction <maximumf>, %553, %cst_188 [1] : vector<16x64xf32> to vector<16xf32>
    %555 = vector.shape_cast %554 : vector<16xf32> to vector<16x1xf32>
    %556 = vector.shape_cast %44 : vector<1x64xi1> to vector<1x64xi1>
    %557 = vector.broadcast %556 : vector<1x64xi1> to vector<16x64xi1>
    %558 = vector.shape_cast %555 : vector<16x1xf32> to vector<16x1xf32>
    %559 = vector.broadcast %558 : vector<16x1xf32> to vector<16x64xf32>
    %560 = arith.select %557, %559, %549 : vector<16x64xi1>, vector<16x64xf32>
    %cst_189 = arith.constant -1.000000e+30 : f32
    %561 = vector.shape_cast %49 : vector<1x64xi1> to vector<1x64xi1>
    %562 = vector.broadcast %561 : vector<1x64xi1> to vector<16x64xi1>
    %563 = vector.broadcast %cst_189 : f32 to vector<16x64xf32>
    %564 = arith.select %562, %537, %563 : vector<16x64xi1>, vector<16x64xf32>
    %cst_190 = arith.constant dense<0xFF800000> : vector<16xf32>
    %565 = vector.multi_reduction <maximumf>, %564, %cst_190 [1] : vector<16x64xf32> to vector<16xf32>
    %566 = vector.shape_cast %565 : vector<16xf32> to vector<16x1xf32>
    %567 = vector.shape_cast %49 : vector<1x64xi1> to vector<1x64xi1>
    %568 = vector.broadcast %567 : vector<1x64xi1> to vector<16x64xi1>
    %569 = vector.shape_cast %566 : vector<16x1xf32> to vector<16x1xf32>
    %570 = vector.broadcast %569 : vector<16x1xf32> to vector<16x64xf32>
    %571 = arith.select %568, %570, %560 : vector<16x64xi1>, vector<16x64xf32>
    %cst_191 = arith.constant -1.000000e+30 : f32
    %572 = vector.shape_cast %54 : vector<1x64xi1> to vector<1x64xi1>
    %573 = vector.broadcast %572 : vector<1x64xi1> to vector<16x64xi1>
    %574 = vector.broadcast %cst_191 : f32 to vector<16x64xf32>
    %575 = arith.select %573, %537, %574 : vector<16x64xi1>, vector<16x64xf32>
    %cst_192 = arith.constant dense<0xFF800000> : vector<16xf32>
    %576 = vector.multi_reduction <maximumf>, %575, %cst_192 [1] : vector<16x64xf32> to vector<16xf32>
    %577 = vector.shape_cast %576 : vector<16xf32> to vector<16x1xf32>
    %578 = vector.shape_cast %54 : vector<1x64xi1> to vector<1x64xi1>
    %579 = vector.broadcast %578 : vector<1x64xi1> to vector<16x64xi1>
    %580 = vector.shape_cast %577 : vector<16x1xf32> to vector<16x1xf32>
    %581 = vector.broadcast %580 : vector<16x1xf32> to vector<16x64xf32>
    %582 = arith.select %579, %581, %571 : vector<16x64xi1>, vector<16x64xf32>
    %583 = arith.subf %537, %582 : vector<16x64xf32>
    %584 = math.exp %583 : vector<16x64xf32>
    %cst_193 = arith.constant 0.000000e+00 : f32
    %585 = vector.broadcast %cst_193 : f32 to vector<16x64xf32>
    %cst_194 = arith.constant 0.000000e+00 : f32
    %586 = vector.shape_cast %39 : vector<1x64xi1> to vector<1x64xi1>
    %587 = vector.broadcast %586 : vector<1x64xi1> to vector<16x64xi1>
    %588 = vector.broadcast %cst_194 : f32 to vector<16x64xf32>
    %589 = arith.select %587, %584, %588 : vector<16x64xi1>, vector<16x64xf32>
    %cst_195 = arith.constant dense<0.000000e+00> : vector<16xf32>
    %590 = vector.multi_reduction <add>, %589, %cst_195 [1] : vector<16x64xf32> to vector<16xf32>
    %591 = vector.shape_cast %590 : vector<16xf32> to vector<16x1xf32>
    %cst_196 = arith.constant 1.000000e-30 : f32
    %592 = vector.broadcast %cst_196 : f32 to vector<16x1xf32>
    %593 = arith.maximumf %591, %592 : vector<16x1xf32>
    %594 = tpu.reciprocal %593 {approx = true} : vector<16x1xf32> -> vector<16x1xf32>
    %595 = vector.shape_cast %39 : vector<1x64xi1> to vector<1x64xi1>
    %596 = vector.broadcast %595 : vector<1x64xi1> to vector<16x64xi1>
    %597 = vector.shape_cast %594 : vector<16x1xf32> to vector<16x1xf32>
    %598 = vector.broadcast %597 : vector<16x1xf32> to vector<16x64xf32>
    %599 = arith.select %596, %598, %585 : vector<16x64xi1>, vector<16x64xf32>
    %cst_197 = arith.constant 0.000000e+00 : f32
    %600 = vector.shape_cast %44 : vector<1x64xi1> to vector<1x64xi1>
    %601 = vector.broadcast %600 : vector<1x64xi1> to vector<16x64xi1>
    %602 = vector.broadcast %cst_197 : f32 to vector<16x64xf32>
    %603 = arith.select %601, %584, %602 : vector<16x64xi1>, vector<16x64xf32>
    %cst_198 = arith.constant dense<0.000000e+00> : vector<16xf32>
    %604 = vector.multi_reduction <add>, %603, %cst_198 [1] : vector<16x64xf32> to vector<16xf32>
    %605 = vector.shape_cast %604 : vector<16xf32> to vector<16x1xf32>
    %cst_199 = arith.constant 1.000000e-30 : f32
    %606 = vector.broadcast %cst_199 : f32 to vector<16x1xf32>
    %607 = arith.maximumf %605, %606 : vector<16x1xf32>
    %608 = tpu.reciprocal %607 {approx = true} : vector<16x1xf32> -> vector<16x1xf32>
    %609 = vector.shape_cast %44 : vector<1x64xi1> to vector<1x64xi1>
    %610 = vector.broadcast %609 : vector<1x64xi1> to vector<16x64xi1>
    %611 = vector.shape_cast %608 : vector<16x1xf32> to vector<16x1xf32>
    %612 = vector.broadcast %611 : vector<16x1xf32> to vector<16x64xf32>
    %613 = arith.select %610, %612, %599 : vector<16x64xi1>, vector<16x64xf32>
    %cst_200 = arith.constant 0.000000e+00 : f32
    %614 = vector.shape_cast %49 : vector<1x64xi1> to vector<1x64xi1>
    %615 = vector.broadcast %614 : vector<1x64xi1> to vector<16x64xi1>
    %616 = vector.broadcast %cst_200 : f32 to vector<16x64xf32>
    %617 = arith.select %615, %584, %616 : vector<16x64xi1>, vector<16x64xf32>
    %cst_201 = arith.constant dense<0.000000e+00> : vector<16xf32>
    %618 = vector.multi_reduction <add>, %617, %cst_201 [1] : vector<16x64xf32> to vector<16xf32>
    %619 = vector.shape_cast %618 : vector<16xf32> to vector<16x1xf32>
    %cst_202 = arith.constant 1.000000e-30 : f32
    %620 = vector.broadcast %cst_202 : f32 to vector<16x1xf32>
    %621 = arith.maximumf %619, %620 : vector<16x1xf32>
    %622 = tpu.reciprocal %621 {approx = true} : vector<16x1xf32> -> vector<16x1xf32>
    %623 = vector.shape_cast %49 : vector<1x64xi1> to vector<1x64xi1>
    %624 = vector.broadcast %623 : vector<1x64xi1> to vector<16x64xi1>
    %625 = vector.shape_cast %622 : vector<16x1xf32> to vector<16x1xf32>
    %626 = vector.broadcast %625 : vector<16x1xf32> to vector<16x64xf32>
    %627 = arith.select %624, %626, %613 : vector<16x64xi1>, vector<16x64xf32>
    %cst_203 = arith.constant 0.000000e+00 : f32
    %628 = vector.shape_cast %54 : vector<1x64xi1> to vector<1x64xi1>
    %629 = vector.broadcast %628 : vector<1x64xi1> to vector<16x64xi1>
    %630 = vector.broadcast %cst_203 : f32 to vector<16x64xf32>
    %631 = arith.select %629, %584, %630 : vector<16x64xi1>, vector<16x64xf32>
    %cst_204 = arith.constant dense<0.000000e+00> : vector<16xf32>
    %632 = vector.multi_reduction <add>, %631, %cst_204 [1] : vector<16x64xf32> to vector<16xf32>
    %633 = vector.shape_cast %632 : vector<16xf32> to vector<16x1xf32>
    %cst_205 = arith.constant 1.000000e-30 : f32
    %634 = vector.broadcast %cst_205 : f32 to vector<16x1xf32>
    %635 = arith.maximumf %633, %634 : vector<16x1xf32>
    %636 = tpu.reciprocal %635 {approx = true} : vector<16x1xf32> -> vector<16x1xf32>
    %637 = vector.shape_cast %54 : vector<1x64xi1> to vector<1x64xi1>
    %638 = vector.broadcast %637 : vector<1x64xi1> to vector<16x64xi1>
    %639 = vector.shape_cast %636 : vector<16x1xf32> to vector<16x1xf32>
    %640 = vector.broadcast %639 : vector<16x1xf32> to vector<16x64xf32>
    %641 = arith.select %638, %640, %627 : vector<16x64xi1>, vector<16x64xf32>
    %642 = arith.mulf %584, %641 : vector<16x64xf32>
    %cst_206 = arith.constant dense<0.000000e+00> : vector<16x128xf32>
    %643 = tpu.matmul %642, %533, %cst_206 {dimension_numbers = #tpu.dot_dimension_numbers<[1], [0], [0], [1], [0, 0, 1, 1], [], []>} : vector<16x64xf32>, vector<64x128xf32>, vector<16x128xf32> -> vector<16x128xf32>
    %cst_207 = arith.constant dense<0.000000e+00> : vector<16x128xf32>
    %644 = tpu.matmul %643, %520, %cst_207 {dimension_numbers = #tpu.dot_dimension_numbers<[1], [0], [0], [1], [0, 0, 1, 1], [], []>} : vector<16x128xf32>, vector<128x128xf32>, vector<16x128xf32> -> vector<16x128xf32>
    %645 = vector.broadcast %522 : vector<1x128xf32> to vector<16x128xf32>
    %646 = arith.addf %644, %645 : vector<16x128xf32>
    %c0_208 = arith.constant 0 : index
    %c0_209 = arith.constant 0 : index
    %c0_210 = arith.constant 0 : index
    %647 = vector.load %arg19[%c0_208, %c0_209, %c0_210] : memref<2x2x128xf32, #tpu.memory_space<vmem>>, vector<1x2x128xf32>
    %648 = vector.shape_cast %647 : vector<1x2x128xf32> to vector<2x128xf32>
    %649 = arith.addf %508, %646 : vector<16x128xf32>
    %650 = vector.extract_strided_slice %648 {offsets = [0, 0], sizes = [1, 128], strides = [1, 1]} : vector<2x128xf32> to vector<1x128xf32>
    %651 = vector.extract_strided_slice %648 {offsets = [1, 0], sizes = [1, 128], strides = [1, 1]} : vector<2x128xf32> to vector<1x128xf32>
    %cst_211 = arith.constant dense<0.000000e+00> : vector<16xf32>
    %652 = vector.multi_reduction <add>, %649, %cst_211 [1] : vector<16x128xf32> to vector<16xf32>
    %653 = vector.shape_cast %652 : vector<16xf32> to vector<16x1xf32>
    %cst_212 = arith.constant 0.0416666679 : f32
    %654 = vector.broadcast %cst_212 : f32 to vector<16x1xf32>
    %655 = arith.mulf %653, %654 : vector<16x1xf32>
    %656 = arith.mulf %649, %649 : vector<16x128xf32>
    %cst_213 = arith.constant dense<0.000000e+00> : vector<16xf32>
    %657 = vector.multi_reduction <add>, %656, %cst_213 [1] : vector<16x128xf32> to vector<16xf32>
    %658 = vector.shape_cast %657 : vector<16xf32> to vector<16x1xf32>
    %cst_214 = arith.constant 0.0416666679 : f32
    %659 = vector.broadcast %cst_214 : f32 to vector<16x1xf32>
    %660 = arith.mulf %658, %659 : vector<16x1xf32>
    %661 = arith.mulf %655, %655 : vector<16x1xf32>
    %662 = arith.subf %660, %661 : vector<16x1xf32>
    %cst_215 = arith.constant 0.000000e+00 : f32
    %663 = vector.broadcast %cst_215 : f32 to vector<16x1xf32>
    %664 = arith.maximumf %662, %663 : vector<16x1xf32>
    %665 = vector.broadcast %655 : vector<16x1xf32> to vector<16x128xf32>
    %666 = arith.subf %649, %665 : vector<16x128xf32>
    %cst_216 = arith.constant 9.99999996E-13 : f32
    %667 = vector.broadcast %cst_216 : f32 to vector<16x1xf32>
    %668 = arith.addf %664, %667 : vector<16x1xf32>
    %669 = math.rsqrt %668 : vector<16x1xf32>
    %670 = vector.broadcast %669 : vector<16x1xf32> to vector<16x128xf32>
    %671 = arith.mulf %666, %670 : vector<16x128xf32>
    %672 = vector.broadcast %650 : vector<1x128xf32> to vector<16x128xf32>
    %673 = arith.mulf %671, %672 : vector<16x128xf32>
    %674 = vector.broadcast %651 : vector<1x128xf32> to vector<16x128xf32>
    %675 = arith.addf %673, %674 : vector<16x128xf32>
    %c0_217 = arith.constant 0 : index
    %c0_218 = arith.constant 0 : index
    %c0_219 = arith.constant 0 : index
    %676 = vector.load %arg20[%c0_217, %c0_218, %c0_219] : memref<2x128x128xf32, #tpu.memory_space<vmem>>, vector<1x128x128xf32>
    %677 = vector.shape_cast %676 : vector<1x128x128xf32> to vector<128x128xf32>
    %cst_220 = arith.constant dense<0.000000e+00> : vector<16x128xf32>
    %678 = tpu.matmul %675, %677, %cst_220 {dimension_numbers = #tpu.dot_dimension_numbers<[1], [0], [0], [1], [0, 0, 1, 1], [], []>} : vector<16x128xf32>, vector<128x128xf32>, vector<16x128xf32> -> vector<16x128xf32>
    %c0_221 = arith.constant 0 : index
    %c0_222 = arith.constant 0 : index
    %c0_223 = arith.constant 0 : index
    %679 = vector.load %arg21[%c0_221, %c0_222, %c0_223] : memref<2x1x128xf32, #tpu.memory_space<vmem>>, vector<1x1x128xf32>
    %680 = vector.shape_cast %679 : vector<1x1x128xf32> to vector<1x128xf32>
    %681 = vector.broadcast %680 : vector<1x128xf32> to vector<16x128xf32>
    %682 = arith.addf %678, %681 : vector<16x128xf32>
    %c0_224 = arith.constant 0 : index
    %c0_225 = arith.constant 0 : index
    %c0_226 = arith.constant 0 : index
    %683 = vector.load %arg22[%c0_224, %c0_225, %c0_226] : memref<2x128x256xf32, #tpu.memory_space<vmem>>, vector<1x128x256xf32>
    %684 = vector.shape_cast %683 : vector<1x128x256xf32> to vector<128x256xf32>
    %cst_227 = arith.constant dense<0.000000e+00> : vector<16x256xf32>
    %685 = tpu.matmul %507, %684, %cst_227 {dimension_numbers = #tpu.dot_dimension_numbers<[1], [0], [0], [1], [0, 0, 1, 1], [], []>} : vector<16x128xf32>, vector<128x256xf32>, vector<16x256xf32> -> vector<16x256xf32>
    %c0_228 = arith.constant 0 : index
    %c0_229 = arith.constant 0 : index
    %c0_230 = arith.constant 0 : index
    %686 = vector.load %arg23[%c0_228, %c0_229, %c0_230] : memref<2x1x256xf32, #tpu.memory_space<vmem>>, vector<1x1x256xf32>
    %687 = vector.shape_cast %686 : vector<1x1x256xf32> to vector<1x256xf32>
    %688 = vector.broadcast %687 : vector<1x256xf32> to vector<16x256xf32>
    %689 = arith.addf %685, %688 : vector<16x256xf32>
    %690 = vector.extract_strided_slice %689 {offsets = [0, 0], sizes = [16, 128], strides = [1, 1]} : vector<16x256xf32> to vector<16x128xf32>
    %691 = vector.extract_strided_slice %689 {offsets = [0, 128], sizes = [16, 128], strides = [1, 1]} : vector<16x256xf32> to vector<16x128xf32>
    %c0_231 = arith.constant 0 : index
    %c0_232 = arith.constant 0 : index
    %c0_233 = arith.constant 0 : index
    %692 = vector.load %arg24[%c0_231, %c0_232, %c0_233] : memref<2x128x128xf32, #tpu.memory_space<vmem>>, vector<1x128x128xf32>
    %693 = vector.shape_cast %692 : vector<1x128x128xf32> to vector<128x128xf32>
    %c0_234 = arith.constant 0 : index
    %c0_235 = arith.constant 0 : index
    %c0_236 = arith.constant 0 : index
    %694 = vector.load %arg25[%c0_234, %c0_235, %c0_236] : memref<2x1x128xf32, #tpu.memory_space<vmem>>, vector<1x1x128xf32>
    %695 = vector.shape_cast %694 : vector<1x1x128xf32> to vector<1x128xf32>
    %696 = vector.shape_cast %12 : vector<4x128xf32> to vector<4x1x128xf32>
    %697 = vector.shape_cast %690 : vector<16x128xf32> to vector<1x16x128xf32>
    %698 = vector.broadcast %697 : vector<1x16x128xf32> to vector<4x16x128xf32>
    %699 = vector.broadcast %696 : vector<4x1x128xf32> to vector<4x16x128xf32>
    %700 = arith.mulf %698, %699 : vector<4x16x128xf32>
    %701 = vector.shape_cast %700 : vector<4x16x128xf32> to vector<64x128xf32>
    %702 = vector.shape_cast %691 : vector<16x128xf32> to vector<1x16x128xf32>
    %703 = vector.broadcast %702 : vector<1x16x128xf32> to vector<4x16x128xf32>
    %704 = vector.broadcast %696 : vector<4x1x128xf32> to vector<4x16x128xf32>
    %705 = arith.mulf %703, %704 : vector<4x16x128xf32>
    %706 = vector.shape_cast %705 : vector<4x16x128xf32> to vector<64x128xf32>
    %cst_237 = arith.constant dense<0.000000e+00> : vector<16x64xf32>
    %707 = tpu.matmul %682, %701, %cst_237 {dimension_numbers = #tpu.dot_dimension_numbers<[1], [1], [0], [0], [0, 0, 1, 0], [], []>} : vector<16x128xf32>, vector<64x128xf32>, vector<16x64xf32> -> vector<16x64xf32>
    %cst_238 = arith.constant 0.408248305 : f32
    %708 = vector.broadcast %cst_238 : f32 to vector<16x64xf32>
    %709 = arith.mulf %707, %708 : vector<16x64xf32>
    %710 = arith.addf %709, %60 : vector<16x64xf32>
    %cst_239 = arith.constant 0.000000e+00 : f32
    %711 = vector.broadcast %cst_239 : f32 to vector<16x64xf32>
    %cst_240 = arith.constant -1.000000e+30 : f32
    %712 = vector.shape_cast %18 : vector<1x64xi1> to vector<1x64xi1>
    %713 = vector.broadcast %712 : vector<1x64xi1> to vector<16x64xi1>
    %714 = vector.broadcast %cst_240 : f32 to vector<16x64xf32>
    %715 = arith.select %713, %710, %714 : vector<16x64xi1>, vector<16x64xf32>
    %cst_241 = arith.constant dense<0xFF800000> : vector<16xf32>
    %716 = vector.multi_reduction <maximumf>, %715, %cst_241 [1] : vector<16x64xf32> to vector<16xf32>
    %717 = vector.shape_cast %716 : vector<16xf32> to vector<16x1xf32>
    %718 = vector.shape_cast %18 : vector<1x64xi1> to vector<1x64xi1>
    %719 = vector.broadcast %718 : vector<1x64xi1> to vector<16x64xi1>
    %720 = vector.shape_cast %717 : vector<16x1xf32> to vector<16x1xf32>
    %721 = vector.broadcast %720 : vector<16x1xf32> to vector<16x64xf32>
    %722 = arith.select %719, %721, %711 : vector<16x64xi1>, vector<16x64xf32>
    %cst_242 = arith.constant -1.000000e+30 : f32
    %723 = vector.shape_cast %23 : vector<1x64xi1> to vector<1x64xi1>
    %724 = vector.broadcast %723 : vector<1x64xi1> to vector<16x64xi1>
    %725 = vector.broadcast %cst_242 : f32 to vector<16x64xf32>
    %726 = arith.select %724, %710, %725 : vector<16x64xi1>, vector<16x64xf32>
    %cst_243 = arith.constant dense<0xFF800000> : vector<16xf32>
    %727 = vector.multi_reduction <maximumf>, %726, %cst_243 [1] : vector<16x64xf32> to vector<16xf32>
    %728 = vector.shape_cast %727 : vector<16xf32> to vector<16x1xf32>
    %729 = vector.shape_cast %23 : vector<1x64xi1> to vector<1x64xi1>
    %730 = vector.broadcast %729 : vector<1x64xi1> to vector<16x64xi1>
    %731 = vector.shape_cast %728 : vector<16x1xf32> to vector<16x1xf32>
    %732 = vector.broadcast %731 : vector<16x1xf32> to vector<16x64xf32>
    %733 = arith.select %730, %732, %722 : vector<16x64xi1>, vector<16x64xf32>
    %cst_244 = arith.constant -1.000000e+30 : f32
    %734 = vector.shape_cast %28 : vector<1x64xi1> to vector<1x64xi1>
    %735 = vector.broadcast %734 : vector<1x64xi1> to vector<16x64xi1>
    %736 = vector.broadcast %cst_244 : f32 to vector<16x64xf32>
    %737 = arith.select %735, %710, %736 : vector<16x64xi1>, vector<16x64xf32>
    %cst_245 = arith.constant dense<0xFF800000> : vector<16xf32>
    %738 = vector.multi_reduction <maximumf>, %737, %cst_245 [1] : vector<16x64xf32> to vector<16xf32>
    %739 = vector.shape_cast %738 : vector<16xf32> to vector<16x1xf32>
    %740 = vector.shape_cast %28 : vector<1x64xi1> to vector<1x64xi1>
    %741 = vector.broadcast %740 : vector<1x64xi1> to vector<16x64xi1>
    %742 = vector.shape_cast %739 : vector<16x1xf32> to vector<16x1xf32>
    %743 = vector.broadcast %742 : vector<16x1xf32> to vector<16x64xf32>
    %744 = arith.select %741, %743, %733 : vector<16x64xi1>, vector<16x64xf32>
    %cst_246 = arith.constant -1.000000e+30 : f32
    %745 = vector.shape_cast %33 : vector<1x64xi1> to vector<1x64xi1>
    %746 = vector.broadcast %745 : vector<1x64xi1> to vector<16x64xi1>
    %747 = vector.broadcast %cst_246 : f32 to vector<16x64xf32>
    %748 = arith.select %746, %710, %747 : vector<16x64xi1>, vector<16x64xf32>
    %cst_247 = arith.constant dense<0xFF800000> : vector<16xf32>
    %749 = vector.multi_reduction <maximumf>, %748, %cst_247 [1] : vector<16x64xf32> to vector<16xf32>
    %750 = vector.shape_cast %749 : vector<16xf32> to vector<16x1xf32>
    %751 = vector.shape_cast %33 : vector<1x64xi1> to vector<1x64xi1>
    %752 = vector.broadcast %751 : vector<1x64xi1> to vector<16x64xi1>
    %753 = vector.shape_cast %750 : vector<16x1xf32> to vector<16x1xf32>
    %754 = vector.broadcast %753 : vector<16x1xf32> to vector<16x64xf32>
    %755 = arith.select %752, %754, %744 : vector<16x64xi1>, vector<16x64xf32>
    %756 = arith.subf %710, %755 : vector<16x64xf32>
    %757 = math.exp %756 : vector<16x64xf32>
    %cst_248 = arith.constant 0.000000e+00 : f32
    %758 = vector.broadcast %cst_248 : f32 to vector<16x64xf32>
    %cst_249 = arith.constant 0.000000e+00 : f32
    %759 = vector.shape_cast %18 : vector<1x64xi1> to vector<1x64xi1>
    %760 = vector.broadcast %759 : vector<1x64xi1> to vector<16x64xi1>
    %761 = vector.broadcast %cst_249 : f32 to vector<16x64xf32>
    %762 = arith.select %760, %757, %761 : vector<16x64xi1>, vector<16x64xf32>
    %cst_250 = arith.constant dense<0.000000e+00> : vector<16xf32>
    %763 = vector.multi_reduction <add>, %762, %cst_250 [1] : vector<16x64xf32> to vector<16xf32>
    %764 = vector.shape_cast %763 : vector<16xf32> to vector<16x1xf32>
    %cst_251 = arith.constant 1.000000e-30 : f32
    %765 = vector.broadcast %cst_251 : f32 to vector<16x1xf32>
    %766 = arith.maximumf %764, %765 : vector<16x1xf32>
    %767 = tpu.reciprocal %766 {approx = true} : vector<16x1xf32> -> vector<16x1xf32>
    %768 = vector.shape_cast %18 : vector<1x64xi1> to vector<1x64xi1>
    %769 = vector.broadcast %768 : vector<1x64xi1> to vector<16x64xi1>
    %770 = vector.shape_cast %767 : vector<16x1xf32> to vector<16x1xf32>
    %771 = vector.broadcast %770 : vector<16x1xf32> to vector<16x64xf32>
    %772 = arith.select %769, %771, %758 : vector<16x64xi1>, vector<16x64xf32>
    %cst_252 = arith.constant 0.000000e+00 : f32
    %773 = vector.shape_cast %23 : vector<1x64xi1> to vector<1x64xi1>
    %774 = vector.broadcast %773 : vector<1x64xi1> to vector<16x64xi1>
    %775 = vector.broadcast %cst_252 : f32 to vector<16x64xf32>
    %776 = arith.select %774, %757, %775 : vector<16x64xi1>, vector<16x64xf32>
    %cst_253 = arith.constant dense<0.000000e+00> : vector<16xf32>
    %777 = vector.multi_reduction <add>, %776, %cst_253 [1] : vector<16x64xf32> to vector<16xf32>
    %778 = vector.shape_cast %777 : vector<16xf32> to vector<16x1xf32>
    %cst_254 = arith.constant 1.000000e-30 : f32
    %779 = vector.broadcast %cst_254 : f32 to vector<16x1xf32>
    %780 = arith.maximumf %778, %779 : vector<16x1xf32>
    %781 = tpu.reciprocal %780 {approx = true} : vector<16x1xf32> -> vector<16x1xf32>
    %782 = vector.shape_cast %23 : vector<1x64xi1> to vector<1x64xi1>
    %783 = vector.broadcast %782 : vector<1x64xi1> to vector<16x64xi1>
    %784 = vector.shape_cast %781 : vector<16x1xf32> to vector<16x1xf32>
    %785 = vector.broadcast %784 : vector<16x1xf32> to vector<16x64xf32>
    %786 = arith.select %783, %785, %772 : vector<16x64xi1>, vector<16x64xf32>
    %cst_255 = arith.constant 0.000000e+00 : f32
    %787 = vector.shape_cast %28 : vector<1x64xi1> to vector<1x64xi1>
    %788 = vector.broadcast %787 : vector<1x64xi1> to vector<16x64xi1>
    %789 = vector.broadcast %cst_255 : f32 to vector<16x64xf32>
    %790 = arith.select %788, %757, %789 : vector<16x64xi1>, vector<16x64xf32>
    %cst_256 = arith.constant dense<0.000000e+00> : vector<16xf32>
    %791 = vector.multi_reduction <add>, %790, %cst_256 [1] : vector<16x64xf32> to vector<16xf32>
    %792 = vector.shape_cast %791 : vector<16xf32> to vector<16x1xf32>
    %cst_257 = arith.constant 1.000000e-30 : f32
    %793 = vector.broadcast %cst_257 : f32 to vector<16x1xf32>
    %794 = arith.maximumf %792, %793 : vector<16x1xf32>
    %795 = tpu.reciprocal %794 {approx = true} : vector<16x1xf32> -> vector<16x1xf32>
    %796 = vector.shape_cast %28 : vector<1x64xi1> to vector<1x64xi1>
    %797 = vector.broadcast %796 : vector<1x64xi1> to vector<16x64xi1>
    %798 = vector.shape_cast %795 : vector<16x1xf32> to vector<16x1xf32>
    %799 = vector.broadcast %798 : vector<16x1xf32> to vector<16x64xf32>
    %800 = arith.select %797, %799, %786 : vector<16x64xi1>, vector<16x64xf32>
    %cst_258 = arith.constant 0.000000e+00 : f32
    %801 = vector.shape_cast %33 : vector<1x64xi1> to vector<1x64xi1>
    %802 = vector.broadcast %801 : vector<1x64xi1> to vector<16x64xi1>
    %803 = vector.broadcast %cst_258 : f32 to vector<16x64xf32>
    %804 = arith.select %802, %757, %803 : vector<16x64xi1>, vector<16x64xf32>
    %cst_259 = arith.constant dense<0.000000e+00> : vector<16xf32>
    %805 = vector.multi_reduction <add>, %804, %cst_259 [1] : vector<16x64xf32> to vector<16xf32>
    %806 = vector.shape_cast %805 : vector<16xf32> to vector<16x1xf32>
    %cst_260 = arith.constant 1.000000e-30 : f32
    %807 = vector.broadcast %cst_260 : f32 to vector<16x1xf32>
    %808 = arith.maximumf %806, %807 : vector<16x1xf32>
    %809 = tpu.reciprocal %808 {approx = true} : vector<16x1xf32> -> vector<16x1xf32>
    %810 = vector.shape_cast %33 : vector<1x64xi1> to vector<1x64xi1>
    %811 = vector.broadcast %810 : vector<1x64xi1> to vector<16x64xi1>
    %812 = vector.shape_cast %809 : vector<16x1xf32> to vector<16x1xf32>
    %813 = vector.broadcast %812 : vector<16x1xf32> to vector<16x64xf32>
    %814 = arith.select %811, %813, %800 : vector<16x64xi1>, vector<16x64xf32>
    %815 = arith.mulf %757, %814 : vector<16x64xf32>
    %cst_261 = arith.constant dense<0.000000e+00> : vector<16x128xf32>
    %816 = tpu.matmul %815, %706, %cst_261 {dimension_numbers = #tpu.dot_dimension_numbers<[1], [0], [0], [1], [0, 0, 1, 1], [], []>} : vector<16x64xf32>, vector<64x128xf32>, vector<16x128xf32> -> vector<16x128xf32>
    %cst_262 = arith.constant dense<0.000000e+00> : vector<16x128xf32>
    %817 = tpu.matmul %816, %693, %cst_262 {dimension_numbers = #tpu.dot_dimension_numbers<[1], [0], [0], [1], [0, 0, 1, 1], [], []>} : vector<16x128xf32>, vector<128x128xf32>, vector<16x128xf32> -> vector<16x128xf32>
    %818 = vector.broadcast %695 : vector<1x128xf32> to vector<16x128xf32>
    %819 = arith.addf %817, %818 : vector<16x128xf32>
    %c0_263 = arith.constant 0 : index
    %c0_264 = arith.constant 0 : index
    %c0_265 = arith.constant 0 : index
    %820 = vector.load %arg26[%c0_263, %c0_264, %c0_265] : memref<2x2x128xf32, #tpu.memory_space<vmem>>, vector<1x2x128xf32>
    %821 = vector.shape_cast %820 : vector<1x2x128xf32> to vector<2x128xf32>
    %822 = arith.addf %675, %819 : vector<16x128xf32>
    %823 = vector.extract_strided_slice %821 {offsets = [0, 0], sizes = [1, 128], strides = [1, 1]} : vector<2x128xf32> to vector<1x128xf32>
    %824 = vector.extract_strided_slice %821 {offsets = [1, 0], sizes = [1, 128], strides = [1, 1]} : vector<2x128xf32> to vector<1x128xf32>
    %cst_266 = arith.constant dense<0.000000e+00> : vector<16xf32>
    %825 = vector.multi_reduction <add>, %822, %cst_266 [1] : vector<16x128xf32> to vector<16xf32>
    %826 = vector.shape_cast %825 : vector<16xf32> to vector<16x1xf32>
    %cst_267 = arith.constant 0.0416666679 : f32
    %827 = vector.broadcast %cst_267 : f32 to vector<16x1xf32>
    %828 = arith.mulf %826, %827 : vector<16x1xf32>
    %829 = arith.mulf %822, %822 : vector<16x128xf32>
    %cst_268 = arith.constant dense<0.000000e+00> : vector<16xf32>
    %830 = vector.multi_reduction <add>, %829, %cst_268 [1] : vector<16x128xf32> to vector<16xf32>
    %831 = vector.shape_cast %830 : vector<16xf32> to vector<16x1xf32>
    %cst_269 = arith.constant 0.0416666679 : f32
    %832 = vector.broadcast %cst_269 : f32 to vector<16x1xf32>
    %833 = arith.mulf %831, %832 : vector<16x1xf32>
    %834 = arith.mulf %828, %828 : vector<16x1xf32>
    %835 = arith.subf %833, %834 : vector<16x1xf32>
    %cst_270 = arith.constant 0.000000e+00 : f32
    %836 = vector.broadcast %cst_270 : f32 to vector<16x1xf32>
    %837 = arith.maximumf %835, %836 : vector<16x1xf32>
    %838 = vector.broadcast %828 : vector<16x1xf32> to vector<16x128xf32>
    %839 = arith.subf %822, %838 : vector<16x128xf32>
    %cst_271 = arith.constant 9.99999996E-13 : f32
    %840 = vector.broadcast %cst_271 : f32 to vector<16x1xf32>
    %841 = arith.addf %837, %840 : vector<16x1xf32>
    %842 = math.rsqrt %841 : vector<16x1xf32>
    %843 = vector.broadcast %842 : vector<16x1xf32> to vector<16x128xf32>
    %844 = arith.mulf %839, %843 : vector<16x128xf32>
    %845 = vector.broadcast %823 : vector<1x128xf32> to vector<16x128xf32>
    %846 = arith.mulf %844, %845 : vector<16x128xf32>
    %847 = vector.broadcast %824 : vector<1x128xf32> to vector<16x128xf32>
    %848 = arith.addf %846, %847 : vector<16x128xf32>
    %c0_272 = arith.constant 0 : index
    %c0_273 = arith.constant 0 : index
    %c0_274 = arith.constant 0 : index
    %849 = vector.load %arg27[%c0_272, %c0_273, %c0_274] : memref<2x128x128xf32, #tpu.memory_space<vmem>>, vector<1x128x128xf32>
    %850 = vector.shape_cast %849 : vector<1x128x128xf32> to vector<128x128xf32>
    %cst_275 = arith.constant dense<0.000000e+00> : vector<16x128xf32>
    %851 = tpu.matmul %848, %850, %cst_275 {dimension_numbers = #tpu.dot_dimension_numbers<[1], [0], [0], [1], [0, 0, 1, 1], [], []>} : vector<16x128xf32>, vector<128x128xf32>, vector<16x128xf32> -> vector<16x128xf32>
    %c0_276 = arith.constant 0 : index
    %c0_277 = arith.constant 0 : index
    %c0_278 = arith.constant 0 : index
    %852 = vector.load %arg28[%c0_276, %c0_277, %c0_278] : memref<2x1x128xf32, #tpu.memory_space<vmem>>, vector<1x1x128xf32>
    %853 = vector.shape_cast %852 : vector<1x1x128xf32> to vector<1x128xf32>
    %854 = vector.broadcast %853 : vector<1x128xf32> to vector<16x128xf32>
    %855 = arith.addf %851, %854 : vector<16x128xf32>
    %cst_279 = arith.constant 5.000000e-01 : f32
    %856 = vector.broadcast %cst_279 : f32 to vector<16x128xf32>
    %857 = arith.mulf %856, %855 : vector<16x128xf32>
    %cst_280 = arith.constant 4.471500e-02 : f32
    %858 = vector.broadcast %cst_280 : f32 to vector<16x128xf32>
    %859 = arith.mulf %858, %855 : vector<16x128xf32>
    %860 = arith.mulf %859, %855 : vector<16x128xf32>
    %861 = arith.mulf %860, %855 : vector<16x128xf32>
    %862 = arith.addf %855, %861 : vector<16x128xf32>
    %cst_281 = arith.constant 0.797884583 : f32
    %863 = vector.broadcast %cst_281 : f32 to vector<16x128xf32>
    %864 = arith.mulf %863, %862 : vector<16x128xf32>
    %865 = math.tanh %864 : vector<16x128xf32>
    %cst_282 = arith.constant 1.000000e+00 : f32
    %866 = vector.broadcast %cst_282 : f32 to vector<16x128xf32>
    %867 = arith.addf %866, %865 : vector<16x128xf32>
    %868 = arith.mulf %857, %867 : vector<16x128xf32>
    %c0_283 = arith.constant 0 : index
    %c0_284 = arith.constant 0 : index
    %c0_285 = arith.constant 0 : index
    %869 = vector.load %arg29[%c0_283, %c0_284, %c0_285] : memref<2x128x128xf32, #tpu.memory_space<vmem>>, vector<1x128x128xf32>
    %870 = vector.shape_cast %869 : vector<1x128x128xf32> to vector<128x128xf32>
    %cst_286 = arith.constant dense<0.000000e+00> : vector<16x128xf32>
    %871 = tpu.matmul %868, %870, %cst_286 {dimension_numbers = #tpu.dot_dimension_numbers<[1], [0], [0], [1], [0, 0, 1, 1], [], []>} : vector<16x128xf32>, vector<128x128xf32>, vector<16x128xf32> -> vector<16x128xf32>
    %c0_287 = arith.constant 0 : index
    %c0_288 = arith.constant 0 : index
    %c0_289 = arith.constant 0 : index
    %872 = vector.load %arg30[%c0_287, %c0_288, %c0_289] : memref<2x1x128xf32, #tpu.memory_space<vmem>>, vector<1x1x128xf32>
    %873 = vector.shape_cast %872 : vector<1x1x128xf32> to vector<1x128xf32>
    %874 = vector.broadcast %873 : vector<1x128xf32> to vector<16x128xf32>
    %875 = arith.addf %871, %874 : vector<16x128xf32>
    %c0_290 = arith.constant 0 : index
    %c0_291 = arith.constant 0 : index
    %c0_292 = arith.constant 0 : index
    %876 = vector.load %arg31[%c0_290, %c0_291, %c0_292] : memref<2x2x128xf32, #tpu.memory_space<vmem>>, vector<1x2x128xf32>
    %877 = vector.shape_cast %876 : vector<1x2x128xf32> to vector<2x128xf32>
    %878 = arith.addf %848, %875 : vector<16x128xf32>
    %879 = vector.extract_strided_slice %877 {offsets = [0, 0], sizes = [1, 128], strides = [1, 1]} : vector<2x128xf32> to vector<1x128xf32>
    %880 = vector.extract_strided_slice %877 {offsets = [1, 0], sizes = [1, 128], strides = [1, 1]} : vector<2x128xf32> to vector<1x128xf32>
    %cst_293 = arith.constant dense<0.000000e+00> : vector<16xf32>
    %881 = vector.multi_reduction <add>, %878, %cst_293 [1] : vector<16x128xf32> to vector<16xf32>
    %882 = vector.shape_cast %881 : vector<16xf32> to vector<16x1xf32>
    %cst_294 = arith.constant 0.0416666679 : f32
    %883 = vector.broadcast %cst_294 : f32 to vector<16x1xf32>
    %884 = arith.mulf %882, %883 : vector<16x1xf32>
    %885 = arith.mulf %878, %878 : vector<16x128xf32>
    %cst_295 = arith.constant dense<0.000000e+00> : vector<16xf32>
    %886 = vector.multi_reduction <add>, %885, %cst_295 [1] : vector<16x128xf32> to vector<16xf32>
    %887 = vector.shape_cast %886 : vector<16xf32> to vector<16x1xf32>
    %cst_296 = arith.constant 0.0416666679 : f32
    %888 = vector.broadcast %cst_296 : f32 to vector<16x1xf32>
    %889 = arith.mulf %887, %888 : vector<16x1xf32>
    %890 = arith.mulf %884, %884 : vector<16x1xf32>
    %891 = arith.subf %889, %890 : vector<16x1xf32>
    %cst_297 = arith.constant 0.000000e+00 : f32
    %892 = vector.broadcast %cst_297 : f32 to vector<16x1xf32>
    %893 = arith.maximumf %891, %892 : vector<16x1xf32>
    %894 = vector.broadcast %884 : vector<16x1xf32> to vector<16x128xf32>
    %895 = arith.subf %878, %894 : vector<16x128xf32>
    %cst_298 = arith.constant 9.99999996E-13 : f32
    %896 = vector.broadcast %cst_298 : f32 to vector<16x1xf32>
    %897 = arith.addf %893, %896 : vector<16x1xf32>
    %898 = math.rsqrt %897 : vector<16x1xf32>
    %899 = vector.broadcast %898 : vector<16x1xf32> to vector<16x128xf32>
    %900 = arith.mulf %895, %899 : vector<16x128xf32>
    %901 = vector.broadcast %879 : vector<1x128xf32> to vector<16x128xf32>
    %902 = arith.mulf %900, %901 : vector<16x128xf32>
    %903 = vector.broadcast %880 : vector<1x128xf32> to vector<16x128xf32>
    %904 = arith.addf %902, %903 : vector<16x128xf32>
    %c1_299 = arith.constant 1 : index
    %c0_300 = arith.constant 0 : index
    %c0_301 = arith.constant 0 : index
    %905 = vector.load %arg15[%c1_299, %c0_300, %c0_301] : memref<2x128x384xf32, #tpu.memory_space<vmem>>, vector<1x128x384xf32>
    %906 = vector.shape_cast %905 : vector<1x128x384xf32> to vector<128x384xf32>
    %cst_302 = arith.constant dense<0.000000e+00> : vector<16x384xf32>
    %907 = tpu.matmul %904, %906, %cst_302 {dimension_numbers = #tpu.dot_dimension_numbers<[1], [0], [0], [1], [0, 0, 1, 1], [], []>} : vector<16x128xf32>, vector<128x384xf32>, vector<16x384xf32> -> vector<16x384xf32>
    %c1_303 = arith.constant 1 : index
    %c0_304 = arith.constant 0 : index
    %c0_305 = arith.constant 0 : index
    %908 = vector.load %arg16[%c1_303, %c0_304, %c0_305] : memref<2x1x384xf32, #tpu.memory_space<vmem>>, vector<1x1x384xf32>
    %909 = vector.shape_cast %908 : vector<1x1x384xf32> to vector<1x384xf32>
    %910 = vector.broadcast %909 : vector<1x384xf32> to vector<16x384xf32>
    %911 = arith.addf %907, %910 : vector<16x384xf32>
    %912 = vector.extract_strided_slice %911 {offsets = [0, 0], sizes = [16, 128], strides = [1, 1]} : vector<16x384xf32> to vector<16x128xf32>
    %913 = vector.extract_strided_slice %911 {offsets = [0, 128], sizes = [16, 128], strides = [1, 1]} : vector<16x384xf32> to vector<16x128xf32>
    %914 = vector.extract_strided_slice %911 {offsets = [0, 256], sizes = [16, 128], strides = [1, 1]} : vector<16x384xf32> to vector<16x128xf32>
    %c1_306 = arith.constant 1 : index
    %c0_307 = arith.constant 0 : index
    %c0_308 = arith.constant 0 : index
    %915 = vector.load %arg17[%c1_306, %c0_307, %c0_308] : memref<2x128x128xf32, #tpu.memory_space<vmem>>, vector<1x128x128xf32>
    %916 = vector.shape_cast %915 : vector<1x128x128xf32> to vector<128x128xf32>
    %c1_309 = arith.constant 1 : index
    %c0_310 = arith.constant 0 : index
    %c0_311 = arith.constant 0 : index
    %917 = vector.load %arg18[%c1_309, %c0_310, %c0_311] : memref<2x1x128xf32, #tpu.memory_space<vmem>>, vector<1x1x128xf32>
    %918 = vector.shape_cast %917 : vector<1x1x128xf32> to vector<1x128xf32>
    %919 = vector.shape_cast %12 : vector<4x128xf32> to vector<4x1x128xf32>
    %920 = vector.shape_cast %913 : vector<16x128xf32> to vector<1x16x128xf32>
    %921 = vector.broadcast %920 : vector<1x16x128xf32> to vector<4x16x128xf32>
    %922 = vector.broadcast %919 : vector<4x1x128xf32> to vector<4x16x128xf32>
    %923 = arith.mulf %921, %922 : vector<4x16x128xf32>
    %924 = vector.shape_cast %923 : vector<4x16x128xf32> to vector<64x128xf32>
    %925 = vector.shape_cast %914 : vector<16x128xf32> to vector<1x16x128xf32>
    %926 = vector.broadcast %925 : vector<1x16x128xf32> to vector<4x16x128xf32>
    %927 = vector.broadcast %919 : vector<4x1x128xf32> to vector<4x16x128xf32>
    %928 = arith.mulf %926, %927 : vector<4x16x128xf32>
    %929 = vector.shape_cast %928 : vector<4x16x128xf32> to vector<64x128xf32>
    %cst_312 = arith.constant dense<0.000000e+00> : vector<16x64xf32>
    %930 = tpu.matmul %912, %924, %cst_312 {dimension_numbers = #tpu.dot_dimension_numbers<[1], [1], [0], [0], [0, 0, 1, 0], [], []>} : vector<16x128xf32>, vector<64x128xf32>, vector<16x64xf32> -> vector<16x64xf32>
    %cst_313 = arith.constant 0.408248305 : f32
    %931 = vector.broadcast %cst_313 : f32 to vector<16x64xf32>
    %932 = arith.mulf %930, %931 : vector<16x64xf32>
    %933 = arith.addf %932, %58 : vector<16x64xf32>
    %cst_314 = arith.constant 0.000000e+00 : f32
    %934 = vector.broadcast %cst_314 : f32 to vector<16x64xf32>
    %cst_315 = arith.constant -1.000000e+30 : f32
    %935 = vector.shape_cast %39 : vector<1x64xi1> to vector<1x64xi1>
    %936 = vector.broadcast %935 : vector<1x64xi1> to vector<16x64xi1>
    %937 = vector.broadcast %cst_315 : f32 to vector<16x64xf32>
    %938 = arith.select %936, %933, %937 : vector<16x64xi1>, vector<16x64xf32>
    %cst_316 = arith.constant dense<0xFF800000> : vector<16xf32>
    %939 = vector.multi_reduction <maximumf>, %938, %cst_316 [1] : vector<16x64xf32> to vector<16xf32>
    %940 = vector.shape_cast %939 : vector<16xf32> to vector<16x1xf32>
    %941 = vector.shape_cast %39 : vector<1x64xi1> to vector<1x64xi1>
    %942 = vector.broadcast %941 : vector<1x64xi1> to vector<16x64xi1>
    %943 = vector.shape_cast %940 : vector<16x1xf32> to vector<16x1xf32>
    %944 = vector.broadcast %943 : vector<16x1xf32> to vector<16x64xf32>
    %945 = arith.select %942, %944, %934 : vector<16x64xi1>, vector<16x64xf32>
    %cst_317 = arith.constant -1.000000e+30 : f32
    %946 = vector.shape_cast %44 : vector<1x64xi1> to vector<1x64xi1>
    %947 = vector.broadcast %946 : vector<1x64xi1> to vector<16x64xi1>
    %948 = vector.broadcast %cst_317 : f32 to vector<16x64xf32>
    %949 = arith.select %947, %933, %948 : vector<16x64xi1>, vector<16x64xf32>
    %cst_318 = arith.constant dense<0xFF800000> : vector<16xf32>
    %950 = vector.multi_reduction <maximumf>, %949, %cst_318 [1] : vector<16x64xf32> to vector<16xf32>
    %951 = vector.shape_cast %950 : vector<16xf32> to vector<16x1xf32>
    %952 = vector.shape_cast %44 : vector<1x64xi1> to vector<1x64xi1>
    %953 = vector.broadcast %952 : vector<1x64xi1> to vector<16x64xi1>
    %954 = vector.shape_cast %951 : vector<16x1xf32> to vector<16x1xf32>
    %955 = vector.broadcast %954 : vector<16x1xf32> to vector<16x64xf32>
    %956 = arith.select %953, %955, %945 : vector<16x64xi1>, vector<16x64xf32>
    %cst_319 = arith.constant -1.000000e+30 : f32
    %957 = vector.shape_cast %49 : vector<1x64xi1> to vector<1x64xi1>
    %958 = vector.broadcast %957 : vector<1x64xi1> to vector<16x64xi1>
    %959 = vector.broadcast %cst_319 : f32 to vector<16x64xf32>
    %960 = arith.select %958, %933, %959 : vector<16x64xi1>, vector<16x64xf32>
    %cst_320 = arith.constant dense<0xFF800000> : vector<16xf32>
    %961 = vector.multi_reduction <maximumf>, %960, %cst_320 [1] : vector<16x64xf32> to vector<16xf32>
    %962 = vector.shape_cast %961 : vector<16xf32> to vector<16x1xf32>
    %963 = vector.shape_cast %49 : vector<1x64xi1> to vector<1x64xi1>
    %964 = vector.broadcast %963 : vector<1x64xi1> to vector<16x64xi1>
    %965 = vector.shape_cast %962 : vector<16x1xf32> to vector<16x1xf32>
    %966 = vector.broadcast %965 : vector<16x1xf32> to vector<16x64xf32>
    %967 = arith.select %964, %966, %956 : vector<16x64xi1>, vector<16x64xf32>
    %cst_321 = arith.constant -1.000000e+30 : f32
    %968 = vector.shape_cast %54 : vector<1x64xi1> to vector<1x64xi1>
    %969 = vector.broadcast %968 : vector<1x64xi1> to vector<16x64xi1>
    %970 = vector.broadcast %cst_321 : f32 to vector<16x64xf32>
    %971 = arith.select %969, %933, %970 : vector<16x64xi1>, vector<16x64xf32>
    %cst_322 = arith.constant dense<0xFF800000> : vector<16xf32>
    %972 = vector.multi_reduction <maximumf>, %971, %cst_322 [1] : vector<16x64xf32> to vector<16xf32>
    %973 = vector.shape_cast %972 : vector<16xf32> to vector<16x1xf32>
    %974 = vector.shape_cast %54 : vector<1x64xi1> to vector<1x64xi1>
    %975 = vector.broadcast %974 : vector<1x64xi1> to vector<16x64xi1>
    %976 = vector.shape_cast %973 : vector<16x1xf32> to vector<16x1xf32>
    %977 = vector.broadcast %976 : vector<16x1xf32> to vector<16x64xf32>
    %978 = arith.select %975, %977, %967 : vector<16x64xi1>, vector<16x64xf32>
    %979 = arith.subf %933, %978 : vector<16x64xf32>
    %980 = math.exp %979 : vector<16x64xf32>
    %cst_323 = arith.constant 0.000000e+00 : f32
    %981 = vector.broadcast %cst_323 : f32 to vector<16x64xf32>
    %cst_324 = arith.constant 0.000000e+00 : f32
    %982 = vector.shape_cast %39 : vector<1x64xi1> to vector<1x64xi1>
    %983 = vector.broadcast %982 : vector<1x64xi1> to vector<16x64xi1>
    %984 = vector.broadcast %cst_324 : f32 to vector<16x64xf32>
    %985 = arith.select %983, %980, %984 : vector<16x64xi1>, vector<16x64xf32>
    %cst_325 = arith.constant dense<0.000000e+00> : vector<16xf32>
    %986 = vector.multi_reduction <add>, %985, %cst_325 [1] : vector<16x64xf32> to vector<16xf32>
    %987 = vector.shape_cast %986 : vector<16xf32> to vector<16x1xf32>
    %cst_326 = arith.constant 1.000000e-30 : f32
    %988 = vector.broadcast %cst_326 : f32 to vector<16x1xf32>
    %989 = arith.maximumf %987, %988 : vector<16x1xf32>
    %990 = tpu.reciprocal %989 {approx = true} : vector<16x1xf32> -> vector<16x1xf32>
    %991 = vector.shape_cast %39 : vector<1x64xi1> to vector<1x64xi1>
    %992 = vector.broadcast %991 : vector<1x64xi1> to vector<16x64xi1>
    %993 = vector.shape_cast %990 : vector<16x1xf32> to vector<16x1xf32>
    %994 = vector.broadcast %993 : vector<16x1xf32> to vector<16x64xf32>
    %995 = arith.select %992, %994, %981 : vector<16x64xi1>, vector<16x64xf32>
    %cst_327 = arith.constant 0.000000e+00 : f32
    %996 = vector.shape_cast %44 : vector<1x64xi1> to vector<1x64xi1>
    %997 = vector.broadcast %996 : vector<1x64xi1> to vector<16x64xi1>
    %998 = vector.broadcast %cst_327 : f32 to vector<16x64xf32>
    %999 = arith.select %997, %980, %998 : vector<16x64xi1>, vector<16x64xf32>
    %cst_328 = arith.constant dense<0.000000e+00> : vector<16xf32>
    %1000 = vector.multi_reduction <add>, %999, %cst_328 [1] : vector<16x64xf32> to vector<16xf32>
    %1001 = vector.shape_cast %1000 : vector<16xf32> to vector<16x1xf32>
    %cst_329 = arith.constant 1.000000e-30 : f32
    %1002 = vector.broadcast %cst_329 : f32 to vector<16x1xf32>
    %1003 = arith.maximumf %1001, %1002 : vector<16x1xf32>
    %1004 = tpu.reciprocal %1003 {approx = true} : vector<16x1xf32> -> vector<16x1xf32>
    %1005 = vector.shape_cast %44 : vector<1x64xi1> to vector<1x64xi1>
    %1006 = vector.broadcast %1005 : vector<1x64xi1> to vector<16x64xi1>
    %1007 = vector.shape_cast %1004 : vector<16x1xf32> to vector<16x1xf32>
    %1008 = vector.broadcast %1007 : vector<16x1xf32> to vector<16x64xf32>
    %1009 = arith.select %1006, %1008, %995 : vector<16x64xi1>, vector<16x64xf32>
    %cst_330 = arith.constant 0.000000e+00 : f32
    %1010 = vector.shape_cast %49 : vector<1x64xi1> to vector<1x64xi1>
    %1011 = vector.broadcast %1010 : vector<1x64xi1> to vector<16x64xi1>
    %1012 = vector.broadcast %cst_330 : f32 to vector<16x64xf32>
    %1013 = arith.select %1011, %980, %1012 : vector<16x64xi1>, vector<16x64xf32>
    %cst_331 = arith.constant dense<0.000000e+00> : vector<16xf32>
    %1014 = vector.multi_reduction <add>, %1013, %cst_331 [1] : vector<16x64xf32> to vector<16xf32>
    %1015 = vector.shape_cast %1014 : vector<16xf32> to vector<16x1xf32>
    %cst_332 = arith.constant 1.000000e-30 : f32
    %1016 = vector.broadcast %cst_332 : f32 to vector<16x1xf32>
    %1017 = arith.maximumf %1015, %1016 : vector<16x1xf32>
    %1018 = tpu.reciprocal %1017 {approx = true} : vector<16x1xf32> -> vector<16x1xf32>
    %1019 = vector.shape_cast %49 : vector<1x64xi1> to vector<1x64xi1>
    %1020 = vector.broadcast %1019 : vector<1x64xi1> to vector<16x64xi1>
    %1021 = vector.shape_cast %1018 : vector<16x1xf32> to vector<16x1xf32>
    %1022 = vector.broadcast %1021 : vector<16x1xf32> to vector<16x64xf32>
    %1023 = arith.select %1020, %1022, %1009 : vector<16x64xi1>, vector<16x64xf32>
    %cst_333 = arith.constant 0.000000e+00 : f32
    %1024 = vector.shape_cast %54 : vector<1x64xi1> to vector<1x64xi1>
    %1025 = vector.broadcast %1024 : vector<1x64xi1> to vector<16x64xi1>
    %1026 = vector.broadcast %cst_333 : f32 to vector<16x64xf32>
    %1027 = arith.select %1025, %980, %1026 : vector<16x64xi1>, vector<16x64xf32>
    %cst_334 = arith.constant dense<0.000000e+00> : vector<16xf32>
    %1028 = vector.multi_reduction <add>, %1027, %cst_334 [1] : vector<16x64xf32> to vector<16xf32>
    %1029 = vector.shape_cast %1028 : vector<16xf32> to vector<16x1xf32>
    %cst_335 = arith.constant 1.000000e-30 : f32
    %1030 = vector.broadcast %cst_335 : f32 to vector<16x1xf32>
    %1031 = arith.maximumf %1029, %1030 : vector<16x1xf32>
    %1032 = tpu.reciprocal %1031 {approx = true} : vector<16x1xf32> -> vector<16x1xf32>
    %1033 = vector.shape_cast %54 : vector<1x64xi1> to vector<1x64xi1>
    %1034 = vector.broadcast %1033 : vector<1x64xi1> to vector<16x64xi1>
    %1035 = vector.shape_cast %1032 : vector<16x1xf32> to vector<16x1xf32>
    %1036 = vector.broadcast %1035 : vector<16x1xf32> to vector<16x64xf32>
    %1037 = arith.select %1034, %1036, %1023 : vector<16x64xi1>, vector<16x64xf32>
    %1038 = arith.mulf %980, %1037 : vector<16x64xf32>
    %cst_336 = arith.constant dense<0.000000e+00> : vector<16x128xf32>
    %1039 = tpu.matmul %1038, %929, %cst_336 {dimension_numbers = #tpu.dot_dimension_numbers<[1], [0], [0], [1], [0, 0, 1, 1], [], []>} : vector<16x64xf32>, vector<64x128xf32>, vector<16x128xf32> -> vector<16x128xf32>
    %cst_337 = arith.constant dense<0.000000e+00> : vector<16x128xf32>
    %1040 = tpu.matmul %1039, %916, %cst_337 {dimension_numbers = #tpu.dot_dimension_numbers<[1], [0], [0], [1], [0, 0, 1, 1], [], []>} : vector<16x128xf32>, vector<128x128xf32>, vector<16x128xf32> -> vector<16x128xf32>
    %1041 = vector.broadcast %918 : vector<1x128xf32> to vector<16x128xf32>
    %1042 = arith.addf %1040, %1041 : vector<16x128xf32>
    %c1_338 = arith.constant 1 : index
    %c0_339 = arith.constant 0 : index
    %c0_340 = arith.constant 0 : index
    %1043 = vector.load %arg19[%c1_338, %c0_339, %c0_340] : memref<2x2x128xf32, #tpu.memory_space<vmem>>, vector<1x2x128xf32>
    %1044 = vector.shape_cast %1043 : vector<1x2x128xf32> to vector<2x128xf32>
    %1045 = arith.addf %904, %1042 : vector<16x128xf32>
    %1046 = vector.extract_strided_slice %1044 {offsets = [0, 0], sizes = [1, 128], strides = [1, 1]} : vector<2x128xf32> to vector<1x128xf32>
    %1047 = vector.extract_strided_slice %1044 {offsets = [1, 0], sizes = [1, 128], strides = [1, 1]} : vector<2x128xf32> to vector<1x128xf32>
    %cst_341 = arith.constant dense<0.000000e+00> : vector<16xf32>
    %1048 = vector.multi_reduction <add>, %1045, %cst_341 [1] : vector<16x128xf32> to vector<16xf32>
    %1049 = vector.shape_cast %1048 : vector<16xf32> to vector<16x1xf32>
    %cst_342 = arith.constant 0.0416666679 : f32
    %1050 = vector.broadcast %cst_342 : f32 to vector<16x1xf32>
    %1051 = arith.mulf %1049, %1050 : vector<16x1xf32>
    %1052 = arith.mulf %1045, %1045 : vector<16x128xf32>
    %cst_343 = arith.constant dense<0.000000e+00> : vector<16xf32>
    %1053 = vector.multi_reduction <add>, %1052, %cst_343 [1] : vector<16x128xf32> to vector<16xf32>
    %1054 = vector.shape_cast %1053 : vector<16xf32> to vector<16x1xf32>
    %cst_344 = arith.constant 0.0416666679 : f32
    %1055 = vector.broadcast %cst_344 : f32 to vector<16x1xf32>
    %1056 = arith.mulf %1054, %1055 : vector<16x1xf32>
    %1057 = arith.mulf %1051, %1051 : vector<16x1xf32>
    %1058 = arith.subf %1056, %1057 : vector<16x1xf32>
    %cst_345 = arith.constant 0.000000e+00 : f32
    %1059 = vector.broadcast %cst_345 : f32 to vector<16x1xf32>
    %1060 = arith.maximumf %1058, %1059 : vector<16x1xf32>
    %1061 = vector.broadcast %1051 : vector<16x1xf32> to vector<16x128xf32>
    %1062 = arith.subf %1045, %1061 : vector<16x128xf32>
    %cst_346 = arith.constant 9.99999996E-13 : f32
    %1063 = vector.broadcast %cst_346 : f32 to vector<16x1xf32>
    %1064 = arith.addf %1060, %1063 : vector<16x1xf32>
    %1065 = math.rsqrt %1064 : vector<16x1xf32>
    %1066 = vector.broadcast %1065 : vector<16x1xf32> to vector<16x128xf32>
    %1067 = arith.mulf %1062, %1066 : vector<16x128xf32>
    %1068 = vector.broadcast %1046 : vector<1x128xf32> to vector<16x128xf32>
    %1069 = arith.mulf %1067, %1068 : vector<16x128xf32>
    %1070 = vector.broadcast %1047 : vector<1x128xf32> to vector<16x128xf32>
    %1071 = arith.addf %1069, %1070 : vector<16x128xf32>
    %c1_347 = arith.constant 1 : index
    %c0_348 = arith.constant 0 : index
    %c0_349 = arith.constant 0 : index
    %1072 = vector.load %arg20[%c1_347, %c0_348, %c0_349] : memref<2x128x128xf32, #tpu.memory_space<vmem>>, vector<1x128x128xf32>
    %1073 = vector.shape_cast %1072 : vector<1x128x128xf32> to vector<128x128xf32>
    %cst_350 = arith.constant dense<0.000000e+00> : vector<16x128xf32>
    %1074 = tpu.matmul %1071, %1073, %cst_350 {dimension_numbers = #tpu.dot_dimension_numbers<[1], [0], [0], [1], [0, 0, 1, 1], [], []>} : vector<16x128xf32>, vector<128x128xf32>, vector<16x128xf32> -> vector<16x128xf32>
    %c1_351 = arith.constant 1 : index
    %c0_352 = arith.constant 0 : index
    %c0_353 = arith.constant 0 : index
    %1075 = vector.load %arg21[%c1_351, %c0_352, %c0_353] : memref<2x1x128xf32, #tpu.memory_space<vmem>>, vector<1x1x128xf32>
    %1076 = vector.shape_cast %1075 : vector<1x1x128xf32> to vector<1x128xf32>
    %1077 = vector.broadcast %1076 : vector<1x128xf32> to vector<16x128xf32>
    %1078 = arith.addf %1074, %1077 : vector<16x128xf32>
    %c1_354 = arith.constant 1 : index
    %c0_355 = arith.constant 0 : index
    %c0_356 = arith.constant 0 : index
    %1079 = vector.load %arg22[%c1_354, %c0_355, %c0_356] : memref<2x128x256xf32, #tpu.memory_space<vmem>>, vector<1x128x256xf32>
    %1080 = vector.shape_cast %1079 : vector<1x128x256xf32> to vector<128x256xf32>
    %cst_357 = arith.constant dense<0.000000e+00> : vector<16x256xf32>
    %1081 = tpu.matmul %507, %1080, %cst_357 {dimension_numbers = #tpu.dot_dimension_numbers<[1], [0], [0], [1], [0, 0, 1, 1], [], []>} : vector<16x128xf32>, vector<128x256xf32>, vector<16x256xf32> -> vector<16x256xf32>
    %c1_358 = arith.constant 1 : index
    %c0_359 = arith.constant 0 : index
    %c0_360 = arith.constant 0 : index
    %1082 = vector.load %arg23[%c1_358, %c0_359, %c0_360] : memref<2x1x256xf32, #tpu.memory_space<vmem>>, vector<1x1x256xf32>
    %1083 = vector.shape_cast %1082 : vector<1x1x256xf32> to vector<1x256xf32>
    %1084 = vector.broadcast %1083 : vector<1x256xf32> to vector<16x256xf32>
    %1085 = arith.addf %1081, %1084 : vector<16x256xf32>
    %1086 = vector.extract_strided_slice %1085 {offsets = [0, 0], sizes = [16, 128], strides = [1, 1]} : vector<16x256xf32> to vector<16x128xf32>
    %1087 = vector.extract_strided_slice %1085 {offsets = [0, 128], sizes = [16, 128], strides = [1, 1]} : vector<16x256xf32> to vector<16x128xf32>
    %c1_361 = arith.constant 1 : index
    %c0_362 = arith.constant 0 : index
    %c0_363 = arith.constant 0 : index
    %1088 = vector.load %arg24[%c1_361, %c0_362, %c0_363] : memref<2x128x128xf32, #tpu.memory_space<vmem>>, vector<1x128x128xf32>
    %1089 = vector.shape_cast %1088 : vector<1x128x128xf32> to vector<128x128xf32>
    %c1_364 = arith.constant 1 : index
    %c0_365 = arith.constant 0 : index
    %c0_366 = arith.constant 0 : index
    %1090 = vector.load %arg25[%c1_364, %c0_365, %c0_366] : memref<2x1x128xf32, #tpu.memory_space<vmem>>, vector<1x1x128xf32>
    %1091 = vector.shape_cast %1090 : vector<1x1x128xf32> to vector<1x128xf32>
    %1092 = vector.shape_cast %12 : vector<4x128xf32> to vector<4x1x128xf32>
    %1093 = vector.shape_cast %1086 : vector<16x128xf32> to vector<1x16x128xf32>
    %1094 = vector.broadcast %1093 : vector<1x16x128xf32> to vector<4x16x128xf32>
    %1095 = vector.broadcast %1092 : vector<4x1x128xf32> to vector<4x16x128xf32>
    %1096 = arith.mulf %1094, %1095 : vector<4x16x128xf32>
    %1097 = vector.shape_cast %1096 : vector<4x16x128xf32> to vector<64x128xf32>
    %1098 = vector.shape_cast %1087 : vector<16x128xf32> to vector<1x16x128xf32>
    %1099 = vector.broadcast %1098 : vector<1x16x128xf32> to vector<4x16x128xf32>
    %1100 = vector.broadcast %1092 : vector<4x1x128xf32> to vector<4x16x128xf32>
    %1101 = arith.mulf %1099, %1100 : vector<4x16x128xf32>
    %1102 = vector.shape_cast %1101 : vector<4x16x128xf32> to vector<64x128xf32>
    %cst_367 = arith.constant dense<0.000000e+00> : vector<16x64xf32>
    %1103 = tpu.matmul %1078, %1097, %cst_367 {dimension_numbers = #tpu.dot_dimension_numbers<[1], [1], [0], [0], [0, 0, 1, 0], [], []>} : vector<16x128xf32>, vector<64x128xf32>, vector<16x64xf32> -> vector<16x64xf32>
    %cst_368 = arith.constant 0.408248305 : f32
    %1104 = vector.broadcast %cst_368 : f32 to vector<16x64xf32>
    %1105 = arith.mulf %1103, %1104 : vector<16x64xf32>
    %1106 = arith.addf %1105, %60 : vector<16x64xf32>
    %cst_369 = arith.constant 0.000000e+00 : f32
    %1107 = vector.broadcast %cst_369 : f32 to vector<16x64xf32>
    %cst_370 = arith.constant -1.000000e+30 : f32
    %1108 = vector.shape_cast %18 : vector<1x64xi1> to vector<1x64xi1>
    %1109 = vector.broadcast %1108 : vector<1x64xi1> to vector<16x64xi1>
    %1110 = vector.broadcast %cst_370 : f32 to vector<16x64xf32>
    %1111 = arith.select %1109, %1106, %1110 : vector<16x64xi1>, vector<16x64xf32>
    %cst_371 = arith.constant dense<0xFF800000> : vector<16xf32>
    %1112 = vector.multi_reduction <maximumf>, %1111, %cst_371 [1] : vector<16x64xf32> to vector<16xf32>
    %1113 = vector.shape_cast %1112 : vector<16xf32> to vector<16x1xf32>
    %1114 = vector.shape_cast %18 : vector<1x64xi1> to vector<1x64xi1>
    %1115 = vector.broadcast %1114 : vector<1x64xi1> to vector<16x64xi1>
    %1116 = vector.shape_cast %1113 : vector<16x1xf32> to vector<16x1xf32>
    %1117 = vector.broadcast %1116 : vector<16x1xf32> to vector<16x64xf32>
    %1118 = arith.select %1115, %1117, %1107 : vector<16x64xi1>, vector<16x64xf32>
    %cst_372 = arith.constant -1.000000e+30 : f32
    %1119 = vector.shape_cast %23 : vector<1x64xi1> to vector<1x64xi1>
    %1120 = vector.broadcast %1119 : vector<1x64xi1> to vector<16x64xi1>
    %1121 = vector.broadcast %cst_372 : f32 to vector<16x64xf32>
    %1122 = arith.select %1120, %1106, %1121 : vector<16x64xi1>, vector<16x64xf32>
    %cst_373 = arith.constant dense<0xFF800000> : vector<16xf32>
    %1123 = vector.multi_reduction <maximumf>, %1122, %cst_373 [1] : vector<16x64xf32> to vector<16xf32>
    %1124 = vector.shape_cast %1123 : vector<16xf32> to vector<16x1xf32>
    %1125 = vector.shape_cast %23 : vector<1x64xi1> to vector<1x64xi1>
    %1126 = vector.broadcast %1125 : vector<1x64xi1> to vector<16x64xi1>
    %1127 = vector.shape_cast %1124 : vector<16x1xf32> to vector<16x1xf32>
    %1128 = vector.broadcast %1127 : vector<16x1xf32> to vector<16x64xf32>
    %1129 = arith.select %1126, %1128, %1118 : vector<16x64xi1>, vector<16x64xf32>
    %cst_374 = arith.constant -1.000000e+30 : f32
    %1130 = vector.shape_cast %28 : vector<1x64xi1> to vector<1x64xi1>
    %1131 = vector.broadcast %1130 : vector<1x64xi1> to vector<16x64xi1>
    %1132 = vector.broadcast %cst_374 : f32 to vector<16x64xf32>
    %1133 = arith.select %1131, %1106, %1132 : vector<16x64xi1>, vector<16x64xf32>
    %cst_375 = arith.constant dense<0xFF800000> : vector<16xf32>
    %1134 = vector.multi_reduction <maximumf>, %1133, %cst_375 [1] : vector<16x64xf32> to vector<16xf32>
    %1135 = vector.shape_cast %1134 : vector<16xf32> to vector<16x1xf32>
    %1136 = vector.shape_cast %28 : vector<1x64xi1> to vector<1x64xi1>
    %1137 = vector.broadcast %1136 : vector<1x64xi1> to vector<16x64xi1>
    %1138 = vector.shape_cast %1135 : vector<16x1xf32> to vector<16x1xf32>
    %1139 = vector.broadcast %1138 : vector<16x1xf32> to vector<16x64xf32>
    %1140 = arith.select %1137, %1139, %1129 : vector<16x64xi1>, vector<16x64xf32>
    %cst_376 = arith.constant -1.000000e+30 : f32
    %1141 = vector.shape_cast %33 : vector<1x64xi1> to vector<1x64xi1>
    %1142 = vector.broadcast %1141 : vector<1x64xi1> to vector<16x64xi1>
    %1143 = vector.broadcast %cst_376 : f32 to vector<16x64xf32>
    %1144 = arith.select %1142, %1106, %1143 : vector<16x64xi1>, vector<16x64xf32>
    %cst_377 = arith.constant dense<0xFF800000> : vector<16xf32>
    %1145 = vector.multi_reduction <maximumf>, %1144, %cst_377 [1] : vector<16x64xf32> to vector<16xf32>
    %1146 = vector.shape_cast %1145 : vector<16xf32> to vector<16x1xf32>
    %1147 = vector.shape_cast %33 : vector<1x64xi1> to vector<1x64xi1>
    %1148 = vector.broadcast %1147 : vector<1x64xi1> to vector<16x64xi1>
    %1149 = vector.shape_cast %1146 : vector<16x1xf32> to vector<16x1xf32>
    %1150 = vector.broadcast %1149 : vector<16x1xf32> to vector<16x64xf32>
    %1151 = arith.select %1148, %1150, %1140 : vector<16x64xi1>, vector<16x64xf32>
    %1152 = arith.subf %1106, %1151 : vector<16x64xf32>
    %1153 = math.exp %1152 : vector<16x64xf32>
    %cst_378 = arith.constant 0.000000e+00 : f32
    %1154 = vector.broadcast %cst_378 : f32 to vector<16x64xf32>
    %cst_379 = arith.constant 0.000000e+00 : f32
    %1155 = vector.shape_cast %18 : vector<1x64xi1> to vector<1x64xi1>
    %1156 = vector.broadcast %1155 : vector<1x64xi1> to vector<16x64xi1>
    %1157 = vector.broadcast %cst_379 : f32 to vector<16x64xf32>
    %1158 = arith.select %1156, %1153, %1157 : vector<16x64xi1>, vector<16x64xf32>
    %cst_380 = arith.constant dense<0.000000e+00> : vector<16xf32>
    %1159 = vector.multi_reduction <add>, %1158, %cst_380 [1] : vector<16x64xf32> to vector<16xf32>
    %1160 = vector.shape_cast %1159 : vector<16xf32> to vector<16x1xf32>
    %cst_381 = arith.constant 1.000000e-30 : f32
    %1161 = vector.broadcast %cst_381 : f32 to vector<16x1xf32>
    %1162 = arith.maximumf %1160, %1161 : vector<16x1xf32>
    %1163 = tpu.reciprocal %1162 {approx = true} : vector<16x1xf32> -> vector<16x1xf32>
    %1164 = vector.shape_cast %18 : vector<1x64xi1> to vector<1x64xi1>
    %1165 = vector.broadcast %1164 : vector<1x64xi1> to vector<16x64xi1>
    %1166 = vector.shape_cast %1163 : vector<16x1xf32> to vector<16x1xf32>
    %1167 = vector.broadcast %1166 : vector<16x1xf32> to vector<16x64xf32>
    %1168 = arith.select %1165, %1167, %1154 : vector<16x64xi1>, vector<16x64xf32>
    %cst_382 = arith.constant 0.000000e+00 : f32
    %1169 = vector.shape_cast %23 : vector<1x64xi1> to vector<1x64xi1>
    %1170 = vector.broadcast %1169 : vector<1x64xi1> to vector<16x64xi1>
    %1171 = vector.broadcast %cst_382 : f32 to vector<16x64xf32>
    %1172 = arith.select %1170, %1153, %1171 : vector<16x64xi1>, vector<16x64xf32>
    %cst_383 = arith.constant dense<0.000000e+00> : vector<16xf32>
    %1173 = vector.multi_reduction <add>, %1172, %cst_383 [1] : vector<16x64xf32> to vector<16xf32>
    %1174 = vector.shape_cast %1173 : vector<16xf32> to vector<16x1xf32>
    %cst_384 = arith.constant 1.000000e-30 : f32
    %1175 = vector.broadcast %cst_384 : f32 to vector<16x1xf32>
    %1176 = arith.maximumf %1174, %1175 : vector<16x1xf32>
    %1177 = tpu.reciprocal %1176 {approx = true} : vector<16x1xf32> -> vector<16x1xf32>
    %1178 = vector.shape_cast %23 : vector<1x64xi1> to vector<1x64xi1>
    %1179 = vector.broadcast %1178 : vector<1x64xi1> to vector<16x64xi1>
    %1180 = vector.shape_cast %1177 : vector<16x1xf32> to vector<16x1xf32>
    %1181 = vector.broadcast %1180 : vector<16x1xf32> to vector<16x64xf32>
    %1182 = arith.select %1179, %1181, %1168 : vector<16x64xi1>, vector<16x64xf32>
    %cst_385 = arith.constant 0.000000e+00 : f32
    %1183 = vector.shape_cast %28 : vector<1x64xi1> to vector<1x64xi1>
    %1184 = vector.broadcast %1183 : vector<1x64xi1> to vector<16x64xi1>
    %1185 = vector.broadcast %cst_385 : f32 to vector<16x64xf32>
    %1186 = arith.select %1184, %1153, %1185 : vector<16x64xi1>, vector<16x64xf32>
    %cst_386 = arith.constant dense<0.000000e+00> : vector<16xf32>
    %1187 = vector.multi_reduction <add>, %1186, %cst_386 [1] : vector<16x64xf32> to vector<16xf32>
    %1188 = vector.shape_cast %1187 : vector<16xf32> to vector<16x1xf32>
    %cst_387 = arith.constant 1.000000e-30 : f32
    %1189 = vector.broadcast %cst_387 : f32 to vector<16x1xf32>
    %1190 = arith.maximumf %1188, %1189 : vector<16x1xf32>
    %1191 = tpu.reciprocal %1190 {approx = true} : vector<16x1xf32> -> vector<16x1xf32>
    %1192 = vector.shape_cast %28 : vector<1x64xi1> to vector<1x64xi1>
    %1193 = vector.broadcast %1192 : vector<1x64xi1> to vector<16x64xi1>
    %1194 = vector.shape_cast %1191 : vector<16x1xf32> to vector<16x1xf32>
    %1195 = vector.broadcast %1194 : vector<16x1xf32> to vector<16x64xf32>
    %1196 = arith.select %1193, %1195, %1182 : vector<16x64xi1>, vector<16x64xf32>
    %cst_388 = arith.constant 0.000000e+00 : f32
    %1197 = vector.shape_cast %33 : vector<1x64xi1> to vector<1x64xi1>
    %1198 = vector.broadcast %1197 : vector<1x64xi1> to vector<16x64xi1>
    %1199 = vector.broadcast %cst_388 : f32 to vector<16x64xf32>
    %1200 = arith.select %1198, %1153, %1199 : vector<16x64xi1>, vector<16x64xf32>
    %cst_389 = arith.constant dense<0.000000e+00> : vector<16xf32>
    %1201 = vector.multi_reduction <add>, %1200, %cst_389 [1] : vector<16x64xf32> to vector<16xf32>
    %1202 = vector.shape_cast %1201 : vector<16xf32> to vector<16x1xf32>
    %cst_390 = arith.constant 1.000000e-30 : f32
    %1203 = vector.broadcast %cst_390 : f32 to vector<16x1xf32>
    %1204 = arith.maximumf %1202, %1203 : vector<16x1xf32>
    %1205 = tpu.reciprocal %1204 {approx = true} : vector<16x1xf32> -> vector<16x1xf32>
    %1206 = vector.shape_cast %33 : vector<1x64xi1> to vector<1x64xi1>
    %1207 = vector.broadcast %1206 : vector<1x64xi1> to vector<16x64xi1>
    %1208 = vector.shape_cast %1205 : vector<16x1xf32> to vector<16x1xf32>
    %1209 = vector.broadcast %1208 : vector<16x1xf32> to vector<16x64xf32>
    %1210 = arith.select %1207, %1209, %1196 : vector<16x64xi1>, vector<16x64xf32>
    %1211 = arith.mulf %1153, %1210 : vector<16x64xf32>
    %cst_391 = arith.constant dense<0.000000e+00> : vector<16x128xf32>
    %1212 = tpu.matmul %1211, %1102, %cst_391 {dimension_numbers = #tpu.dot_dimension_numbers<[1], [0], [0], [1], [0, 0, 1, 1], [], []>} : vector<16x64xf32>, vector<64x128xf32>, vector<16x128xf32> -> vector<16x128xf32>
    %cst_392 = arith.constant dense<0.000000e+00> : vector<16x128xf32>
    %1213 = tpu.matmul %1212, %1089, %cst_392 {dimension_numbers = #tpu.dot_dimension_numbers<[1], [0], [0], [1], [0, 0, 1, 1], [], []>} : vector<16x128xf32>, vector<128x128xf32>, vector<16x128xf32> -> vector<16x128xf32>
    %1214 = vector.broadcast %1091 : vector<1x128xf32> to vector<16x128xf32>
    %1215 = arith.addf %1213, %1214 : vector<16x128xf32>
    %c1_393 = arith.constant 1 : index
    %c0_394 = arith.constant 0 : index
    %c0_395 = arith.constant 0 : index
    %1216 = vector.load %arg26[%c1_393, %c0_394, %c0_395] : memref<2x2x128xf32, #tpu.memory_space<vmem>>, vector<1x2x128xf32>
    %1217 = vector.shape_cast %1216 : vector<1x2x128xf32> to vector<2x128xf32>
    %1218 = arith.addf %1071, %1215 : vector<16x128xf32>
    %1219 = vector.extract_strided_slice %1217 {offsets = [0, 0], sizes = [1, 128], strides = [1, 1]} : vector<2x128xf32> to vector<1x128xf32>
    %1220 = vector.extract_strided_slice %1217 {offsets = [1, 0], sizes = [1, 128], strides = [1, 1]} : vector<2x128xf32> to vector<1x128xf32>
    %cst_396 = arith.constant dense<0.000000e+00> : vector<16xf32>
    %1221 = vector.multi_reduction <add>, %1218, %cst_396 [1] : vector<16x128xf32> to vector<16xf32>
    %1222 = vector.shape_cast %1221 : vector<16xf32> to vector<16x1xf32>
    %cst_397 = arith.constant 0.0416666679 : f32
    %1223 = vector.broadcast %cst_397 : f32 to vector<16x1xf32>
    %1224 = arith.mulf %1222, %1223 : vector<16x1xf32>
    %1225 = arith.mulf %1218, %1218 : vector<16x128xf32>
    %cst_398 = arith.constant dense<0.000000e+00> : vector<16xf32>
    %1226 = vector.multi_reduction <add>, %1225, %cst_398 [1] : vector<16x128xf32> to vector<16xf32>
    %1227 = vector.shape_cast %1226 : vector<16xf32> to vector<16x1xf32>
    %cst_399 = arith.constant 0.0416666679 : f32
    %1228 = vector.broadcast %cst_399 : f32 to vector<16x1xf32>
    %1229 = arith.mulf %1227, %1228 : vector<16x1xf32>
    %1230 = arith.mulf %1224, %1224 : vector<16x1xf32>
    %1231 = arith.subf %1229, %1230 : vector<16x1xf32>
    %cst_400 = arith.constant 0.000000e+00 : f32
    %1232 = vector.broadcast %cst_400 : f32 to vector<16x1xf32>
    %1233 = arith.maximumf %1231, %1232 : vector<16x1xf32>
    %1234 = vector.broadcast %1224 : vector<16x1xf32> to vector<16x128xf32>
    %1235 = arith.subf %1218, %1234 : vector<16x128xf32>
    %cst_401 = arith.constant 9.99999996E-13 : f32
    %1236 = vector.broadcast %cst_401 : f32 to vector<16x1xf32>
    %1237 = arith.addf %1233, %1236 : vector<16x1xf32>
    %1238 = math.rsqrt %1237 : vector<16x1xf32>
    %1239 = vector.broadcast %1238 : vector<16x1xf32> to vector<16x128xf32>
    %1240 = arith.mulf %1235, %1239 : vector<16x128xf32>
    %1241 = vector.broadcast %1219 : vector<1x128xf32> to vector<16x128xf32>
    %1242 = arith.mulf %1240, %1241 : vector<16x128xf32>
    %1243 = vector.broadcast %1220 : vector<1x128xf32> to vector<16x128xf32>
    %1244 = arith.addf %1242, %1243 : vector<16x128xf32>
    %c1_402 = arith.constant 1 : index
    %c0_403 = arith.constant 0 : index
    %c0_404 = arith.constant 0 : index
    %1245 = vector.load %arg27[%c1_402, %c0_403, %c0_404] : memref<2x128x128xf32, #tpu.memory_space<vmem>>, vector<1x128x128xf32>
    %1246 = vector.shape_cast %1245 : vector<1x128x128xf32> to vector<128x128xf32>
    %cst_405 = arith.constant dense<0.000000e+00> : vector<16x128xf32>
    %1247 = tpu.matmul %1244, %1246, %cst_405 {dimension_numbers = #tpu.dot_dimension_numbers<[1], [0], [0], [1], [0, 0, 1, 1], [], []>} : vector<16x128xf32>, vector<128x128xf32>, vector<16x128xf32> -> vector<16x128xf32>
    %c1_406 = arith.constant 1 : index
    %c0_407 = arith.constant 0 : index
    %c0_408 = arith.constant 0 : index
    %1248 = vector.load %arg28[%c1_406, %c0_407, %c0_408] : memref<2x1x128xf32, #tpu.memory_space<vmem>>, vector<1x1x128xf32>
    %1249 = vector.shape_cast %1248 : vector<1x1x128xf32> to vector<1x128xf32>
    %1250 = vector.broadcast %1249 : vector<1x128xf32> to vector<16x128xf32>
    %1251 = arith.addf %1247, %1250 : vector<16x128xf32>
    %cst_409 = arith.constant 5.000000e-01 : f32
    %1252 = vector.broadcast %cst_409 : f32 to vector<16x128xf32>
    %1253 = arith.mulf %1252, %1251 : vector<16x128xf32>
    %cst_410 = arith.constant 4.471500e-02 : f32
    %1254 = vector.broadcast %cst_410 : f32 to vector<16x128xf32>
    %1255 = arith.mulf %1254, %1251 : vector<16x128xf32>
    %1256 = arith.mulf %1255, %1251 : vector<16x128xf32>
    %1257 = arith.mulf %1256, %1251 : vector<16x128xf32>
    %1258 = arith.addf %1251, %1257 : vector<16x128xf32>
    %cst_411 = arith.constant 0.797884583 : f32
    %1259 = vector.broadcast %cst_411 : f32 to vector<16x128xf32>
    %1260 = arith.mulf %1259, %1258 : vector<16x128xf32>
    %1261 = math.tanh %1260 : vector<16x128xf32>
    %cst_412 = arith.constant 1.000000e+00 : f32
    %1262 = vector.broadcast %cst_412 : f32 to vector<16x128xf32>
    %1263 = arith.addf %1262, %1261 : vector<16x128xf32>
    %1264 = arith.mulf %1253, %1263 : vector<16x128xf32>
    %c1_413 = arith.constant 1 : index
    %c0_414 = arith.constant 0 : index
    %c0_415 = arith.constant 0 : index
    %1265 = vector.load %arg29[%c1_413, %c0_414, %c0_415] : memref<2x128x128xf32, #tpu.memory_space<vmem>>, vector<1x128x128xf32>
    %1266 = vector.shape_cast %1265 : vector<1x128x128xf32> to vector<128x128xf32>
    %cst_416 = arith.constant dense<0.000000e+00> : vector<16x128xf32>
    %1267 = tpu.matmul %1264, %1266, %cst_416 {dimension_numbers = #tpu.dot_dimension_numbers<[1], [0], [0], [1], [0, 0, 1, 1], [], []>} : vector<16x128xf32>, vector<128x128xf32>, vector<16x128xf32> -> vector<16x128xf32>
    %c1_417 = arith.constant 1 : index
    %c0_418 = arith.constant 0 : index
    %c0_419 = arith.constant 0 : index
    %1268 = vector.load %arg30[%c1_417, %c0_418, %c0_419] : memref<2x1x128xf32, #tpu.memory_space<vmem>>, vector<1x1x128xf32>
    %1269 = vector.shape_cast %1268 : vector<1x1x128xf32> to vector<1x128xf32>
    %1270 = vector.broadcast %1269 : vector<1x128xf32> to vector<16x128xf32>
    %1271 = arith.addf %1267, %1270 : vector<16x128xf32>
    %c1_420 = arith.constant 1 : index
    %c0_421 = arith.constant 0 : index
    %c0_422 = arith.constant 0 : index
    %1272 = vector.load %arg31[%c1_420, %c0_421, %c0_422] : memref<2x2x128xf32, #tpu.memory_space<vmem>>, vector<1x2x128xf32>
    %1273 = vector.shape_cast %1272 : vector<1x2x128xf32> to vector<2x128xf32>
    %1274 = arith.addf %1244, %1271 : vector<16x128xf32>
    %1275 = vector.extract_strided_slice %1273 {offsets = [0, 0], sizes = [1, 128], strides = [1, 1]} : vector<2x128xf32> to vector<1x128xf32>
    %1276 = vector.extract_strided_slice %1273 {offsets = [1, 0], sizes = [1, 128], strides = [1, 1]} : vector<2x128xf32> to vector<1x128xf32>
    %cst_423 = arith.constant dense<0.000000e+00> : vector<16xf32>
    %1277 = vector.multi_reduction <add>, %1274, %cst_423 [1] : vector<16x128xf32> to vector<16xf32>
    %1278 = vector.shape_cast %1277 : vector<16xf32> to vector<16x1xf32>
    %cst_424 = arith.constant 0.0416666679 : f32
    %1279 = vector.broadcast %cst_424 : f32 to vector<16x1xf32>
    %1280 = arith.mulf %1278, %1279 : vector<16x1xf32>
    %1281 = arith.mulf %1274, %1274 : vector<16x128xf32>
    %cst_425 = arith.constant dense<0.000000e+00> : vector<16xf32>
    %1282 = vector.multi_reduction <add>, %1281, %cst_425 [1] : vector<16x128xf32> to vector<16xf32>
    %1283 = vector.shape_cast %1282 : vector<16xf32> to vector<16x1xf32>
    %cst_426 = arith.constant 0.0416666679 : f32
    %1284 = vector.broadcast %cst_426 : f32 to vector<16x1xf32>
    %1285 = arith.mulf %1283, %1284 : vector<16x1xf32>
    %1286 = arith.mulf %1280, %1280 : vector<16x1xf32>
    %1287 = arith.subf %1285, %1286 : vector<16x1xf32>
    %cst_427 = arith.constant 0.000000e+00 : f32
    %1288 = vector.broadcast %cst_427 : f32 to vector<16x1xf32>
    %1289 = arith.maximumf %1287, %1288 : vector<16x1xf32>
    %1290 = vector.broadcast %1280 : vector<16x1xf32> to vector<16x128xf32>
    %1291 = arith.subf %1274, %1290 : vector<16x128xf32>
    %cst_428 = arith.constant 9.99999996E-13 : f32
    %1292 = vector.broadcast %cst_428 : f32 to vector<16x1xf32>
    %1293 = arith.addf %1289, %1292 : vector<16x1xf32>
    %1294 = math.rsqrt %1293 : vector<16x1xf32>
    %1295 = vector.broadcast %1294 : vector<16x1xf32> to vector<16x128xf32>
    %1296 = arith.mulf %1291, %1295 : vector<16x128xf32>
    %1297 = vector.broadcast %1275 : vector<1x128xf32> to vector<16x128xf32>
    %1298 = arith.mulf %1296, %1297 : vector<16x128xf32>
    %1299 = vector.broadcast %1276 : vector<1x128xf32> to vector<16x128xf32>
    %1300 = arith.addf %1298, %1299 : vector<16x128xf32>
    %c0_429 = arith.constant 0 : index
    %c0_430 = arith.constant 0 : index
    %1301 = vector.load %arg34[%c0_429, %c0_430] : memref<16x128xf32, #tpu.memory_space<vmem>>, vector<16x128xf32>
    tpu.vector_store %arg34[%c0_429, %c0_430], %1300 {strides = array<i32>} : memref<16x128xf32, #tpu.memory_space<vmem>>, vector<16x128xf32>,
    %1302 = tpu.iota {dimensions = array<i32: 0>} : vector<2x16xi32>
    %1303 = tpu.iota {dimensions = array<i32: 1>} : vector<2x16xi32>
    %c8_i32 = arith.constant 8 : i32
    %1304 = vector.broadcast %c8_i32 : i32 to vector<2x16xi32>
    %1305 = arith.muli %1302, %1304 : vector<2x16xi32>
    %c3_i32 = arith.constant 3 : i32
    %1306 = vector.broadcast %c3_i32 : i32 to vector<2x16xi32>
    %1307 = arith.addi %1305, %1306 : vector<2x16xi32>
    %1308 = arith.cmpi eq, %1303, %1307 : vector<2x16xi32>
    %1309 = arith.extui %1308 : vector<2x16xi1> to vector<2x16xi32>
    %1310 = arith.sitofp %1309 : vector<2x16xi32> to vector<2x16xf32>
    %cst_431 = arith.constant dense<0.000000e+00> : vector<2x128xf32>
    %1311 = tpu.matmul %1310, %1300, %cst_431 {dimension_numbers = #tpu.dot_dimension_numbers<[1], [0], [0], [1], [0, 0, 1, 1], [], []>} : vector<2x16xf32>, vector<16x128xf32>, vector<2x128xf32> -> vector<2x128xf32>
    %1312 = arith.mulf %1311, %1311 : vector<2x128xf32>
    %cst_432 = arith.constant dense<0.000000e+00> : vector<2xf32>
    %1313 = vector.multi_reduction <add>, %1312, %cst_432 [1] : vector<2x128xf32> to vector<2xf32>
    %1314 = vector.shape_cast %1313 : vector<2xf32> to vector<2x1xf32>
    %cst_433 = arith.constant 1.000000e-24 : f32
    %1315 = vector.broadcast %cst_433 : f32 to vector<2x1xf32>
    %1316 = arith.maximumf %1314, %1315 : vector<2x1xf32>
    %1317 = math.rsqrt %1316 : vector<2x1xf32>
    %1318 = vector.broadcast %1317 : vector<2x1xf32> to vector<2x128xf32>
    %1319 = arith.mulf %1311, %1318 : vector<2x128xf32>
    %c0_434 = arith.constant 0 : index
    %c0_435 = arith.constant 0 : index
    %1320 = vector.load %arg32[%c0_434, %c0_435] : memref<128x128xf32, #tpu.memory_space<vmem>>, vector<128x128xf32>
    %cst_436 = arith.constant dense<0.000000e+00> : vector<2x128xf32>
    %1321 = tpu.matmul %1319, %1320, %cst_436 {dimension_numbers = #tpu.dot_dimension_numbers<[1], [0], [0], [1], [0, 0, 1, 1], [], []>} : vector<2x128xf32>, vector<128x128xf32>, vector<2x128xf32> -> vector<2x128xf32>
    %c0_437 = arith.constant 0 : index
    %c0_438 = arith.constant 0 : index
    %1322 = vector.load %arg33[%c0_437, %c0_438] : memref<1x128xf32, #tpu.memory_space<vmem>>, vector<1x128xf32>
    %1323 = vector.broadcast %1322 : vector<1x128xf32> to vector<2x128xf32>
    %1324 = arith.addf %1321, %1323 : vector<2x128xf32>
    %c0_439 = arith.constant 0 : index
    %c0_440 = arith.constant 0 : index
    %1325 = vector.load %arg35[%c0_439, %c0_440] : memref<2x128xf32, #tpu.memory_space<vmem>>, vector<2x128xf32>
    tpu.vector_store %arg35[%c0_439, %c0_440], %1324 {strides = array<i32>} : memref<2x128xf32, #tpu.memory_space<vmem>>, vector<2x128xf32>,
    return
  }
}

</mosaic_0001>

<llo_original>
// kernel: hf_transformer_forward.1
$region0: #{hf_transformer_forward.1}
  #allocation0 [shape = 'u32[]', space=smem, size = 0x4, offset = 0x4, fixed_abs, tag = 'smem constant byte address 0x4 - core index']
  #allocation1 [shape = 'u32[144,128]{1,0:T(1,128)}', space=vmem, size = 0x12000, scoped, tag = 'internal scratch']
  %s0 = inlined_call_operand.smem [shape: u32[36], index: -1, kind: input, shape index: {}]
  %s1 = sld [smem:[%s0]]
  %s2 = scalar_lea.smem %s0, 1
  %s3 = sld [smem:[%s2]]
  %s4 = scalar_lea.smem %s0, 2
  %s5 = sld [smem:[%s4]]
  %s6 = scalar_lea.smem %s0, 3
  %s7 = sld [smem:[%s6]]
  %s8 = scalar_lea.smem %s0, 4
  %s9 = sld [smem:[%s8]]
  %s10 = scalar_lea.smem %s0, 5
  %s11 = sld [smem:[%s10]]
  %s12 = scalar_lea.smem %s0, 6
  %s13 = sld [smem:[%s12]]
  %s14 = scalar_lea.smem %s0, 7
  %s15 = sld [smem:[%s14]]
  %s16 = scalar_lea.smem %s0, 8
  %s17 = sld [smem:[%s16]]
  %s18 = scalar_lea.smem %s0, 9
  %s19 = sld [smem:[%s18]]
  %s20 = scalar_lea.smem %s0, 10
  %s21 = sld [smem:[%s20]]
  %s22 = scalar_lea.smem %s0, 11
  %s23 = sld [smem:[%s22]]
  %s24 = scalar_lea.smem %s0, 12
  %s25 = sld [smem:[%s24]]
  %s26 = scalar_lea.smem %s0, 13
  %s27 = sld [smem:[%s26]]
  %s28 = scalar_lea.smem %s0, 14
  %s29 = sld [smem:[%s28]]
  %s30 = scalar_lea.smem %s0, 15
  %s31 = sld [smem:[%s30]]
  %s32 = scalar_lea.smem %s0, 16
  %s33 = sld [smem:[%s32]]
  %s34 = scalar_lea.smem %s0, 17
  %s35 = sld [smem:[%s34]]
  %s36 = scalar_lea.smem %s0, 18
  %s37 = sld [smem:[%s36]]
  %s38 = scalar_lea.smem %s0, 19
  %s39 = sld [smem:[%s38]]
  %s40 = scalar_lea.smem %s0, 20
  %s41 = sld [smem:[%s40]]
  %s42 = scalar_lea.smem %s0, 21
  %s43 = sld [smem:[%s42]]
  %s44 = scalar_lea.smem %s0, 22
  %s45 = sld [smem:[%s44]]
  %s46 = scalar_lea.smem %s0, 23
  %s47 = sld [smem:[%s46]]
  %s48 = scalar_lea.smem %s0, 24
  %s49 = sld [smem:[%s48]]
  %s50 = scalar_lea.smem %s0, 25
  %s51 = sld [smem:[%s50]]
  %s52 = scalar_lea.smem %s0, 26
  %s53 = sld [smem:[%s52]]
  %s54 = scalar_lea.smem %s0, 27
  %s55 = sld [smem:[%s54]]
  %s56 = scalar_lea.smem %s0, 28
  %s57 = sld [smem:[%s56]]
  %s58 = scalar_lea.smem %s0, 29
  %s59 = sld [smem:[%s58]]
  %s60 = scalar_lea.smem %s0, 30
  %s61 = sld [smem:[%s60]]
  %s62 = scalar_lea.smem %s0, 31
  %s63 = sld [smem:[%s62]]
  %s64 = scalar_lea.smem %s0, 32
  %s65 = sld [smem:[%s64]]
  %s66 = scalar_lea.smem %s0, 33
  %s67 = sld [smem:[%s66]]
  %s68 = scalar_lea.smem %s0, 34
  %s69 = sld [smem:[%s68]]
  %s70 = scalar_lea.smem %s0, 35
  %s71 = sld [smem:[%s70]]
  %72 = xla_tuple %s69, %s71
  %s73 = sld [smem:[#allocation0]]
  $region290: #{hf_transformer_forward.1} parent=0
    _
  %s75 = ssub.s32 1, %s73
  %s76 = scalar_select 0, %s75, %s73
  $region1: #{hf_transformer_forward.1} parent=0
    #allocation2 [shape = 'u8[8192]{0}', space=vmem, size = 0x2000, scoped, tag = 'input window, operand 0, single buffered']
    #allocation3 [shape = 's32[1]{0}', space=sflag, size = 0x4, scoped, tag = 'scoped memory for hf_transformer_forward.1']
    #allocation4 [shape = 's32[1]{0}', space=sflag, size = 0x4, scoped, tag = 'scoped memory for hf_transformer_forward.1']
    #allocation5 [shape = 'u8[8192]{0}', space=vmem, size = 0x2000, scoped, tag = 'input window, operand 1, single buffered']
    #allocation6 [shape = 's32[1]{0}', space=sflag, size = 0x4, scoped, tag = 'scoped memory for hf_transformer_forward.1']
    #allocation7 [shape = 'u8[8192]{0}', space=vmem, size = 0x2000, scoped, tag = 'input window, operand 2, single buffered']
    #allocation8 [shape = 'u8[8192]{0}', space=vmem, size = 0x2000, scoped, tag = 'input window, operand 3, single buffered']
    #allocation9 [shape = 's32[1]{0}', space=sflag, size = 0x4, scoped, tag = 'scoped memory for hf_transformer_forward.1']
    #allocation10 [shape = 'u8[8192]{0}', space=vmem, size = 0x2000, scoped, tag = 'input window, operand 4, single buffered']
    #allocation11 [shape = 'u8[393216]{0}', space=vmem, size = 0x60000, scoped, tag = 'input window, operand 5, single buffered']
    #allocation12 [shape = 's32[1]{0}', space=sflag, size = 0x4, scoped, tag = 'scoped memory for hf_transformer_forward.1']
    #allocation13 [shape = 'u8[3072]{0}', space=vmem, size = 0xc00, scoped, tag = 'input window, operand 6, single buffered']
    #allocation14 [shape = 'u8[131072]{0}', space=vmem, size = 0x20000, scoped, tag = 'input window, operand 7, single buffered']
    #allocation15 [shape = 's32[1]{0}', space=sflag, size = 0x4, scoped, tag = 'scoped memory for hf_transformer_forward.1']
    #allocation16 [shape = 'u8[1024]{0}', space=vmem, size = 0x400, scoped, tag = 'input window, operand 8, single buffered']
    #allocation17 [shape = 'u8[2048]{0}', space=vmem, size = 0x800, scoped, tag = 'input window, operand 9, single buffered']
    #allocation18 [shape = 's32[1]{0}', space=sflag, size = 0x4, scoped, tag = 'scoped memory for hf_transformer_forward.1']
    #allocation19 [shape = 'u8[131072]{0}', space=vmem, size = 0x20000, scoped, tag = 'input window, operand 10, single buffered']
    #allocation20 [shape = 'u8[1024]{0}', space=vmem, size = 0x400, scoped, tag = 'input window, operand 11, single buffered']
    #allocation21 [shape = 's32[1]{0}', space=sflag, size = 0x4, scoped, tag = 'scoped memory for hf_transformer_forward.1']
    #allocation22 [shape = 'u8[131072]{0}', space=vmem, size = 0x20000, scoped, tag = 'input window, operand 12, single buffered']
    #allocation23 [shape = 'u8[1024]{0}', space=vmem, size = 0x400, scoped, tag = 'input window, operand 13, single buffered']
    #allocation24 [shape = 's32[1]{0}', space=sflag, size = 0x4, scoped, tag = 'scoped memory for hf_transformer_forward.1']
    #allocation25 [shape = 'u8[2048]{0}', space=vmem, size = 0x800, scoped, tag = 'input window, operand 14, single buffered']
    #allocation26 [shape = 'u8[393216]{0}', space=vmem, size = 0x60000, scoped, tag = 'input window, operand 15, single buffered']
    #allocation27 [shape = 's32[1]{0}', space=sflag, size = 0x4, scoped, tag = 'scoped memory for hf_transformer_forward.1']
    #allocation28 [shape = 'u8[3072]{0}', space=vmem, size = 0xc00, scoped, tag = 'input window, operand 16, single buffered']
    #allocation29 [shape = 'u8[131072]{0}', space=vmem, size = 0x20000, scoped, tag = 'input window, operand 17, single buffered']
    #allocation30 [shape = 's32[1]{0}', space=sflag, size = 0x4, scoped, tag = 'scoped memory for hf_transformer_forward.1']
    #allocation31 [shape = 'u8[1024]{0}', space=vmem, size = 0x400, scoped, tag = 'input window, operand 18, single buffered']
    #allocation32 [shape = 'u8[2048]{0}', space=vmem, size = 0x800, scoped, tag = 'input window, operand 19, single buffered']
    #allocation33 [shape = 's32[1]{0}', space=sflag, size = 0x4, scoped, tag = 'scoped memory for hf_transformer_forward.1']
    #allocation34 [shape = 'u8[131072]{0}', space=vmem, size = 0x20000, scoped, tag = 'input window, operand 20, single buffered']
    #allocation35 [shape = 'u8[1024]{0}', space=vmem, size = 0x400, scoped, tag = 'input window, operand 21, single buffered']
    #allocation36 [shape = 's32[1]{0}', space=sflag, size = 0x4, scoped, tag = 'scoped memory for hf_transformer_forward.1']
    #allocation37 [shape = 'u8[262144]{0}', space=vmem, size = 0x40000, scoped, tag = 'input window, operand 22, single buffered']
    #allocation38 [shape = 'u8[2048]{0}', space=vmem, size = 0x800, scoped, tag = 'input window, operand 23, single buffered']
    #allocation39 [shape = 's32[1]{0}', space=sflag, size = 0x4, scoped, tag = 'scoped memory for hf_transformer_forward.1']
    #allocation40 [shape = 'u8[131072]{0}', space=vmem, size = 0x20000, scoped, tag = 'input window, operand 24, single buffered']
    #allocation41 [shape = 'u8[1024]{0}', space=vmem, size = 0x400, scoped, tag = 'input window, operand 25, single buffered']
    #allocation42 [shape = 's32[1]{0}', space=sflag, size = 0x4, scoped, tag = 'scoped memory for hf_transformer_forward.1']
    #allocation43 [shape = 'u8[2048]{0}', space=vmem, size = 0x800, scoped, tag = 'input window, operand 26, single buffered']
    #allocation44 [shape = 'u8[131072]{0}', space=vmem, size = 0x20000, scoped, tag = 'input window, operand 27, single buffered']
    #allocation45 [shape = 's32[1]{0}', space=sflag, size = 0x4, scoped, tag = 'scoped memory for hf_transformer_forward.1']
    #allocation46 [shape = 'u8[1024]{0}', space=vmem, size = 0x400, scoped, tag = 'input window, operand 28, single buffered']
    #allocation47 [shape = 'u8[131072]{0}', space=vmem, size = 0x20000, scoped, tag = 'input window, operand 29, single buffered']
    #allocation48 [shape = 's32[1]{0}', space=sflag, size = 0x4, scoped, tag = 'scoped memory for hf_transformer_forward.1']
    #allocation49 [shape = 'u8[1024]{0}', space=vmem, size = 0x400, scoped, tag = 'input window, operand 30, single buffered']
    #allocation50 [shape = 'u8[2048]{0}', space=vmem, size = 0x800, scoped, tag = 'input window, operand 31, single buffered']
    #allocation51 [shape = 's32[1]{0}', space=sflag, size = 0x4, scoped, tag = 'scoped memory for hf_transformer_forward.1']
    #allocation52 [shape = 'u8[65536]{0}', space=vmem, size = 0x10000, scoped, tag = 'input window, operand 32, single buffered']
    #allocation53 [shape = 'u8[512]{0}', space=vmem, size = 0x400, scoped, tag = 'input window, operand 33, single buffered']
    #allocation54 [shape = 's32[1]{0}', space=sflag, size = 0x4, scoped, tag = 'scoped memory for hf_transformer_forward.1']
    #allocation55 [shape = 'u8[8192]{0}', space=vmem, size = 0x2000, scoped, tag = 'output window, operand 0, single buffered']
    #allocation56 [shape = 'u8[1024]{0}', space=vmem, size = 0x400, scoped, tag = 'output window, operand 1, single buffered']
    #allocation57 [shape = 's32[1]{0}', space=sflag, size = 0x4, scoped, tag = 'scoped memory for hf_transformer_forward.1']
    %77 = vsyncpa [#allocation3], 0
    %78 = vsyncpa [#allocation6], 0
    %79 = vsyncpa [#allocation9], 0
    %80 = vsyncpa [#allocation12], 0
    %81 = vsyncpa [#allocation15], 0
    %82 = vsyncpa [#allocation18], 0
    %83 = vsyncpa [#allocation21], 0
    %84 = vsyncpa [#allocation24], 0
    %85 = vsyncpa [#allocation27], 0
    %86 = vsyncpa [#allocation30], 0
    %87 = vsyncpa [#allocation33], 0
    %88 = vsyncpa [#allocation36], 0
    %89 = vsyncpa [#allocation39], 0
    %90 = vsyncpa [#allocation42], 0
    %91 = vsyncpa [#allocation45], 0
    %92 = vsyncpa [#allocation48], 0
    %93 = vsyncpa [#allocation51], 0
    %94 = vsyncpa [#allocation54], 0
    %95 = vsyncpa [#allocation4], 0
    %96 = vsyncpa [#allocation57], 0
    // Predicated region
    $region2: #{hf_transformer_forward.1} parent=1 // pred_check
      _
    $region3: #{hf_transformer_forward.1} parent=1 // pred_check_branch
      %98 = sbr.rel (0) target = $region5
    $region4: #{hf_transformer_forward.1} parent=1 // pred_region
      %s100 = ssub.s32 256, 256
      %101 = vsyncadd [#allocation3], %s100
      %s102 = sshll.u32 [#allocation2], 4
      %s103 = int_to_ptr.vmem [resolvable:$true] %s102
      %108 = dma.hbm_to_vmem [thread:$0]  %s1, 256, %s103, [#allocation3], 128, 128, 8
    $region5: #{hf_transformer_forward.1} parent=1 // pred_fallthru
      _
    // Predicated region
    $region6: #{hf_transformer_forward.1} parent=1 // pred_check
      _
    $region7: #{hf_transformer_forward.1} parent=1 // pred_check_branch
      %110 = sbr.rel (0) target = $region9
    $region8: #{hf_transformer_forward.1} parent=1 // pred_region
      %s112 = ssub.s32 256, 256
      %113 = vsyncadd [#allocation6], %s112
      %s114 = sshll.u32 [#allocation5], 4
      %s115 = int_to_ptr.vmem [resolvable:$true] %s114
      %120 = dma.hbm_to_vmem [thread:$0]  %s3, 256, %s115, [#allocation6], 128, 128, 8
    $region9: #{hf_transformer_forward.1} parent=1 // pred_fallthru
      _
    // Predicated region
    $region10: #{hf_transformer_forward.1} parent=1 // pred_check
      _
    $region11: #{hf_transformer_forward.1} parent=1 // pred_check_branch
      %122 = sbr.rel (0) target = $region13
    $region12: #{hf_transformer_forward.1} parent=1 // pred_region
      %s124 = ssub.s32 256, 256
      %125 = vsyncadd [#allocation6], %s124
      %s126 = sshll.u32 [#allocation7], 4
      %s127 = int_to_ptr.vmem [resolvable:$true] %s126
      %132 = dma.hbm_to_vmem [thread:$0]  %s5, 256, %s127, [#allocation6], 128, 128, 8
    $region13: #{hf_transformer_forward.1} parent=1 // pred_fallthru
      _
    // Predicated region
    $region14: #{hf_transformer_forward.1} parent=1 // pred_check
      _
    $region15: #{hf_transformer_forward.1} parent=1 // pred_check_branch
      %134 = sbr.rel (0) target = $region17
    $region16: #{hf_transformer_forward.1} parent=1 // pred_region
      %s136 = ssub.s32 256, 256
      %137 = vsyncadd [#allocation9], %s136
      %s138 = sshll.u32 [#allocation8], 4
      %s139 = int_to_ptr.vmem [resolvable:$true] %s138
      %144 = dma.hbm_to_vmem [thread:$0]  %s7, 256, %s139, [#allocation9], 128, 128, 8
    $region17: #{hf_transformer_forward.1} parent=1 // pred_fallthru
      _
    // Predicated region
    $region18: #{hf_transformer_forward.1} parent=1 // pred_check
      _
    $region19: #{hf_transformer_forward.1} parent=1 // pred_check_branch
      %146 = sbr.rel (0) target = $region21
    $region20: #{hf_transformer_forward.1} parent=1 // pred_region
      %s148 = ssub.s32 256, 256
      %149 = vsyncadd [#allocation9], %s148
      %s150 = sshll.u32 [#allocation10], 4
      %s151 = int_to_ptr.vmem [resolvable:$true] %s150
      %156 = dma.hbm_to_vmem [thread:$0]  %s9, 256, %s151, [#allocation9], 128, 128, 8
    $region21: #{hf_transformer_forward.1} parent=1 // pred_fallthru
      _
    // Predicated region
    $region22: #{hf_transformer_forward.1} parent=1 // pred_check
      _
    $region23: #{hf_transformer_forward.1} parent=1 // pred_check_branch
      %158 = sbr.rel (0) target = $region25
    $region24: #{hf_transformer_forward.1} parent=1 // pred_region
      %s160 = ssub.s32 12288, 12288
      %161 = vsyncadd [#allocation12], %s160
      %s162 = sshll.u32 [#allocation11], 4
      %s163 = int_to_ptr.vmem [resolvable:$true] %s162
      %168 = dma.hbm_to_vmem [thread:$0]  %s11, 12288, %s163, [#allocation12], 384, 384, 24
    $region25: #{hf_transformer_forward.1} parent=1 // pred_fallthru
      _
    // Predicated region
    $region26: #{hf_transformer_forward.1} parent=1 // pred_check
      _
    $region27: #{hf_transformer_forward.1} parent=1 // pred_check_branch
      %170 = sbr.rel (0) target = $region29
    $region28: #{hf_transformer_forward.1} parent=1 // pred_region
      %s172 = ssub.s32 96, 96
      %173 = vsyncadd [#allocation12], %s172
      %s174 = sshll.u32 [#allocation13], 4
      %s175 = int_to_ptr.vmem [resolvable:$true] %s174
      %180 = dma.hbm_to_vmem [thread:$0]  %s13, 96, %s175, [#allocation12], 48, 48, 3
    $region29: #{hf_transformer_forward.1} parent=1 // pred_fallthru
      _
    // Predicated region
    $region30: #{hf_transformer_forward.1} parent=1 // pred_check
      _
    $region31: #{hf_transformer_forward.1} parent=1 // pred_check_branch
      %182 = sbr.rel (0) target = $region33
    $region32: #{hf_transformer_forward.1} parent=1 // pred_region
      %s184 = ssub.s32 4096, 4096
      %185 = vsyncadd [#allocation15], %s184
      %s186 = sshll.u32 [#allocation14], 4
      %s187 = int_to_ptr.vmem [resolvable:$true] %s186
      %192 = dma.hbm_to_vmem [thread:$0]  %s15, 4096, %s187, [#allocation15], 128, 128, 8
    $region33: #{hf_transformer_forward.1} parent=1 // pred_fallthru
      _
    // Predicated region
    $region34: #{hf_transformer_forward.1} parent=1 // pred_check
      _
    $region35: #{hf_transformer_forward.1} parent=1 // pred_check_branch
      %194 = sbr.rel (0) target = $region37
    $region36: #{hf_transformer_forward.1} parent=1 // pred_region
      %s196 = ssub.s32 32, 32
      %197 = vsyncadd [#allocation15], %s196
      %s198 = sshll.u32 [#allocation16], 4
      %s199 = int_to_ptr.vmem [resolvable:$true] %s198
      %204 = dma.hbm_to_vmem [thread:$0]  %s17, 32, %s199, [#allocation15], 16, 16, 1
    $region37: #{hf_transformer_forward.1} parent=1 // pred_fallthru
      _
    // Predicated region
    $region38: #{hf_transformer_forward.1} parent=1 // pred_check
      _
    $region39: #{hf_transformer_forward.1} parent=1 // pred_check_branch
      %206 = sbr.rel (0) target = $region41
    $region40: #{hf_transformer_forward.1} parent=1 // pred_region
      %s208 = ssub.s32 64, 64
      %209 = vsyncadd [#allocation18], %s208
      %s210 = sshll.u32 [#allocation17], 4
      %s211 = int_to_ptr.vmem [resolvable:$true] %s210
      %216 = dma.hbm_to_vmem [thread:$0]  %s19, 64, %s211, [#allocation18], 32, 32, 2
    $region41: #{hf_transformer_forward.1} parent=1 // pred_fallthru
      _
    // Predicated region
    $region42: #{hf_transformer_forward.1} parent=1 // pred_check
      _
    $region43: #{hf_transformer_forward.1} parent=1 // pred_check_branch
      %218 = sbr.rel (0) target = $region45
    $region44: #{hf_transformer_forward.1} parent=1 // pred_region
      %s220 = ssub.s32 4096, 4096
      %221 = vsyncadd [#allocation18], %s220
      %s222 = sshll.u32 [#allocation19], 4
      %s223 = int_to_ptr.vmem [resolvable:$true] %s222
      %228 = dma.hbm_to_vmem [thread:$0]  %s21, 4096, %s223, [#allocation18], 128, 128, 8
    $region45: #{hf_transformer_forward.1} parent=1 // pred_fallthru
      _
    // Predicated region
    $region46: #{hf_transformer_forward.1} parent=1 // pred_check
      _
    $region47: #{hf_transformer_forward.1} parent=1 // pred_check_branch
      %230 = sbr.rel (0) target = $region49
    $region48: #{hf_transformer_forward.1} parent=1 // pred_region
      %s232 = ssub.s32 32, 32
      %233 = vsyncadd [#allocation21], %s232
      %s234 = sshll.u32 [#allocation20], 4
      %s235 = int_to_ptr.vmem [resolvable:$true] %s234
      %240 = dma.hbm_to_vmem [thread:$0]  %s23, 32, %s235, [#allocation21], 16, 16, 1
    $region49: #{hf_transformer_forward.1} parent=1 // pred_fallthru
      _
    // Predicated region
    $region50: #{hf_transformer_forward.1} parent=1 // pred_check
      _
    $region51: #{hf_transformer_forward.1} parent=1 // pred_check_branch
      %242 = sbr.rel (0) target = $region53
    $region52: #{hf_transformer_forward.1} parent=1 // pred_region
      %s244 = ssub.s32 4096, 4096
      %245 = vsyncadd [#allocation21], %s244
      %s246 = sshll.u32 [#allocation22], 4
      %s247 = int_to_ptr.vmem [resolvable:$true] %s246
      %252 = dma.hbm_to_vmem [thread:$0]  %s25, 4096, %s247, [#allocation21], 128, 128, 8
    $region53: #{hf_transformer_forward.1} parent=1 // pred_fallthru
      _
    // Predicated region
    $region54: #{hf_transformer_forward.1} parent=1 // pred_check
      _
    $region55: #{hf_transformer_forward.1} parent=1 // pred_check_branch
      %254 = sbr.rel (0) target = $region57
    $region56: #{hf_transformer_forward.1} parent=1 // pred_region
      %s256 = ssub.s32 32, 32
      %257 = vsyncadd [#allocation24], %s256
      %s258 = sshll.u32 [#allocation23], 4
      %s259 = int_to_ptr.vmem [resolvable:$true] %s258
      %264 = dma.hbm_to_vmem [thread:$0]  %s27, 32, %s259, [#allocation24], 16, 16, 1
    $region57: #{hf_transformer_forward.1} parent=1 // pred_fallthru
      _
    // Predicated region
    $region58: #{hf_transformer_forward.1} parent=1 // pred_check
      _
    $region59: #{hf_transformer_forward.1} parent=1 // pred_check_branch
      %266 = sbr.rel (0) target = $region61
    $region60: #{hf_transformer_forward.1} parent=1 // pred_region
      %s268 = ssub.s32 64, 64
      %269 = vsyncadd [#allocation24], %s268
      %s270 = sshll.u32 [#allocation25], 4
      %s271 = int_to_ptr.vmem [resolvable:$true] %s270
      %276 = dma.hbm_to_vmem [thread:$0]  %s29, 64, %s271, [#allocation24], 32, 32, 2
    $region61: #{hf_transformer_forward.1} parent=1 // pred_fallthru
      _
    // Predicated region
    $region62: #{hf_transformer_forward.1} parent=1 // pred_check
      _
    $region63: #{hf_transformer_forward.1} parent=1 // pred_check_branch
      %278 = sbr.rel (0) target = $region65
    $region64: #{hf_transformer_forward.1} parent=1 // pred_region
      %s280 = ssub.s32 12288, 12288
      %281 = vsyncadd [#allocation27], %s280
      %s282 = sshll.u32 [#allocation26], 4
      %s283 = int_to_ptr.vmem [resolvable:$true] %s282
      %288 = dma.hbm_to_vmem [thread:$0]  %s31, 12288, %s283, [#allocation27], 384, 384, 24
    $region65: #{hf_transformer_forward.1} parent=1 // pred_fallthru
      _
    // Predicated region
    $region66: #{hf_transformer_forward.1} parent=1 // pred_check
      _
    $region67: #{hf_transformer_forward.1} parent=1 // pred_check_branch
      %290 = sbr.rel (0) target = $region69
    $region68: #{hf_transformer_forward.1} parent=1 // pred_region
      %s292 = ssub.s32 96, 96
      %293 = vsyncadd [#allocation27], %s292
      %s294 = sshll.u32 [#allocation28], 4
      %s295 = int_to_ptr.vmem [resolvable:$true] %s294
      %300 = dma.hbm_to_vmem [thread:$0]  %s33, 96, %s295, [#allocation27], 48, 48, 3
    $region69: #{hf_transformer_forward.1} parent=1 // pred_fallthru
      _
    // Predicated region
    $region70: #{hf_transformer_forward.1} parent=1 // pred_check
      _
    $region71: #{hf_transformer_forward.1} parent=1 // pred_check_branch
      %302 = sbr.rel (0) target = $region73
    $region72: #{hf_transformer_forward.1} parent=1 // pred_region
      %s304 = ssub.s32 4096, 4096
      %305 = vsyncadd [#allocation30], %s304
      %s306 = sshll.u32 [#allocation29], 4
      %s307 = int_to_ptr.vmem [resolvable:$true] %s306
      %312 = dma.hbm_to_vmem [thread:$0]  %s35, 4096, %s307, [#allocation30], 128, 128, 8
    $region73: #{hf_transformer_forward.1} parent=1 // pred_fallthru
      _
    // Predicated region
    $region74: #{hf_transformer_forward.1} parent=1 // pred_check
      _
    $region75: #{hf_transformer_forward.1} parent=1 // pred_check_branch
      %314 = sbr.rel (0) target = $region77
    $region76: #{hf_transformer_forward.1} parent=1 // pred_region
      %s316 = ssub.s32 32, 32
      %317 = vsyncadd [#allocation30], %s316
      %s318 = sshll.u32 [#allocation31], 4
      %s319 = int_to_ptr.vmem [resolvable:$true] %s318
      %324 = dma.hbm_to_vmem [thread:$0]  %s37, 32, %s319, [#allocation30], 16, 16, 1
    $region77: #{hf_transformer_forward.1} parent=1 // pred_fallthru
      _
    // Predicated region
    $region78: #{hf_transformer_forward.1} parent=1 // pred_check
      _
    $region79: #{hf_transformer_forward.1} parent=1 // pred_check_branch
      %326 = sbr.rel (0) target = $region81
    $region80: #{hf_transformer_forward.1} parent=1 // pred_region
      %s328 = ssub.s32 64, 64
      %329 = vsyncadd [#allocation33], %s328
      %s330 = sshll.u32 [#allocation32], 4
      %s331 = int_to_ptr.vmem [resolvable:$true] %s330
      %336 = dma.hbm_to_vmem [thread:$0]  %s39, 64, %s331, [#allocation33], 32, 32, 2
    $region81: #{hf_transformer_forward.1} parent=1 // pred_fallthru
      _
    // Predicated region
    $region82: #{hf_transformer_forward.1} parent=1 // pred_check
      _
    $region83: #{hf_transformer_forward.1} parent=1 // pred_check_branch
      %338 = sbr.rel (0) target = $region85
    $region84: #{hf_transformer_forward.1} parent=1 // pred_region
      %s340 = ssub.s32 4096, 4096
      %341 = vsyncadd [#allocation33], %s340
      %s342 = sshll.u32 [#allocation34], 4
      %s343 = int_to_ptr.vmem [resolvable:$true] %s342
      %348 = dma.hbm_to_vmem [thread:$0]  %s41, 4096, %s343, [#allocation33], 128, 128, 8
    $region85: #{hf_transformer_forward.1} parent=1 // pred_fallthru
      _
    // Predicated region
    $region86: #{hf_transformer_forward.1} parent=1 // pred_check
      _
    $region87: #{hf_transformer_forward.1} parent=1 // pred_check_branch
      %350 = sbr.rel (0) target = $region89
    $region88: #{hf_transformer_forward.1} parent=1 // pred_region
      %s352 = ssub.s32 32, 32
      %353 = vsyncadd [#allocation36], %s352
      %s354 = sshll.u32 [#allocation35], 4
      %s355 = int_to_ptr.vmem [resolvable:$true] %s354
      %360 = dma.hbm_to_vmem [thread:$0]  %s43, 32, %s355, [#allocation36], 16, 16, 1
    $region89: #{hf_transformer_forward.1} parent=1 // pred_fallthru
      _
    // Predicated region
    $region90: #{hf_transformer_forward.1} parent=1 // pred_check
      _
    $region91: #{hf_transformer_forward.1} parent=1 // pred_check_branch
      %362 = sbr.rel (0) target = $region93
    $region92: #{hf_transformer_forward.1} parent=1 // pred_region
      %s364 = ssub.s32 8192, 8192
      %365 = vsyncadd [#allocation36], %s364
      %s366 = sshll.u32 [#allocation37], 4
      %s367 = int_to_ptr.vmem [resolvable:$true] %s366
      %372 = dma.hbm_to_vmem [thread:$0]  %s45, 8192, %s367, [#allocation36], 256, 256, 16
    $region93: #{hf_transformer_forward.1} parent=1 // pred_fallthru
      _
    // Predicated region
    $region94: #{hf_transformer_forward.1} parent=1 // pred_check
      _
    $region95: #{hf_transformer_forward.1} parent=1 // pred_check_branch
      %374 = sbr.rel (0) target = $region97
    $region96: #{hf_transformer_forward.1} parent=1 // pred_region
      %s376 = ssub.s32 64, 64
      %377 = vsyncadd [#allocation39], %s376
      %s378 = sshll.u32 [#allocation38], 4
      %s379 = int_to_ptr.vmem [resolvable:$true] %s378
      %384 = dma.hbm_to_vmem [thread:$0]  %s47, 64, %s379, [#allocation39], 32, 32, 2
    $region97: #{hf_transformer_forward.1} parent=1 // pred_fallthru
      _
    // Predicated region
    $region98: #{hf_transformer_forward.1} parent=1 // pred_check
      _
    $region99: #{hf_transformer_forward.1} parent=1 // pred_check_branch
      %386 = sbr.rel (0) target = $region101
    $region100: #{hf_transformer_forward.1} parent=1 // pred_region
      %s388 = ssub.s32 4096, 4096
      %389 = vsyncadd [#allocation39], %s388
      %s390 = sshll.u32 [#allocation40], 4
      %s391 = int_to_ptr.vmem [resolvable:$true] %s390
      %396 = dma.hbm_to_vmem [thread:$0]  %s49, 4096, %s391, [#allocation39], 128, 128, 8
    $region101: #{hf_transformer_forward.1} parent=1 // pred_fallthru
      _
    // Predicated region
    $region102: #{hf_transformer_forward.1} parent=1 // pred_check
      _
    $region103: #{hf_transformer_forward.1} parent=1 // pred_check_branch
      %398 = sbr.rel (0) target = $region105
    $region104: #{hf_transformer_forward.1} parent=1 // pred_region
      %s400 = ssub.s32 32, 32
      %401 = vsyncadd [#allocation42], %s400
      %s402 = sshll.u32 [#allocation41], 4
      %s403 = int_to_ptr.vmem [resolvable:$true] %s402
      %408 = dma.hbm_to_vmem [thread:$0]  %s51, 32, %s403, [#allocation42], 16, 16, 1
    $region105: #{hf_transformer_forward.1} parent=1 // pred_fallthru
      _
    // Predicated region
    $region106: #{hf_transformer_forward.1} parent=1 // pred_check
      _
    $region107: #{hf_transformer_forward.1} parent=1 // pred_check_branch
      %410 = sbr.rel (0) target = $region109
    $region108: #{hf_transformer_forward.1} parent=1 // pred_region
      %s412 = ssub.s32 64, 64
      %413 = vsyncadd [#allocation42], %s412
      %s414 = sshll.u32 [#allocation43], 4
      %s415 = int_to_ptr.vmem [resolvable:$true] %s414
      %420 = dma.hbm_to_vmem [thread:$0]  %s53, 64, %s415, [#allocation42], 32, 32, 2
    $region109: #{hf_transformer_forward.1} parent=1 // pred_fallthru
      _
    // Predicated region
    $region110: #{hf_transformer_forward.1} parent=1 // pred_check
      _
    $region111: #{hf_transformer_forward.1} parent=1 // pred_check_branch
      %422 = sbr.rel (0) target = $region113
    $region112: #{hf_transformer_forward.1} parent=1 // pred_region
      %s424 = ssub.s32 4096, 4096
      %425 = vsyncadd [#allocation45], %s424
      %s426 = sshll.u32 [#allocation44], 4
      %s427 = int_to_ptr.vmem [resolvable:$true] %s426
      %432 = dma.hbm_to_vmem [thread:$0]  %s55, 4096, %s427, [#allocation45], 128, 128, 8
    $region113: #{hf_transformer_forward.1} parent=1 // pred_fallthru
      _
    // Predicated region
    $region114: #{hf_transformer_forward.1} parent=1 // pred_check
      _
    $region115: #{hf_transformer_forward.1} parent=1 // pred_check_branch
      %434 = sbr.rel (0) target = $region117
    $region116: #{hf_transformer_forward.1} parent=1 // pred_region
      %s436 = ssub.s32 32, 32
      %437 = vsyncadd [#allocation45], %s436
      %s438 = sshll.u32 [#allocation46], 4
      %s439 = int_to_ptr.vmem [resolvable:$true] %s438
      %444 = dma.hbm_to_vmem [thread:$0]  %s57, 32, %s439, [#allocation45], 16, 16, 1
    $region117: #{hf_transformer_forward.1} parent=1 // pred_fallthru
      _
    // Predicated region
    $region118: #{hf_transformer_forward.1} parent=1 // pred_check
      _
    $region119: #{hf_transformer_forward.1} parent=1 // pred_check_branch
      %446 = sbr.rel (0) target = $region121
    $region120: #{hf_transformer_forward.1} parent=1 // pred_region
      %s448 = ssub.s32 4096, 4096
      %449 = vsyncadd [#allocation48], %s448
      %s450 = sshll.u32 [#allocation47], 4
      %s451 = int_to_ptr.vmem [resolvable:$true] %s450
      %456 = dma.hbm_to_vmem [thread:$0]  %s59, 4096, %s451, [#allocation48], 128, 128, 8
    $region121: #{hf_transformer_forward.1} parent=1 // pred_fallthru
      _
    // Predicated region
    $region122: #{hf_transformer_forward.1} parent=1 // pred_check
      _
    $region123: #{hf_transformer_forward.1} parent=1 // pred_check_branch
      %458 = sbr.rel (0) target = $region125
    $region124: #{hf_transformer_forward.1} parent=1 // pred_region
      %s460 = ssub.s32 32, 32
      %461 = vsyncadd [#allocation48], %s460
      %s462 = sshll.u32 [#allocation49], 4
      %s463 = int_to_ptr.vmem [resolvable:$true] %s462
      %468 = dma.hbm_to_vmem [thread:$0]  %s61, 32, %s463, [#allocation48], 16, 16, 1
    $region125: #{hf_transformer_forward.1} parent=1 // pred_fallthru
      _
    // Predicated region
    $region126: #{hf_transformer_forward.1} parent=1 // pred_check
      _
    $region127: #{hf_transformer_forward.1} parent=1 // pred_check_branch
      %470 = sbr.rel (0) target = $region129
    $region128: #{hf_transformer_forward.1} parent=1 // pred_region
      %s472 = ssub.s32 64, 64
      %473 = vsyncadd [#allocation51], %s472
      %s474 = sshll.u32 [#allocation50], 4
      %s475 = int_to_ptr.vmem [resolvable:$true] %s474
      %480 = dma.hbm_to_vmem [thread:$0]  %s63, 64, %s475, [#allocation51], 32, 32, 2
    $region129: #{hf_transformer_forward.1} parent=1 // pred_fallthru
      _
    // Predicated region
    $region130: #{hf_transformer_forward.1} parent=1 // pred_check
      _
    $region131: #{hf_transformer_forward.1} parent=1 // pred_check_branch
      %482 = sbr.rel (0) target = $region133
    $region132: #{hf_transformer_forward.1} parent=1 // pred_region
      %s484 = ssub.s32 2048, 2048
      %485 = vsyncadd [#allocation51], %s484
      %s486 = sshll.u32 [#allocation52], 4
      %s487 = int_to_ptr.vmem [resolvable:$true] %s486
      %492 = dma.hbm_to_vmem [thread:$0]  %s65, 2048, %s487, [#allocation51], 128, 128, 8
    $region133: #{hf_transformer_forward.1} parent=1 // pred_fallthru
      _
    // Predicated region
    $region134: #{hf_transformer_forward.1} parent=1 // pred_check
      _
    $region135: #{hf_transformer_forward.1} parent=1 // pred_check_branch
      %494 = sbr.rel (0) target = $region137
    $region136: #{hf_transformer_forward.1} parent=1 // pred_region
      %s496 = ssub.s32 16, 16
      %497 = vsyncadd [#allocation54], %s496
      %s499 = sshll.u32 [#allocation53], 4
      %s500 = int_to_ptr.vmem [resolvable:$true] %s499
      %502 = dma.hbm_to_vmem [thread:$0]  %s67, 16, %s500, [#allocation54]
    $region137: #{hf_transformer_forward.1} parent=1 // pred_fallthru
      _
    // Predicated region
    $region138: #{hf_transformer_forward.1} parent=1 // pred_check
      _
    $region139: #{hf_transformer_forward.1} parent=1 // pred_check_branch
      %504 = sbr.rel (0) target = $region141
    $region140: #{hf_transformer_forward.1} parent=1 // pred_region
      %505 = dma.done [#allocation3], 256
    $region141: #{hf_transformer_forward.1} parent=1 // pred_fallthru
      _
    // Predicated region
    $region142: #{hf_transformer_forward.1} parent=1 // pred_check
      _
    $region143: #{hf_transformer_forward.1} parent=1 // pred_check_branch
      %507 = sbr.rel (0) target = $region145
    $region144: #{hf_transformer_forward.1} parent=1 // pred_region
      %508 = dma.done [#allocation6], 256
    $region145: #{hf_transformer_forward.1} parent=1 // pred_fallthru
      _
    // Predicated region
    $region146: #{hf_transformer_forward.1} parent=1 // pred_check
      _
    $region147: #{hf_transformer_forward.1} parent=1 // pred_check_branch
      %510 = sbr.rel (0) target = $region149
    $region148: #{hf_transformer_forward.1} parent=1 // pred_region
      %511 = dma.done [#allocation6], 256
    $region149: #{hf_transformer_forward.1} parent=1 // pred_fallthru
      _
    // Predicated region
    $region150: #{hf_transformer_forward.1} parent=1 // pred_check
      _
    $region151: #{hf_transformer_forward.1} parent=1 // pred_check_branch
      %513 = sbr.rel (0) target = $region153
    $region152: #{hf_transformer_forward.1} parent=1 // pred_region
      %514 = dma.done [#allocation9], 256
    $region153: #{hf_transformer_forward.1} parent=1 // pred_fallthru
      _
    // Predicated region
    $region154: #{hf_transformer_forward.1} parent=1 // pred_check
      _
    $region155: #{hf_transformer_forward.1} parent=1 // pred_check_branch
      %516 = sbr.rel (0) target = $region157
    $region156: #{hf_transformer_forward.1} parent=1 // pred_region
      %517 = dma.done [#allocation9], 256
    $region157: #{hf_transformer_forward.1} parent=1 // pred_fallthru
      _
    // Predicated region
    $region158: #{hf_transformer_forward.1} parent=1 // pred_check
      _
    $region159: #{hf_transformer_forward.1} parent=1 // pred_check_branch
      %519 = sbr.rel (0) target = $region161
    $region160: #{hf_transformer_forward.1} parent=1 // pred_region
      %520 = dma.done [#allocation12], 12288
    $region161: #{hf_transformer_forward.1} parent=1 // pred_fallthru
      _
    // Predicated region
    $region162: #{hf_transformer_forward.1} parent=1 // pred_check
      _
    $region163: #{hf_transformer_forward.1} parent=1 // pred_check_branch
      %522 = sbr.rel (0) target = $region165
    $region164: #{hf_transformer_forward.1} parent=1 // pred_region
      %523 = dma.done [#allocation12], 96
    $region165: #{hf_transformer_forward.1} parent=1 // pred_fallthru
      _
    // Predicated region
    $region166: #{hf_transformer_forward.1} parent=1 // pred_check
      _
    $region167: #{hf_transformer_forward.1} parent=1 // pred_check_branch
      %525 = sbr.rel (0) target = $region169
    $region168: #{hf_transformer_forward.1} parent=1 // pred_region
      %526 = dma.done [#allocation15], 4096
    $region169: #{hf_transformer_forward.1} parent=1 // pred_fallthru
      _
    // Predicated region
    $region170: #{hf_transformer_forward.1} parent=1 // pred_check
      _
    $region171: #{hf_transformer_forward.1} parent=1 // pred_check_branch
      %528 = sbr.rel (0) target = $region173
    $region172: #{hf_transformer_forward.1} parent=1 // pred_region
      %529 = dma.done [#allocation15], 32
    $region173: #{hf_transformer_forward.1} parent=1 // pred_fallthru
      _
    // Predicated region
    $region174: #{hf_transformer_forward.1} parent=1 // pred_check
      _
    $region175: #{hf_transformer_forward.1} parent=1 // pred_check_branch
      %531 = sbr.rel (0) target = $region177
    $region176: #{hf_transformer_forward.1} parent=1 // pred_region
      %532 = dma.done [#allocation18], 64
    $region177: #{hf_transformer_forward.1} parent=1 // pred_fallthru
      _
    // Predicated region
    $region178: #{hf_transformer_forward.1} parent=1 // pred_check
      _
    $region179: #{hf_transformer_forward.1} parent=1 // pred_check_branch
      %534 = sbr.rel (0) target = $region181
    $region180: #{hf_transformer_forward.1} parent=1 // pred_region
      %535 = dma.done [#allocation18], 4096
    $region181: #{hf_transformer_forward.1} parent=1 // pred_fallthru
      _
    // Predicated region
    $region182: #{hf_transformer_forward.1} parent=1 // pred_check
      _
    $region183: #{hf_transformer_forward.1} parent=1 // pred_check_branch
      %537 = sbr.rel (0) target = $region185
    $region184: #{hf_transformer_forward.1} parent=1 // pred_region
      %538 = dma.done [#allocation21], 32
    $region185: #{hf_transformer_forward.1} parent=1 // pred_fallthru
      _
    // Predicated region
    $region186: #{hf_transformer_forward.1} parent=1 // pred_check
      _
    $region187: #{hf_transformer_forward.1} parent=1 // pred_check_branch
      %540 = sbr.rel (0) target = $region189
    $region188: #{hf_transformer_forward.1} parent=1 // pred_region
      %541 = dma.done [#allocation21], 4096
    $region189: #{hf_transformer_forward.1} parent=1 // pred_fallthru
      _
    // Predicated region
    $region190: #{hf_transformer_forward.1} parent=1 // pred_check
      _
    $region191: #{hf_transformer_forward.1} parent=1 // pred_check_branch
      %543 = sbr.rel (0) target = $region193
    $region192: #{hf_transformer_forward.1} parent=1 // pred_region
      %544 = dma.done [#allocation24], 32
    $region193: #{hf_transformer_forward.1} parent=1 // pred_fallthru
      _
    // Predicated region
    $region194: #{hf_transformer_forward.1} parent=1 // pred_check
      _
    $region195: #{hf_transformer_forward.1} parent=1 // pred_check_branch
      %546 = sbr.rel (0) target = $region197
    $region196: #{hf_transformer_forward.1} parent=1 // pred_region
      %547 = dma.done [#allocation24], 64
    $region197: #{hf_transformer_forward.1} parent=1 // pred_fallthru
      _
    // Predicated region
    $region198: #{hf_transformer_forward.1} parent=1 // pred_check
      _
    $region199: #{hf_transformer_forward.1} parent=1 // pred_check_branch
      %549 = sbr.rel (0) target = $region201
    $region200: #{hf_transformer_forward.1} parent=1 // pred_region
      %550 = dma.done [#allocation27], 12288
    $region201: #{hf_transformer_forward.1} parent=1 // pred_fallthru
      _
    // Predicated region
    $region202: #{hf_transformer_forward.1} parent=1 // pred_check
      _
    $region203: #{hf_transformer_forward.1} parent=1 // pred_check_branch
      %552 = sbr.rel (0) target = $region205
    $region204: #{hf_transformer_forward.1} parent=1 // pred_region
      %553 = dma.done [#allocation27], 96
    $region205: #{hf_transformer_forward.1} parent=1 // pred_fallthru
      _
    // Predicated region
    $region206: #{hf_transformer_forward.1} parent=1 // pred_check
      _
    $region207: #{hf_transformer_forward.1} parent=1 // pred_check_branch
      %555 = sbr.rel (0) target = $region209
    $region208: #{hf_transformer_forward.1} parent=1 // pred_region
      %556 = dma.done [#allocation30], 4096
    $region209: #{hf_transformer_forward.1} parent=1 // pred_fallthru
      _
    // Predicated region
    $region210: #{hf_transformer_forward.1} parent=1 // pred_check
      _
    $region211: #{hf_transformer_forward.1} parent=1 // pred_check_branch
      %558 = sbr.rel (0) target = $region213
    $region212: #{hf_transformer_forward.1} parent=1 // pred_region
      %559 = dma.done [#allocation30], 32
    $region213: #{hf_transformer_forward.1} parent=1 // pred_fallthru
      _
    // Predicated region
    $region214: #{hf_transformer_forward.1} parent=1 // pred_check
      _
    $region215: #{hf_transformer_forward.1} parent=1 // pred_check_branch
      %561 = sbr.rel (0) target = $region217
    $region216: #{hf_transformer_forward.1} parent=1 // pred_region
      %562 = dma.done [#allocation33], 64
    $region217: #{hf_transformer_forward.1} parent=1 // pred_fallthru
      _
    // Predicated region
    $region218: #{hf_transformer_forward.1} parent=1 // pred_check
      _
    $region219: #{hf_transformer_forward.1} parent=1 // pred_check_branch
      %564 = sbr.rel (0) target = $region221
    $region220: #{hf_transformer_forward.1} parent=1 // pred_region
      %565 = dma.done [#allocation33], 4096
    $region221: #{hf_transformer_forward.1} parent=1 // pred_fallthru
      _
    // Predicated region
    $region222: #{hf_transformer_forward.1} parent=1 // pred_check
      _
    $region223: #{hf_transformer_forward.1} parent=1 // pred_check_branch
      %567 = sbr.rel (0) target = $region225
    $region224: #{hf_transformer_forward.1} parent=1 // pred_region
      %568 = dma.done [#allocation36], 32
    $region225: #{hf_transformer_forward.1} parent=1 // pred_fallthru
      _
    // Predicated region
    $region226: #{hf_transformer_forward.1} parent=1 // pred_check
      _
    $region227: #{hf_transformer_forward.1} parent=1 // pred_check_branch
      %570 = sbr.rel (0) target = $region229
    $region228: #{hf_transformer_forward.1} parent=1 // pred_region
      %571 = dma.done [#allocation36], 8192
    $region229: #{hf_transformer_forward.1} parent=1 // pred_fallthru
      _
    // Predicated region
    $region230: #{hf_transformer_forward.1} parent=1 // pred_check
      _
    $region231: #{hf_transformer_forward.1} parent=1 // pred_check_branch
      %573 = sbr.rel (0) target = $region233
    $region232: #{hf_transformer_forward.1} parent=1 // pred_region
      %574 = dma.done [#allocation39], 64
    $region233: #{hf_transformer_forward.1} parent=1 // pred_fallthru
      _
    // Predicated region
    $region234: #{hf_transformer_forward.1} parent=1 // pred_check
      _
    $region235: #{hf_transformer_forward.1} parent=1 // pred_check_branch
      %576 = sbr.rel (0) target = $region237
    $region236: #{hf_transformer_forward.1} parent=1 // pred_region
      %577 = dma.done [#allocation39], 4096
    $region237: #{hf_transformer_forward.1} parent=1 // pred_fallthru
      _
    // Predicated region
    $region238: #{hf_transformer_forward.1} parent=1 // pred_check
      _
    $region239: #{hf_transformer_forward.1} parent=1 // pred_check_branch
      %579 = sbr.rel (0) target = $region241
    $region240: #{hf_transformer_forward.1} parent=1 // pred_region
      %580 = dma.done [#allocation42], 32
    $region241: #{hf_transformer_forward.1} parent=1 // pred_fallthru
      _
    // Predicated region
    $region242: #{hf_transformer_forward.1} parent=1 // pred_check
      _
    $region243: #{hf_transformer_forward.1} parent=1 // pred_check_branch
      %582 = sbr.rel (0) target = $region245
    $region244: #{hf_transformer_forward.1} parent=1 // pred_region
      %583 = dma.done [#allocation42], 64
    $region245: #{hf_transformer_forward.1} parent=1 // pred_fallthru
      _
    // Predicated region
    $region246: #{hf_transformer_forward.1} parent=1 // pred_check
      _
    $region247: #{hf_transformer_forward.1} parent=1 // pred_check_branch
      %585 = sbr.rel (0) target = $region249
    $region248: #{hf_transformer_forward.1} parent=1 // pred_region
      %586 = dma.done [#allocation45], 4096
    $region249: #{hf_transformer_forward.1} parent=1 // pred_fallthru
      _
    // Predicated region
    $region250: #{hf_transformer_forward.1} parent=1 // pred_check
      _
    $region251: #{hf_transformer_forward.1} parent=1 // pred_check_branch
      %588 = sbr.rel (0) target = $region253
    $region252: #{hf_transformer_forward.1} parent=1 // pred_region
      %589 = dma.done [#allocation45], 32
    $region253: #{hf_transformer_forward.1} parent=1 // pred_fallthru
      _
    // Predicated region
    $region254: #{hf_transformer_forward.1} parent=1 // pred_check
      _
    $region255: #{hf_transformer_forward.1} parent=1 // pred_check_branch
      %591 = sbr.rel (0) target = $region257
    $region256: #{hf_transformer_forward.1} parent=1 // pred_region
      %592 = dma.done [#allocation48], 4096
    $region257: #{hf_transformer_forward.1} parent=1 // pred_fallthru
      _
    // Predicated region
    $region258: #{hf_transformer_forward.1} parent=1 // pred_check
      _
    $region259: #{hf_transformer_forward.1} parent=1 // pred_check_branch
      %594 = sbr.rel (0) target = $region261
    $region260: #{hf_transformer_forward.1} parent=1 // pred_region
      %595 = dma.done [#allocation48], 32
    $region261: #{hf_transformer_forward.1} parent=1 // pred_fallthru
      _
    // Predicated region
    $region262: #{hf_transformer_forward.1} parent=1 // pred_check
      _
    $region263: #{hf_transformer_forward.1} parent=1 // pred_check_branch
      %597 = sbr.rel (0) target = $region265
    $region264: #{hf_transformer_forward.1} parent=1 // pred_region
      %598 = dma.done [#allocation51], 64
    $region265: #{hf_transformer_forward.1} parent=1 // pred_fallthru
      _
    // Predicated region
    $region266: #{hf_transformer_forward.1} parent=1 // pred_check
      _
    $region267: #{hf_transformer_forward.1} parent=1 // pred_check_branch
      %600 = sbr.rel (0) target = $region269
    $region268: #{hf_transformer_forward.1} parent=1 // pred_region
      %601 = dma.done [#allocation51], 2048
    $region269: #{hf_transformer_forward.1} parent=1 // pred_fallthru
      _
    // Predicated region
    $region270: #{hf_transformer_forward.1} parent=1 // pred_check
      _
    $region271: #{hf_transformer_forward.1} parent=1 // pred_check_branch
      %603 = sbr.rel (0) target = $region273
    $region272: #{hf_transformer_forward.1} parent=1 // pred_region
      %604 = dma.done [#allocation54], 16
    $region273: #{hf_transformer_forward.1} parent=1 // pred_fallthru
      _
    %v605 = vlaneseq
    %v606 = vshrl.u32 %v605, 7
    %v607 = vlaneseq
    %v608 = vand.u32 %v607, 127
    %v609 = vmul.u32 %v606, 6
    %vm610 = vcmp.ge.s32.totalorder %v608, %v609
    %v611 = vadd.s32 %v606, 1
    %v612 = vmul.u32 %v611, 6
    %vm613 = vcmp.lt.s32.totalorder %v608, %v612
    %vm614 = vmand %vm610, %vm613
    %v615 = vsel %vm614, 1, 0
    %v616 = vcvt.s32.f32 %v615
    %vm617 = vcmp.ge.s32.totalorder %v608, 0
    %vm618 = vcmp.lt.s32.totalorder %v608, 16
    %vm619 = vmand %vm617, %vm618
    %vm620 = vcmp.ge.s32.totalorder %v608, 16
    %vm621 = vcmp.lt.s32.totalorder %v608, 32
    %vm622 = vmand %vm620, %vm621
    %vm623 = vcmp.ge.s32.totalorder %v608, 32
    %vm624 = vcmp.lt.s32.totalorder %v608, 48
    %vm625 = vmand %vm623, %vm624
    %vm626 = vcmp.ge.s32.totalorder %v608, 48
    %vm627 = vcmp.lt.s32.totalorder %v608, 64
    %vm628 = vmand %vm626, %vm627
    %v629 = vld [vmem:[#allocation7] sm:$0xff]
    %v630 = vld [vmem:[#allocation7 + $0x8] sm:$0xff]
    %633 = vrot.lane.b32.xlu0 %v629, 16
    %v634 = vpop.permute.xlu0 %633
    %635 = vrot.lane.b32.xlu0 %v630, 16
    %v636 = vpop.permute.xlu0 %635
    %639 = vrot.lane.b32.xlu0 %v629, 32
    %v640 = vpop.permute.xlu0 %639
    %641 = vrot.lane.b32.xlu0 %v630, 32
    %v642 = vpop.permute.xlu0 %641
    %645 = vrot.lane.b32.xlu0 %v629, 48
    %v646 = vpop.permute.xlu0 %645
    %647 = vrot.lane.b32.xlu0 %v630, 48
    %v648 = vpop.permute.xlu0 %647
    %vm651 = vcmask 130048
    %v652 = vsel %vm651, %v629, %v634
    %v653 = vsel %vm651, %v630, %v636
    %vm654 = vcmask 261120
    %v655 = vsel %vm654, %v652, %v640
    %v656 = vsel %vm654, %v653, %v642
    %vm657 = vcmask 392192
    %v658 = vsel %vm657, %v655, %v646
    %v659 = vsel %vm657, %v656, %v648
    %v660 = vld [vmem:[#allocation8] sm:$0xff]
    %v661 = vld [vmem:[#allocation8 + $0x8] sm:$0xff]
    %664 = vrot.lane.b32.xlu0 %v660, 16
    %v665 = vpop.permute.xlu0 %664
    %666 = vrot.lane.b32.xlu0 %v661, 16
    %v667 = vpop.permute.xlu0 %666
    %670 = vrot.lane.b32.xlu0 %v660, 32
    %v671 = vpop.permute.xlu0 %670
    %672 = vrot.lane.b32.xlu0 %v661, 32
    %v673 = vpop.permute.xlu0 %672
    %676 = vrot.lane.b32.xlu0 %v660, 48
    %v677 = vpop.permute.xlu0 %676
    %678 = vrot.lane.b32.xlu0 %v661, 48
    %v679 = vpop.permute.xlu0 %678
    %v682 = vsel %vm651, %v660, %v665
    %v683 = vsel %vm651, %v661, %v667
    %v684 = vsel %vm654, %v682, %v671
    %v685 = vsel %vm654, %v683, %v673
    %v686 = vsel %vm657, %v684, %v677
    %v687 = vsel %vm657, %v685, %v679
    %v688 = vld [vmem:[#allocation10] sm:$0xff]
    %v689 = vld [vmem:[#allocation10 + $0x8] sm:$0xff]
    %692 = vrot.lane.b32.xlu0 %v688, 16
    %v693 = vpop.permute.xlu0 %692
    %694 = vrot.lane.b32.xlu0 %v689, 16
    %v695 = vpop.permute.xlu0 %694
    %698 = vrot.lane.b32.xlu0 %v688, 32
    %v699 = vpop.permute.xlu0 %698
    %700 = vrot.lane.b32.xlu0 %v689, 32
    %v701 = vpop.permute.xlu0 %700
    %704 = vrot.lane.b32.xlu0 %v688, 48
    %v705 = vpop.permute.xlu0 %704
    %706 = vrot.lane.b32.xlu0 %v689, 48
    %v707 = vpop.permute.xlu0 %706
    %v710 = vsel %vm651, %v688, %v693
    %v711 = vsel %vm651, %v689, %v695
    %v712 = vsel %vm654, %v710, %v699
    %v713 = vsel %vm654, %v711, %v701
    %v714 = vsel %vm657, %v712, %v705
    %v715 = vsel %vm657, %v713, %v707
    %v716 = vld [vmem:[#allocation2] sm:$0xff]
    %v717 = vld [vmem:[#allocation2 + $0x8] sm:$0xff]
    %v718 = vld [vmem:[#allocation11] sm:$0xff]
    %v719 = vld [vmem:[#allocation11 + $0x8] sm:$0xff]
    %v720 = vld [vmem:[#allocation11 + $0x10] sm:$0xff]
    %v721 = vld [vmem:[#allocation11 + $0x18] sm:$0xff]
    %v722 = vld [vmem:[#allocation11 + $0x20] sm:$0xff]
    %v723 = vld [vmem:[#allocation11 + $0x28] sm:$0xff]
    %v724 = vld [vmem:[#allocation11 + $0x30] sm:$0xff]
    %v725 = vld [vmem:[#allocation11 + $0x38] sm:$0xff]
    %v726 = vld [vmem:[#allocation11 + $0x40] sm:$0xff]
    %v727 = vld [vmem:[#allocation11 + $0x48] sm:$0xff]
    %v728 = vld [vmem:[#allocation11 + $0x50] sm:$0xff]
    %v729 = vld [vmem:[#allocation11 + $0x58] sm:$0xff]
    %v730 = vld [vmem:[#allocation11 + $0x60] sm:$0xff]
    %v731 = vld [vmem:[#allocation11 + $0x68] sm:$0xff]
    %v732 = vld [vmem:[#allocation11 + $0x70] sm:$0xff]
    %v733 = vld [vmem:[#allocation11 + $0x78] sm:$0xff]
    %v734 = vld [vmem:[#allocation11 + $0x80] sm:$0xff]
    %v735 = vld [vmem:[#allocation11 + $0x88] sm:$0xff]
    %v736 = vld [vmem:[#allocation11 + $0x90] sm:$0xff]
    %v737 = vld [vmem:[#allocation11 + $0x98] sm:$0xff]
    %v738 = vld [vmem:[#allocation11 + $0xa0] sm:$0xff]
    %v739 = vld [vmem:[#allocation11 + $0xa8] sm:$0xff]
    %v740 = vld [vmem:[#allocation11 + $0xb0] sm:$0xff]
    %v741 = vld [vmem:[#allocation11 + $0xb8] sm:$0xff]
    %v742 = vld [vmem:[#allocation11 + $0xc0] sm:$0xff]
    %v743 = vld [vmem:[#allocation11 + $0xc8] sm:$0xff]
    %v744 = vld [vmem:[#allocation11 + $0xd0] sm:$0xff]
    %v745 = vld [vmem:[#allocation11 + $0xd8] sm:$0xff]
    %v746 = vld [vmem:[#allocation11 + $0xe0] sm:$0xff]
    %v747 = vld [vmem:[#allocation11 + $0xe8] sm:$0xff]
    %v748 = vld [vmem:[#allocation11 + $0xf0] sm:$0xff]
    %v749 = vld [vmem:[#allocation11 + $0xf8] sm:$0xff]
    %v750 = vld [vmem:[#allocation11 + $0x100] sm:$0xff]
    %v751 = vld [vmem:[#allocation11 + $0x108] sm:$0xff]
    %v752 = vld [vmem:[#allocation11 + $0x110] sm:$0xff]
    %v753 = vld [vmem:[#allocation11 + $0x118] sm:$0xff]
    %v754 = vld [vmem:[#allocation11 + $0x120] sm:$0xff]
    %v755 = vld [vmem:[#allocation11 + $0x128] sm:$0xff]
    %v756 = vld [vmem:[#allocation11 + $0x130] sm:$0xff]
    %v757 = vld [vmem:[#allocation11 + $0x138] sm:$0xff]
    %v758 = vld [vmem:[#allocation11 + $0x140] sm:$0xff]
    %v759 = vld [vmem:[#allocation11 + $0x148] sm:$0xff]
    %v760 = vld [vmem:[#allocation11 + $0x150] sm:$0xff]
    %v761 = vld [vmem:[#allocation11 + $0x158] sm:$0xff]
    %v762 = vld [vmem:[#allocation11 + $0x160] sm:$0xff]
    %v763 = vld [vmem:[#allocation11 + $0x168] sm:$0xff]
    %v764 = vld [vmem:[#allocation11 + $0x170] sm:$0xff]
    %v765 = vld [vmem:[#allocation11 + $0x178] sm:$0xff]
    %v766 = vld [vmem:[#allocation13] sm:$0x7]
    %v768 = vlaneseq
    %v769 = vshrl.u32 %v768, 7
    %v770 = vsub.s32 0, %v769
    %v771 = vrot.slane %v766, %v770
    %v772 = vlaneseq
    %v773 = vshrl.u32 %v772, 7
    %v774 = vsub.s32 1, %v773
    %v775 = vrot.slane %v766, %v774
    %v776 = vlaneseq
    %v777 = vshrl.u32 %v776, 7
    %v778 = vsub.s32 2, %v777
    %v779 = vrot.slane %v766, %v778
    %783 = vmatprep.subr.mxu0 %v719
    %784 = vmatpush1.msra.mxu0 %v718
    %785 = vmatprep.subr.mxu0 %v722
    %786 = vmatpush1.msra.mxu0 %v721
    %787 = vmatprep.subr.mxu0 %v725
    %788 = vmatpush1.msra.mxu0 %v724
    %789 = vmatprep.subr.mxu0 %v728
    %790 = vmatpush1.msra.mxu0 %v727
    %791 = vmatprep.subr.mxu0 %v731
    %792 = vmatpush1.msra.mxu0 %v730
    %793 = vmatprep.subr.mxu0 %v734
    %794 = vmatpush1.msra.mxu0 %v733
    %795 = vmatprep.subr.mxu0 %v737
    %796 = vmatpush1.msra.mxu0 %v736
    %797 = vmatprep.subr.mxu0 %v740
    %798 = vmatpush1.msra.mxu0 %v739
    %799 = vmatprep.subr.mxu0 %v743
    %800 = vmatpush1.msra.mxu0 %v742
    %801 = vmatprep.subr.mxu0 %v746
    %802 = vmatpush1.msra.mxu0 %v745
    %803 = vmatprep.subr.mxu0 %v749
    %804 = vmatpush1.msra.mxu0 %v748
    %805 = vmatprep.subr.mxu0 %v752
    %806 = vmatpush1.msra.mxu0 %v751
    %807 = vmatprep.subr.mxu0 %v755
    %808 = vmatpush1.msra.mxu0 %v754
    %809 = vmatprep.subr.mxu0 %v758
    %810 = vmatpush1.msra.mxu0 %v757
    %811 = vmatprep.subr.mxu0 %v761
    %812 = vmatpush1.msra.mxu0 %v760
    %813 = vmatprep.subr.mxu0 %v764
    %814 = vmatpush1.msra.mxu0 %v763
    %815 = vmatprep.subr.mxu0 0.0
    %816 = vmatpush1.msra.mxu0 0.0
    %817 = vmatprep.subr.mxu0 0.0
    %818 = vmatpush1.msra.mxu0 0.0
    %819 = vmatprep.subr.mxu0 0.0
    %820 = vmatpush1.msra.mxu0 0.0
    %821 = vmatprep.subr.mxu0 0.0
    %822 = vmatpush1.msra.mxu0 0.0
    %823 = vmatprep.subr.mxu0 0.0
    %824 = vmatpush1.msra.mxu0 0.0
    %825 = vmatprep.subr.mxu0 0.0
    %826 = vmatpush1.msra.mxu0 0.0
    %827 = vmatprep.subr.mxu0 0.0
    %828 = vmatpush1.msra.mxu0 0.0
    %829 = vmatprep.subr.mxu0 0.0
    %830 = vmatpush1.msra.mxu0 0.0
    %831 = vmatprep.subr.mxu0 0.0
    %832 = vmatpush1.msra.mxu0 0.0
    %833 = vmatprep.subr.mxu0 0.0
    %834 = vmatpush1.msra.mxu0 0.0
    %835 = vmatprep.subr.mxu0 0.0
    %836 = vmatpush1.msra.mxu0 0.0
    %837 = vmatprep.subr.mxu0 0.0
    %838 = vmatpush1.msra.mxu0 0.0
    %839 = vmatprep.subr.mxu0 0.0
    %840 = vmatpush1.msra.mxu0 0.0
    %841 = vmatprep.subr.mxu0 0.0
    %842 = vmatpush1.msra.mxu0 0.0
    %843 = vmatprep.subr.mxu0 0.0
    %844 = vmatpush1.msra.mxu0 0.0
    %845 = vmatprep.subr.mxu0 0.0
    %846 = vmatpush1.msra.mxu0 0.0
    %847 = vmatprep.mubr.f32.mxu0 0.0
    %848 = vmatmul.mubr.f32.gmra.mrb[0].mxu0 %v716
    %v849 = vpop.f32.mrb[0].mxu0
    %v850 = vadd.f32 %v771, %v849
    %v851 = vpop.f32.mrb[0].mxu0
    %v852 = vadd.f32 %v775, %v851
    %853 = vmatprep.mubr.f32.mxu0 0.0
    %854 = vmatmul.mubr.f32.gmra.mrb[0].mxu0 %v717
    %v855 = vpop.f32.mrb[0].mxu0
    %v856 = vadd.f32 %v771, %v855
    %v857 = vpop.f32.mrb[0].mxu0
    %v858 = vadd.f32 %v775, %v857
    %859 = vdwg.mxu0
    %860 = vmatprep.subr.mxu0 0.0
    %861 = vmatpush1.msra.mxu0 %v720
    %862 = vmatprep.subr.mxu0 0.0
    %863 = vmatpush1.msra.mxu0 %v723
    %864 = vmatprep.subr.mxu0 0.0
    %865 = vmatpush1.msra.mxu0 %v726
    %866 = vmatprep.subr.mxu0 0.0
    %867 = vmatpush1.msra.mxu0 %v729
    %868 = vmatprep.subr.mxu0 0.0
    %869 = vmatpush1.msra.mxu0 %v732
    %870 = vmatprep.subr.mxu0 0.0
    %871 = vmatpush1.msra.mxu0 %v735
    %872 = vmatprep.subr.mxu0 0.0
    %873 = vmatpush1.msra.mxu0 %v738
    %874 = vmatprep.subr.mxu0 0.0
    %875 = vmatpush1.msra.mxu0 %v741
    %876 = vmatprep.subr.mxu0 0.0
    %877 = vmatpush1.msra.mxu0 %v744
    %878 = vmatprep.subr.mxu0 0.0
    %879 = vmatpush1.msra.mxu0 %v747
    %880 = vmatprep.subr.mxu0 0.0
    %881 = vmatpush1.msra.mxu0 %v750
    %882 = vmatprep.subr.mxu0 0.0
    %883 = vmatpush1.msra.mxu0 %v753
    %884 = vmatprep.subr.mxu0 0.0
    %885 = vmatpush1.msra.mxu0 %v756
    %886 = vmatprep.subr.mxu0 0.0
    %887 = vmatpush1.msra.mxu0 %v759
    %888 = vmatprep.subr.mxu0 0.0
    %889 = vmatpush1.msra.mxu0 %v762
    %890 = vmatprep.subr.mxu0 0.0
    %891 = vmatpush1.msra.mxu0 %v765
    %892 = vmatprep.subr.mxu0 0.0
    %893 = vmatpush1.msra.mxu0 0.0
    %894 = vmatprep.subr.mxu0 0.0
    %895 = vmatpush1.msra.mxu0 0.0
    %896 = vmatprep.subr.mxu0 0.0
    %897 = vmatpush1.msra.mxu0 0.0
    %898 = vmatprep.subr.mxu0 0.0
    %899 = vmatpush1.msra.mxu0 0.0
    %900 = vmatprep.subr.mxu0 0.0
    %901 = vmatpush1.msra.mxu0 0.0
    %902 = vmatprep.subr.mxu0 0.0
    %903 = vmatpush1.msra.mxu0 0.0
    %904 = vmatprep.subr.mxu0 0.0
    %905 = vmatpush1.msra.mxu0 0.0
    %906 = vmatprep.subr.mxu0 0.0
    %907 = vmatpush1.msra.mxu0 0.0
    %908 = vmatprep.subr.mxu0 0.0
    %909 = vmatpush1.msra.mxu0 0.0
    %910 = vmatprep.subr.mxu0 0.0
    %911 = vmatpush1.msra.mxu0 0.0
    %912 = vmatprep.subr.mxu0 0.0
    %913 = vmatpush1.msra.mxu0 0.0
    %914 = vmatprep.subr.mxu0 0.0
    %915 = vmatpush1.msra.mxu0 0.0
    %916 = vmatprep.subr.mxu0 0.0
    %917 = vmatpush1.msra.mxu0 0.0
    %918 = vmatprep.subr.mxu0 0.0
    %919 = vmatpush1.msra.mxu0 0.0
    %920 = vmatprep.subr.mxu0 0.0
    %921 = vmatpush1.msra.mxu0 0.0
    %922 = vmatprep.subr.mxu0 0.0
    %923 = vmatpush1.msra.mxu0 0.0
    %924 = vmatprep.mubr.f32.mxu0 0.0
    %925 = vmatmul.mubr.f32.gmra.mrb[0].mxu0 %v716
    %v926 = vpop.f32.mrb[0].mxu0
    %v927 = vadd.f32 %v779, %v926
    %v928 = vpop.f32.mrb[0].mxu0
    %929 = vmatprep.mubr.f32.mxu0 0.0
    %930 = vmatmul.mubr.f32.gmra.mrb[0].mxu0 %v717
    %v931 = vpop.f32.mrb[0].mxu0
    %v932 = vadd.f32 %v779, %v931
    %v933 = vpop.f32.mrb[0].mxu0
    %934 = vdwg.mxu0
    %v935 = vld [vmem:[#allocation14] sm:$0xff]
    %v936 = vld [vmem:[#allocation14 + $0x8] sm:$0xff]
    %v937 = vld [vmem:[#allocation14 + $0x10] sm:$0xff]
    %v938 = vld [vmem:[#allocation14 + $0x18] sm:$0xff]
    %v939 = vld [vmem:[#allocation14 + $0x20] sm:$0xff]
    %v940 = vld [vmem:[#allocation14 + $0x28] sm:$0xff]
    %v941 = vld [vmem:[#allocation14 + $0x30] sm:$0xff]
    %v942 = vld [vmem:[#allocation14 + $0x38] sm:$0xff]
    %v943 = vld [vmem:[#allocation14 + $0x40] sm:$0xff]
    %v944 = vld [vmem:[#allocation14 + $0x48] sm:$0xff]
    %v945 = vld [vmem:[#allocation14 + $0x50] sm:$0xff]
    %v946 = vld [vmem:[#allocation14 + $0x58] sm:$0xff]
    %v947 = vld [vmem:[#allocation14 + $0x60] sm:$0xff]
    %v948 = vld [vmem:[#allocation14 + $0x68] sm:$0xff]
    %v949 = vld [vmem:[#allocation14 + $0x70] sm:$0xff]
    %v950 = vld [vmem:[#allocation14 + $0x78] sm:$0xff]
    %v951 = vld [vmem:[#allocation16] sm:$0x1]
    %v954 = vunpack.c.l.s4 1966171168
    %v955 = vunpack.c.0.s8 %v954
    %v956 = vlaneseq
    %v957 = vshrl.u32 %v956, 7
    %v958 = vsub.s32 %v955, %v957
    %v959 = vrot.slane %v616, %v958
    %v960 = vcombine.high %v959, %v959
    %v962 = vunpack.c.l.s4 1966171168
    %v963 = vunpack.c.0.s8 %v962
    %v964 = vlaneseq
    %v965 = vshrl.u32 %v964, 7
    %v966 = vsub.s32 %v963, %v965
    %v967 = vrot.slane %v959, %v966
    %v969 = vunpack.c.l.s4 1966171168
    %v970 = vunpack.c.0.s8 %v969
    %v971 = vlaneseq
    %v972 = vshrl.u32 %v971, 7
    %v973 = vsub.s32 %v970, %v972
    %v974 = vrot.slane %v960, %v973
    %v975 = vcombine.high %v967, %v967
    %v976 = vcombine.high %v974, %v974
    %v977 = vlaneseq
    %v978 = vshrl.u32 %v977, 7
    %v979 = vsub.s32 0, %v978
    %v980 = vrot.slane %v967, %v979
    %v981 = vlaneseq
    %v982 = vshrl.u32 %v981, 7
    %v983 = vsub.s32 0, %v982
    %v984 = vrot.slane %v974, %v983
    %v985 = vlaneseq
    %v986 = vshrl.u32 %v985, 7
    %v987 = vsub.s32 0, %v986
    %v988 = vrot.slane %v975, %v987
    %v989 = vlaneseq
    %v990 = vshrl.u32 %v989, 7
    %v991 = vsub.s32 0, %v990
    %v992 = vrot.slane %v976, %v991
    %v997 = vmul.f32 %v852, %v980
    %v998 = vmul.f32 %v858, %v980
    %v999 = vmul.f32 %v852, %v984
    %v1000 = vmul.f32 %v858, %v984
    %v1001 = vmul.f32 %v852, %v988
    %v1002 = vmul.f32 %v858, %v988
    %v1003 = vmul.f32 %v852, %v992
    %v1004 = vmul.f32 %v858, %v992
    %v1005 = vmul.f32 %v927, %v980
    %v1006 = vmul.f32 %v932, %v980
    %v1007 = vmul.f32 %v927, %v984
    %v1008 = vmul.f32 %v932, %v984
    %v1009 = vmul.f32 %v927, %v988
    %v1010 = vmul.f32 %v932, %v988
    %v1011 = vmul.f32 %v927, %v992
    %v1012 = vmul.f32 %v932, %v992
    %1013 = vmatprep.subr.mxu0 0.0
    %1014 = vmatpush1.xpose.msra.mxu0 %v997
    %1015 = vmatprep.subr.mxu0 0.0
    %1016 = vmatpush1.xpose.msra.mxu0 %v998
    %1017 = vmatprep.subr.mxu0 0.0
    %1018 = vmatpush1.xpose.msra.mxu0 %v999
    %1019 = vmatprep.subr.mxu0 0.0
    %1020 = vmatpush1.xpose.msra.mxu0 %v1000
    %1021 = vmatprep.subr.mxu0 0.0
    %1022 = vmatpush1.xpose.msra.mxu0 %v1001
    %1023 = vmatprep.subr.mxu0 0.0
    %1024 = vmatpush1.xpose.msra.mxu0 %v1002
    %1025 = vmatprep.subr.mxu0 0.0
    %1026 = vmatpush1.xpose.msra.mxu0 %v1003
    %1027 = vmatprep.subr.mxu0 0.0
    %1028 = vmatpush1.xpose.msra.mxu0 %v1004
    %1029 = vmatprep.subr.mxu0 0.0
    %1030 = vmatpush1.xpose.msra.mxu0 0.0
    %1031 = vmatprep.subr.mxu0 0.0
    %1032 = vmatpush1.xpose.msra.mxu0 0.0
    %1033 = vmatprep.subr.mxu0 0.0
    %1034 = vmatpush1.xpose.msra.mxu0 0.0
    %1035 = vmatprep.subr.mxu0 0.0
    %1036 = vmatpush1.xpose.msra.mxu0 0.0
    %1037 = vmatprep.subr.mxu0 0.0
    %1038 = vmatpush1.xpose.msra.mxu0 0.0
    %1039 = vmatprep.subr.mxu0 0.0
    %1040 = vmatpush1.xpose.msra.mxu0 0.0
    %1041 = vmatprep.subr.mxu0 0.0
    %1042 = vmatpush1.xpose.msra.mxu0 0.0
    %1043 = vmatprep.subr.mxu0 0.0
    %1044 = vmatpush1.xpose.msra.mxu0 0.0
    %1045 = vmatprep.subr.mxu0 0.0
    %1046 = vmatpush1.xpose.msra.mxu0 0.0
    %1047 = vmatprep.subr.mxu0 0.0
    %1048 = vmatpush1.xpose.msra.mxu0 0.0
    %1049 = vmatprep.subr.mxu0 0.0
    %1050 = vmatpush1.xpose.msra.mxu0 0.0
    %1051 = vmatprep.subr.mxu0 0.0
    %1052 = vmatpush1.xpose.msra.mxu0 0.0
    %1053 = vmatprep.subr.mxu0 0.0
    %1054 = vmatpush1.xpose.msra.mxu0 0.0
    %1055 = vmatprep.subr.mxu0 0.0
    %1056 = vmatpush1.xpose.msra.mxu0 0.0
    %1057 = vmatprep.subr.mxu0 0.0
    %1058 = vmatpush1.xpose.msra.mxu0 0.0
    %1059 = vmatprep.subr.mxu0 0.0
    %1060 = vmatpush1.xpose.msra.mxu0 0.0
    %1061 = vmatprep.subr.mxu0 0.0
    %1062 = vmatpush1.xpose.msra.mxu0 0.0
    %1063 = vmatprep.subr.mxu0 0.0
    %1064 = vmatpush1.xpose.msra.mxu0 0.0
    %1065 = vmatprep.subr.mxu0 0.0
    %1066 = vmatpush1.xpose.msra.mxu0 0.0
    %1067 = vmatprep.subr.mxu0 0.0
    %1068 = vmatpush1.xpose.msra.mxu0 0.0
    %1069 = vmatprep.subr.mxu0 0.0
    %1070 = vmatpush1.xpose.msra.mxu0 0.0
    %1071 = vmatprep.subr.mxu0 0.0
    %1072 = vmatpush1.xpose.msra.mxu0 0.0
    %1073 = vmatprep.subr.mxu0 0.0
    %1074 = vmatpush1.xpose.msra.mxu0 0.0
    %1075 = vmatprep.subr.mxu0 0.0
    %1076 = vmatpush1.xpose.msra.mxu0 0.0
    %1077 = vmatprep.mubr.f32.mxu0 0.0
    %1078 = vmatmul.mubr.f32.gmra.mrb[0].mxu0 %v850
    %v1079 = vpop.f32.mrb[0].mxu0
    %v1080 = vadd.f32 0.0, %v1079
    %v1081 = vpop.f32.mrb[0].mxu0
    %1082 = vmatprep.mubr.f32.mxu0 0.0
    %1083 = vmatmul.mubr.f32.gmra.mrb[0].mxu0 %v856
    %v1084 = vpop.f32.mrb[0].mxu0
    %v1085 = vadd.f32 0.0, %v1084
    %v1086 = vpop.f32.mrb[0].mxu0
    %1087 = vdwg.mxu0
    %v1088 = vmul.f32 %v1080, 0.4082483
    %v1089 = vmul.f32 %v1085, 0.4082483
    %v1090 = vadd.f32 %v1088, %v658
    %v1091 = vadd.f32 %v1089, %v659
    %v1092 = vsel %vm619, 1, 0
    %vm1093 = vcmp.eq.s32.totalorder %v1092, 1
    %v1094 = vsel %vm1093, %v1090, -1e+30
    %v1095 = vsel %vm1093, %v1091, -1e+30
    %vm1096 = vcmask 523264
    %v1097 = vsel %vm1096, %v1094, -inf
    %1098 = vmax.xlane.f32.xlu0 %v1097
    %v1099 = vpop.xlane.xlu0 %1098
    %v1100 = vsel %vm1096, %v1095, -inf
    %1101 = vmax.xlane.f32.xlu0 %v1100
    %v1102 = vpop.xlane.xlu0 %1101
    %v1103 = vsel %vm1093, %v1099, 0.0
    %v1104 = vsel %vm1093, %v1102, 0.0
    %v1105 = vsel %vm622, 1, 0
    %vm1106 = vcmp.eq.s32.totalorder %v1105, 1
    %v1107 = vsel %vm1106, %v1090, -1e+30
    %v1108 = vsel %vm1106, %v1091, -1e+30
    %v1109 = vsel %vm1096, %v1107, -inf
    %1110 = vmax.xlane.f32.xlu0 %v1109
    %v1111 = vpop.xlane.xlu0 %1110
    %v1112 = vsel %vm1096, %v1108, -inf
    %1113 = vmax.xlane.f32.xlu0 %v1112
    %v1114 = vpop.xlane.xlu0 %1113
    %v1115 = vsel %vm1106, %v1111, %v1103
    %v1116 = vsel %vm1106, %v1114, %v1104
    %v1117 = vsel %vm625, 1, 0
    %vm1118 = vcmp.eq.s32.totalorder %v1117, 1
    %v1119 = vsel %vm1118, %v1090, -1e+30
    %v1120 = vsel %vm1118, %v1091, -1e+30
    %v1121 = vsel %vm1096, %v1119, -inf
    %1122 = vmax.xlane.f32.xlu0 %v1121
    %v1123 = vpop.xlane.xlu0 %1122
    %v1124 = vsel %vm1096, %v1120, -inf
    %1125 = vmax.xlane.f32.xlu0 %v1124
    %v1126 = vpop.xlane.xlu0 %1125
    %v1127 = vsel %vm1118, %v1123, %v1115
    %v1128 = vsel %vm1118, %v1126, %v1116
    %v1129 = vsel %vm628, 1, 0
    %vm1130 = vcmp.eq.s32.totalorder %v1129, 1
    %v1131 = vsel %vm1130, %v1090, -1e+30
    %v1132 = vsel %vm1130, %v1091, -1e+30
    %v1133 = vsel %vm1096, %v1131, -inf
    %1134 = vmax.xlane.f32.xlu0 %v1133
    %v1135 = vpop.xlane.xlu0 %1134
    %v1136 = vsel %vm1096, %v1132, -inf
    %1137 = vmax.xlane.f32.xlu0 %v1136
    %v1138 = vpop.xlane.xlu0 %1137
    %v1139 = vsel %vm1130, %v1135, %v1127
    %v1140 = vsel %vm1130, %v1138, %v1128
    %v1141 = vsub.f32 %v1090, %v1139
    %v1142 = vsub.f32 %v1091, %v1140
    %v1143 = vmul.f32 %v1141, 1.442695
    %v1144 = vpow.pop %v1143
    %v1145 = vmul.f32 %v1142, 1.442695
    %v1146 = vpow.pop %v1145
    %v1147 = vsel %vm1093, %v1144, 0.0
    %v1148 = vsel %vm1093, %v1146, 0.0
    %v1149 = vsel %vm1096, %v1147, 0.0
    %1150 = vadd.xlane.f32.xlu0 %v1149
    %v1151 = vpop.xlane.xlu0 %1150
    %v1152 = vsel %vm1096, %v1148, 0.0
    %1153 = vadd.xlane.f32.xlu0 %v1152
    %v1154 = vpop.xlane.xlu0 %1153
    %v1155 = vmax.f32 %v1151, 1e-30
    %v1156 = vmax.f32 %v1154, 1e-30
    %v1157 = vrcp.pop %v1155
    %v1158 = vrcp.pop %v1156
    %v1159 = vsel %vm1093, %v1157, 0.0
    %v1160 = vsel %vm1093, %v1158, 0.0
    %v1161 = vsel %vm1106, %v1144, 0.0
    %v1162 = vsel %vm1106, %v1146, 0.0
    %v1163 = vsel %vm1096, %v1161, 0.0
    %1164 = vadd.xlane.f32.xlu0 %v1163
    %v1165 = vpop.xlane.xlu0 %1164
    %v1166 = vsel %vm1096, %v1162, 0.0
    %1167 = vadd.xlane.f32.xlu0 %v1166
    %v1168 = vpop.xlane.xlu0 %1167
    %v1169 = vmax.f32 %v1165, 1e-30
    %v1170 = vmax.f32 %v1168, 1e-30
    %v1171 = vrcp.pop %v1169
    %v1172 = vrcp.pop %v1170
    %v1173 = vsel %vm1106, %v1171, %v1159
    %v1174 = vsel %vm1106, %v1172, %v1160
    %v1175 = vsel %vm1118, %v1144, 0.0
    %v1176 = vsel %vm1118, %v1146, 0.0
    %v1177 = vsel %vm1096, %v1175, 0.0
    %1178 = vadd.xlane.f32.xlu0 %v1177
    %v1179 = vpop.xlane.xlu0 %1178
    %v1180 = vsel %vm1096, %v1176, 0.0
    %1181 = vadd.xlane.f32.xlu0 %v1180
    %v1182 = vpop.xlane.xlu0 %1181
    %v1183 = vmax.f32 %v1179, 1e-30
    %v1184 = vmax.f32 %v1182, 1e-30
    %v1185 = vrcp.pop %v1183
    %v1186 = vrcp.pop %v1184
    %v1187 = vsel %vm1118, %v1185, %v1173
    %v1188 = vsel %vm1118, %v1186, %v1174
    %v1189 = vsel %vm1130, %v1144, 0.0
    %v1190 = vsel %vm1130, %v1146, 0.0
    %v1191 = vsel %vm1096, %v1189, 0.0
    %1192 = vadd.xlane.f32.xlu0 %v1191
    %v1193 = vpop.xlane.xlu0 %1192
    %v1194 = vsel %vm1096, %v1190, 0.0
    %1195 = vadd.xlane.f32.xlu0 %v1194
    %v1196 = vpop.xlane.xlu0 %1195
    %v1197 = vmax.f32 %v1193, 1e-30
    %v1198 = vmax.f32 %v1196, 1e-30
    %v1199 = vrcp.pop %v1197
    %v1200 = vrcp.pop %v1198
    %v1201 = vsel %vm1130, %v1199, %v1187
    %v1202 = vsel %vm1130, %v1200, %v1188
    %v1203 = vmul.f32 %v1144, %v1201
    %v1204 = vmul.f32 %v1146, %v1202
    %v1206 = vsel %vm1096, %v1203, 0
    %v1209 = vsel %vm1096, %v1204, 0
    %1211 = vmatprep.subr.mxu0 0.0
    %1212 = vmatpush1.msra.mxu0 %v1005
    %1213 = vmatprep.subr.mxu0 0.0
    %1214 = vmatpush1.msra.mxu0 %v1006
    %1215 = vmatprep.subr.mxu0 0.0
    %1216 = vmatpush1.msra.mxu0 %v1007
    %1217 = vmatprep.subr.mxu0 0.0
    %1218 = vmatpush1.msra.mxu0 %v1008
    %1219 = vmatprep.subr.mxu0 0.0
    %1220 = vmatpush1.msra.mxu0 %v1009
    %1221 = vmatprep.subr.mxu0 0.0
    %1222 = vmatpush1.msra.mxu0 %v1010
    %1223 = vmatprep.subr.mxu0 0.0
    %1224 = vmatpush1.msra.mxu0 %v1011
    %1225 = vmatprep.subr.mxu0 0.0
    %1226 = vmatpush1.msra.mxu0 %v1012
    %1227 = vmatprep.subr.mxu0 0.0
    %1228 = vmatpush1.msra.mxu0 0.0
    %1229 = vmatprep.subr.mxu0 0.0
    %1230 = vmatpush1.msra.mxu0 0.0
    %1231 = vmatprep.subr.mxu0 0.0
    %1232 = vmatpush1.msra.mxu0 0.0
    %1233 = vmatprep.subr.mxu0 0.0
    %1234 = vmatpush1.msra.mxu0 0.0
    %1235 = vmatprep.subr.mxu0 0.0
    %1236 = vmatpush1.msra.mxu0 0.0
    %1237 = vmatprep.subr.mxu0 0.0
    %1238 = vmatpush1.msra.mxu0 0.0
    %1239 = vmatprep.subr.mxu0 0.0
    %1240 = vmatpush1.msra.mxu0 0.0
    %1241 = vmatprep.subr.mxu0 0.0
    %1242 = vmatpush1.msra.mxu0 0.0
    %1243 = vmatprep.subr.mxu0 0.0
    %1244 = vmatpush1.msra.mxu0 0.0
    %1245 = vmatprep.subr.mxu0 0.0
    %1246 = vmatpush1.msra.mxu0 0.0
    %1247 = vmatprep.subr.mxu0 0.0
    %1248 = vmatpush1.msra.mxu0 0.0
    %1249 = vmatprep.subr.mxu0 0.0
    %1250 = vmatpush1.msra.mxu0 0.0
    %1251 = vmatprep.subr.mxu0 0.0
    %1252 = vmatpush1.msra.mxu0 0.0
    %1253 = vmatprep.subr.mxu0 0.0
    %1254 = vmatpush1.msra.mxu0 0.0
    %1255 = vmatprep.subr.mxu0 0.0
    %1256 = vmatpush1.msra.mxu0 0.0
    %1257 = vmatprep.subr.mxu0 0.0
    %1258 = vmatpush1.msra.mxu0 0.0
    %1259 = vmatprep.subr.mxu0 0.0
    %1260 = vmatpush1.msra.mxu0 0.0
    %1261 = vmatprep.subr.mxu0 0.0
    %1262 = vmatpush1.msra.mxu0 0.0
    %1263 = vmatprep.subr.mxu0 0.0
    %1264 = vmatpush1.msra.mxu0 0.0
    %1265 = vmatprep.subr.mxu0 0.0
    %1266 = vmatpush1.msra.mxu0 0.0
    %1267 = vmatprep.subr.mxu0 0.0
    %1268 = vmatpush1.msra.mxu0 0.0
    %1269 = vmatprep.subr.mxu0 0.0
    %1270 = vmatpush1.msra.mxu0 0.0
    %1271 = vmatprep.subr.mxu0 0.0
    %1272 = vmatpush1.msra.mxu0 0.0
    %1273 = vmatprep.subr.mxu0 0.0
    %1274 = vmatpush1.msra.mxu0 0.0
    %1275 = vmatprep.mubr.f32.mxu0 0.0
    %1276 = vmatmul.mubr.f32.gmra.mrb[0].mxu0 %v1206
    %v1277 = vpop.f32.mrb[0].mxu0
    %v1278 = vadd.f32 0.0, %v1277
    %v1279 = vpop.f32.mrb[0].mxu0
    %1280 = vmatprep.mubr.f32.mxu0 0.0
    %1281 = vmatmul.mubr.f32.gmra.mrb[0].mxu0 %v1209
    %v1282 = vpop.f32.mrb[0].mxu0
    %v1283 = vadd.f32 0.0, %v1282
    %v1284 = vpop.f32.mrb[0].mxu0
    %1285 = vdwg.mxu0
    %v1287 = vlaneseq
    %v1288 = vshrl.u32 %v1287, 7
    %v1289 = vsub.s32 0, %v1288
    %v1290 = vrot.slane %v951, %v1289
    %1292 = vmatprep.subr.mxu0 0.0
    %1293 = vmatpush1.msra.mxu0 %v935
    %1294 = vmatprep.subr.mxu0 0.0
    %1295 = vmatpush1.msra.mxu0 %v936
    %1296 = vmatprep.subr.mxu0 0.0
    %1297 = vmatpush1.msra.mxu0 %v937
    %1298 = vmatprep.subr.mxu0 0.0
    %1299 = vmatpush1.msra.mxu0 %v938
    %1300 = vmatprep.subr.mxu0 0.0
    %1301 = vmatpush1.msra.mxu0 %v939
    %1302 = vmatprep.subr.mxu0 0.0
    %1303 = vmatpush1.msra.mxu0 %v940
    %1304 = vmatprep.subr.mxu0 0.0
    %1305 = vmatpush1.msra.mxu0 %v941
    %1306 = vmatprep.subr.mxu0 0.0
    %1307 = vmatpush1.msra.mxu0 %v942
    %1308 = vmatprep.subr.mxu0 0.0
    %1309 = vmatpush1.msra.mxu0 %v943
    %1310 = vmatprep.subr.mxu0 0.0
    %1311 = vmatpush1.msra.mxu0 %v944
    %1312 = vmatprep.subr.mxu0 0.0
    %1313 = vmatpush1.msra.mxu0 %v945
    %1314 = vmatprep.subr.mxu0 0.0
    %1315 = vmatpush1.msra.mxu0 %v946
    %1316 = vmatprep.subr.mxu0 0.0
    %1317 = vmatpush1.msra.mxu0 %v947
    %1318 = vmatprep.subr.mxu0 0.0
    %1319 = vmatpush1.msra.mxu0 %v948
    %1320 = vmatprep.subr.mxu0 0.0
    %1321 = vmatpush1.msra.mxu0 %v949
    %1322 = vmatprep.subr.mxu0 0.0
    %1323 = vmatpush1.msra.mxu0 %v950
    %1324 = vmatprep.subr.mxu0 0.0
    %1325 = vmatpush1.msra.mxu0 0.0
    %1326 = vmatprep.subr.mxu0 0.0
    %1327 = vmatpush1.msra.mxu0 0.0
    %1328 = vmatprep.subr.mxu0 0.0
    %1329 = vmatpush1.msra.mxu0 0.0
    %1330 = vmatprep.subr.mxu0 0.0
    %1331 = vmatpush1.msra.mxu0 0.0
    %1332 = vmatprep.subr.mxu0 0.0
    %1333 = vmatpush1.msra.mxu0 0.0
    %1334 = vmatprep.subr.mxu0 0.0
    %1335 = vmatpush1.msra.mxu0 0.0
    %1336 = vmatprep.subr.mxu0 0.0
    %1337 = vmatpush1.msra.mxu0 0.0
    %1338 = vmatprep.subr.mxu0 0.0
    %1339 = vmatpush1.msra.mxu0 0.0
    %1340 = vmatprep.subr.mxu0 0.0
    %1341 = vmatpush1.msra.mxu0 0.0
    %1342 = vmatprep.subr.mxu0 0.0
    %1343 = vmatpush1.msra.mxu0 0.0
    %1344 = vmatprep.subr.mxu0 0.0
    %1345 = vmatpush1.msra.mxu0 0.0
    %1346 = vmatprep.subr.mxu0 0.0
    %1347 = vmatpush1.msra.mxu0 0.0
    %1348 = vmatprep.subr.mxu0 0.0
    %1349 = vmatpush1.msra.mxu0 0.0
    %1350 = vmatprep.subr.mxu0 0.0
    %1351 = vmatpush1.msra.mxu0 0.0
    %1352 = vmatprep.subr.mxu0 0.0
    %1353 = vmatpush1.msra.mxu0 0.0
    %1354 = vmatprep.subr.mxu0 0.0
    %1355 = vmatpush1.msra.mxu0 0.0
    %1356 = vmatprep.mubr.f32.mxu0 0.0
    %1357 = vmatmul.mubr.f32.gmra.mrb[0].mxu0 %v1278
    %v1358 = vpop.f32.mrb[0].mxu0
    %v1359 = vadd.f32 %v1290, %v1358
    %v1360 = vpop.f32.mrb[0].mxu0
    %1361 = vmatprep.mubr.f32.mxu0 0.0
    %1362 = vmatmul.mubr.f32.gmra.mrb[0].mxu0 %v1283
    %v1363 = vpop.f32.mrb[0].mxu0
    %v1364 = vadd.f32 %v1290, %v1363
    %v1365 = vpop.f32.mrb[0].mxu0
    %1366 = vdwg.mxu0
    %v1367 = vld [vmem:[#allocation17] sm:$0x3]
    %v1368 = vadd.f32 %v716, %v1359
    %v1369 = vadd.f32 %v717, %v1364
    %1370 = vadd.xlane.f32.xlu0 %v1368
    %v1371 = vpop.xlane.xlu0 %1370
    %1372 = vadd.xlane.f32.xlu0 %v1369
    %v1373 = vpop.xlane.xlu0 %1372
    %v1374 = vmul.f32 %v1371, 0.041666668
    %v1375 = vmul.f32 %v1373, 0.041666668
    %v1376 = vmul.f32 %v1368, %v1368
    %v1377 = vmul.f32 %v1369, %v1369
    %1378 = vadd.xlane.f32.xlu0 %v1376
    %v1379 = vpop.xlane.xlu0 %1378
    %1380 = vadd.xlane.f32.xlu0 %v1377
    %v1381 = vpop.xlane.xlu0 %1380
    %v1382 = vmul.f32 %v1379, 0.041666668
    %v1383 = vmul.f32 %v1381, 0.041666668
    %v1384 = vmul.f32 %v1374, %v1374
    %v1385 = vmul.f32 %v1375, %v1375
    %v1386 = vsub.f32 %v1382, %v1384
    %v1387 = vsub.f32 %v1383, %v1385
    %v1388 = vmax.f32 %v1386, 0.0
    %v1389 = vmax.f32 %v1387, 0.0
    %v1390 = vsub.f32 %v1368, %v1374
    %v1391 = vsub.f32 %v1369, %v1375
    %v1392 = vadd.f32 %v1388, 1e-12
    %v1393 = vadd.f32 %v1389, 1e-12
    %v1394 = vrsqrt.pop %v1392
    %v1395 = vrsqrt.pop %v1393
    %v1396 = vmul.f32 %v1390, %v1394
    %v1397 = vmul.f32 %v1391, %v1395
    %v1398 = vlaneseq
    %v1399 = vshrl.u32 %v1398, 7
    %v1400 = vsub.s32 0, %v1399
    %v1401 = vrot.slane %v1367, %v1400
    %v1402 = vmul.f32 %v1396, %v1401
    %v1403 = vmul.f32 %v1397, %v1401
    %v1404 = vlaneseq
    %v1405 = vshrl.u32 %v1404, 7
    %v1406 = vsub.s32 1, %v1405
    %v1407 = vrot.slane %v1367, %v1406
    %v1408 = vadd.f32 %v1402, %v1407
    %v1409 = vadd.f32 %v1403, %v1407
    %v1410 = vld [vmem:[#allocation19] sm:$0xff]
    %v1411 = vld [vmem:[#allocation19 + $0x8] sm:$0xff]
    %v1412 = vld [vmem:[#allocation19 + $0x10] sm:$0xff]
    %v1413 = vld [vmem:[#allocation19 + $0x18] sm:$0xff]
    %v1414 = vld [vmem:[#allocation19 + $0x20] sm:$0xff]
    %v1415 = vld [vmem:[#allocation19 + $0x28] sm:$0xff]
    %v1416 = vld [vmem:[#allocation19 + $0x30] sm:$0xff]
    %v1417 = vld [vmem:[#allocation19 + $0x38] sm:$0xff]
    %v1418 = vld [vmem:[#allocation19 + $0x40] sm:$0xff]
    %v1419 = vld [vmem:[#allocation19 + $0x48] sm:$0xff]
    %v1420 = vld [vmem:[#allocation19 + $0x50] sm:$0xff]
    %v1421 = vld [vmem:[#allocation19 + $0x58] sm:$0xff]
    %v1422 = vld [vmem:[#allocation19 + $0x60] sm:$0xff]
    %v1423 = vld [vmem:[#allocation19 + $0x68] sm:$0xff]
    %v1424 = vld [vmem:[#allocation19 + $0x70] sm:$0xff]
    %v1425 = vld [vmem:[#allocation19 + $0x78] sm:$0xff]
    %v1426 = vld [vmem:[#allocation20] sm:$0x1]
    %v1428 = vlaneseq
    %v1429 = vshrl.u32 %v1428, 7
    %v1430 = vsub.s32 0, %v1429
    %v1431 = vrot.slane %v1426, %v1430
    %1433 = vmatprep.subr.mxu0 0.0
    %1434 = vmatpush1.msra.mxu0 %v1410
    %1435 = vmatprep.subr.mxu0 0.0
    %1436 = vmatpush1.msra.mxu0 %v1411
    %1437 = vmatprep.subr.mxu0 0.0
    %1438 = vmatpush1.msra.mxu0 %v1412
    %1439 = vmatprep.subr.mxu0 0.0
    %1440 = vmatpush1.msra.mxu0 %v1413
    %1441 = vmatprep.subr.mxu0 0.0
    %1442 = vmatpush1.msra.mxu0 %v1414
    %1443 = vmatprep.subr.mxu0 0.0
    %1444 = vmatpush1.msra.mxu0 %v1415
    %1445 = vmatprep.subr.mxu0 0.0
    %1446 = vmatpush1.msra.mxu0 %v1416
    %1447 = vmatprep.subr.mxu0 0.0
    %1448 = vmatpush1.msra.mxu0 %v1417
    %1449 = vmatprep.subr.mxu0 0.0
    %1450 = vmatpush1.msra.mxu0 %v1418
    %1451 = vmatprep.subr.mxu0 0.0
    %1452 = vmatpush1.msra.mxu0 %v1419
    %1453 = vmatprep.subr.mxu0 0.0
    %1454 = vmatpush1.msra.mxu0 %v1420
    %1455 = vmatprep.subr.mxu0 0.0
    %1456 = vmatpush1.msra.mxu0 %v1421
    %1457 = vmatprep.subr.mxu0 0.0
    %1458 = vmatpush1.msra.mxu0 %v1422
    %1459 = vmatprep.subr.mxu0 0.0
    %1460 = vmatpush1.msra.mxu0 %v1423
    %1461 = vmatprep.subr.mxu0 0.0
    %1462 = vmatpush1.msra.mxu0 %v1424
    %1463 = vmatprep.subr.mxu0 0.0
    %1464 = vmatpush1.msra.mxu0 %v1425
    %1465 = vmatprep.subr.mxu0 0.0
    %1466 = vmatpush1.msra.mxu0 0.0
    %1467 = vmatprep.subr.mxu0 0.0
    %1468 = vmatpush1.msra.mxu0 0.0
    %1469 = vmatprep.subr.mxu0 0.0
    %1470 = vmatpush1.msra.mxu0 0.0
    %1471 = vmatprep.subr.mxu0 0.0
    %1472 = vmatpush1.msra.mxu0 0.0
    %1473 = vmatprep.subr.mxu0 0.0
    %1474 = vmatpush1.msra.mxu0 0.0
    %1475 = vmatprep.subr.mxu0 0.0
    %1476 = vmatpush1.msra.mxu0 0.0
    %1477 = vmatprep.subr.mxu0 0.0
    %1478 = vmatpush1.msra.mxu0 0.0
    %1479 = vmatprep.subr.mxu0 0.0
    %1480 = vmatpush1.msra.mxu0 0.0
    %1481 = vmatprep.subr.mxu0 0.0
    %1482 = vmatpush1.msra.mxu0 0.0
    %1483 = vmatprep.subr.mxu0 0.0
    %1484 = vmatpush1.msra.mxu0 0.0
    %1485 = vmatprep.subr.mxu0 0.0
    %1486 = vmatpush1.msra.mxu0 0.0
    %1487 = vmatprep.subr.mxu0 0.0
    %1488 = vmatpush1.msra.mxu0 0.0
    %1489 = vmatprep.subr.mxu0 0.0
    %1490 = vmatpush1.msra.mxu0 0.0
    %1491 = vmatprep.subr.mxu0 0.0
    %1492 = vmatpush1.msra.mxu0 0.0
    %1493 = vmatprep.subr.mxu0 0.0
    %1494 = vmatpush1.msra.mxu0 0.0
    %1495 = vmatprep.subr.mxu0 0.0
    %1496 = vmatpush1.msra.mxu0 0.0
    %1497 = vmatprep.mubr.f32.mxu0 0.0
    %1498 = vmatmul.mubr.f32.gmra.mrb[0].mxu0 %v1408
    %v1499 = vpop.f32.mrb[0].mxu0
    %v1500 = vadd.f32 %v1431, %v1499
    %v1501 = vpop.f32.mrb[0].mxu0
    %1502 = vmatprep.mubr.f32.mxu0 0.0
    %1503 = vmatmul.mubr.f32.gmra.mrb[0].mxu0 %v1409
    %v1504 = vpop.f32.mrb[0].mxu0
    %v1505 = vadd.f32 %v1431, %v1504
    %v1506 = vpop.f32.mrb[0].mxu0
    %1507 = vdwg.mxu0
    %v1508 = vmul.f32 %v1500, 0.5
    %v1509 = vmul.f32 %v1505, 0.5
    %v1510 = vmul.f32 %v1500, 0.044715
    %v1511 = vmul.f32 %v1505, 0.044715
    %v1512 = vmul.f32 %v1510, %v1500
    %v1513 = vmul.f32 %v1511, %v1505
    %v1514 = vmul.f32 %v1512, %v1500
    %v1515 = vmul.f32 %v1513, %v1505
    %v1516 = vadd.f32 %v1500, %v1514
    %v1517 = vadd.f32 %v1505, %v1515
    %v1518 = vmul.f32 %v1516, 0.7978846
    %v1519 = vmul.f32 %v1517, 0.7978846
    %v1520 = vtanh.pop %v1518
    %v1521 = vtanh.pop %v1519
    %v1522 = vadd.f32 %v1520, 1.0
    %v1523 = vadd.f32 %v1521, 1.0
    %v1524 = vmul.f32 %v1508, %v1522
    %v1525 = vmul.f32 %v1509, %v1523
    %v1526 = vld [vmem:[#allocation22] sm:$0xff]
    %v1527 = vld [vmem:[#allocation22 + $0x8] sm:$0xff]
    %v1528 = vld [vmem:[#allocation22 + $0x10] sm:$0xff]
    %v1529 = vld [vmem:[#allocation22 + $0x18] sm:$0xff]
    %v1530 = vld [vmem:[#allocation22 + $0x20] sm:$0xff]
    %v1531 = vld [vmem:[#allocation22 + $0x28] sm:$0xff]
    %v1532 = vld [vmem:[#allocation22 + $0x30] sm:$0xff]
    %v1533 = vld [vmem:[#allocation22 + $0x38] sm:$0xff]
    %v1534 = vld [vmem:[#allocation22 + $0x40] sm:$0xff]
    %v1535 = vld [vmem:[#allocation22 + $0x48] sm:$0xff]
    %v1536 = vld [vmem:[#allocation22 + $0x50] sm:$0xff]
    %v1537 = vld [vmem:[#allocation22 + $0x58] sm:$0xff]
    %v1538 = vld [vmem:[#allocation22 + $0x60] sm:$0xff]
    %v1539 = vld [vmem:[#allocation22 + $0x68] sm:$0xff]
    %v1540 = vld [vmem:[#allocation22 + $0x70] sm:$0xff]
    %v1541 = vld [vmem:[#allocation22 + $0x78] sm:$0xff]
    %v1542 = vld [vmem:[#allocation23] sm:$0x1]
    %v1544 = vlaneseq
    %v1545 = vshrl.u32 %v1544, 7
    %v1546 = vsub.s32 0, %v1545
    %v1547 = vrot.slane %v1542, %v1546
    %1549 = vmatprep.subr.mxu0 0.0
    %1550 = vmatpush1.msra.mxu0 %v1526
    %1551 = vmatprep.subr.mxu0 0.0
    %1552 = vmatpush1.msra.mxu0 %v1527
    %1553 = vmatprep.subr.mxu0 0.0
    %1554 = vmatpush1.msra.mxu0 %v1528
    %1555 = vmatprep.subr.mxu0 0.0
    %1556 = vmatpush1.msra.mxu0 %v1529
    %1557 = vmatprep.subr.mxu0 0.0
    %1558 = vmatpush1.msra.mxu0 %v1530
    %1559 = vmatprep.subr.mxu0 0.0
    %1560 = vmatpush1.msra.mxu0 %v1531
    %1561 = vmatprep.subr.mxu0 0.0
    %1562 = vmatpush1.msra.mxu0 %v1532
    %1563 = vmatprep.subr.mxu0 0.0
    %1564 = vmatpush1.msra.mxu0 %v1533
    %1565 = vmatprep.subr.mxu0 0.0
    %1566 = vmatpush1.msra.mxu0 %v1534
    %1567 = vmatprep.subr.mxu0 0.0
    %1568 = vmatpush1.msra.mxu0 %v1535
    %1569 = vmatprep.subr.mxu0 0.0
    %1570 = vmatpush1.msra.mxu0 %v1536
    %1571 = vmatprep.subr.mxu0 0.0
    %1572 = vmatpush1.msra.mxu0 %v1537
    %1573 = vmatprep.subr.mxu0 0.0
    %1574 = vmatpush1.msra.mxu0 %v1538
    %1575 = vmatprep.subr.mxu0 0.0
    %1576 = vmatpush1.msra.mxu0 %v1539
    %1577 = vmatprep.subr.mxu0 0.0
    %1578 = vmatpush1.msra.mxu0 %v1540
    %1579 = vmatprep.subr.mxu0 0.0
    %1580 = vmatpush1.msra.mxu0 %v1541
    %1581 = vmatprep.subr.mxu0 0.0
    %1582 = vmatpush1.msra.mxu0 0.0
    %1583 = vmatprep.subr.mxu0 0.0
    %1584 = vmatpush1.msra.mxu0 0.0
    %1585 = vmatprep.subr.mxu0 0.0
    %1586 = vmatpush1.msra.mxu0 0.0
    %1587 = vmatprep.subr.mxu0 0.0
    %1588 = vmatpush1.msra.mxu0 0.0
    %1589 = vmatprep.subr.mxu0 0.0
    %1590 = vmatpush1.msra.mxu0 0.0
    %1591 = vmatprep.subr.mxu0 0.0
    %1592 = vmatpush1.msra.mxu0 0.0
    %1593 = vmatprep.subr.mxu0 0.0
    %1594 = vmatpush1.msra.mxu0 0.0
    %1595 = vmatprep.subr.mxu0 0.0
    %1596 = vmatpush1.msra.mxu0 0.0
    %1597 = vmatprep.subr.mxu0 0.0
    %1598 = vmatpush1.msra.mxu0 0.0
    %1599 = vmatprep.subr.mxu0 0.0
    %1600 = vmatpush1.msra.mxu0 0.0
    %1601 = vmatprep.subr.mxu0 0.0
    %1602 = vmatpush1.msra.mxu0 0.0
    %1603 = vmatprep.subr.mxu0 0.0
    %1604 = vmatpush1.msra.mxu0 0.0
    %1605 = vmatprep.subr.mxu0 0.0
    %1606 = vmatpush1.msra.mxu0 0.0
    %1607 = vmatprep.subr.mxu0 0.0
    %1608 = vmatpush1.msra.mxu0 0.0
    %1609 = vmatprep.subr.mxu0 0.0
    %1610 = vmatpush1.msra.mxu0 0.0
    %1611 = vmatprep.subr.mxu0 0.0
    %1612 = vmatpush1.msra.mxu0 0.0
    %1613 = vmatprep.mubr.f32.mxu0 0.0
    %1614 = vmatmul.mubr.f32.gmra.mrb[0].mxu0 %v1524
    %v1615 = vpop.f32.mrb[0].mxu0
    %v1616 = vadd.f32 %v1547, %v1615
    %v1617 = vpop.f32.mrb[0].mxu0
    %1618 = vmatprep.mubr.f32.mxu0 0.0
    %1619 = vmatmul.mubr.f32.gmra.mrb[0].mxu0 %v1525
    %v1620 = vpop.f32.mrb[0].mxu0
    %v1621 = vadd.f32 %v1547, %v1620
    %v1622 = vpop.f32.mrb[0].mxu0
    %1623 = vdwg.mxu0
    %v1624 = vld [vmem:[#allocation25] sm:$0x3]
    %v1625 = vadd.f32 %v1408, %v1616
    %v1626 = vadd.f32 %v1409, %v1621
    %1627 = vadd.xlane.f32.xlu0 %v1625
    %v1628 = vpop.xlane.xlu0 %1627
    %1629 = vadd.xlane.f32.xlu0 %v1626
    %v1630 = vpop.xlane.xlu0 %1629
    %v1631 = vmul.f32 %v1628, 0.041666668
    %v1632 = vmul.f32 %v1630, 0.041666668
    %v1633 = vmul.f32 %v1625, %v1625
    %v1634 = vmul.f32 %v1626, %v1626
    %1635 = vadd.xlane.f32.xlu0 %v1633
    %v1636 = vpop.xlane.xlu0 %1635
    %1637 = vadd.xlane.f32.xlu0 %v1634
    %v1638 = vpop.xlane.xlu0 %1637
    %v1639 = vmul.f32 %v1636, 0.041666668
    %v1640 = vmul.f32 %v1638, 0.041666668
    %v1641 = vmul.f32 %v1631, %v1631
    %v1642 = vmul.f32 %v1632, %v1632
    %v1643 = vsub.f32 %v1639, %v1641
    %v1644 = vsub.f32 %v1640, %v1642
    %v1645 = vmax.f32 %v1643, 0.0
    %v1646 = vmax.f32 %v1644, 0.0
    %v1647 = vsub.f32 %v1625, %v1631
    %v1648 = vsub.f32 %v1626, %v1632
    %v1649 = vadd.f32 %v1645, 1e-12
    %v1650 = vadd.f32 %v1646, 1e-12
    %v1651 = vrsqrt.pop %v1649
    %v1652 = vrsqrt.pop %v1650
    %v1653 = vmul.f32 %v1647, %v1651
    %v1654 = vmul.f32 %v1648, %v1652
    %v1655 = vlaneseq
    %v1656 = vshrl.u32 %v1655, 7
    %v1657 = vsub.s32 0, %v1656
    %v1658 = vrot.slane %v1624, %v1657
    %v1659 = vmul.f32 %v1653, %v1658
    %v1660 = vmul.f32 %v1654, %v1658
    %v1661 = vlaneseq
    %v1662 = vshrl.u32 %v1661, 7
    %v1663 = vsub.s32 1, %v1662
    %v1664 = vrot.slane %v1624, %v1663
    %v1665 = vadd.f32 %v1659, %v1664
    %v1666 = vadd.f32 %v1660, %v1664
    %s1667 = scalar_lea.vmem [#allocation11], 384
    %v1668 = vld [vmem:[%s1667] sm:$0xff]
    %v1669 = vld [vmem:[%s1667 + $0x8] sm:$0xff]
    %v1670 = vld [vmem:[%s1667 + $0x10] sm:$0xff]
    %v1671 = vld [vmem:[%s1667 + $0x18] sm:$0xff]
    %v1672 = vld [vmem:[%s1667 + $0x20] sm:$0xff]
    %v1673 = vld [vmem:[%s1667 + $0x28] sm:$0xff]
    %v1674 = vld [vmem:[%s1667 + $0x30] sm:$0xff]
    %v1675 = vld [vmem:[%s1667 + $0x38] sm:$0xff]
    %v1676 = vld [vmem:[%s1667 + $0x40] sm:$0xff]
    %v1677 = vld [vmem:[%s1667 + $0x48] sm:$0xff]
    %v1678 = vld [vmem:[%s1667 + $0x50] sm:$0xff]
    %v1679 = vld [vmem:[%s1667 + $0x58] sm:$0xff]
    %v1680 = vld [vmem:[%s1667 + $0x60] sm:$0xff]
    %v1681 = vld [vmem:[%s1667 + $0x68] sm:$0xff]
    %v1682 = vld [vmem:[%s1667 + $0x70] sm:$0xff]
    %v1683 = vld [vmem:[%s1667 + $0x78] sm:$0xff]
    %v1684 = vld [vmem:[%s1667 + $0x80] sm:$0xff]
    %v1685 = vld [vmem:[%s1667 + $0x88] sm:$0xff]
    %v1686 = vld [vmem:[%s1667 + $0x90] sm:$0xff]
    %v1687 = vld [vmem:[%s1667 + $0x98] sm:$0xff]
    %v1688 = vld [vmem:[%s1667 + $0xa0] sm:$0xff]
    %v1689 = vld [vmem:[%s1667 + $0xa8] sm:$0xff]
    %v1690 = vld [vmem:[%s1667 + $0xb0] sm:$0xff]
    %v1691 = vld [vmem:[%s1667 + $0xb8] sm:$0xff]
    %v1692 = vld [vmem:[%s1667 + $0xc0] sm:$0xff]
    %v1693 = vld [vmem:[%s1667 + $0xc8] sm:$0xff]
    %v1694 = vld [vmem:[%s1667 + $0xd0] sm:$0xff]
    %v1695 = vld [vmem:[%s1667 + $0xd8] sm:$0xff]
    %v1696 = vld [vmem:[%s1667 + $0xe0] sm:$0xff]
    %v1697 = vld [vmem:[%s1667 + $0xe8] sm:$0xff]
    %v1698 = vld [vmem:[%s1667 + $0xf0] sm:$0xff]
    %v1699 = vld [vmem:[%s1667 + $0xf8] sm:$0xff]
    %v1700 = vld [vmem:[%s1667 + $0x100] sm:$0xff]
    %v1701 = vld [vmem:[%s1667 + $0x108] sm:$0xff]
    %v1702 = vld [vmem:[%s1667 + $0x110] sm:$0xff]
    %v1703 = vld [vmem:[%s1667 + $0x118] sm:$0xff]
    %v1704 = vld [vmem:[%s1667 + $0x120] sm:$0xff]
    %v1705 = vld [vmem:[%s1667 + $0x128] sm:$0xff]
    %v1706 = vld [vmem:[%s1667 + $0x130] sm:$0xff]
    %v1707 = vld [vmem:[%s1667 + $0x138] sm:$0xff]
    %v1708 = vld [vmem:[%s1667 + $0x140] sm:$0xff]
    %v1709 = vld [vmem:[%s1667 + $0x148] sm:$0xff]
    %v1710 = vld [vmem:[%s1667 + $0x150] sm:$0xff]
    %v1711 = vld [vmem:[%s1667 + $0x158] sm:$0xff]
    %v1712 = vld [vmem:[%s1667 + $0x160] sm:$0xff]
    %v1713 = vld [vmem:[%s1667 + $0x168] sm:$0xff]
    %v1714 = vld [vmem:[%s1667 + $0x170] sm:$0xff]
    %v1715 = vld [vmem:[%s1667 + $0x178] sm:$0xff]
    %s1716 = scalar_lea.vmem [#allocation13], 3
    %v1717 = vld [vmem:[%s1716] sm:$0x7]
    %v1719 = vlaneseq
    %v1720 = vshrl.u32 %v1719, 7
    %v1721 = vsub.s32 0, %v1720
    %v1722 = vrot.slane %v1717, %v1721
    %v1723 = vlaneseq
    %v1724 = vshrl.u32 %v1723, 7
    %v1725 = vsub.s32 1, %v1724
    %v1726 = vrot.slane %v1717, %v1725
    %v1727 = vlaneseq
    %v1728 = vshrl.u32 %v1727, 7
    %v1729 = vsub.s32 2, %v1728
    %v1730 = vrot.slane %v1717, %v1729
    %1734 = vmatprep.subr.mxu0 %v1669
    %1735 = vmatpush1.msra.mxu0 %v1668
    %1736 = vmatprep.subr.mxu0 %v1672
    %1737 = vmatpush1.msra.mxu0 %v1671
    %1738 = vmatprep.subr.mxu0 %v1675
    %1739 = vmatpush1.msra.mxu0 %v1674
    %1740 = vmatprep.subr.mxu0 %v1678
    %1741 = vmatpush1.msra.mxu0 %v1677
    %1742 = vmatprep.subr.mxu0 %v1681
    %1743 = vmatpush1.msra.mxu0 %v1680
    %1744 = vmatprep.subr.mxu0 %v1684
    %1745 = vmatpush1.msra.mxu0 %v1683
    %1746 = vmatprep.subr.mxu0 %v1687
    %1747 = vmatpush1.msra.mxu0 %v1686
    %1748 = vmatprep.subr.mxu0 %v1690
    %1749 = vmatpush1.msra.mxu0 %v1689
    %1750 = vmatprep.subr.mxu0 %v1693
    %1751 = vmatpush1.msra.mxu0 %v1692
    %1752 = vmatprep.subr.mxu0 %v1696
    %1753 = vmatpush1.msra.mxu0 %v1695
    %1754 = vmatprep.subr.mxu0 %v1699
    %1755 = vmatpush1.msra.mxu0 %v1698
    %1756 = vmatprep.subr.mxu0 %v1702
    %1757 = vmatpush1.msra.mxu0 %v1701
    %1758 = vmatprep.subr.mxu0 %v1705
    %1759 = vmatpush1.msra.mxu0 %v1704
    %1760 = vmatprep.subr.mxu0 %v1708
    %1761 = vmatpush1.msra.mxu0 %v1707
    %1762 = vmatprep.subr.mxu0 %v1711
    %1763 = vmatpush1.msra.mxu0 %v1710
    %1764 = vmatprep.subr.mxu0 %v1714
    %1765 = vmatpush1.msra.mxu0 %v1713
    %1766 = vmatprep.subr.mxu0 0.0
    %1767 = vmatpush1.msra.mxu0 0.0
    %1768 = vmatprep.subr.mxu0 0.0
    %1769 = vmatpush1.msra.mxu0 0.0
    %1770 = vmatprep.subr.mxu0 0.0
    %1771 = vmatpush1.msra.mxu0 0.0
    %1772 = vmatprep.subr.mxu0 0.0
    %1773 = vmatpush1.msra.mxu0 0.0
    %1774 = vmatprep.subr.mxu0 0.0
    %1775 = vmatpush1.msra.mxu0 0.0
    %1776 = vmatprep.subr.mxu0 0.0
    %1777 = vmatpush1.msra.mxu0 0.0
    %1778 = vmatprep.subr.mxu0 0.0
    %1779 = vmatpush1.msra.mxu0 0.0
    %1780 = vmatprep.subr.mxu0 0.0
    %1781 = vmatpush1.msra.mxu0 0.0
    %1782 = vmatprep.subr.mxu0 0.0
    %1783 = vmatpush1.msra.mxu0 0.0
    %1784 = vmatprep.subr.mxu0 0.0
    %1785 = vmatpush1.msra.mxu0 0.0
    %1786 = vmatprep.subr.mxu0 0.0
    %1787 = vmatpush1.msra.mxu0 0.0
    %1788 = vmatprep.subr.mxu0 0.0
    %1789 = vmatpush1.msra.mxu0 0.0
    %1790 = vmatprep.subr.mxu0 0.0
    %1791 = vmatpush1.msra.mxu0 0.0
    %1792 = vmatprep.subr.mxu0 0.0
    %1793 = vmatpush1.msra.mxu0 0.0
    %1794 = vmatprep.subr.mxu0 0.0
    %1795 = vmatpush1.msra.mxu0 0.0
    %1796 = vmatprep.subr.mxu0 0.0
    %1797 = vmatpush1.msra.mxu0 0.0
    %1798 = vmatprep.mubr.f32.mxu0 0.0
    %1799 = vmatmul.mubr.f32.gmra.mrb[0].mxu0 %v1665
    %v1800 = vpop.f32.mrb[0].mxu0
    %v1801 = vadd.f32 %v1722, %v1800
    %v1802 = vpop.f32.mrb[0].mxu0
    %v1803 = vadd.f32 %v1726, %v1802
    %1804 = vmatprep.mubr.f32.mxu0 0.0
    %1805 = vmatmul.mubr.f32.gmra.mrb[0].mxu0 %v1666
    %v1806 = vpop.f32.mrb[0].mxu0
    %v1807 = vadd.f32 %v1722, %v1806
    %v1808 = vpop.f32.mrb[0].mxu0
    %v1809 = vadd.f32 %v1726, %v1808
    %1810 = vdwg.mxu0
    %1811 = vmatprep.subr.mxu0 0.0
    %1812 = vmatpush1.msra.mxu0 %v1670
    %1813 = vmatprep.subr.mxu0 0.0
    %1814 = vmatpush1.msra.mxu0 %v1673
    %1815 = vmatprep.subr.mxu0 0.0
    %1816 = vmatpush1.msra.mxu0 %v1676
    %1817 = vmatprep.subr.mxu0 0.0
    %1818 = vmatpush1.msra.mxu0 %v1679
    %1819 = vmatprep.subr.mxu0 0.0
    %1820 = vmatpush1.msra.mxu0 %v1682
    %1821 = vmatprep.subr.mxu0 0.0
    %1822 = vmatpush1.msra.mxu0 %v1685
    %1823 = vmatprep.subr.mxu0 0.0
    %1824 = vmatpush1.msra.mxu0 %v1688
    %1825 = vmatprep.subr.mxu0 0.0
    %1826 = vmatpush1.msra.mxu0 %v1691
    %1827 = vmatprep.subr.mxu0 0.0
    %1828 = vmatpush1.msra.mxu0 %v1694
    %1829 = vmatprep.subr.mxu0 0.0
    %1830 = vmatpush1.msra.mxu0 %v1697
    %1831 = vmatprep.subr.mxu0 0.0
    %1832 = vmatpush1.msra.mxu0 %v1700
    %1833 = vmatprep.subr.mxu0 0.0
    %1834 = vmatpush1.msra.mxu0 %v1703
    %1835 = vmatprep.subr.mxu0 0.0
    %1836 = vmatpush1.msra.mxu0 %v1706
    %1837 = vmatprep.subr.mxu0 0.0
    %1838 = vmatpush1.msra.mxu0 %v1709
    %1839 = vmatprep.subr.mxu0 0.0
    %1840 = vmatpush1.msra.mxu0 %v1712
    %1841 = vmatprep.subr.mxu0 0.0
    %1842 = vmatpush1.msra.mxu0 %v1715
    %1843 = vmatprep.subr.mxu0 0.0
    %1844 = vmatpush1.msra.mxu0 0.0
    %1845 = vmatprep.subr.mxu0 0.0
    %1846 = vmatpush1.msra.mxu0 0.0
    %1847 = vmatprep.subr.mxu0 0.0
    %1848 = vmatpush1.msra.mxu0 0.0
    %1849 = vmatprep.subr.mxu0 0.0
    %1850 = vmatpush1.msra.mxu0 0.0
    %1851 = vmatprep.subr.mxu0 0.0
    %1852 = vmatpush1.msra.mxu0 0.0
    %1853 = vmatprep.subr.mxu0 0.0
    %1854 = vmatpush1.msra.mxu0 0.0
    %1855 = vmatprep.subr.mxu0 0.0
    %1856 = vmatpush1.msra.mxu0 0.0
    %1857 = vmatprep.subr.mxu0 0.0
    %1858 = vmatpush1.msra.mxu0 0.0
    %1859 = vmatprep.subr.mxu0 0.0
    %1860 = vmatpush1.msra.mxu0 0.0
    %1861 = vmatprep.subr.mxu0 0.0
    %1862 = vmatpush1.msra.mxu0 0.0
    %1863 = vmatprep.subr.mxu0 0.0
    %1864 = vmatpush1.msra.mxu0 0.0
    %1865 = vmatprep.subr.mxu0 0.0
    %1866 = vmatpush1.msra.mxu0 0.0
    %1867 = vmatprep.subr.mxu0 0.0
    %1868 = vmatpush1.msra.mxu0 0.0
    %1869 = vmatprep.subr.mxu0 0.0
    %1870 = vmatpush1.msra.mxu0 0.0
    %1871 = vmatprep.subr.mxu0 0.0
    %1872 = vmatpush1.msra.mxu0 0.0
    %1873 = vmatprep.subr.mxu0 0.0
    %1874 = vmatpush1.msra.mxu0 0.0
    %1875 = vmatprep.mubr.f32.mxu0 0.0
    %1876 = vmatmul.mubr.f32.gmra.mrb[0].mxu0 %v1665
    %v1877 = vpop.f32.mrb[0].mxu0
    %v1878 = vadd.f32 %v1730, %v1877
    %v1879 = vpop.f32.mrb[0].mxu0
    %1880 = vmatprep.mubr.f32.mxu0 0.0
    %1881 = vmatmul.mubr.f32.gmra.mrb[0].mxu0 %v1666
    %v1882 = vpop.f32.mrb[0].mxu0
    %v1883 = vadd.f32 %v1730, %v1882
    %v1884 = vpop.f32.mrb[0].mxu0
    %1885 = vdwg.mxu0
    %s1886 = scalar_lea.vmem [#allocation14], 128
    %v1887 = vld [vmem:[%s1886] sm:$0xff]
    %v1888 = vld [vmem:[%s1886 + $0x8] sm:$0xff]
    %v1889 = vld [vmem:[%s1886 + $0x10] sm:$0xff]
    %v1890 = vld [vmem:[%s1886 + $0x18] sm:$0xff]
    %v1891 = vld [vmem:[%s1886 + $0x20] sm:$0xff]
    %v1892 = vld [vmem:[%s1886 + $0x28] sm:$0xff]
    %v1893 = vld [vmem:[%s1886 + $0x30] sm:$0xff]
    %v1894 = vld [vmem:[%s1886 + $0x38] sm:$0xff]
    %v1895 = vld [vmem:[%s1886 + $0x40] sm:$0xff]
    %v1896 = vld [vmem:[%s1886 + $0x48] sm:$0xff]
    %v1897 = vld [vmem:[%s1886 + $0x50] sm:$0xff]
    %v1898 = vld [vmem:[%s1886 + $0x58] sm:$0xff]
    %v1899 = vld [vmem:[%s1886 + $0x60] sm:$0xff]
    %v1900 = vld [vmem:[%s1886 + $0x68] sm:$0xff]
    %v1901 = vld [vmem:[%s1886 + $0x70] sm:$0xff]
    %v1902 = vld [vmem:[%s1886 + $0x78] sm:$0xff]
    %s1903 = scalar_lea.vmem [#allocation16], 1
    %v1904 = vld [vmem:[%s1903] sm:$0x1]
    %v1905 = vmul.f32 %v1803, %v980
    %v1906 = vmul.f32 %v1809, %v980
    %v1907 = vmul.f32 %v1803, %v984
    %v1908 = vmul.f32 %v1809, %v984
    %v1909 = vmul.f32 %v1803, %v988
    %v1910 = vmul.f32 %v1809, %v988
    %v1911 = vmul.f32 %v1803, %v992
    %v1912 = vmul.f32 %v1809, %v992
    %v1913 = vmul.f32 %v1878, %v980
    %v1914 = vmul.f32 %v1883, %v980
    %v1915 = vmul.f32 %v1878, %v984
    %v1916 = vmul.f32 %v1883, %v984
    %v1917 = vmul.f32 %v1878, %v988
    %v1918 = vmul.f32 %v1883, %v988
    %v1919 = vmul.f32 %v1878, %v992
    %v1920 = vmul.f32 %v1883, %v992
    %1921 = vmatprep.subr.mxu0 0.0
    %1922 = vmatpush1.xpose.msra.mxu0 %v1905
    %1923 = vmatprep.subr.mxu0 0.0
    %1924 = vmatpush1.xpose.msra.mxu0 %v1906
    %1925 = vmatprep.subr.mxu0 0.0
    %1926 = vmatpush1.xpose.msra.mxu0 %v1907
    %1927 = vmatprep.subr.mxu0 0.0
    %1928 = vmatpush1.xpose.msra.mxu0 %v1908
    %1929 = vmatprep.subr.mxu0 0.0
    %1930 = vmatpush1.xpose.msra.mxu0 %v1909
    %1931 = vmatprep.subr.mxu0 0.0
    %1932 = vmatpush1.xpose.msra.mxu0 %v1910
    %1933 = vmatprep.subr.mxu0 0.0
    %1934 = vmatpush1.xpose.msra.mxu0 %v1911
    %1935 = vmatprep.subr.mxu0 0.0
    %1936 = vmatpush1.xpose.msra.mxu0 %v1912
    %1937 = vmatprep.subr.mxu0 0.0
    %1938 = vmatpush1.xpose.msra.mxu0 0.0
    %1939 = vmatprep.subr.mxu0 0.0
    %1940 = vmatpush1.xpose.msra.mxu0 0.0
    %1941 = vmatprep.subr.mxu0 0.0
    %1942 = vmatpush1.xpose.msra.mxu0 0.0
    %1943 = vmatprep.subr.mxu0 0.0
    %1944 = vmatpush1.xpose.msra.mxu0 0.0
    %1945 = vmatprep.subr.mxu0 0.0
    %1946 = vmatpush1.xpose.msra.mxu0 0.0
    %1947 = vmatprep.subr.mxu0 0.0
    %1948 = vmatpush1.xpose.msra.mxu0 0.0
    %1949 = vmatprep.subr.mxu0 0.0
    %1950 = vmatpush1.xpose.msra.mxu0 0.0
    %1951 = vmatprep.subr.mxu0 0.0
    %1952 = vmatpush1.xpose.msra.mxu0 0.0
    %1953 = vmatprep.subr.mxu0 0.0
    %1954 = vmatpush1.xpose.msra.mxu0 0.0
    %1955 = vmatprep.subr.mxu0 0.0
    %1956 = vmatpush1.xpose.msra.mxu0 0.0
    %1957 = vmatprep.subr.mxu0 0.0
    %1958 = vmatpush1.xpose.msra.mxu0 0.0
    %1959 = vmatprep.subr.mxu0 0.0
    %1960 = vmatpush1.xpose.msra.mxu0 0.0
    %1961 = vmatprep.subr.mxu0 0.0
    %1962 = vmatpush1.xpose.msra.mxu0 0.0
    %1963 = vmatprep.subr.mxu0 0.0
    %1964 = vmatpush1.xpose.msra.mxu0 0.0
    %1965 = vmatprep.subr.mxu0 0.0
    %1966 = vmatpush1.xpose.msra.mxu0 0.0
    %1967 = vmatprep.subr.mxu0 0.0
    %1968 = vmatpush1.xpose.msra.mxu0 0.0
    %1969 = vmatprep.subr.mxu0 0.0
    %1970 = vmatpush1.xpose.msra.mxu0 0.0
    %1971 = vmatprep.subr.mxu0 0.0
    %1972 = vmatpush1.xpose.msra.mxu0 0.0
    %1973 = vmatprep.subr.mxu0 0.0
    %1974 = vmatpush1.xpose.msra.mxu0 0.0
    %1975 = vmatprep.subr.mxu0 0.0
    %1976 = vmatpush1.xpose.msra.mxu0 0.0
    %1977 = vmatprep.subr.mxu0 0.0
    %1978 = vmatpush1.xpose.msra.mxu0 0.0
    %1979 = vmatprep.subr.mxu0 0.0
    %1980 = vmatpush1.xpose.msra.mxu0 0.0
    %1981 = vmatprep.subr.mxu0 0.0
    %1982 = vmatpush1.xpose.msra.mxu0 0.0
    %1983 = vmatprep.subr.mxu0 0.0
    %1984 = vmatpush1.xpose.msra.mxu0 0.0
    %1985 = vmatprep.mubr.f32.mxu0 0.0
    %1986 = vmatmul.mubr.f32.gmra.mrb[0].mxu0 %v1801
    %v1987 = vpop.f32.mrb[0].mxu0
    %v1988 = vadd.f32 0.0, %v1987
    %v1989 = vpop.f32.mrb[0].mxu0
    %1990 = vmatprep.mubr.f32.mxu0 0.0
    %1991 = vmatmul.mubr.f32.gmra.mrb[0].mxu0 %v1807
    %v1992 = vpop.f32.mrb[0].mxu0
    %v1993 = vadd.f32 0.0, %v1992
    %v1994 = vpop.f32.mrb[0].mxu0
    %1995 = vdwg.mxu0
    %v1996 = vmul.f32 %v1988, 0.4082483
    %v1997 = vmul.f32 %v1993, 0.4082483
    %v1998 = vadd.f32 %v1996, %v658
    %v1999 = vadd.f32 %v1997, %v659
    %v2000 = vsel %vm1093, %v1998, -1e+30
    %v2001 = vsel %vm1093, %v1999, -1e+30
    %v2002 = vsel %vm1096, %v2000, -inf
    %2003 = vmax.xlane.f32.xlu0 %v2002
    %v2004 = vpop.xlane.xlu0 %2003
    %v2005 = vsel %vm1096, %v2001, -inf
    %2006 = vmax.xlane.f32.xlu0 %v2005
    %v2007 = vpop.xlane.xlu0 %2006
    %v2008 = vsel %vm1093, %v2004, 0.0
    %v2009 = vsel %vm1093, %v2007, 0.0
    %v2010 = vsel %vm1106, %v1998, -1e+30
    %v2011 = vsel %vm1106, %v1999, -1e+30
    %v2012 = vsel %vm1096, %v2010, -inf
    %2013 = vmax.xlane.f32.xlu0 %v2012
    %v2014 = vpop.xlane.xlu0 %2013
    %v2015 = vsel %vm1096, %v2011, -inf
    %2016 = vmax.xlane.f32.xlu0 %v2015
    %v2017 = vpop.xlane.xlu0 %2016
    %v2018 = vsel %vm1106, %v2014, %v2008
    %v2019 = vsel %vm1106, %v2017, %v2009
    %v2020 = vsel %vm1118, %v1998, -1e+30
    %v2021 = vsel %vm1118, %v1999, -1e+30
    %v2022 = vsel %vm1096, %v2020, -inf
    %2023 = vmax.xlane.f32.xlu0 %v2022
    %v2024 = vpop.xlane.xlu0 %2023
    %v2025 = vsel %vm1096, %v2021, -inf
    %2026 = vmax.xlane.f32.xlu0 %v2025
    %v2027 = vpop.xlane.xlu0 %2026
    %v2028 = vsel %vm1118, %v2024, %v2018
    %v2029 = vsel %vm1118, %v2027, %v2019
    %v2030 = vsel %vm1130, %v1998, -1e+30
    %v2031 = vsel %vm1130, %v1999, -1e+30
    %v2032 = vsel %vm1096, %v2030, -inf
    %2033 = vmax.xlane.f32.xlu0 %v2032
    %v2034 = vpop.xlane.xlu0 %2033
    %v2035 = vsel %vm1096, %v2031, -inf
    %2036 = vmax.xlane.f32.xlu0 %v2035
    %v2037 = vpop.xlane.xlu0 %2036
    %v2038 = vsel %vm1130, %v2034, %v2028
    %v2039 = vsel %vm1130, %v2037, %v2029
    %v2040 = vsub.f32 %v1998, %v2038
    %v2041 = vsub.f32 %v1999, %v2039
    %v2042 = vmul.f32 %v2040, 1.442695
    %v2043 = vpow.pop %v2042
    %v2044 = vmul.f32 %v2041, 1.442695
    %v2045 = vpow.pop %v2044
    %v2046 = vsel %vm1093, %v2043, 0.0
    %v2047 = vsel %vm1093, %v2045, 0.0
    %v2048 = vsel %vm1096, %v2046, 0.0
    %2049 = vadd.xlane.f32.xlu0 %v2048
    %v2050 = vpop.xlane.xlu0 %2049
    %v2051 = vsel %vm1096, %v2047, 0.0
    %2052 = vadd.xlane.f32.xlu0 %v2051
    %v2053 = vpop.xlane.xlu0 %2052
    %v2054 = vmax.f32 %v2050, 1e-30
    %v2055 = vmax.f32 %v2053, 1e-30
    %v2056 = vrcp.pop %v2054
    %v2057 = vrcp.pop %v2055
    %v2058 = vsel %vm1093, %v2056, 0.0
    %v2059 = vsel %vm1093, %v2057, 0.0
    %v2060 = vsel %vm1106, %v2043, 0.0
    %v2061 = vsel %vm1106, %v2045, 0.0
    %v2062 = vsel %vm1096, %v2060, 0.0
    %2063 = vadd.xlane.f32.xlu0 %v2062
    %v2064 = vpop.xlane.xlu0 %2063
    %v2065 = vsel %vm1096, %v2061, 0.0
    %2066 = vadd.xlane.f32.xlu0 %v2065
    %v2067 = vpop.xlane.xlu0 %2066
    %v2068 = vmax.f32 %v2064, 1e-30
    %v2069 = vmax.f32 %v2067, 1e-30
    %v2070 = vrcp.pop %v2068
    %v2071 = vrcp.pop %v2069
    %v2072 = vsel %vm1106, %v2070, %v2058
    %v2073 = vsel %vm1106, %v2071, %v2059
    %v2074 = vsel %vm1118, %v2043, 0.0
    %v2075 = vsel %vm1118, %v2045, 0.0
    %v2076 = vsel %vm1096, %v2074, 0.0
    %2077 = vadd.xlane.f32.xlu0 %v2076
    %v2078 = vpop.xlane.xlu0 %2077
    %v2079 = vsel %vm1096, %v2075, 0.0
    %2080 = vadd.xlane.f32.xlu0 %v2079
    %v2081 = vpop.xlane.xlu0 %2080
    %v2082 = vmax.f32 %v2078, 1e-30
    %v2083 = vmax.f32 %v2081, 1e-30
    %v2084 = vrcp.pop %v2082
    %v2085 = vrcp.pop %v2083
    %v2086 = vsel %vm1118, %v2084, %v2072
    %v2087 = vsel %vm1118, %v2085, %v2073
    %v2088 = vsel %vm1130, %v2043, 0.0
    %v2089 = vsel %vm1130, %v2045, 0.0
    %v2090 = vsel %vm1096, %v2088, 0.0
    %2091 = vadd.xlane.f32.xlu0 %v2090
    %v2092 = vpop.xlane.xlu0 %2091
    %v2093 = vsel %vm1096, %v2089, 0.0
    %2094 = vadd.xlane.f32.xlu0 %v2093
    %v2095 = vpop.xlane.xlu0 %2094
    %v2096 = vmax.f32 %v2092, 1e-30
    %v2097 = vmax.f32 %v2095, 1e-30
    %v2098 = vrcp.pop %v2096
    %v2099 = vrcp.pop %v2097
    %v2100 = vsel %vm1130, %v2098, %v2086
    %v2101 = vsel %vm1130, %v2099, %v2087
    %v2102 = vmul.f32 %v2043, %v2100
    %v2103 = vmul.f32 %v2045, %v2101
    %v2105 = vsel %vm1096, %v2102, 0
    %v2108 = vsel %vm1096, %v2103, 0
    %2110 = vmatprep.subr.mxu0 0.0
    %2111 = vmatpush1.msra.mxu0 %v1913
    %2112 = vmatprep.subr.mxu0 0.0
    %2113 = vmatpush1.msra.mxu0 %v1914
    %2114 = vmatprep.subr.mxu0 0.0
    %2115 = vmatpush1.msra.mxu0 %v1915
    %2116 = vmatprep.subr.mxu0 0.0
    %2117 = vmatpush1.msra.mxu0 %v1916
    %2118 = vmatprep.subr.mxu0 0.0
    %2119 = vmatpush1.msra.mxu0 %v1917
    %2120 = vmatprep.subr.mxu0 0.0
    %2121 = vmatpush1.msra.mxu0 %v1918
    %2122 = vmatprep.subr.mxu0 0.0
    %2123 = vmatpush1.msra.mxu0 %v1919
    %2124 = vmatprep.subr.mxu0 0.0
    %2125 = vmatpush1.msra.mxu0 %v1920
    %2126 = vmatprep.subr.mxu0 0.0
    %2127 = vmatpush1.msra.mxu0 0.0
    %2128 = vmatprep.subr.mxu0 0.0
    %2129 = vmatpush1.msra.mxu0 0.0
    %2130 = vmatprep.subr.mxu0 0.0
    %2131 = vmatpush1.msra.mxu0 0.0
    %2132 = vmatprep.subr.mxu0 0.0
    %2133 = vmatpush1.msra.mxu0 0.0
    %2134 = vmatprep.subr.mxu0 0.0
    %2135 = vmatpush1.msra.mxu0 0.0
    %2136 = vmatprep.subr.mxu0 0.0
    %2137 = vmatpush1.msra.mxu0 0.0
    %2138 = vmatprep.subr.mxu0 0.0
    %2139 = vmatpush1.msra.mxu0 0.0
    %2140 = vmatprep.subr.mxu0 0.0
    %2141 = vmatpush1.msra.mxu0 0.0
    %2142 = vmatprep.subr.mxu0 0.0
    %2143 = vmatpush1.msra.mxu0 0.0
    %2144 = vmatprep.subr.mxu0 0.0
    %2145 = vmatpush1.msra.mxu0 0.0
    %2146 = vmatprep.subr.mxu0 0.0
    %2147 = vmatpush1.msra.mxu0 0.0
    %2148 = vmatprep.subr.mxu0 0.0
    %2149 = vmatpush1.msra.mxu0 0.0
    %2150 = vmatprep.subr.mxu0 0.0
    %2151 = vmatpush1.msra.mxu0 0.0
    %2152 = vmatprep.subr.mxu0 0.0
    %2153 = vmatpush1.msra.mxu0 0.0
    %2154 = vmatprep.subr.mxu0 0.0
    %2155 = vmatpush1.msra.mxu0 0.0
    %2156 = vmatprep.subr.mxu0 0.0
    %2157 = vmatpush1.msra.mxu0 0.0
    %2158 = vmatprep.subr.mxu0 0.0
    %2159 = vmatpush1.msra.mxu0 0.0
    %2160 = vmatprep.subr.mxu0 0.0
    %2161 = vmatpush1.msra.mxu0 0.0
    %2162 = vmatprep.subr.mxu0 0.0
    %2163 = vmatpush1.msra.mxu0 0.0
    %2164 = vmatprep.subr.mxu0 0.0
    %2165 = vmatpush1.msra.mxu0 0.0
    %2166 = vmatprep.subr.mxu0 0.0
    %2167 = vmatpush1.msra.mxu0 0.0
    %2168 = vmatprep.subr.mxu0 0.0
    %2169 = vmatpush1.msra.mxu0 0.0
    %2170 = vmatprep.subr.mxu0 0.0
    %2171 = vmatpush1.msra.mxu0 0.0
    %2172 = vmatprep.subr.mxu0 0.0
    %2173 = vmatpush1.msra.mxu0 0.0
    %2174 = vmatprep.mubr.f32.mxu0 0.0
    %2175 = vmatmul.mubr.f32.gmra.mrb[0].mxu0 %v2105
    %v2176 = vpop.f32.mrb[0].mxu0
    %v2177 = vadd.f32 0.0, %v2176
    %v2178 = vpop.f32.mrb[0].mxu0
    %2179 = vmatprep.mubr.f32.mxu0 0.0
    %2180 = vmatmul.mubr.f32.gmra.mrb[0].mxu0 %v2108
    %v2181 = vpop.f32.mrb[0].mxu0
    %v2182 = vadd.f32 0.0, %v2181
    %v2183 = vpop.f32.mrb[0].mxu0
    %2184 = vdwg.mxu0
    %v2186 = vlaneseq
    %v2187 = vshrl.u32 %v2186, 7
    %v2188 = vsub.s32 0, %v2187
    %v2189 = vrot.slane %v1904, %v2188
    %2191 = vmatprep.subr.mxu0 0.0
    %2192 = vmatpush1.msra.mxu0 %v1887
    %2193 = vmatprep.subr.mxu0 0.0
    %2194 = vmatpush1.msra.mxu0 %v1888
    %2195 = vmatprep.subr.mxu0 0.0
    %2196 = vmatpush1.msra.mxu0 %v1889
    %2197 = vmatprep.subr.mxu0 0.0
    %2198 = vmatpush1.msra.mxu0 %v1890
    %2199 = vmatprep.subr.mxu0 0.0
    %2200 = vmatpush1.msra.mxu0 %v1891
    %2201 = vmatprep.subr.mxu0 0.0
    %2202 = vmatpush1.msra.mxu0 %v1892
    %2203 = vmatprep.subr.mxu0 0.0
    %2204 = vmatpush1.msra.mxu0 %v1893
    %2205 = vmatprep.subr.mxu0 0.0
    %2206 = vmatpush1.msra.mxu0 %v1894
    %2207 = vmatprep.subr.mxu0 0.0
    %2208 = vmatpush1.msra.mxu0 %v1895
    %2209 = vmatprep.subr.mxu0 0.0
    %2210 = vmatpush1.msra.mxu0 %v1896
    %2211 = vmatprep.subr.mxu0 0.0
    %2212 = vmatpush1.msra.mxu0 %v1897
    %2213 = vmatprep.subr.mxu0 0.0
    %2214 = vmatpush1.msra.mxu0 %v1898
    %2215 = vmatprep.subr.mxu0 0.0
    %2216 = vmatpush1.msra.mxu0 %v1899
    %2217 = vmatprep.subr.mxu0 0.0
    %2218 = vmatpush1.msra.mxu0 %v1900
    %2219 = vmatprep.subr.mxu0 0.0
    %2220 = vmatpush1.msra.mxu0 %v1901
    %2221 = vmatprep.subr.mxu0 0.0
    %2222 = vmatpush1.msra.mxu0 %v1902
    %2223 = vmatprep.subr.mxu0 0.0
    %2224 = vmatpush1.msra.mxu0 0.0
    %2225 = vmatprep.subr.mxu0 0.0
    %2226 = vmatpush1.msra.mxu0 0.0
    %2227 = vmatprep.subr.mxu0 0.0
    %2228 = vmatpush1.msra.mxu0 0.0
    %2229 = vmatprep.subr.mxu0 0.0
    %2230 = vmatpush1.msra.mxu0 0.0
    %2231 = vmatprep.subr.mxu0 0.0
    %2232 = vmatpush1.msra.mxu0 0.0
    %2233 = vmatprep.subr.mxu0 0.0
    %2234 = vmatpush1.msra.mxu0 0.0
    %2235 = vmatprep.subr.mxu0 0.0
    %2236 = vmatpush1.msra.mxu0 0.0
    %2237 = vmatprep.subr.mxu0 0.0
    %2238 = vmatpush1.msra.mxu0 0.0
    %2239 = vmatprep.subr.mxu0 0.0
    %2240 = vmatpush1.msra.mxu0 0.0
    %2241 = vmatprep.subr.mxu0 0.0
    %2242 = vmatpush1.msra.mxu0 0.0
    %2243 = vmatprep.subr.mxu0 0.0
    %2244 = vmatpush1.msra.mxu0 0.0
    %2245 = vmatprep.subr.mxu0 0.0
    %2246 = vmatpush1.msra.mxu0 0.0
    %2247 = vmatprep.subr.mxu0 0.0
    %2248 = vmatpush1.msra.mxu0 0.0
    %2249 = vmatprep.subr.mxu0 0.0
    %2250 = vmatpush1.msra.mxu0 0.0
    %2251 = vmatprep.subr.mxu0 0.0
    %2252 = vmatpush1.msra.mxu0 0.0
    %2253 = vmatprep.subr.mxu0 0.0
    %2254 = vmatpush1.msra.mxu0 0.0
    %2255 = vmatprep.mubr.f32.mxu0 0.0
    %2256 = vmatmul.mubr.f32.gmra.mrb[0].mxu0 %v2177
    %v2257 = vpop.f32.mrb[0].mxu0
    %v2258 = vadd.f32 %v2189, %v2257
    %v2259 = vpop.f32.mrb[0].mxu0
    %2260 = vmatprep.mubr.f32.mxu0 0.0
    %2261 = vmatmul.mubr.f32.gmra.mrb[0].mxu0 %v2182
    %v2262 = vpop.f32.mrb[0].mxu0
    %v2263 = vadd.f32 %v2189, %v2262
    %v2264 = vpop.f32.mrb[0].mxu0
    %2265 = vdwg.mxu0
    %s2266 = scalar_lea.vmem [#allocation17], 2
    %v2267 = vld [vmem:[%s2266] sm:$0x3]
    %v2268 = vadd.f32 %v1665, %v2258
    %v2269 = vadd.f32 %v1666, %v2263
    %2270 = vadd.xlane.f32.xlu0 %v2268
    %v2271 = vpop.xlane.xlu0 %2270
    %2272 = vadd.xlane.f32.xlu0 %v2269
    %v2273 = vpop.xlane.xlu0 %2272
    %v2274 = vmul.f32 %v2271, 0.041666668
    %v2275 = vmul.f32 %v2273, 0.041666668
    %v2276 = vmul.f32 %v2268, %v2268
    %v2277 = vmul.f32 %v2269, %v2269
    %2278 = vadd.xlane.f32.xlu0 %v2276
    %v2279 = vpop.xlane.xlu0 %2278
    %2280 = vadd.xlane.f32.xlu0 %v2277
    %v2281 = vpop.xlane.xlu0 %2280
    %v2282 = vmul.f32 %v2279, 0.041666668
    %v2283 = vmul.f32 %v2281, 0.041666668
    %v2284 = vmul.f32 %v2274, %v2274
    %v2285 = vmul.f32 %v2275, %v2275
    %v2286 = vsub.f32 %v2282, %v2284
    %v2287 = vsub.f32 %v2283, %v2285
    %v2288 = vmax.f32 %v2286, 0.0
    %v2289 = vmax.f32 %v2287, 0.0
    %v2290 = vsub.f32 %v2268, %v2274
    %v2291 = vsub.f32 %v2269, %v2275
    %v2292 = vadd.f32 %v2288, 1e-12
    %v2293 = vadd.f32 %v2289, 1e-12
    %v2294 = vrsqrt.pop %v2292
    %v2295 = vrsqrt.pop %v2293
    %v2296 = vmul.f32 %v2290, %v2294
    %v2297 = vmul.f32 %v2291, %v2295
    %v2298 = vlaneseq
    %v2299 = vshrl.u32 %v2298, 7
    %v2300 = vsub.s32 0, %v2299
    %v2301 = vrot.slane %v2267, %v2300
    %v2302 = vmul.f32 %v2296, %v2301
    %v2303 = vmul.f32 %v2297, %v2301
    %v2304 = vlaneseq
    %v2305 = vshrl.u32 %v2304, 7
    %v2306 = vsub.s32 1, %v2305
    %v2307 = vrot.slane %v2267, %v2306
    %v2308 = vadd.f32 %v2302, %v2307
    %v2309 = vadd.f32 %v2303, %v2307
    %s2310 = scalar_lea.vmem [#allocation19], 128
    %v2311 = vld [vmem:[%s2310] sm:$0xff]
    %v2312 = vld [vmem:[%s2310 + $0x8] sm:$0xff]
    %v2313 = vld [vmem:[%s2310 + $0x10] sm:$0xff]
    %v2314 = vld [vmem:[%s2310 + $0x18] sm:$0xff]
    %v2315 = vld [vmem:[%s2310 + $0x20] sm:$0xff]
    %v2316 = vld [vmem:[%s2310 + $0x28] sm:$0xff]
    %v2317 = vld [vmem:[%s2310 + $0x30] sm:$0xff]
    %v2318 = vld [vmem:[%s2310 + $0x38] sm:$0xff]
    %v2319 = vld [vmem:[%s2310 + $0x40] sm:$0xff]
    %v2320 = vld [vmem:[%s2310 + $0x48] sm:$0xff]
    %v2321 = vld [vmem:[%s2310 + $0x50] sm:$0xff]
    %v2322 = vld [vmem:[%s2310 + $0x58] sm:$0xff]
    %v2323 = vld [vmem:[%s2310 + $0x60] sm:$0xff]
    %v2324 = vld [vmem:[%s2310 + $0x68] sm:$0xff]
    %v2325 = vld [vmem:[%s2310 + $0x70] sm:$0xff]
    %v2326 = vld [vmem:[%s2310 + $0x78] sm:$0xff]
    %s2327 = scalar_lea.vmem [#allocation20], 1
    %v2328 = vld [vmem:[%s2327] sm:$0x1]
    %v2330 = vlaneseq
    %v2331 = vshrl.u32 %v2330, 7
    %v2332 = vsub.s32 0, %v2331
    %v2333 = vrot.slane %v2328, %v2332
    %2335 = vmatprep.subr.mxu0 0.0
    %2336 = vmatpush1.msra.mxu0 %v2311
    %2337 = vmatprep.subr.mxu0 0.0
    %2338 = vmatpush1.msra.mxu0 %v2312
    %2339 = vmatprep.subr.mxu0 0.0
    %2340 = vmatpush1.msra.mxu0 %v2313
    %2341 = vmatprep.subr.mxu0 0.0
    %2342 = vmatpush1.msra.mxu0 %v2314
    %2343 = vmatprep.subr.mxu0 0.0
    %2344 = vmatpush1.msra.mxu0 %v2315
    %2345 = vmatprep.subr.mxu0 0.0
    %2346 = vmatpush1.msra.mxu0 %v2316
    %2347 = vmatprep.subr.mxu0 0.0
    %2348 = vmatpush1.msra.mxu0 %v2317
    %2349 = vmatprep.subr.mxu0 0.0
    %2350 = vmatpush1.msra.mxu0 %v2318
    %2351 = vmatprep.subr.mxu0 0.0
    %2352 = vmatpush1.msra.mxu0 %v2319
    %2353 = vmatprep.subr.mxu0 0.0
    %2354 = vmatpush1.msra.mxu0 %v2320
    %2355 = vmatprep.subr.mxu0 0.0
    %2356 = vmatpush1.msra.mxu0 %v2321
    %2357 = vmatprep.subr.mxu0 0.0
    %2358 = vmatpush1.msra.mxu0 %v2322
    %2359 = vmatprep.subr.mxu0 0.0
    %2360 = vmatpush1.msra.mxu0 %v2323
    %2361 = vmatprep.subr.mxu0 0.0
    %2362 = vmatpush1.msra.mxu0 %v2324
    %2363 = vmatprep.subr.mxu0 0.0
    %2364 = vmatpush1.msra.mxu0 %v2325
    %2365 = vmatprep.subr.mxu0 0.0
    %2366 = vmatpush1.msra.mxu0 %v2326
    %2367 = vmatprep.subr.mxu0 0.0
    %2368 = vmatpush1.msra.mxu0 0.0
    %2369 = vmatprep.subr.mxu0 0.0
    %2370 = vmatpush1.msra.mxu0 0.0
    %2371 = vmatprep.subr.mxu0 0.0
    %2372 = vmatpush1.msra.mxu0 0.0
    %2373 = vmatprep.subr.mxu0 0.0
    %2374 = vmatpush1.msra.mxu0 0.0
    %2375 = vmatprep.subr.mxu0 0.0
    %2376 = vmatpush1.msra.mxu0 0.0
    %2377 = vmatprep.subr.mxu0 0.0
    %2378 = vmatpush1.msra.mxu0 0.0
    %2379 = vmatprep.subr.mxu0 0.0
    %2380 = vmatpush1.msra.mxu0 0.0
    %2381 = vmatprep.subr.mxu0 0.0
    %2382 = vmatpush1.msra.mxu0 0.0
    %2383 = vmatprep.subr.mxu0 0.0
    %2384 = vmatpush1.msra.mxu0 0.0
    %2385 = vmatprep.subr.mxu0 0.0
    %2386 = vmatpush1.msra.mxu0 0.0
    %2387 = vmatprep.subr.mxu0 0.0
    %2388 = vmatpush1.msra.mxu0 0.0
    %2389 = vmatprep.subr.mxu0 0.0
    %2390 = vmatpush1.msra.mxu0 0.0
    %2391 = vmatprep.subr.mxu0 0.0
    %2392 = vmatpush1.msra.mxu0 0.0
    %2393 = vmatprep.subr.mxu0 0.0
    %2394 = vmatpush1.msra.mxu0 0.0
    %2395 = vmatprep.subr.mxu0 0.0
    %2396 = vmatpush1.msra.mxu0 0.0
    %2397 = vmatprep.subr.mxu0 0.0
    %2398 = vmatpush1.msra.mxu0 0.0
    %2399 = vmatprep.mubr.f32.mxu0 0.0
    %2400 = vmatmul.mubr.f32.gmra.mrb[0].mxu0 %v2308
    %v2401 = vpop.f32.mrb[0].mxu0
    %v2402 = vadd.f32 %v2333, %v2401
    %v2403 = vpop.f32.mrb[0].mxu0
    %2404 = vmatprep.mubr.f32.mxu0 0.0
    %2405 = vmatmul.mubr.f32.gmra.mrb[0].mxu0 %v2309
    %v2406 = vpop.f32.mrb[0].mxu0
    %v2407 = vadd.f32 %v2333, %v2406
    %v2408 = vpop.f32.mrb[0].mxu0
    %2409 = vdwg.mxu0
    %v2410 = vmul.f32 %v2402, 0.5
    %v2411 = vmul.f32 %v2407, 0.5
    %v2412 = vmul.f32 %v2402, 0.044715
    %v2413 = vmul.f32 %v2407, 0.044715
    %v2414 = vmul.f32 %v2412, %v2402
    %v2415 = vmul.f32 %v2413, %v2407
    %v2416 = vmul.f32 %v2414, %v2402
    %v2417 = vmul.f32 %v2415, %v2407
    %v2418 = vadd.f32 %v2402, %v2416
    %v2419 = vadd.f32 %v2407, %v2417
    %v2420 = vmul.f32 %v2418, 0.7978846
    %v2421 = vmul.f32 %v2419, 0.7978846
    %v2422 = vtanh.pop %v2420
    %v2423 = vtanh.pop %v2421
    %v2424 = vadd.f32 %v2422, 1.0
    %v2425 = vadd.f32 %v2423, 1.0
    %v2426 = vmul.f32 %v2410, %v2424
    %v2427 = vmul.f32 %v2411, %v2425
    %s2428 = scalar_lea.vmem [#allocation22], 128
    %v2429 = vld [vmem:[%s2428] sm:$0xff]
    %v2430 = vld [vmem:[%s2428 + $0x8] sm:$0xff]
    %v2431 = vld [vmem:[%s2428 + $0x10] sm:$0xff]
    %v2432 = vld [vmem:[%s2428 + $0x18] sm:$0xff]
    %v2433 = vld [vmem:[%s2428 + $0x20] sm:$0xff]
    %v2434 = vld [vmem:[%s2428 + $0x28] sm:$0xff]
    %v2435 = vld [vmem:[%s2428 + $0x30] sm:$0xff]
    %v2436 = vld [vmem:[%s2428 + $0x38] sm:$0xff]
    %v2437 = vld [vmem:[%s2428 + $0x40] sm:$0xff]
    %v2438 = vld [vmem:[%s2428 + $0x48] sm:$0xff]
    %v2439 = vld [vmem:[%s2428 + $0x50] sm:$0xff]
    %v2440 = vld [vmem:[%s2428 + $0x58] sm:$0xff]
    %v2441 = vld [vmem:[%s2428 + $0x60] sm:$0xff]
    %v2442 = vld [vmem:[%s2428 + $0x68] sm:$0xff]
    %v2443 = vld [vmem:[%s2428 + $0x70] sm:$0xff]
    %v2444 = vld [vmem:[%s2428 + $0x78] sm:$0xff]
    %s2445 = scalar_lea.vmem [#allocation23], 1
    %v2446 = vld [vmem:[%s2445] sm:$0x1]
    %v2448 = vlaneseq
    %v2449 = vshrl.u32 %v2448, 7
    %v2450 = vsub.s32 0, %v2449
    %v2451 = vrot.slane %v2446, %v2450
    %2453 = vmatprep.subr.mxu0 0.0
    %2454 = vmatpush1.msra.mxu0 %v2429
    %2455 = vmatprep.subr.mxu0 0.0
    %2456 = vmatpush1.msra.mxu0 %v2430
    %2457 = vmatprep.subr.mxu0 0.0
    %2458 = vmatpush1.msra.mxu0 %v2431
    %2459 = vmatprep.subr.mxu0 0.0
    %2460 = vmatpush1.msra.mxu0 %v2432
    %2461 = vmatprep.subr.mxu0 0.0
    %2462 = vmatpush1.msra.mxu0 %v2433
    %2463 = vmatprep.subr.mxu0 0.0
    %2464 = vmatpush1.msra.mxu0 %v2434
    %2465 = vmatprep.subr.mxu0 0.0
    %2466 = vmatpush1.msra.mxu0 %v2435
    %2467 = vmatprep.subr.mxu0 0.0
    %2468 = vmatpush1.msra.mxu0 %v2436
    %2469 = vmatprep.subr.mxu0 0.0
    %2470 = vmatpush1.msra.mxu0 %v2437
    %2471 = vmatprep.subr.mxu0 0.0
    %2472 = vmatpush1.msra.mxu0 %v2438
    %2473 = vmatprep.subr.mxu0 0.0
    %2474 = vmatpush1.msra.mxu0 %v2439
    %2475 = vmatprep.subr.mxu0 0.0
    %2476 = vmatpush1.msra.mxu0 %v2440
    %2477 = vmatprep.subr.mxu0 0.0
    %2478 = vmatpush1.msra.mxu0 %v2441
    %2479 = vmatprep.subr.mxu0 0.0
    %2480 = vmatpush1.msra.mxu0 %v2442
    %2481 = vmatprep.subr.mxu0 0.0
    %2482 = vmatpush1.msra.mxu0 %v2443
    %2483 = vmatprep.subr.mxu0 0.0
    %2484 = vmatpush1.msra.mxu0 %v2444
    %2485 = vmatprep.subr.mxu0 0.0
    %2486 = vmatpush1.msra.mxu0 0.0
    %2487 = vmatprep.subr.mxu0 0.0
    %2488 = vmatpush1.msra.mxu0 0.0
    %2489 = vmatprep.subr.mxu0 0.0
    %2490 = vmatpush1.msra.mxu0 0.0
    %2491 = vmatprep.subr.mxu0 0.0
    %2492 = vmatpush1.msra.mxu0 0.0
    %2493 = vmatprep.subr.mxu0 0.0
    %2494 = vmatpush1.msra.mxu0 0.0
    %2495 = vmatprep.subr.mxu0 0.0
    %2496 = vmatpush1.msra.mxu0 0.0
    %2497 = vmatprep.subr.mxu0 0.0
    %2498 = vmatpush1.msra.mxu0 0.0
    %2499 = vmatprep.subr.mxu0 0.0
    %2500 = vmatpush1.msra.mxu0 0.0
    %2501 = vmatprep.subr.mxu0 0.0
    %2502 = vmatpush1.msra.mxu0 0.0
    %2503 = vmatprep.subr.mxu0 0.0
    %2504 = vmatpush1.msra.mxu0 0.0
    %2505 = vmatprep.subr.mxu0 0.0
    %2506 = vmatpush1.msra.mxu0 0.0
    %2507 = vmatprep.subr.mxu0 0.0
    %2508 = vmatpush1.msra.mxu0 0.0
    %2509 = vmatprep.subr.mxu0 0.0
    %2510 = vmatpush1.msra.mxu0 0.0
    %2511 = vmatprep.subr.mxu0 0.0
    %2512 = vmatpush1.msra.mxu0 0.0
    %2513 = vmatprep.subr.mxu0 0.0
    %2514 = vmatpush1.msra.mxu0 0.0
    %2515 = vmatprep.subr.mxu0 0.0
    %2516 = vmatpush1.msra.mxu0 0.0
    %2517 = vmatprep.mubr.f32.mxu0 0.0
    %2518 = vmatmul.mubr.f32.gmra.mrb[0].mxu0 %v2426
    %v2519 = vpop.f32.mrb[0].mxu0
    %v2520 = vadd.f32 %v2451, %v2519
    %v2521 = vpop.f32.mrb[0].mxu0
    %2522 = vmatprep.mubr.f32.mxu0 0.0
    %2523 = vmatmul.mubr.f32.gmra.mrb[0].mxu0 %v2427
    %v2524 = vpop.f32.mrb[0].mxu0
    %v2525 = vadd.f32 %v2451, %v2524
    %v2526 = vpop.f32.mrb[0].mxu0
    %2527 = vdwg.mxu0
    %s2528 = scalar_lea.vmem [#allocation25], 2
    %v2529 = vld [vmem:[%s2528] sm:$0x3]
    %v2530 = vadd.f32 %v2308, %v2520
    %v2531 = vadd.f32 %v2309, %v2525
    %2532 = vadd.xlane.f32.xlu0 %v2530
    %v2533 = vpop.xlane.xlu0 %2532
    %2534 = vadd.xlane.f32.xlu0 %v2531
    %v2535 = vpop.xlane.xlu0 %2534
    %v2536 = vmul.f32 %v2533, 0.041666668
    %v2537 = vmul.f32 %v2535, 0.041666668
    %v2538 = vmul.f32 %v2530, %v2530
    %v2539 = vmul.f32 %v2531, %v2531
    %2540 = vadd.xlane.f32.xlu0 %v2538
    %v2541 = vpop.xlane.xlu0 %2540
    %2542 = vadd.xlane.f32.xlu0 %v2539
    %v2543 = vpop.xlane.xlu0 %2542
    %v2544 = vmul.f32 %v2541, 0.041666668
    %v2545 = vmul.f32 %v2543, 0.041666668
    %v2546 = vmul.f32 %v2536, %v2536
    %v2547 = vmul.f32 %v2537, %v2537
    %v2548 = vsub.f32 %v2544, %v2546
    %v2549 = vsub.f32 %v2545, %v2547
    %v2550 = vmax.f32 %v2548, 0.0
    %v2551 = vmax.f32 %v2549, 0.0
    %v2552 = vsub.f32 %v2530, %v2536
    %v2553 = vsub.f32 %v2531, %v2537
    %v2554 = vadd.f32 %v2550, 1e-12
    %v2555 = vadd.f32 %v2551, 1e-12
    %v2556 = vrsqrt.pop %v2554
    %v2557 = vrsqrt.pop %v2555
    %v2558 = vmul.f32 %v2552, %v2556
    %v2559 = vmul.f32 %v2553, %v2557
    %v2560 = vlaneseq
    %v2561 = vshrl.u32 %v2560, 7
    %v2562 = vsub.s32 0, %v2561
    %v2563 = vrot.slane %v2529, %v2562
    %v2564 = vmul.f32 %v2558, %v2563
    %v2565 = vmul.f32 %v2559, %v2563
    %v2566 = vlaneseq
    %v2567 = vshrl.u32 %v2566, 7
    %v2568 = vsub.s32 1, %v2567
    %v2569 = vrot.slane %v2529, %v2568
    %v2570 = vadd.f32 %v2564, %v2569
    %v2571 = vadd.f32 %v2565, %v2569
    %v2572 = vld [vmem:[#allocation5] sm:$0xff]
    %v2573 = vld [vmem:[#allocation5 + $0x8] sm:$0xff]
    %v2574 = vld [vmem:[#allocation26] sm:$0xff]
    %v2575 = vld [vmem:[#allocation26 + $0x8] sm:$0xff]
    %v2576 = vld [vmem:[#allocation26 + $0x10] sm:$0xff]
    %v2577 = vld [vmem:[#allocation26 + $0x18] sm:$0xff]
    %v2578 = vld [vmem:[#allocation26 + $0x20] sm:$0xff]
    %v2579 = vld [vmem:[#allocation26 + $0x28] sm:$0xff]
    %v2580 = vld [vmem:[#allocation26 + $0x30] sm:$0xff]
    %v2581 = vld [vmem:[#allocation26 + $0x38] sm:$0xff]
    %v2582 = vld [vmem:[#allocation26 + $0x40] sm:$0xff]
    %v2583 = vld [vmem:[#allocation26 + $0x48] sm:$0xff]
    %v2584 = vld [vmem:[#allocation26 + $0x50] sm:$0xff]
    %v2585 = vld [vmem:[#allocation26 + $0x58] sm:$0xff]
    %v2586 = vld [vmem:[#allocation26 + $0x60] sm:$0xff]
    %v2587 = vld [vmem:[#allocation26 + $0x68] sm:$0xff]
    %v2588 = vld [vmem:[#allocation26 + $0x70] sm:$0xff]
    %v2589 = vld [vmem:[#allocation26 + $0x78] sm:$0xff]
    %v2590 = vld [vmem:[#allocation26 + $0x80] sm:$0xff]
    %v2591 = vld [vmem:[#allocation26 + $0x88] sm:$0xff]
    %v2592 = vld [vmem:[#allocation26 + $0x90] sm:$0xff]
    %v2593 = vld [vmem:[#allocation26 + $0x98] sm:$0xff]
    %v2594 = vld [vmem:[#allocation26 + $0xa0] sm:$0xff]
    %v2595 = vld [vmem:[#allocation26 + $0xa8] sm:$0xff]
    %v2596 = vld [vmem:[#allocation26 + $0xb0] sm:$0xff]
    %v2597 = vld [vmem:[#allocation26 + $0xb8] sm:$0xff]
    %v2598 = vld [vmem:[#allocation26 + $0xc0] sm:$0xff]
    %v2599 = vld [vmem:[#allocation26 + $0xc8] sm:$0xff]
    %v2600 = vld [vmem:[#allocation26 + $0xd0] sm:$0xff]
    %v2601 = vld [vmem:[#allocation26 + $0xd8] sm:$0xff]
    %v2602 = vld [vmem:[#allocation26 + $0xe0] sm:$0xff]
    %v2603 = vld [vmem:[#allocation26 + $0xe8] sm:$0xff]
    %v2604 = vld [vmem:[#allocation26 + $0xf0] sm:$0xff]
    %v2605 = vld [vmem:[#allocation26 + $0xf8] sm:$0xff]
    %v2606 = vld [vmem:[#allocation26 + $0x100] sm:$0xff]
    %v2607 = vld [vmem:[#allocation26 + $0x108] sm:$0xff]
    %v2608 = vld [vmem:[#allocation26 + $0x110] sm:$0xff]
    %v2609 = vld [vmem:[#allocation26 + $0x118] sm:$0xff]
    %v2610 = vld [vmem:[#allocation26 + $0x120] sm:$0xff]
    %v2611 = vld [vmem:[#allocation26 + $0x128] sm:$0xff]
    %v2612 = vld [vmem:[#allocation26 + $0x130] sm:$0xff]
    %v2613 = vld [vmem:[#allocation26 + $0x138] sm:$0xff]
    %v2614 = vld [vmem:[#allocation26 + $0x140] sm:$0xff]
    %v2615 = vld [vmem:[#allocation26 + $0x148] sm:$0xff]
    %v2616 = vld [vmem:[#allocation26 + $0x150] sm:$0xff]
    %v2617 = vld [vmem:[#allocation26 + $0x158] sm:$0xff]
    %v2618 = vld [vmem:[#allocation26 + $0x160] sm:$0xff]
    %v2619 = vld [vmem:[#allocation26 + $0x168] sm:$0xff]
    %v2620 = vld [vmem:[#allocation26 + $0x170] sm:$0xff]
    %v2621 = vld [vmem:[#allocation26 + $0x178] sm:$0xff]
    %v2622 = vld [vmem:[#allocation28] sm:$0x7]
    %v2624 = vlaneseq
    %v2625 = vshrl.u32 %v2624, 7
    %v2626 = vsub.s32 0, %v2625
    %v2627 = vrot.slane %v2622, %v2626
    %v2628 = vlaneseq
    %v2629 = vshrl.u32 %v2628, 7
    %v2630 = vsub.s32 1, %v2629
    %v2631 = vrot.slane %v2622, %v2630
    %v2632 = vlaneseq
    %v2633 = vshrl.u32 %v2632, 7
    %v2634 = vsub.s32 2, %v2633
    %v2635 = vrot.slane %v2622, %v2634
    %2639 = vmatprep.subr.mxu0 %v2575
    %2640 = vmatpush1.msra.mxu0 %v2574
    %2641 = vmatprep.subr.mxu0 %v2578
    %2642 = vmatpush1.msra.mxu0 %v2577
    %2643 = vmatprep.subr.mxu0 %v2581
    %2644 = vmatpush1.msra.mxu0 %v2580
    %2645 = vmatprep.subr.mxu0 %v2584
    %2646 = vmatpush1.msra.mxu0 %v2583
    %2647 = vmatprep.subr.mxu0 %v2587
    %2648 = vmatpush1.msra.mxu0 %v2586
    %2649 = vmatprep.subr.mxu0 %v2590
    %2650 = vmatpush1.msra.mxu0 %v2589
    %2651 = vmatprep.subr.mxu0 %v2593
    %2652 = vmatpush1.msra.mxu0 %v2592
    %2653 = vmatprep.subr.mxu0 %v2596
    %2654 = vmatpush1.msra.mxu0 %v2595
    %2655 = vmatprep.subr.mxu0 %v2599
    %2656 = vmatpush1.msra.mxu0 %v2598
    %2657 = vmatprep.subr.mxu0 %v2602
    %2658 = vmatpush1.msra.mxu0 %v2601
    %2659 = vmatprep.subr.mxu0 %v2605
    %2660 = vmatpush1.msra.mxu0 %v2604
    %2661 = vmatprep.subr.mxu0 %v2608
    %2662 = vmatpush1.msra.mxu0 %v2607
    %2663 = vmatprep.subr.mxu0 %v2611
    %2664 = vmatpush1.msra.mxu0 %v2610
    %2665 = vmatprep.subr.mxu0 %v2614
    %2666 = vmatpush1.msra.mxu0 %v2613
    %2667 = vmatprep.subr.mxu0 %v2617
    %2668 = vmatpush1.msra.mxu0 %v2616
    %2669 = vmatprep.subr.mxu0 %v2620
    %2670 = vmatpush1.msra.mxu0 %v2619
    %2671 = vmatprep.subr.mxu0 0.0
    %2672 = vmatpush1.msra.mxu0 0.0
    %2673 = vmatprep.subr.mxu0 0.0
    %2674 = vmatpush1.msra.mxu0 0.0
    %2675 = vmatprep.subr.mxu0 0.0
    %2676 = vmatpush1.msra.mxu0 0.0
    %2677 = vmatprep.subr.mxu0 0.0
    %2678 = vmatpush1.msra.mxu0 0.0
    %2679 = vmatprep.subr.mxu0 0.0
    %2680 = vmatpush1.msra.mxu0 0.0
    %2681 = vmatprep.subr.mxu0 0.0
    %2682 = vmatpush1.msra.mxu0 0.0
    %2683 = vmatprep.subr.mxu0 0.0
    %2684 = vmatpush1.msra.mxu0 0.0
    %2685 = vmatprep.subr.mxu0 0.0
    %2686 = vmatpush1.msra.mxu0 0.0
    %2687 = vmatprep.subr.mxu0 0.0
    %2688 = vmatpush1.msra.mxu0 0.0
    %2689 = vmatprep.subr.mxu0 0.0
    %2690 = vmatpush1.msra.mxu0 0.0
    %2691 = vmatprep.subr.mxu0 0.0
    %2692 = vmatpush1.msra.mxu0 0.0
    %2693 = vmatprep.subr.mxu0 0.0
    %2694 = vmatpush1.msra.mxu0 0.0
    %2695 = vmatprep.subr.mxu0 0.0
    %2696 = vmatpush1.msra.mxu0 0.0
    %2697 = vmatprep.subr.mxu0 0.0
    %2698 = vmatpush1.msra.mxu0 0.0
    %2699 = vmatprep.subr.mxu0 0.0
    %2700 = vmatpush1.msra.mxu0 0.0
    %2701 = vmatprep.subr.mxu0 0.0
    %2702 = vmatpush1.msra.mxu0 0.0
    %2703 = vmatprep.mubr.f32.mxu0 0.0
    %2704 = vmatmul.mubr.f32.gmra.mrb[0].mxu0 %v2572
    %v2705 = vpop.f32.mrb[0].mxu0
    %v2706 = vadd.f32 %v2627, %v2705
    %v2707 = vpop.f32.mrb[0].mxu0
    %v2708 = vadd.f32 %v2631, %v2707
    %2709 = vmatprep.mubr.f32.mxu0 0.0
    %2710 = vmatmul.mubr.f32.gmra.mrb[0].mxu0 %v2573
    %v2711 = vpop.f32.mrb[0].mxu0
    %v2712 = vadd.f32 %v2627, %v2711
    %v2713 = vpop.f32.mrb[0].mxu0
    %v2714 = vadd.f32 %v2631, %v2713
    %2715 = vdwg.mxu0
    %2716 = vmatprep.subr.mxu0 0.0
    %2717 = vmatpush1.msra.mxu0 %v2576
    %2718 = vmatprep.subr.mxu0 0.0
    %2719 = vmatpush1.msra.mxu0 %v2579
    %2720 = vmatprep.subr.mxu0 0.0
    %2721 = vmatpush1.msra.mxu0 %v2582
    %2722 = vmatprep.subr.mxu0 0.0
    %2723 = vmatpush1.msra.mxu0 %v2585
    %2724 = vmatprep.subr.mxu0 0.0
    %2725 = vmatpush1.msra.mxu0 %v2588
    %2726 = vmatprep.subr.mxu0 0.0
    %2727 = vmatpush1.msra.mxu0 %v2591
    %2728 = vmatprep.subr.mxu0 0.0
    %2729 = vmatpush1.msra.mxu0 %v2594
    %2730 = vmatprep.subr.mxu0 0.0
    %2731 = vmatpush1.msra.mxu0 %v2597
    %2732 = vmatprep.subr.mxu0 0.0
    %2733 = vmatpush1.msra.mxu0 %v2600
    %2734 = vmatprep.subr.mxu0 0.0
    %2735 = vmatpush1.msra.mxu0 %v2603
    %2736 = vmatprep.subr.mxu0 0.0
    %2737 = vmatpush1.msra.mxu0 %v2606
    %2738 = vmatprep.subr.mxu0 0.0
    %2739 = vmatpush1.msra.mxu0 %v2609
    %2740 = vmatprep.subr.mxu0 0.0
    %2741 = vmatpush1.msra.mxu0 %v2612
    %2742 = vmatprep.subr.mxu0 0.0
    %2743 = vmatpush1.msra.mxu0 %v2615
    %2744 = vmatprep.subr.mxu0 0.0
    %2745 = vmatpush1.msra.mxu0 %v2618
    %2746 = vmatprep.subr.mxu0 0.0
    %2747 = vmatpush1.msra.mxu0 %v2621
    %2748 = vmatprep.subr.mxu0 0.0
    %2749 = vmatpush1.msra.mxu0 0.0
    %2750 = vmatprep.subr.mxu0 0.0
    %2751 = vmatpush1.msra.mxu0 0.0
    %2752 = vmatprep.subr.mxu0 0.0
    %2753 = vmatpush1.msra.mxu0 0.0
    %2754 = vmatprep.subr.mxu0 0.0
    %2755 = vmatpush1.msra.mxu0 0.0
    %2756 = vmatprep.subr.mxu0 0.0
    %2757 = vmatpush1.msra.mxu0 0.0
    %2758 = vmatprep.subr.mxu0 0.0
    %2759 = vmatpush1.msra.mxu0 0.0
    %2760 = vmatprep.subr.mxu0 0.0
    %2761 = vmatpush1.msra.mxu0 0.0
    %2762 = vmatprep.subr.mxu0 0.0
    %2763 = vmatpush1.msra.mxu0 0.0
    %2764 = vmatprep.subr.mxu0 0.0
    %2765 = vmatpush1.msra.mxu0 0.0
    %2766 = vmatprep.subr.mxu0 0.0
    %2767 = vmatpush1.msra.mxu0 0.0
    %2768 = vmatprep.subr.mxu0 0.0
    %2769 = vmatpush1.msra.mxu0 0.0
    %2770 = vmatprep.subr.mxu0 0.0
    %2771 = vmatpush1.msra.mxu0 0.0
    %2772 = vmatprep.subr.mxu0 0.0
    %2773 = vmatpush1.msra.mxu0 0.0
    %2774 = vmatprep.subr.mxu0 0.0
    %2775 = vmatpush1.msra.mxu0 0.0
    %2776 = vmatprep.subr.mxu0 0.0
    %2777 = vmatpush1.msra.mxu0 0.0
    %2778 = vmatprep.subr.mxu0 0.0
    %2779 = vmatpush1.msra.mxu0 0.0
    %2780 = vmatprep.mubr.f32.mxu0 0.0
    %2781 = vmatmul.mubr.f32.gmra.mrb[0].mxu0 %v2572
    %v2782 = vpop.f32.mrb[0].mxu0
    %v2783 = vadd.f32 %v2635, %v2782
    %v2784 = vpop.f32.mrb[0].mxu0
    %2785 = vmatprep.mubr.f32.mxu0 0.0
    %2786 = vmatmul.mubr.f32.gmra.mrb[0].mxu0 %v2573
    %v2787 = vpop.f32.mrb[0].mxu0
    %v2788 = vadd.f32 %v2635, %v2787
    %v2789 = vpop.f32.mrb[0].mxu0
    %2790 = vdwg.mxu0
    %v2791 = vld [vmem:[#allocation29] sm:$0xff]
    %v2792 = vld [vmem:[#allocation29 + $0x8] sm:$0xff]
    %v2793 = vld [vmem:[#allocation29 + $0x10] sm:$0xff]
    %v2794 = vld [vmem:[#allocation29 + $0x18] sm:$0xff]
    %v2795 = vld [vmem:[#allocation29 + $0x20] sm:$0xff]
    %v2796 = vld [vmem:[#allocation29 + $0x28] sm:$0xff]
    %v2797 = vld [vmem:[#allocation29 + $0x30] sm:$0xff]
    %v2798 = vld [vmem:[#allocation29 + $0x38] sm:$0xff]
    %v2799 = vld [vmem:[#allocation29 + $0x40] sm:$0xff]
    %v2800 = vld [vmem:[#allocation29 + $0x48] sm:$0xff]
    %v2801 = vld [vmem:[#allocation29 + $0x50] sm:$0xff]
    %v2802 = vld [vmem:[#allocation29 + $0x58] sm:$0xff]
    %v2803 = vld [vmem:[#allocation29 + $0x60] sm:$0xff]
    %v2804 = vld [vmem:[#allocation29 + $0x68] sm:$0xff]
    %v2805 = vld [vmem:[#allocation29 + $0x70] sm:$0xff]
    %v2806 = vld [vmem:[#allocation29 + $0x78] sm:$0xff]
    %v2807 = vld [vmem:[#allocation31] sm:$0x1]
    %v2808 = vmul.f32 %v2708, %v980
    %v2809 = vmul.f32 %v2714, %v980
    %v2810 = vmul.f32 %v2708, %v984
    %v2811 = vmul.f32 %v2714, %v984
    %v2812 = vmul.f32 %v2708, %v988
    %v2813 = vmul.f32 %v2714, %v988
    %v2814 = vmul.f32 %v2708, %v992
    %v2815 = vmul.f32 %v2714, %v992
    %v2816 = vmul.f32 %v2783, %v980
    %v2817 = vmul.f32 %v2788, %v980
    %v2818 = vmul.f32 %v2783, %v984
    %v2819 = vmul.f32 %v2788, %v984
    %v2820 = vmul.f32 %v2783, %v988
    %v2821 = vmul.f32 %v2788, %v988
    %v2822 = vmul.f32 %v2783, %v992
    %v2823 = vmul.f32 %v2788, %v992
    %2824 = vmatprep.subr.mxu0 0.0
    %2825 = vmatpush1.xpose.msra.mxu0 %v2808
    %2826 = vmatprep.subr.mxu0 0.0
    %2827 = vmatpush1.xpose.msra.mxu0 %v2809
    %2828 = vmatprep.subr.mxu0 0.0
    %2829 = vmatpush1.xpose.msra.mxu0 %v2810
    %2830 = vmatprep.subr.mxu0 0.0
    %2831 = vmatpush1.xpose.msra.mxu0 %v2811
    %2832 = vmatprep.subr.mxu0 0.0
    %2833 = vmatpush1.xpose.msra.mxu0 %v2812
    %2834 = vmatprep.subr.mxu0 0.0
    %2835 = vmatpush1.xpose.msra.mxu0 %v2813
    %2836 = vmatprep.subr.mxu0 0.0
    %2837 = vmatpush1.xpose.msra.mxu0 %v2814
    %2838 = vmatprep.subr.mxu0 0.0
    %2839 = vmatpush1.xpose.msra.mxu0 %v2815
    %2840 = vmatprep.subr.mxu0 0.0
    %2841 = vmatpush1.xpose.msra.mxu0 0.0
    %2842 = vmatprep.subr.mxu0 0.0
    %2843 = vmatpush1.xpose.msra.mxu0 0.0
    %2844 = vmatprep.subr.mxu0 0.0
    %2845 = vmatpush1.xpose.msra.mxu0 0.0
    %2846 = vmatprep.subr.mxu0 0.0
    %2847 = vmatpush1.xpose.msra.mxu0 0.0
    %2848 = vmatprep.subr.mxu0 0.0
    %2849 = vmatpush1.xpose.msra.mxu0 0.0
    %2850 = vmatprep.subr.mxu0 0.0
    %2851 = vmatpush1.xpose.msra.mxu0 0.0
    %2852 = vmatprep.subr.mxu0 0.0
    %2853 = vmatpush1.xpose.msra.mxu0 0.0
    %2854 = vmatprep.subr.mxu0 0.0
    %2855 = vmatpush1.xpose.msra.mxu0 0.0
    %2856 = vmatprep.subr.mxu0 0.0
    %2857 = vmatpush1.xpose.msra.mxu0 0.0
    %2858 = vmatprep.subr.mxu0 0.0
    %2859 = vmatpush1.xpose.msra.mxu0 0.0
    %2860 = vmatprep.subr.mxu0 0.0
    %2861 = vmatpush1.xpose.msra.mxu0 0.0
    %2862 = vmatprep.subr.mxu0 0.0
    %2863 = vmatpush1.xpose.msra.mxu0 0.0
    %2864 = vmatprep.subr.mxu0 0.0
    %2865 = vmatpush1.xpose.msra.mxu0 0.0
    %2866 = vmatprep.subr.mxu0 0.0
    %2867 = vmatpush1.xpose.msra.mxu0 0.0
    %2868 = vmatprep.subr.mxu0 0.0
    %2869 = vmatpush1.xpose.msra.mxu0 0.0
    %2870 = vmatprep.subr.mxu0 0.0
    %2871 = vmatpush1.xpose.msra.mxu0 0.0
    %2872 = vmatprep.subr.mxu0 0.0
    %2873 = vmatpush1.xpose.msra.mxu0 0.0
    %2874 = vmatprep.subr.mxu0 0.0
    %2875 = vmatpush1.xpose.msra.mxu0 0.0
    %2876 = vmatprep.subr.mxu0 0.0
    %2877 = vmatpush1.xpose.msra.mxu0 0.0
    %2878 = vmatprep.subr.mxu0 0.0
    %2879 = vmatpush1.xpose.msra.mxu0 0.0
    %2880 = vmatprep.subr.mxu0 0.0
    %2881 = vmatpush1.xpose.msra.mxu0 0.0
    %2882 = vmatprep.subr.mxu0 0.0
    %2883 = vmatpush1.xpose.msra.mxu0 0.0
    %2884 = vmatprep.subr.mxu0 0.0
    %2885 = vmatpush1.xpose.msra.mxu0 0.0
    %2886 = vmatprep.subr.mxu0 0.0
    %2887 = vmatpush1.xpose.msra.mxu0 0.0
    %2888 = vmatprep.mubr.f32.mxu0 0.0
    %2889 = vmatmul.mubr.f32.gmra.mrb[0].mxu0 %v2706
    %v2890 = vpop.f32.mrb[0].mxu0
    %v2891 = vadd.f32 0.0, %v2890
    %v2892 = vpop.f32.mrb[0].mxu0
    %2893 = vmatprep.mubr.f32.mxu0 0.0
    %2894 = vmatmul.mubr.f32.gmra.mrb[0].mxu0 %v2712
    %v2895 = vpop.f32.mrb[0].mxu0
    %v2896 = vadd.f32 0.0, %v2895
    %v2897 = vpop.f32.mrb[0].mxu0
    %2898 = vdwg.mxu0
    %v2899 = vmul.f32 %v2891, 0.4082483
    %v2900 = vmul.f32 %v2896, 0.4082483
    %v2901 = vadd.f32 %v2899, %v686
    %v2902 = vadd.f32 %v2900, %v687
    %v2903 = vsel %vm1093, %v2901, -1e+30
    %v2904 = vsel %vm1093, %v2902, -1e+30
    %v2905 = vsel %vm1096, %v2903, -inf
    %2906 = vmax.xlane.f32.xlu0 %v2905
    %v2907 = vpop.xlane.xlu0 %2906
    %v2908 = vsel %vm1096, %v2904, -inf
    %2909 = vmax.xlane.f32.xlu0 %v2908
    %v2910 = vpop.xlane.xlu0 %2909
    %v2911 = vsel %vm1093, %v2907, 0.0
    %v2912 = vsel %vm1093, %v2910, 0.0
    %v2913 = vsel %vm1106, %v2901, -1e+30
    %v2914 = vsel %vm1106, %v2902, -1e+30
    %v2915 = vsel %vm1096, %v2913, -inf
    %2916 = vmax.xlane.f32.xlu0 %v2915
    %v2917 = vpop.xlane.xlu0 %2916
    %v2918 = vsel %vm1096, %v2914, -inf
    %2919 = vmax.xlane.f32.xlu0 %v2918
    %v2920 = vpop.xlane.xlu0 %2919
    %v2921 = vsel %vm1106, %v2917, %v2911
    %v2922 = vsel %vm1106, %v2920, %v2912
    %v2923 = vsel %vm1118, %v2901, -1e+30
    %v2924 = vsel %vm1118, %v2902, -1e+30
    %v2925 = vsel %vm1096, %v2923, -inf
    %2926 = vmax.xlane.f32.xlu0 %v2925
    %v2927 = vpop.xlane.xlu0 %2926
    %v2928 = vsel %vm1096, %v2924, -inf
    %2929 = vmax.xlane.f32.xlu0 %v2928
    %v2930 = vpop.xlane.xlu0 %2929
    %v2931 = vsel %vm1118, %v2927, %v2921
    %v2932 = vsel %vm1118, %v2930, %v2922
    %v2933 = vsel %vm1130, %v2901, -1e+30
    %v2934 = vsel %vm1130, %v2902, -1e+30
    %v2935 = vsel %vm1096, %v2933, -inf
    %2936 = vmax.xlane.f32.xlu0 %v2935
    %v2937 = vpop.xlane.xlu0 %2936
    %v2938 = vsel %vm1096, %v2934, -inf
    %2939 = vmax.xlane.f32.xlu0 %v2938
    %v2940 = vpop.xlane.xlu0 %2939
    %v2941 = vsel %vm1130, %v2937, %v2931
    %v2942 = vsel %vm1130, %v2940, %v2932
    %v2943 = vsub.f32 %v2901, %v2941
    %v2944 = vsub.f32 %v2902, %v2942
    %v2945 = vmul.f32 %v2943, 1.442695
    %v2946 = vpow.pop %v2945
    %v2947 = vmul.f32 %v2944, 1.442695
    %v2948 = vpow.pop %v2947
    %v2949 = vsel %vm1093, %v2946, 0.0
    %v2950 = vsel %vm1093, %v2948, 0.0
    %v2951 = vsel %vm1096, %v2949, 0.0
    %2952 = vadd.xlane.f32.xlu0 %v2951
    %v2953 = vpop.xlane.xlu0 %2952
    %v2954 = vsel %vm1096, %v2950, 0.0
    %2955 = vadd.xlane.f32.xlu0 %v2954
    %v2956 = vpop.xlane.xlu0 %2955
    %v2957 = vmax.f32 %v2953, 1e-30
    %v2958 = vmax.f32 %v2956, 1e-30
    %v2959 = vrcp.pop %v2957
    %v2960 = vrcp.pop %v2958
    %v2961 = vsel %vm1093, %v2959, 0.0
    %v2962 = vsel %vm1093, %v2960, 0.0
    %v2963 = vsel %vm1106, %v2946, 0.0
    %v2964 = vsel %vm1106, %v2948, 0.0
    %v2965 = vsel %vm1096, %v2963, 0.0
    %2966 = vadd.xlane.f32.xlu0 %v2965
    %v2967 = vpop.xlane.xlu0 %2966
    %v2968 = vsel %vm1096, %v2964, 0.0
    %2969 = vadd.xlane.f32.xlu0 %v2968
    %v2970 = vpop.xlane.xlu0 %2969
    %v2971 = vmax.f32 %v2967, 1e-30
    %v2972 = vmax.f32 %v2970, 1e-30
    %v2973 = vrcp.pop %v2971
    %v2974 = vrcp.pop %v2972
    %v2975 = vsel %vm1106, %v2973, %v2961
    %v2976 = vsel %vm1106, %v2974, %v2962
    %v2977 = vsel %vm1118, %v2946, 0.0
    %v2978 = vsel %vm1118, %v2948, 0.0
    %v2979 = vsel %vm1096, %v2977, 0.0
    %2980 = vadd.xlane.f32.xlu0 %v2979
    %v2981 = vpop.xlane.xlu0 %2980
    %v2982 = vsel %vm1096, %v2978, 0.0
    %2983 = vadd.xlane.f32.xlu0 %v2982
    %v2984 = vpop.xlane.xlu0 %2983
    %v2985 = vmax.f32 %v2981, 1e-30
    %v2986 = vmax.f32 %v2984, 1e-30
    %v2987 = vrcp.pop %v2985
    %v2988 = vrcp.pop %v2986
    %v2989 = vsel %vm1118, %v2987, %v2975
    %v2990 = vsel %vm1118, %v2988, %v2976
    %v2991 = vsel %vm1130, %v2946, 0.0
    %v2992 = vsel %vm1130, %v2948, 0.0
    %v2993 = vsel %vm1096, %v2991, 0.0
    %2994 = vadd.xlane.f32.xlu0 %v2993
    %v2995 = vpop.xlane.xlu0 %2994
    %v2996 = vsel %vm1096, %v2992, 0.0
    %2997 = vadd.xlane.f32.xlu0 %v2996
    %v2998 = vpop.xlane.xlu0 %2997
    %v2999 = vmax.f32 %v2995, 1e-30
    %v3000 = vmax.f32 %v2998, 1e-30
    %v3001 = vrcp.pop %v2999
    %v3002 = vrcp.pop %v3000
    %v3003 = vsel %vm1130, %v3001, %v2989
    %v3004 = vsel %vm1130, %v3002, %v2990
    %v3005 = vmul.f32 %v2946, %v3003
    %v3006 = vmul.f32 %v2948, %v3004
    %v3008 = vsel %vm1096, %v3005, 0
    %v3011 = vsel %vm1096, %v3006, 0
    %3013 = vmatprep.subr.mxu0 0.0
    %3014 = vmatpush1.msra.mxu0 %v2816
    %3015 = vmatprep.subr.mxu0 0.0
    %3016 = vmatpush1.msra.mxu0 %v2817
    %3017 = vmatprep.subr.mxu0 0.0
    %3018 = vmatpush1.msra.mxu0 %v2818
    %3019 = vmatprep.subr.mxu0 0.0
    %3020 = vmatpush1.msra.mxu0 %v2819
    %3021 = vmatprep.subr.mxu0 0.0
    %3022 = vmatpush1.msra.mxu0 %v2820
    %3023 = vmatprep.subr.mxu0 0.0
    %3024 = vmatpush1.msra.mxu0 %v2821
    %3025 = vmatprep.subr.mxu0 0.0
    %3026 = vmatpush1.msra.mxu0 %v2822
    %3027 = vmatprep.subr.mxu0 0.0
    %3028 = vmatpush1.msra.mxu0 %v2823
    %3029 = vmatprep.subr.mxu0 0.0
    %3030 = vmatpush1.msra.mxu0 0.0
    %3031 = vmatprep.subr.mxu0 0.0
    %3032 = vmatpush1.msra.mxu0 0.0
    %3033 = vmatprep.subr.mxu0 0.0
    %3034 = vmatpush1.msra.mxu0 0.0
    %3035 = vmatprep.subr.mxu0 0.0
    %3036 = vmatpush1.msra.mxu0 0.0
    %3037 = vmatprep.subr.mxu0 0.0
    %3038 = vmatpush1.msra.mxu0 0.0
    %3039 = vmatprep.subr.mxu0 0.0
    %3040 = vmatpush1.msra.mxu0 0.0
    %3041 = vmatprep.subr.mxu0 0.0
    %3042 = vmatpush1.msra.mxu0 0.0
    %3043 = vmatprep.subr.mxu0 0.0
    %3044 = vmatpush1.msra.mxu0 0.0
    %3045 = vmatprep.subr.mxu0 0.0
    %3046 = vmatpush1.msra.mxu0 0.0
    %3047 = vmatprep.subr.mxu0 0.0
    %3048 = vmatpush1.msra.mxu0 0.0
    %3049 = vmatprep.subr.mxu0 0.0
    %3050 = vmatpush1.msra.mxu0 0.0
    %3051 = vmatprep.subr.mxu0 0.0
    %3052 = vmatpush1.msra.mxu0 0.0
    %3053 = vmatprep.subr.mxu0 0.0
    %3054 = vmatpush1.msra.mxu0 0.0
    %3055 = vmatprep.subr.mxu0 0.0
    %3056 = vmatpush1.msra.mxu0 0.0
    %3057 = vmatprep.subr.mxu0 0.0
    %3058 = vmatpush1.msra.mxu0 0.0
    %3059 = vmatprep.subr.mxu0 0.0
    %3060 = vmatpush1.msra.mxu0 0.0
    %3061 = vmatprep.subr.mxu0 0.0
    %3062 = vmatpush1.msra.mxu0 0.0
    %3063 = vmatprep.subr.mxu0 0.0
    %3064 = vmatpush1.msra.mxu0 0.0
    %3065 = vmatprep.subr.mxu0 0.0
    %3066 = vmatpush1.msra.mxu0 0.0
    %3067 = vmatprep.subr.mxu0 0.0
    %3068 = vmatpush1.msra.mxu0 0.0
    %3069 = vmatprep.subr.mxu0 0.0
    %3070 = vmatpush1.msra.mxu0 0.0
    %3071 = vmatprep.subr.mxu0 0.0
    %3072 = vmatpush1.msra.mxu0 0.0
    %3073 = vmatprep.subr.mxu0 0.0
    %3074 = vmatpush1.msra.mxu0 0.0
    %3075 = vmatprep.subr.mxu0 0.0
    %3076 = vmatpush1.msra.mxu0 0.0
    %3077 = vmatprep.mubr.f32.mxu0 0.0
    %3078 = vmatmul.mubr.f32.gmra.mrb[0].mxu0 %v3008
    %v3079 = vpop.f32.mrb[0].mxu0
    %v3080 = vadd.f32 0.0, %v3079
    %v3081 = vpop.f32.mrb[0].mxu0
    %3082 = vmatprep.mubr.f32.mxu0 0.0
    %3083 = vmatmul.mubr.f32.gmra.mrb[0].mxu0 %v3011
    %v3084 = vpop.f32.mrb[0].mxu0
    %v3085 = vadd.f32 0.0, %v3084
    %v3086 = vpop.f32.mrb[0].mxu0
    %3087 = vdwg.mxu0
    %v3089 = vlaneseq
    %v3090 = vshrl.u32 %v3089, 7
    %v3091 = vsub.s32 0, %v3090
    %v3092 = vrot.slane %v2807, %v3091
    %3094 = vmatprep.subr.mxu0 0.0
    %3095 = vmatpush1.msra.mxu0 %v2791
    %3096 = vmatprep.subr.mxu0 0.0
    %3097 = vmatpush1.msra.mxu0 %v2792
    %3098 = vmatprep.subr.mxu0 0.0
    %3099 = vmatpush1.msra.mxu0 %v2793
    %3100 = vmatprep.subr.mxu0 0.0
    %3101 = vmatpush1.msra.mxu0 %v2794
    %3102 = vmatprep.subr.mxu0 0.0
    %3103 = vmatpush1.msra.mxu0 %v2795
    %3104 = vmatprep.subr.mxu0 0.0
    %3105 = vmatpush1.msra.mxu0 %v2796
    %3106 = vmatprep.subr.mxu0 0.0
    %3107 = vmatpush1.msra.mxu0 %v2797
    %3108 = vmatprep.subr.mxu0 0.0
    %3109 = vmatpush1.msra.mxu0 %v2798
    %3110 = vmatprep.subr.mxu0 0.0
    %3111 = vmatpush1.msra.mxu0 %v2799
    %3112 = vmatprep.subr.mxu0 0.0
    %3113 = vmatpush1.msra.mxu0 %v2800
    %3114 = vmatprep.subr.mxu0 0.0
    %3115 = vmatpush1.msra.mxu0 %v2801
    %3116 = vmatprep.subr.mxu0 0.0
    %3117 = vmatpush1.msra.mxu0 %v2802
    %3118 = vmatprep.subr.mxu0 0.0
    %3119 = vmatpush1.msra.mxu0 %v2803
    %3120 = vmatprep.subr.mxu0 0.0
    %3121 = vmatpush1.msra.mxu0 %v2804
    %3122 = vmatprep.subr.mxu0 0.0
    %3123 = vmatpush1.msra.mxu0 %v2805
    %3124 = vmatprep.subr.mxu0 0.0
    %3125 = vmatpush1.msra.mxu0 %v2806
    %3126 = vmatprep.subr.mxu0 0.0
    %3127 = vmatpush1.msra.mxu0 0.0
    %3128 = vmatprep.subr.mxu0 0.0
    %3129 = vmatpush1.msra.mxu0 0.0
    %3130 = vmatprep.subr.mxu0 0.0
    %3131 = vmatpush1.msra.mxu0 0.0
    %3132 = vmatprep.subr.mxu0 0.0
    %3133 = vmatpush1.msra.mxu0 0.0
    %3134 = vmatprep.subr.mxu0 0.0
    %3135 = vmatpush1.msra.mxu0 0.0
    %3136 = vmatprep.subr.mxu0 0.0
    %3137 = vmatpush1.msra.mxu0 0.0
    %3138 = vmatprep.subr.mxu0 0.0
    %3139 = vmatpush1.msra.mxu0 0.0
    %3140 = vmatprep.subr.mxu0 0.0
    %3141 = vmatpush1.msra.mxu0 0.0
    %3142 = vmatprep.subr.mxu0 0.0
    %3143 = vmatpush1.msra.mxu0 0.0
    %3144 = vmatprep.subr.mxu0 0.0
    %3145 = vmatpush1.msra.mxu0 0.0
    %3146 = vmatprep.subr.mxu0 0.0
    %3147 = vmatpush1.msra.mxu0 0.0
    %3148 = vmatprep.subr.mxu0 0.0
    %3149 = vmatpush1.msra.mxu0 0.0
    %3150 = vmatprep.subr.mxu0 0.0
    %3151 = vmatpush1.msra.mxu0 0.0
    %3152 = vmatprep.subr.mxu0 0.0
    %3153 = vmatpush1.msra.mxu0 0.0
    %3154 = vmatprep.subr.mxu0 0.0
    %3155 = vmatpush1.msra.mxu0 0.0
    %3156 = vmatprep.subr.mxu0 0.0
    %3157 = vmatpush1.msra.mxu0 0.0
    %3158 = vmatprep.mubr.f32.mxu0 0.0
    %3159 = vmatmul.mubr.f32.gmra.mrb[0].mxu0 %v3080
    %v3160 = vpop.f32.mrb[0].mxu0
    %v3161 = vadd.f32 %v3092, %v3160
    %v3162 = vpop.f32.mrb[0].mxu0
    %3163 = vmatprep.mubr.f32.mxu0 0.0
    %3164 = vmatmul.mubr.f32.gmra.mrb[0].mxu0 %v3085
    %v3165 = vpop.f32.mrb[0].mxu0
    %v3166 = vadd.f32 %v3092, %v3165
    %v3167 = vpop.f32.mrb[0].mxu0
    %3168 = vdwg.mxu0
    %v3169 = vld [vmem:[#allocation32] sm:$0x3]
    %v3170 = vadd.f32 %v2572, %v3161
    %v3171 = vadd.f32 %v2573, %v3166
    %3172 = vadd.xlane.f32.xlu0 %v3170
    %v3173 = vpop.xlane.xlu0 %3172
    %3174 = vadd.xlane.f32.xlu0 %v3171
    %v3175 = vpop.xlane.xlu0 %3174
    %v3176 = vmul.f32 %v3173, 0.041666668
    %v3177 = vmul.f32 %v3175, 0.041666668
    %v3178 = vmul.f32 %v3170, %v3170
    %v3179 = vmul.f32 %v3171, %v3171
    %3180 = vadd.xlane.f32.xlu0 %v3178
    %v3181 = vpop.xlane.xlu0 %3180
    %3182 = vadd.xlane.f32.xlu0 %v3179
    %v3183 = vpop.xlane.xlu0 %3182
    %v3184 = vmul.f32 %v3181, 0.041666668
    %v3185 = vmul.f32 %v3183, 0.041666668
    %v3186 = vmul.f32 %v3176, %v3176
    %v3187 = vmul.f32 %v3177, %v3177
    %v3188 = vsub.f32 %v3184, %v3186
    %v3189 = vsub.f32 %v3185, %v3187
    %v3190 = vmax.f32 %v3188, 0.0
    %v3191 = vmax.f32 %v3189, 0.0
    %v3192 = vsub.f32 %v3170, %v3176
    %v3193 = vsub.f32 %v3171, %v3177
    %v3194 = vadd.f32 %v3190, 1e-12
    %v3195 = vadd.f32 %v3191, 1e-12
    %v3196 = vrsqrt.pop %v3194
    %v3197 = vrsqrt.pop %v3195
    %v3198 = vmul.f32 %v3192, %v3196
    %v3199 = vmul.f32 %v3193, %v3197
    %v3200 = vlaneseq
    %v3201 = vshrl.u32 %v3200, 7
    %v3202 = vsub.s32 0, %v3201
    %v3203 = vrot.slane %v3169, %v3202
    %v3204 = vmul.f32 %v3198, %v3203
    %v3205 = vmul.f32 %v3199, %v3203
    %v3206 = vlaneseq
    %v3207 = vshrl.u32 %v3206, 7
    %v3208 = vsub.s32 1, %v3207
    %v3209 = vrot.slane %v3169, %v3208
    %v3210 = vadd.f32 %v3204, %v3209
    %v3211 = vadd.f32 %v3205, %v3209
    %v3212 = vld [vmem:[#allocation34] sm:$0xff]
    %v3213 = vld [vmem:[#allocation34 + $0x8] sm:$0xff]
    %v3214 = vld [vmem:[#allocation34 + $0x10] sm:$0xff]
    %v3215 = vld [vmem:[#allocation34 + $0x18] sm:$0xff]
    %v3216 = vld [vmem:[#allocation34 + $0x20] sm:$0xff]
    %v3217 = vld [vmem:[#allocation34 + $0x28] sm:$0xff]
    %v3218 = vld [vmem:[#allocation34 + $0x30] sm:$0xff]
    %v3219 = vld [vmem:[#allocation34 + $0x38] sm:$0xff]
    %v3220 = vld [vmem:[#allocation34 + $0x40] sm:$0xff]
    %v3221 = vld [vmem:[#allocation34 + $0x48] sm:$0xff]
    %v3222 = vld [vmem:[#allocation34 + $0x50] sm:$0xff]
    %v3223 = vld [vmem:[#allocation34 + $0x58] sm:$0xff]
    %v3224 = vld [vmem:[#allocation34 + $0x60] sm:$0xff]
    %v3225 = vld [vmem:[#allocation34 + $0x68] sm:$0xff]
    %v3226 = vld [vmem:[#allocation34 + $0x70] sm:$0xff]
    %v3227 = vld [vmem:[#allocation34 + $0x78] sm:$0xff]
    %v3228 = vld [vmem:[#allocation35] sm:$0x1]
    %v3230 = vlaneseq
    %v3231 = vshrl.u32 %v3230, 7
    %v3232 = vsub.s32 0, %v3231
    %v3233 = vrot.slane %v3228, %v3232
    %3235 = vmatprep.subr.mxu0 0.0
    %3236 = vmatpush1.msra.mxu0 %v3212
    %3237 = vmatprep.subr.mxu0 0.0
    %3238 = vmatpush1.msra.mxu0 %v3213
    %3239 = vmatprep.subr.mxu0 0.0
    %3240 = vmatpush1.msra.mxu0 %v3214
    %3241 = vmatprep.subr.mxu0 0.0
    %3242 = vmatpush1.msra.mxu0 %v3215
    %3243 = vmatprep.subr.mxu0 0.0
    %3244 = vmatpush1.msra.mxu0 %v3216
    %3245 = vmatprep.subr.mxu0 0.0
    %3246 = vmatpush1.msra.mxu0 %v3217
    %3247 = vmatprep.subr.mxu0 0.0
    %3248 = vmatpush1.msra.mxu0 %v3218
    %3249 = vmatprep.subr.mxu0 0.0
    %3250 = vmatpush1.msra.mxu0 %v3219
    %3251 = vmatprep.subr.mxu0 0.0
    %3252 = vmatpush1.msra.mxu0 %v3220
    %3253 = vmatprep.subr.mxu0 0.0
    %3254 = vmatpush1.msra.mxu0 %v3221
    %3255 = vmatprep.subr.mxu0 0.0
    %3256 = vmatpush1.msra.mxu0 %v3222
    %3257 = vmatprep.subr.mxu0 0.0
    %3258 = vmatpush1.msra.mxu0 %v3223
    %3259 = vmatprep.subr.mxu0 0.0
    %3260 = vmatpush1.msra.mxu0 %v3224
    %3261 = vmatprep.subr.mxu0 0.0
    %3262 = vmatpush1.msra.mxu0 %v3225
    %3263 = vmatprep.subr.mxu0 0.0
    %3264 = vmatpush1.msra.mxu0 %v3226
    %3265 = vmatprep.subr.mxu0 0.0
    %3266 = vmatpush1.msra.mxu0 %v3227
    %3267 = vmatprep.subr.mxu0 0.0
    %3268 = vmatpush1.msra.mxu0 0.0
    %3269 = vmatprep.subr.mxu0 0.0
    %3270 = vmatpush1.msra.mxu0 0.0
    %3271 = vmatprep.subr.mxu0 0.0
    %3272 = vmatpush1.msra.mxu0 0.0
    %3273 = vmatprep.subr.mxu0 0.0
    %3274 = vmatpush1.msra.mxu0 0.0
    %3275 = vmatprep.subr.mxu0 0.0
    %3276 = vmatpush1.msra.mxu0 0.0
    %3277 = vmatprep.subr.mxu0 0.0
    %3278 = vmatpush1.msra.mxu0 0.0
    %3279 = vmatprep.subr.mxu0 0.0
    %3280 = vmatpush1.msra.mxu0 0.0
    %3281 = vmatprep.subr.mxu0 0.0
    %3282 = vmatpush1.msra.mxu0 0.0
    %3283 = vmatprep.subr.mxu0 0.0
    %3284 = vmatpush1.msra.mxu0 0.0
    %3285 = vmatprep.subr.mxu0 0.0
    %3286 = vmatpush1.msra.mxu0 0.0
    %3287 = vmatprep.subr.mxu0 0.0
    %3288 = vmatpush1.msra.mxu0 0.0
    %3289 = vmatprep.subr.mxu0 0.0
    %3290 = vmatpush1.msra.mxu0 0.0
    %3291 = vmatprep.subr.mxu0 0.0
    %3292 = vmatpush1.msra.mxu0 0.0
    %3293 = vmatprep.subr.mxu0 0.0
    %3294 = vmatpush1.msra.mxu0 0.0
    %3295 = vmatprep.subr.mxu0 0.0
    %3296 = vmatpush1.msra.mxu0 0.0
    %3297 = vmatprep.subr.mxu0 0.0
    %3298 = vmatpush1.msra.mxu0 0.0
    %3299 = vmatprep.mubr.f32.mxu0 0.0
    %3300 = vmatmul.mubr.f32.gmra.mrb[0].mxu0 %v3210
    %v3301 = vpop.f32.mrb[0].mxu0
    %v3302 = vadd.f32 %v3233, %v3301
    %v3303 = vpop.f32.mrb[0].mxu0
    %3304 = vmatprep.mubr.f32.mxu0 0.0
    %3305 = vmatmul.mubr.f32.gmra.mrb[0].mxu0 %v3211
    %v3306 = vpop.f32.mrb[0].mxu0
    %v3307 = vadd.f32 %v3233, %v3306
    %v3308 = vpop.f32.mrb[0].mxu0
    %3309 = vdwg.mxu0
    %v3310 = vld [vmem:[#allocation37] sm:$0xff]
    %v3311 = vld [vmem:[#allocation37 + $0x8] sm:$0xff]
    %v3312 = vld [vmem:[#allocation37 + $0x10] sm:$0xff]
    %v3313 = vld [vmem:[#allocation37 + $0x18] sm:$0xff]
    %v3314 = vld [vmem:[#allocation37 + $0x20] sm:$0xff]
    %v3315 = vld [vmem:[#allocation37 + $0x28] sm:$0xff]
    %v3316 = vld [vmem:[#allocation37 + $0x30] sm:$0xff]
    %v3317 = vld [vmem:[#allocation37 + $0x38] sm:$0xff]
    %v3318 = vld [vmem:[#allocation37 + $0x40] sm:$0xff]
    %v3319 = vld [vmem:[#allocation37 + $0x48] sm:$0xff]
    %v3320 = vld [vmem:[#allocation37 + $0x50] sm:$0xff]
    %v3321 = vld [vmem:[#allocation37 + $0x58] sm:$0xff]
    %v3322 = vld [vmem:[#allocation37 + $0x60] sm:$0xff]
    %v3323 = vld [vmem:[#allocation37 + $0x68] sm:$0xff]
    %v3324 = vld [vmem:[#allocation37 + $0x70] sm:$0xff]
    %v3325 = vld [vmem:[#allocation37 + $0x78] sm:$0xff]
    %v3326 = vld [vmem:[#allocation37 + $0x80] sm:$0xff]
    %v3327 = vld [vmem:[#allocation37 + $0x88] sm:$0xff]
    %v3328 = vld [vmem:[#allocation37 + $0x90] sm:$0xff]
    %v3329 = vld [vmem:[#allocation37 + $0x98] sm:$0xff]
    %v3330 = vld [vmem:[#allocation37 + $0xa0] sm:$0xff]
    %v3331 = vld [vmem:[#allocation37 + $0xa8] sm:$0xff]
    %v3332 = vld [vmem:[#allocation37 + $0xb0] sm:$0xff]
    %v3333 = vld [vmem:[#allocation37 + $0xb8] sm:$0xff]
    %v3334 = vld [vmem:[#allocation37 + $0xc0] sm:$0xff]
    %v3335 = vld [vmem:[#allocation37 + $0xc8] sm:$0xff]
    %v3336 = vld [vmem:[#allocation37 + $0xd0] sm:$0xff]
    %v3337 = vld [vmem:[#allocation37 + $0xd8] sm:$0xff]
    %v3338 = vld [vmem:[#allocation37 + $0xe0] sm:$0xff]
    %v3339 = vld [vmem:[#allocation37 + $0xe8] sm:$0xff]
    %v3340 = vld [vmem:[#allocation37 + $0xf0] sm:$0xff]
    %v3341 = vld [vmem:[#allocation37 + $0xf8] sm:$0xff]
    %v3342 = vld [vmem:[#allocation38] sm:$0x3]
    %v3344 = vlaneseq
    %v3345 = vshrl.u32 %v3344, 7
    %v3346 = vsub.s32 0, %v3345
    %v3347 = vrot.slane %v3342, %v3346
    %v3348 = vlaneseq
    %v3349 = vshrl.u32 %v3348, 7
    %v3350 = vsub.s32 1, %v3349
    %v3351 = vrot.slane %v3342, %v3350
    %3354 = vmatprep.subr.mxu0 %v3311
    %3355 = vmatpush1.msra.mxu0 %v3310
    %3356 = vmatprep.subr.mxu0 %v3313
    %3357 = vmatpush1.msra.mxu0 %v3312
    %3358 = vmatprep.subr.mxu0 %v3315
    %3359 = vmatpush1.msra.mxu0 %v3314
    %3360 = vmatprep.subr.mxu0 %v3317
    %3361 = vmatpush1.msra.mxu0 %v3316
    %3362 = vmatprep.subr.mxu0 %v3319
    %3363 = vmatpush1.msra.mxu0 %v3318
    %3364 = vmatprep.subr.mxu0 %v3321
    %3365 = vmatpush1.msra.mxu0 %v3320
    %3366 = vmatprep.subr.mxu0 %v3323
    %3367 = vmatpush1.msra.mxu0 %v3322
    %3368 = vmatprep.subr.mxu0 %v3325
    %3369 = vmatpush1.msra.mxu0 %v3324
    %3370 = vmatprep.subr.mxu0 %v3327
    %3371 = vmatpush1.msra.mxu0 %v3326
    %3372 = vmatprep.subr.mxu0 %v3329
    %3373 = vmatpush1.msra.mxu0 %v3328
    %3374 = vmatprep.subr.mxu0 %v3331
    %3375 = vmatpush1.msra.mxu0 %v3330
    %3376 = vmatprep.subr.mxu0 %v3333
    %3377 = vmatpush1.msra.mxu0 %v3332
    %3378 = vmatprep.subr.mxu0 %v3335
    %3379 = vmatpush1.msra.mxu0 %v3334
    %3380 = vmatprep.subr.mxu0 %v3337
    %3381 = vmatpush1.msra.mxu0 %v3336
    %3382 = vmatprep.subr.mxu0 %v3339
    %3383 = vmatpush1.msra.mxu0 %v3338
    %3384 = vmatprep.subr.mxu0 %v3341
    %3385 = vmatpush1.msra.mxu0 %v3340
    %3386 = vmatprep.subr.mxu0 0.0
    %3387 = vmatpush1.msra.mxu0 0.0
    %3388 = vmatprep.subr.mxu0 0.0
    %3389 = vmatpush1.msra.mxu0 0.0
    %3390 = vmatprep.subr.mxu0 0.0
    %3391 = vmatpush1.msra.mxu0 0.0
    %3392 = vmatprep.subr.mxu0 0.0
    %3393 = vmatpush1.msra.mxu0 0.0
    %3394 = vmatprep.subr.mxu0 0.0
    %3395 = vmatpush1.msra.mxu0 0.0
    %3396 = vmatprep.subr.mxu0 0.0
    %3397 = vmatpush1.msra.mxu0 0.0
    %3398 = vmatprep.subr.mxu0 0.0
    %3399 = vmatpush1.msra.mxu0 0.0
    %3400 = vmatprep.subr.mxu0 0.0
    %3401 = vmatpush1.msra.mxu0 0.0
    %3402 = vmatprep.subr.mxu0 0.0
    %3403 = vmatpush1.msra.mxu0 0.0
    %3404 = vmatprep.subr.mxu0 0.0
    %3405 = vmatpush1.msra.mxu0 0.0
    %3406 = vmatprep.subr.mxu0 0.0
    %3407 = vmatpush1.msra.mxu0 0.0
    %3408 = vmatprep.subr.mxu0 0.0
    %3409 = vmatpush1.msra.mxu0 0.0
    %3410 = vmatprep.subr.mxu0 0.0
    %3411 = vmatpush1.msra.mxu0 0.0
    %3412 = vmatprep.subr.mxu0 0.0
    %3413 = vmatpush1.msra.mxu0 0.0
    %3414 = vmatprep.subr.mxu0 0.0
    %3415 = vmatpush1.msra.mxu0 0.0
    %3416 = vmatprep.subr.mxu0 0.0
    %3417 = vmatpush1.msra.mxu0 0.0
    %3418 = vmatprep.mubr.f32.mxu0 0.0
    %3419 = vmatmul.mubr.f32.gmra.mrb[0].mxu0 %v2570
    %v3420 = vpop.f32.mrb[0].mxu0
    %v3421 = vadd.f32 %v3347, %v3420
    %v3422 = vpop.f32.mrb[0].mxu0
    %v3423 = vadd.f32 %v3351, %v3422
    %3424 = vmatprep.mubr.f32.mxu0 0.0
    %3425 = vmatmul.mubr.f32.gmra.mrb[0].mxu0 %v2571
    %v3426 = vpop.f32.mrb[0].mxu0
    %v3427 = vadd.f32 %v3347, %v3426
    %v3428 = vpop.f32.mrb[0].mxu0
    %v3429 = vadd.f32 %v3351, %v3428
    %3430 = vdwg.mxu0
    %v3431 = vld [vmem:[#allocation40] sm:$0xff]
    %v3432 = vld [vmem:[#allocation40 + $0x8] sm:$0xff]
    %v3433 = vld [vmem:[#allocation40 + $0x10] sm:$0xff]
    %v3434 = vld [vmem:[#allocation40 + $0x18] sm:$0xff]
    %v3435 = vld [vmem:[#allocation40 + $0x20] sm:$0xff]
    %v3436 = vld [vmem:[#allocation40 + $0x28] sm:$0xff]
    %v3437 = vld [vmem:[#allocation40 + $0x30] sm:$0xff]
    %v3438 = vld [vmem:[#allocation40 + $0x38] sm:$0xff]
    %v3439 = vld [vmem:[#allocation40 + $0x40] sm:$0xff]
    %v3440 = vld [vmem:[#allocation40 + $0x48] sm:$0xff]
    %v3441 = vld [vmem:[#allocation40 + $0x50] sm:$0xff]
    %v3442 = vld [vmem:[#allocation40 + $0x58] sm:$0xff]
    %v3443 = vld [vmem:[#allocation40 + $0x60] sm:$0xff]
    %v3444 = vld [vmem:[#allocation40 + $0x68] sm:$0xff]
    %v3445 = vld [vmem:[#allocation40 + $0x70] sm:$0xff]
    %v3446 = vld [vmem:[#allocation40 + $0x78] sm:$0xff]
    %v3447 = vld [vmem:[#allocation41] sm:$0x1]
    %v3448 = vmul.f32 %v3421, %v980
    %v3449 = vmul.f32 %v3427, %v980
    %v3450 = vmul.f32 %v3421, %v984
    %v3451 = vmul.f32 %v3427, %v984
    %v3452 = vmul.f32 %v3421, %v988
    %v3453 = vmul.f32 %v3427, %v988
    %v3454 = vmul.f32 %v3421, %v992
    %v3455 = vmul.f32 %v3427, %v992
    %v3456 = vmul.f32 %v3423, %v980
    %v3457 = vmul.f32 %v3429, %v980
    %v3458 = vmul.f32 %v3423, %v984
    %v3459 = vmul.f32 %v3429, %v984
    %v3460 = vmul.f32 %v3423, %v988
    %v3461 = vmul.f32 %v3429, %v988
    %v3462 = vmul.f32 %v3423, %v992
    %v3463 = vmul.f32 %v3429, %v992
    %3464 = vmatprep.subr.mxu0 0.0
    %3465 = vmatpush1.xpose.msra.mxu0 %v3448
    %3466 = vmatprep.subr.mxu0 0.0
    %3467 = vmatpush1.xpose.msra.mxu0 %v3449
    %3468 = vmatprep.subr.mxu0 0.0
    %3469 = vmatpush1.xpose.msra.mxu0 %v3450
    %3470 = vmatprep.subr.mxu0 0.0
    %3471 = vmatpush1.xpose.msra.mxu0 %v3451
    %3472 = vmatprep.subr.mxu0 0.0
    %3473 = vmatpush1.xpose.msra.mxu0 %v3452
    %3474 = vmatprep.subr.mxu0 0.0
    %3475 = vmatpush1.xpose.msra.mxu0 %v3453
    %3476 = vmatprep.subr.mxu0 0.0
    %3477 = vmatpush1.xpose.msra.mxu0 %v3454
    %3478 = vmatprep.subr.mxu0 0.0
    %3479 = vmatpush1.xpose.msra.mxu0 %v3455
    %3480 = vmatprep.subr.mxu0 0.0
    %3481 = vmatpush1.xpose.msra.mxu0 0.0
    %3482 = vmatprep.subr.mxu0 0.0
    %3483 = vmatpush1.xpose.msra.mxu0 0.0
    %3484 = vmatprep.subr.mxu0 0.0
    %3485 = vmatpush1.xpose.msra.mxu0 0.0
    %3486 = vmatprep.subr.mxu0 0.0
    %3487 = vmatpush1.xpose.msra.mxu0 0.0
    %3488 = vmatprep.subr.mxu0 0.0
    %3489 = vmatpush1.xpose.msra.mxu0 0.0
    %3490 = vmatprep.subr.mxu0 0.0
    %3491 = vmatpush1.xpose.msra.mxu0 0.0
    %3492 = vmatprep.subr.mxu0 0.0
    %3493 = vmatpush1.xpose.msra.mxu0 0.0
    %3494 = vmatprep.subr.mxu0 0.0
    %3495 = vmatpush1.xpose.msra.mxu0 0.0
    %3496 = vmatprep.subr.mxu0 0.0
    %3497 = vmatpush1.xpose.msra.mxu0 0.0
    %3498 = vmatprep.subr.mxu0 0.0
    %3499 = vmatpush1.xpose.msra.mxu0 0.0
    %3500 = vmatprep.subr.mxu0 0.0
    %3501 = vmatpush1.xpose.msra.mxu0 0.0
    %3502 = vmatprep.subr.mxu0 0.0
    %3503 = vmatpush1.xpose.msra.mxu0 0.0
    %3504 = vmatprep.subr.mxu0 0.0
    %3505 = vmatpush1.xpose.msra.mxu0 0.0
    %3506 = vmatprep.subr.mxu0 0.0
    %3507 = vmatpush1.xpose.msra.mxu0 0.0
    %3508 = vmatprep.subr.mxu0 0.0
    %3509 = vmatpush1.xpose.msra.mxu0 0.0
    %3510 = vmatprep.subr.mxu0 0.0
    %3511 = vmatpush1.xpose.msra.mxu0 0.0
    %3512 = vmatprep.subr.mxu0 0.0
    %3513 = vmatpush1.xpose.msra.mxu0 0.0
    %3514 = vmatprep.subr.mxu0 0.0
    %3515 = vmatpush1.xpose.msra.mxu0 0.0
    %3516 = vmatprep.subr.mxu0 0.0
    %3517 = vmatpush1.xpose.msra.mxu0 0.0
    %3518 = vmatprep.subr.mxu0 0.0
    %3519 = vmatpush1.xpose.msra.mxu0 0.0
    %3520 = vmatprep.subr.mxu0 0.0
    %3521 = vmatpush1.xpose.msra.mxu0 0.0
    %3522 = vmatprep.subr.mxu0 0.0
    %3523 = vmatpush1.xpose.msra.mxu0 0.0
    %3524 = vmatprep.subr.mxu0 0.0
    %3525 = vmatpush1.xpose.msra.mxu0 0.0
    %3526 = vmatprep.subr.mxu0 0.0
    %3527 = vmatpush1.xpose.msra.mxu0 0.0
    %3528 = vmatprep.mubr.f32.mxu0 0.0
    %3529 = vmatmul.mubr.f32.gmra.mrb[0].mxu0 %v3302
    %v3530 = vpop.f32.mrb[0].mxu0
    %v3531 = vadd.f32 0.0, %v3530
    %v3532 = vpop.f32.mrb[0].mxu0
    %3533 = vmatprep.mubr.f32.mxu0 0.0
    %3534 = vmatmul.mubr.f32.gmra.mrb[0].mxu0 %v3307
    %v3535 = vpop.f32.mrb[0].mxu0
    %v3536 = vadd.f32 0.0, %v3535
    %v3537 = vpop.f32.mrb[0].mxu0
    %3538 = vdwg.mxu0
    %v3539 = vmul.f32 %v3531, 0.4082483
    %v3540 = vmul.f32 %v3536, 0.4082483
    %v3541 = vadd.f32 %v3539, %v714
    %v3542 = vadd.f32 %v3540, %v715
    %v3543 = vsel %vm1093, %v3541, -1e+30
    %v3544 = vsel %vm1093, %v3542, -1e+30
    %v3545 = vsel %vm1096, %v3543, -inf
    %3546 = vmax.xlane.f32.xlu0 %v3545
    %v3547 = vpop.xlane.xlu0 %3546
    %v3548 = vsel %vm1096, %v3544, -inf
    %3549 = vmax.xlane.f32.xlu0 %v3548
    %v3550 = vpop.xlane.xlu0 %3549
    %v3551 = vsel %vm1093, %v3547, 0.0
    %v3552 = vsel %vm1093, %v3550, 0.0
    %v3553 = vsel %vm1106, %v3541, -1e+30
    %v3554 = vsel %vm1106, %v3542, -1e+30
    %v3555 = vsel %vm1096, %v3553, -inf
    %3556 = vmax.xlane.f32.xlu0 %v3555
    %v3557 = vpop.xlane.xlu0 %3556
    %v3558 = vsel %vm1096, %v3554, -inf
    %3559 = vmax.xlane.f32.xlu0 %v3558
    %v3560 = vpop.xlane.xlu0 %3559
    %v3561 = vsel %vm1106, %v3557, %v3551
    %v3562 = vsel %vm1106, %v3560, %v3552
    %v3563 = vsel %vm1118, %v3541, -1e+30
    %v3564 = vsel %vm1118, %v3542, -1e+30
    %v3565 = vsel %vm1096, %v3563, -inf
    %3566 = vmax.xlane.f32.xlu0 %v3565
    %v3567 = vpop.xlane.xlu0 %3566
    %v3568 = vsel %vm1096, %v3564, -inf
    %3569 = vmax.xlane.f32.xlu0 %v3568
    %v3570 = vpop.xlane.xlu0 %3569
    %v3571 = vsel %vm1118, %v3567, %v3561
    %v3572 = vsel %vm1118, %v3570, %v3562
    %v3573 = vsel %vm1130, %v3541, -1e+30
    %v3574 = vsel %vm1130, %v3542, -1e+30
    %v3575 = vsel %vm1096, %v3573, -inf
    %3576 = vmax.xlane.f32.xlu0 %v3575
    %v3577 = vpop.xlane.xlu0 %3576
    %v3578 = vsel %vm1096, %v3574, -inf
    %3579 = vmax.xlane.f32.xlu0 %v3578
    %v3580 = vpop.xlane.xlu0 %3579
    %v3581 = vsel %vm1130, %v3577, %v3571
    %v3582 = vsel %vm1130, %v3580, %v3572
    %v3583 = vsub.f32 %v3541, %v3581
    %v3584 = vsub.f32 %v3542, %v3582
    %v3585 = vmul.f32 %v3583, 1.442695
    %v3586 = vpow.pop %v3585
    %v3587 = vmul.f32 %v3584, 1.442695
    %v3588 = vpow.pop %v3587
    %v3589 = vsel %vm1093, %v3586, 0.0
    %v3590 = vsel %vm1093, %v3588, 0.0
    %v3591 = vsel %vm1096, %v3589, 0.0
    %3592 = vadd.xlane.f32.xlu0 %v3591
    %v3593 = vpop.xlane.xlu0 %3592
    %v3594 = vsel %vm1096, %v3590, 0.0
    %3595 = vadd.xlane.f32.xlu0 %v3594
    %v3596 = vpop.xlane.xlu0 %3595
    %v3597 = vmax.f32 %v3593, 1e-30
    %v3598 = vmax.f32 %v3596, 1e-30
    %v3599 = vrcp.pop %v3597
    %v3600 = vrcp.pop %v3598
    %v3601 = vsel %vm1093, %v3599, 0.0
    %v3602 = vsel %vm1093, %v3600, 0.0
    %v3603 = vsel %vm1106, %v3586, 0.0
    %v3604 = vsel %vm1106, %v3588, 0.0
    %v3605 = vsel %vm1096, %v3603, 0.0
    %3606 = vadd.xlane.f32.xlu0 %v3605
    %v3607 = vpop.xlane.xlu0 %3606
    %v3608 = vsel %vm1096, %v3604, 0.0
    %3609 = vadd.xlane.f32.xlu0 %v3608
    %v3610 = vpop.xlane.xlu0 %3609
    %v3611 = vmax.f32 %v3607, 1e-30
    %v3612 = vmax.f32 %v3610, 1e-30
    %v3613 = vrcp.pop %v3611
    %v3614 = vrcp.pop %v3612
    %v3615 = vsel %vm1106, %v3613, %v3601
    %v3616 = vsel %vm1106, %v3614, %v3602
    %v3617 = vsel %vm1118, %v3586, 0.0
    %v3618 = vsel %vm1118, %v3588, 0.0
    %v3619 = vsel %vm1096, %v3617, 0.0
    %3620 = vadd.xlane.f32.xlu0 %v3619
    %v3621 = vpop.xlane.xlu0 %3620
    %v3622 = vsel %vm1096, %v3618, 0.0
    %3623 = vadd.xlane.f32.xlu0 %v3622
    %v3624 = vpop.xlane.xlu0 %3623
    %v3625 = vmax.f32 %v3621, 1e-30
    %v3626 = vmax.f32 %v3624, 1e-30
    %v3627 = vrcp.pop %v3625
    %v3628 = vrcp.pop %v3626
    %v3629 = vsel %vm1118, %v3627, %v3615
    %v3630 = vsel %vm1118, %v3628, %v3616
    %v3631 = vsel %vm1130, %v3586, 0.0
    %v3632 = vsel %vm1130, %v3588, 0.0
    %v3633 = vsel %vm1096, %v3631, 0.0
    %3634 = vadd.xlane.f32.xlu0 %v3633
    %v3635 = vpop.xlane.xlu0 %3634
    %v3636 = vsel %vm1096, %v3632, 0.0
    %3637 = vadd.xlane.f32.xlu0 %v3636
    %v3638 = vpop.xlane.xlu0 %3637
    %v3639 = vmax.f32 %v3635, 1e-30
    %v3640 = vmax.f32 %v3638, 1e-30
    %v3641 = vrcp.pop %v3639
    %v3642 = vrcp.pop %v3640
    %v3643 = vsel %vm1130, %v3641, %v3629
    %v3644 = vsel %vm1130, %v3642, %v3630
    %v3645 = vmul.f32 %v3586, %v3643
    %v3646 = vmul.f32 %v3588, %v3644
    %v3648 = vsel %vm1096, %v3645, 0
    %v3651 = vsel %vm1096, %v3646, 0
    %3653 = vmatprep.subr.mxu0 0.0
    %3654 = vmatpush1.msra.mxu0 %v3456
    %3655 = vmatprep.subr.mxu0 0.0
    %3656 = vmatpush1.msra.mxu0 %v3457
    %3657 = vmatprep.subr.mxu0 0.0
    %3658 = vmatpush1.msra.mxu0 %v3458
    %3659 = vmatprep.subr.mxu0 0.0
    %3660 = vmatpush1.msra.mxu0 %v3459
    %3661 = vmatprep.subr.mxu0 0.0
    %3662 = vmatpush1.msra.mxu0 %v3460
    %3663 = vmatprep.subr.mxu0 0.0
    %3664 = vmatpush1.msra.mxu0 %v3461
    %3665 = vmatprep.subr.mxu0 0.0
    %3666 = vmatpush1.msra.mxu0 %v3462
    %3667 = vmatprep.subr.mxu0 0.0
    %3668 = vmatpush1.msra.mxu0 %v3463
    %3669 = vmatprep.subr.mxu0 0.0
    %3670 = vmatpush1.msra.mxu0 0.0
    %3671 = vmatprep.subr.mxu0 0.0
    %3672 = vmatpush1.msra.mxu0 0.0
    %3673 = vmatprep.subr.mxu0 0.0
    %3674 = vmatpush1.msra.mxu0 0.0
    %3675 = vmatprep.subr.mxu0 0.0
    %3676 = vmatpush1.msra.mxu0 0.0
    %3677 = vmatprep.subr.mxu0 0.0
    %3678 = vmatpush1.msra.mxu0 0.0
    %3679 = vmatprep.subr.mxu0 0.0
    %3680 = vmatpush1.msra.mxu0 0.0
    %3681 = vmatprep.subr.mxu0 0.0
    %3682 = vmatpush1.msra.mxu0 0.0
    %3683 = vmatprep.subr.mxu0 0.0
    %3684 = vmatpush1.msra.mxu0 0.0
    %3685 = vmatprep.subr.mxu0 0.0
    %3686 = vmatpush1.msra.mxu0 0.0
    %3687 = vmatprep.subr.mxu0 0.0
    %3688 = vmatpush1.msra.mxu0 0.0
    %3689 = vmatprep.subr.mxu0 0.0
    %3690 = vmatpush1.msra.mxu0 0.0
    %3691 = vmatprep.subr.mxu0 0.0
    %3692 = vmatpush1.msra.mxu0 0.0
    %3693 = vmatprep.subr.mxu0 0.0
    %3694 = vmatpush1.msra.mxu0 0.0
    %3695 = vmatprep.subr.mxu0 0.0
    %3696 = vmatpush1.msra.mxu0 0.0
    %3697 = vmatprep.subr.mxu0 0.0
    %3698 = vmatpush1.msra.mxu0 0.0
    %3699 = vmatprep.subr.mxu0 0.0
    %3700 = vmatpush1.msra.mxu0 0.0
    %3701 = vmatprep.subr.mxu0 0.0
    %3702 = vmatpush1.msra.mxu0 0.0
    %3703 = vmatprep.subr.mxu0 0.0
    %3704 = vmatpush1.msra.mxu0 0.0
    %3705 = vmatprep.subr.mxu0 0.0
    %3706 = vmatpush1.msra.mxu0 0.0
    %3707 = vmatprep.subr.mxu0 0.0
    %3708 = vmatpush1.msra.mxu0 0.0
    %3709 = vmatprep.subr.mxu0 0.0
    %3710 = vmatpush1.msra.mxu0 0.0
    %3711 = vmatprep.subr.mxu0 0.0
    %3712 = vmatpush1.msra.mxu0 0.0
    %3713 = vmatprep.subr.mxu0 0.0
    %3714 = vmatpush1.msra.mxu0 0.0
    %3715 = vmatprep.subr.mxu0 0.0
    %3716 = vmatpush1.msra.mxu0 0.0
    %3717 = vmatprep.mubr.f32.mxu0 0.0
    %3718 = vmatmul.mubr.f32.gmra.mrb[0].mxu0 %v3648
    %v3719 = vpop.f32.mrb[0].mxu0
    %v3720 = vadd.f32 0.0, %v3719
    %v3721 = vpop.f32.mrb[0].mxu0
    %3722 = vmatprep.mubr.f32.mxu0 0.0
    %3723 = vmatmul.mubr.f32.gmra.mrb[0].mxu0 %v3651
    %v3724 = vpop.f32.mrb[0].mxu0
    %v3725 = vadd.f32 0.0, %v3724
    %v3726 = vpop.f32.mrb[0].mxu0
    %3727 = vdwg.mxu0
    %v3729 = vlaneseq
    %v3730 = vshrl.u32 %v3729, 7
    %v3731 = vsub.s32 0, %v3730
    %v3732 = vrot.slane %v3447, %v3731
    %3734 = vmatprep.subr.mxu0 0.0
    %3735 = vmatpush1.msra.mxu0 %v3431
    %3736 = vmatprep.subr.mxu0 0.0
    %3737 = vmatpush1.msra.mxu0 %v3432
    %3738 = vmatprep.subr.mxu0 0.0
    %3739 = vmatpush1.msra.mxu0 %v3433
    %3740 = vmatprep.subr.mxu0 0.0
    %3741 = vmatpush1.msra.mxu0 %v3434
    %3742 = vmatprep.subr.mxu0 0.0
    %3743 = vmatpush1.msra.mxu0 %v3435
    %3744 = vmatprep.subr.mxu0 0.0
    %3745 = vmatpush1.msra.mxu0 %v3436
    %3746 = vmatprep.subr.mxu0 0.0
    %3747 = vmatpush1.msra.mxu0 %v3437
    %3748 = vmatprep.subr.mxu0 0.0
    %3749 = vmatpush1.msra.mxu0 %v3438
    %3750 = vmatprep.subr.mxu0 0.0
    %3751 = vmatpush1.msra.mxu0 %v3439
    %3752 = vmatprep.subr.mxu0 0.0
    %3753 = vmatpush1.msra.mxu0 %v3440
    %3754 = vmatprep.subr.mxu0 0.0
    %3755 = vmatpush1.msra.mxu0 %v3441
    %3756 = vmatprep.subr.mxu0 0.0
    %3757 = vmatpush1.msra.mxu0 %v3442
    %3758 = vmatprep.subr.mxu0 0.0
    %3759 = vmatpush1.msra.mxu0 %v3443
    %3760 = vmatprep.subr.mxu0 0.0
    %3761 = vmatpush1.msra.mxu0 %v3444
    %3762 = vmatprep.subr.mxu0 0.0
    %3763 = vmatpush1.msra.mxu0 %v3445
    %3764 = vmatprep.subr.mxu0 0.0
    %3765 = vmatpush1.msra.mxu0 %v3446
    %3766 = vmatprep.subr.mxu0 0.0
    %3767 = vmatpush1.msra.mxu0 0.0
    %3768 = vmatprep.subr.mxu0 0.0
    %3769 = vmatpush1.msra.mxu0 0.0
    %3770 = vmatprep.subr.mxu0 0.0
    %3771 = vmatpush1.msra.mxu0 0.0
    %3772 = vmatprep.subr.mxu0 0.0
    %3773 = vmatpush1.msra.mxu0 0.0
    %3774 = vmatprep.subr.mxu0 0.0
    %3775 = vmatpush1.msra.mxu0 0.0
    %3776 = vmatprep.subr.mxu0 0.0
    %3777 = vmatpush1.msra.mxu0 0.0
    %3778 = vmatprep.subr.mxu0 0.0
    %3779 = vmatpush1.msra.mxu0 0.0
    %3780 = vmatprep.subr.mxu0 0.0
    %3781 = vmatpush1.msra.mxu0 0.0
    %3782 = vmatprep.subr.mxu0 0.0
    %3783 = vmatpush1.msra.mxu0 0.0
    %3784 = vmatprep.subr.mxu0 0.0
    %3785 = vmatpush1.msra.mxu0 0.0
    %3786 = vmatprep.subr.mxu0 0.0
    %3787 = vmatpush1.msra.mxu0 0.0
    %3788 = vmatprep.subr.mxu0 0.0
    %3789 = vmatpush1.msra.mxu0 0.0
    %3790 = vmatprep.subr.mxu0 0.0
    %3791 = vmatpush1.msra.mxu0 0.0
    %3792 = vmatprep.subr.mxu0 0.0
    %3793 = vmatpush1.msra.mxu0 0.0
    %3794 = vmatprep.subr.mxu0 0.0
    %3795 = vmatpush1.msra.mxu0 0.0
    %3796 = vmatprep.subr.mxu0 0.0
    %3797 = vmatpush1.msra.mxu0 0.0
    %3798 = vmatprep.mubr.f32.mxu0 0.0
    %3799 = vmatmul.mubr.f32.gmra.mrb[0].mxu0 %v3720
    %v3800 = vpop.f32.mrb[0].mxu0
    %v3801 = vadd.f32 %v3732, %v3800
    %v3802 = vpop.f32.mrb[0].mxu0
    %3803 = vmatprep.mubr.f32.mxu0 0.0
    %3804 = vmatmul.mubr.f32.gmra.mrb[0].mxu0 %v3725
    %v3805 = vpop.f32.mrb[0].mxu0
    %v3806 = vadd.f32 %v3732, %v3805
    %v3807 = vpop.f32.mrb[0].mxu0
    %3808 = vdwg.mxu0
    %v3809 = vld [vmem:[#allocation43] sm:$0x3]
    %v3810 = vadd.f32 %v3210, %v3801
    %v3811 = vadd.f32 %v3211, %v3806
    %3812 = vadd.xlane.f32.xlu0 %v3810
    %v3813 = vpop.xlane.xlu0 %3812
    %3814 = vadd.xlane.f32.xlu0 %v3811
    %v3815 = vpop.xlane.xlu0 %3814
    %v3816 = vmul.f32 %v3813, 0.041666668
    %v3817 = vmul.f32 %v3815, 0.041666668
    %v3818 = vmul.f32 %v3810, %v3810
    %v3819 = vmul.f32 %v3811, %v3811
    %3820 = vadd.xlane.f32.xlu0 %v3818
    %v3821 = vpop.xlane.xlu0 %3820
    %3822 = vadd.xlane.f32.xlu0 %v3819
    %v3823 = vpop.xlane.xlu0 %3822
    %v3824 = vmul.f32 %v3821, 0.041666668
    %v3825 = vmul.f32 %v3823, 0.041666668
    %v3826 = vmul.f32 %v3816, %v3816
    %v3827 = vmul.f32 %v3817, %v3817
    %v3828 = vsub.f32 %v3824, %v3826
    %v3829 = vsub.f32 %v3825, %v3827
    %v3830 = vmax.f32 %v3828, 0.0
    %v3831 = vmax.f32 %v3829, 0.0
    %v3832 = vsub.f32 %v3810, %v3816
    %v3833 = vsub.f32 %v3811, %v3817
    %v3834 = vadd.f32 %v3830, 1e-12
    %v3835 = vadd.f32 %v3831, 1e-12
    %v3836 = vrsqrt.pop %v3834
    %v3837 = vrsqrt.pop %v3835
    %v3838 = vmul.f32 %v3832, %v3836
    %v3839 = vmul.f32 %v3833, %v3837
    %v3840 = vlaneseq
    %v3841 = vshrl.u32 %v3840, 7
    %v3842 = vsub.s32 0, %v3841
    %v3843 = vrot.slane %v3809, %v3842
    %v3844 = vmul.f32 %v3838, %v3843
    %v3845 = vmul.f32 %v3839, %v3843
    %v3846 = vlaneseq
    %v3847 = vshrl.u32 %v3846, 7
    %v3848 = vsub.s32 1, %v3847
    %v3849 = vrot.slane %v3809, %v3848
    %v3850 = vadd.f32 %v3844, %v3849
    %v3851 = vadd.f32 %v3845, %v3849
    %v3852 = vld [vmem:[#allocation44] sm:$0xff]
    %v3853 = vld [vmem:[#allocation44 + $0x8] sm:$0xff]
    %v3854 = vld [vmem:[#allocation44 + $0x10] sm:$0xff]
    %v3855 = vld [vmem:[#allocation44 + $0x18] sm:$0xff]
    %v3856 = vld [vmem:[#allocation44 + $0x20] sm:$0xff]
    %v3857 = vld [vmem:[#allocation44 + $0x28] sm:$0xff]
    %v3858 = vld [vmem:[#allocation44 + $0x30] sm:$0xff]
    %v3859 = vld [vmem:[#allocation44 + $0x38] sm:$0xff]
    %v3860 = vld [vmem:[#allocation44 + $0x40] sm:$0xff]
    %v3861 = vld [vmem:[#allocation44 + $0x48] sm:$0xff]
    %v3862 = vld [vmem:[#allocation44 + $0x50] sm:$0xff]
    %v3863 = vld [vmem:[#allocation44 + $0x58] sm:$0xff]
    %v3864 = vld [vmem:[#allocation44 + $0x60] sm:$0xff]
    %v3865 = vld [vmem:[#allocation44 + $0x68] sm:$0xff]
    %v3866 = vld [vmem:[#allocation44 + $0x70] sm:$0xff]
    %v3867 = vld [vmem:[#allocation44 + $0x78] sm:$0xff]
    %v3868 = vld [vmem:[#allocation46] sm:$0x1]
    %v3870 = vlaneseq
    %v3871 = vshrl.u32 %v3870, 7
    %v3872 = vsub.s32 0, %v3871
    %v3873 = vrot.slane %v3868, %v3872
    %3875 = vmatprep.subr.mxu0 0.0
    %3876 = vmatpush1.msra.mxu0 %v3852
    %3877 = vmatprep.subr.mxu0 0.0
    %3878 = vmatpush1.msra.mxu0 %v3853
    %3879 = vmatprep.subr.mxu0 0.0
    %3880 = vmatpush1.msra.mxu0 %v3854
    %3881 = vmatprep.subr.mxu0 0.0
    %3882 = vmatpush1.msra.mxu0 %v3855
    %3883 = vmatprep.subr.mxu0 0.0
    %3884 = vmatpush1.msra.mxu0 %v3856
    %3885 = vmatprep.subr.mxu0 0.0
    %3886 = vmatpush1.msra.mxu0 %v3857
    %3887 = vmatprep.subr.mxu0 0.0
    %3888 = vmatpush1.msra.mxu0 %v3858
    %3889 = vmatprep.subr.mxu0 0.0
    %3890 = vmatpush1.msra.mxu0 %v3859
    %3891 = vmatprep.subr.mxu0 0.0
    %3892 = vmatpush1.msra.mxu0 %v3860
    %3893 = vmatprep.subr.mxu0 0.0
    %3894 = vmatpush1.msra.mxu0 %v3861
    %3895 = vmatprep.subr.mxu0 0.0
    %3896 = vmatpush1.msra.mxu0 %v3862
    %3897 = vmatprep.subr.mxu0 0.0
    %3898 = vmatpush1.msra.mxu0 %v3863
    %3899 = vmatprep.subr.mxu0 0.0
    %3900 = vmatpush1.msra.mxu0 %v3864
    %3901 = vmatprep.subr.mxu0 0.0
    %3902 = vmatpush1.msra.mxu0 %v3865
    %3903 = vmatprep.subr.mxu0 0.0
    %3904 = vmatpush1.msra.mxu0 %v3866
    %3905 = vmatprep.subr.mxu0 0.0
    %3906 = vmatpush1.msra.mxu0 %v3867
    %3907 = vmatprep.subr.mxu0 0.0
    %3908 = vmatpush1.msra.mxu0 0.0
    %3909 = vmatprep.subr.mxu0 0.0
    %3910 = vmatpush1.msra.mxu0 0.0
    %3911 = vmatprep.subr.mxu0 0.0
    %3912 = vmatpush1.msra.mxu0 0.0
    %3913 = vmatprep.subr.mxu0 0.0
    %3914 = vmatpush1.msra.mxu0 0.0
    %3915 = vmatprep.subr.mxu0 0.0
    %3916 = vmatpush1.msra.mxu0 0.0
    %3917 = vmatprep.subr.mxu0 0.0
    %3918 = vmatpush1.msra.mxu0 0.0
    %3919 = vmatprep.subr.mxu0 0.0
    %3920 = vmatpush1.msra.mxu0 0.0
    %3921 = vmatprep.subr.mxu0 0.0
    %3922 = vmatpush1.msra.mxu0 0.0
    %3923 = vmatprep.subr.mxu0 0.0
    %3924 = vmatpush1.msra.mxu0 0.0
    %3925 = vmatprep.subr.mxu0 0.0
    %3926 = vmatpush1.msra.mxu0 0.0
    %3927 = vmatprep.subr.mxu0 0.0
    %3928 = vmatpush1.msra.mxu0 0.0
    %3929 = vmatprep.subr.mxu0 0.0
    %3930 = vmatpush1.msra.mxu0 0.0
    %3931 = vmatprep.subr.mxu0 0.0
    %3932 = vmatpush1.msra.mxu0 0.0
    %3933 = vmatprep.subr.mxu0 0.0
    %3934 = vmatpush1.msra.mxu0 0.0
    %3935 = vmatprep.subr.mxu0 0.0
    %3936 = vmatpush1.msra.mxu0 0.0
    %3937 = vmatprep.subr.mxu0 0.0
    %3938 = vmatpush1.msra.mxu0 0.0
    %3939 = vmatprep.mubr.f32.mxu0 0.0
    %3940 = vmatmul.mubr.f32.gmra.mrb[0].mxu0 %v3850
    %v3941 = vpop.f32.mrb[0].mxu0
    %v3942 = vadd.f32 %v3873, %v3941
    %v3943 = vpop.f32.mrb[0].mxu0
    %3944 = vmatprep.mubr.f32.mxu0 0.0
    %3945 = vmatmul.mubr.f32.gmra.mrb[0].mxu0 %v3851
    %v3946 = vpop.f32.mrb[0].mxu0
    %v3947 = vadd.f32 %v3873, %v3946
    %v3948 = vpop.f32.mrb[0].mxu0
    %3949 = vdwg.mxu0
    %v3950 = vmul.f32 %v3942, 0.5
    %v3951 = vmul.f32 %v3947, 0.5
    %v3952 = vmul.f32 %v3942, 0.044715
    %v3953 = vmul.f32 %v3947, 0.044715
    %v3954 = vmul.f32 %v3952, %v3942
    %v3955 = vmul.f32 %v3953, %v3947
    %v3956 = vmul.f32 %v3954, %v3942
    %v3957 = vmul.f32 %v3955, %v3947
    %v3958 = vadd.f32 %v3942, %v3956
    %v3959 = vadd.f32 %v3947, %v3957
    %v3960 = vmul.f32 %v3958, 0.7978846
    %v3961 = vmul.f32 %v3959, 0.7978846
    %v3962 = vtanh.pop %v3960
    %v3963 = vtanh.pop %v3961
    %v3964 = vadd.f32 %v3962, 1.0
    %v3965 = vadd.f32 %v3963, 1.0
    %v3966 = vmul.f32 %v3950, %v3964
    %v3967 = vmul.f32 %v3951, %v3965
    %v3968 = vld [vmem:[#allocation47] sm:$0xff]
    %v3969 = vld [vmem:[#allocation47 + $0x8] sm:$0xff]
    %v3970 = vld [vmem:[#allocation47 + $0x10] sm:$0xff]
    %v3971 = vld [vmem:[#allocation47 + $0x18] sm:$0xff]
    %v3972 = vld [vmem:[#allocation47 + $0x20] sm:$0xff]
    %v3973 = vld [vmem:[#allocation47 + $0x28] sm:$0xff]
    %v3974 = vld [vmem:[#allocation47 + $0x30] sm:$0xff]
    %v3975 = vld [vmem:[#allocation47 + $0x38] sm:$0xff]
    %v3976 = vld [vmem:[#allocation47 + $0x40] sm:$0xff]
    %v3977 = vld [vmem:[#allocation47 + $0x48] sm:$0xff]
    %v3978 = vld [vmem:[#allocation47 + $0x50] sm:$0xff]
    %v3979 = vld [vmem:[#allocation47 + $0x58] sm:$0xff]
    %v3980 = vld [vmem:[#allocation47 + $0x60] sm:$0xff]
    %v3981 = vld [vmem:[#allocation47 + $0x68] sm:$0xff]
    %v3982 = vld [vmem:[#allocation47 + $0x70] sm:$0xff]
    %v3983 = vld [vmem:[#allocation47 + $0x78] sm:$0xff]
    %v3984 = vld [vmem:[#allocation49] sm:$0x1]
    %v3986 = vlaneseq
    %v3987 = vshrl.u32 %v3986, 7
    %v3988 = vsub.s32 0, %v3987
    %v3989 = vrot.slane %v3984, %v3988
    %3991 = vmatprep.subr.mxu0 0.0
    %3992 = vmatpush1.msra.mxu0 %v3968
    %3993 = vmatprep.subr.mxu0 0.0
    %3994 = vmatpush1.msra.mxu0 %v3969
    %3995 = vmatprep.subr.mxu0 0.0
    %3996 = vmatpush1.msra.mxu0 %v3970
    %3997 = vmatprep.subr.mxu0 0.0
    %3998 = vmatpush1.msra.mxu0 %v3971
    %3999 = vmatprep.subr.mxu0 0.0
    %4000 = vmatpush1.msra.mxu0 %v3972
    %4001 = vmatprep.subr.mxu0 0.0
    %4002 = vmatpush1.msra.mxu0 %v3973
    %4003 = vmatprep.subr.mxu0 0.0
    %4004 = vmatpush1.msra.mxu0 %v3974
    %4005 = vmatprep.subr.mxu0 0.0
    %4006 = vmatpush1.msra.mxu0 %v3975
    %4007 = vmatprep.subr.mxu0 0.0
    %4008 = vmatpush1.msra.mxu0 %v3976
    %4009 = vmatprep.subr.mxu0 0.0
    %4010 = vmatpush1.msra.mxu0 %v3977
    %4011 = vmatprep.subr.mxu0 0.0
    %4012 = vmatpush1.msra.mxu0 %v3978
    %4013 = vmatprep.subr.mxu0 0.0
    %4014 = vmatpush1.msra.mxu0 %v3979
    %4015 = vmatprep.subr.mxu0 0.0
    %4016 = vmatpush1.msra.mxu0 %v3980
    %4017 = vmatprep.subr.mxu0 0.0
    %4018 = vmatpush1.msra.mxu0 %v3981
    %4019 = vmatprep.subr.mxu0 0.0
    %4020 = vmatpush1.msra.mxu0 %v3982
    %4021 = vmatprep.subr.mxu0 0.0
    %4022 = vmatpush1.msra.mxu0 %v3983
    %4023 = vmatprep.subr.mxu0 0.0
    %4024 = vmatpush1.msra.mxu0 0.0
    %4025 = vmatprep.subr.mxu0 0.0
    %4026 = vmatpush1.msra.mxu0 0.0
    %4027 = vmatprep.subr.mxu0 0.0
    %4028 = vmatpush1.msra.mxu0 0.0
    %4029 = vmatprep.subr.mxu0 0.0
    %4030 = vmatpush1.msra.mxu0 0.0
    %4031 = vmatprep.subr.mxu0 0.0
    %4032 = vmatpush1.msra.mxu0 0.0
    %4033 = vmatprep.subr.mxu0 0.0
    %4034 = vmatpush1.msra.mxu0 0.0
    %4035 = vmatprep.subr.mxu0 0.0
    %4036 = vmatpush1.msra.mxu0 0.0
    %4037 = vmatprep.subr.mxu0 0.0
    %4038 = vmatpush1.msra.mxu0 0.0
    %4039 = vmatprep.subr.mxu0 0.0
    %4040 = vmatpush1.msra.mxu0 0.0
    %4041 = vmatprep.subr.mxu0 0.0
    %4042 = vmatpush1.msra.mxu0 0.0
    %4043 = vmatprep.subr.mxu0 0.0
    %4044 = vmatpush1.msra.mxu0 0.0
    %4045 = vmatprep.subr.mxu0 0.0
    %4046 = vmatpush1.msra.mxu0 0.0
    %4047 = vmatprep.subr.mxu0 0.0
    %4048 = vmatpush1.msra.mxu0 0.0
    %4049 = vmatprep.subr.mxu0 0.0
    %4050 = vmatpush1.msra.mxu0 0.0
    %4051 = vmatprep.subr.mxu0 0.0
    %4052 = vmatpush1.msra.mxu0 0.0
    %4053 = vmatprep.subr.mxu0 0.0
    %4054 = vmatpush1.msra.mxu0 0.0
    %4055 = vmatprep.mubr.f32.mxu0 0.0
    %4056 = vmatmul.mubr.f32.gmra.mrb[0].mxu0 %v3966
    %v4057 = vpop.f32.mrb[0].mxu0
    %v4058 = vadd.f32 %v3989, %v4057
    %v4059 = vpop.f32.mrb[0].mxu0
    %4060 = vmatprep.mubr.f32.mxu0 0.0
    %4061 = vmatmul.mubr.f32.gmra.mrb[0].mxu0 %v3967
    %v4062 = vpop.f32.mrb[0].mxu0
    %v4063 = vadd.f32 %v3989, %v4062
    %v4064 = vpop.f32.mrb[0].mxu0
    %4065 = vdwg.mxu0
    %v4066 = vld [vmem:[#allocation50] sm:$0x3]
    %v4067 = vadd.f32 %v3850, %v4058
    %v4068 = vadd.f32 %v3851, %v4063
    %4069 = vadd.xlane.f32.xlu0 %v4067
    %v4070 = vpop.xlane.xlu0 %4069
    %4071 = vadd.xlane.f32.xlu0 %v4068
    %v4072 = vpop.xlane.xlu0 %4071
    %v4073 = vmul.f32 %v4070, 0.041666668
    %v4074 = vmul.f32 %v4072, 0.041666668
    %v4075 = vmul.f32 %v4067, %v4067
    %v4076 = vmul.f32 %v4068, %v4068
    %4077 = vadd.xlane.f32.xlu0 %v4075
    %v4078 = vpop.xlane.xlu0 %4077
    %4079 = vadd.xlane.f32.xlu0 %v4076
    %v4080 = vpop.xlane.xlu0 %4079
    %v4081 = vmul.f32 %v4078, 0.041666668
    %v4082 = vmul.f32 %v4080, 0.041666668
    %v4083 = vmul.f32 %v4073, %v4073
    %v4084 = vmul.f32 %v4074, %v4074
    %v4085 = vsub.f32 %v4081, %v4083
    %v4086 = vsub.f32 %v4082, %v4084
    %v4087 = vmax.f32 %v4085, 0.0
    %v4088 = vmax.f32 %v4086, 0.0
    %v4089 = vsub.f32 %v4067, %v4073
    %v4090 = vsub.f32 %v4068, %v4074
    %v4091 = vadd.f32 %v4087, 1e-12
    %v4092 = vadd.f32 %v4088, 1e-12
    %v4093 = vrsqrt.pop %v4091
    %v4094 = vrsqrt.pop %v4092
    %v4095 = vmul.f32 %v4089, %v4093
    %v4096 = vmul.f32 %v4090, %v4094
    %v4097 = vlaneseq
    %v4098 = vshrl.u32 %v4097, 7
    %v4099 = vsub.s32 0, %v4098
    %v4100 = vrot.slane %v4066, %v4099
    %v4101 = vmul.f32 %v4095, %v4100
    %v4102 = vmul.f32 %v4096, %v4100
    %v4103 = vlaneseq
    %v4104 = vshrl.u32 %v4103, 7
    %v4105 = vsub.s32 1, %v4104
    %v4106 = vrot.slane %v4066, %v4105
    %v4107 = vadd.f32 %v4101, %v4106
    %v4108 = vadd.f32 %v4102, %v4106
    %s4109 = scalar_lea.vmem [#allocation26], 384
    %v4110 = vld [vmem:[%s4109] sm:$0xff]
    %v4111 = vld [vmem:[%s4109 + $0x8] sm:$0xff]
    %v4112 = vld [vmem:[%s4109 + $0x10] sm:$0xff]
    %v4113 = vld [vmem:[%s4109 + $0x18] sm:$0xff]
    %v4114 = vld [vmem:[%s4109 + $0x20] sm:$0xff]
    %v4115 = vld [vmem:[%s4109 + $0x28] sm:$0xff]
    %v4116 = vld [vmem:[%s4109 + $0x30] sm:$0xff]
    %v4117 = vld [vmem:[%s4109 + $0x38] sm:$0xff]
    %v4118 = vld [vmem:[%s4109 + $0x40] sm:$0xff]
    %v4119 = vld [vmem:[%s4109 + $0x48] sm:$0xff]
    %v4120 = vld [vmem:[%s4109 + $0x50] sm:$0xff]
    %v4121 = vld [vmem:[%s4109 + $0x58] sm:$0xff]
    %v4122 = vld [vmem:[%s4109 + $0x60] sm:$0xff]
    %v4123 = vld [vmem:[%s4109 + $0x68] sm:$0xff]
    %v4124 = vld [vmem:[%s4109 + $0x70] sm:$0xff]
    %v4125 = vld [vmem:[%s4109 + $0x78] sm:$0xff]
    %v4126 = vld [vmem:[%s4109 + $0x80] sm:$0xff]
    %v4127 = vld [vmem:[%s4109 + $0x88] sm:$0xff]
    %v4128 = vld [vmem:[%s4109 + $0x90] sm:$0xff]
    %v4129 = vld [vmem:[%s4109 + $0x98] sm:$0xff]
    %v4130 = vld [vmem:[%s4109 + $0xa0] sm:$0xff]
    %v4131 = vld [vmem:[%s4109 + $0xa8] sm:$0xff]
    %v4132 = vld [vmem:[%s4109 + $0xb0] sm:$0xff]
    %v4133 = vld [vmem:[%s4109 + $0xb8] sm:$0xff]
    %v4134 = vld [vmem:[%s4109 + $0xc0] sm:$0xff]
    %v4135 = vld [vmem:[%s4109 + $0xc8] sm:$0xff]
    %v4136 = vld [vmem:[%s4109 + $0xd0] sm:$0xff]
    %v4137 = vld [vmem:[%s4109 + $0xd8] sm:$0xff]
    %v4138 = vld [vmem:[%s4109 + $0xe0] sm:$0xff]
    %v4139 = vld [vmem:[%s4109 + $0xe8] sm:$0xff]
    %v4140 = vld [vmem:[%s4109 + $0xf0] sm:$0xff]
    %v4141 = vld [vmem:[%s4109 + $0xf8] sm:$0xff]
    %v4142 = vld [vmem:[%s4109 + $0x100] sm:$0xff]
    %v4143 = vld [vmem:[%s4109 + $0x108] sm:$0xff]
    %v4144 = vld [vmem:[%s4109 + $0x110] sm:$0xff]
    %v4145 = vld [vmem:[%s4109 + $0x118] sm:$0xff]
    %v4146 = vld [vmem:[%s4109 + $0x120] sm:$0xff]
    %v4147 = vld [vmem:[%s4109 + $0x128] sm:$0xff]
    %v4148 = vld [vmem:[%s4109 + $0x130] sm:$0xff]
    %v4149 = vld [vmem:[%s4109 + $0x138] sm:$0xff]
    %v4150 = vld [vmem:[%s4109 + $0x140] sm:$0xff]
    %v4151 = vld [vmem:[%s4109 + $0x148] sm:$0xff]
    %v4152 = vld [vmem:[%s4109 + $0x150] sm:$0xff]
    %v4153 = vld [vmem:[%s4109 + $0x158] sm:$0xff]
    %v4154 = vld [vmem:[%s4109 + $0x160] sm:$0xff]
    %v4155 = vld [vmem:[%s4109 + $0x168] sm:$0xff]
    %v4156 = vld [vmem:[%s4109 + $0x170] sm:$0xff]
    %v4157 = vld [vmem:[%s4109 + $0x178] sm:$0xff]
    %s4158 = scalar_lea.vmem [#allocation28], 3
    %v4159 = vld [vmem:[%s4158] sm:$0x7]
    %v4161 = vlaneseq
    %v4162 = vshrl.u32 %v4161, 7
    %v4163 = vsub.s32 0, %v4162
    %v4164 = vrot.slane %v4159, %v4163
    %v4165 = vlaneseq
    %v4166 = vshrl.u32 %v4165, 7
    %v4167 = vsub.s32 1, %v4166
    %v4168 = vrot.slane %v4159, %v4167
    %v4169 = vlaneseq
    %v4170 = vshrl.u32 %v4169, 7
    %v4171 = vsub.s32 2, %v4170
    %v4172 = vrot.slane %v4159, %v4171
    %4176 = vmatprep.subr.mxu0 %v4111
    %4177 = vmatpush1.msra.mxu0 %v4110
    %4178 = vmatprep.subr.mxu0 %v4114
    %4179 = vmatpush1.msra.mxu0 %v4113
    %4180 = vmatprep.subr.mxu0 %v4117
    %4181 = vmatpush1.msra.mxu0 %v4116
    %4182 = vmatprep.subr.mxu0 %v4120
    %4183 = vmatpush1.msra.mxu0 %v4119
    %4184 = vmatprep.subr.mxu0 %v4123
    %4185 = vmatpush1.msra.mxu0 %v4122
    %4186 = vmatprep.subr.mxu0 %v4126
    %4187 = vmatpush1.msra.mxu0 %v4125
    %4188 = vmatprep.subr.mxu0 %v4129
    %4189 = vmatpush1.msra.mxu0 %v4128
    %4190 = vmatprep.subr.mxu0 %v4132
    %4191 = vmatpush1.msra.mxu0 %v4131
    %4192 = vmatprep.subr.mxu0 %v4135
    %4193 = vmatpush1.msra.mxu0 %v4134
    %4194 = vmatprep.subr.mxu0 %v4138
    %4195 = vmatpush1.msra.mxu0 %v4137
    %4196 = vmatprep.subr.mxu0 %v4141
    %4197 = vmatpush1.msra.mxu0 %v4140
    %4198 = vmatprep.subr.mxu0 %v4144
    %4199 = vmatpush1.msra.mxu0 %v4143
    %4200 = vmatprep.subr.mxu0 %v4147
    %4201 = vmatpush1.msra.mxu0 %v4146
    %4202 = vmatprep.subr.mxu0 %v4150
    %4203 = vmatpush1.msra.mxu0 %v4149
    %4204 = vmatprep.subr.mxu0 %v4153
    %4205 = vmatpush1.msra.mxu0 %v4152
    %4206 = vmatprep.subr.mxu0 %v4156
    %4207 = vmatpush1.msra.mxu0 %v4155
    %4208 = vmatprep.subr.mxu0 0.0
    %4209 = vmatpush1.msra.mxu0 0.0
    %4210 = vmatprep.subr.mxu0 0.0
    %4211 = vmatpush1.msra.mxu0 0.0
    %4212 = vmatprep.subr.mxu0 0.0
    %4213 = vmatpush1.msra.mxu0 0.0
    %4214 = vmatprep.subr.mxu0 0.0
    %4215 = vmatpush1.msra.mxu0 0.0
    %4216 = vmatprep.subr.mxu0 0.0
    %4217 = vmatpush1.msra.mxu0 0.0
    %4218 = vmatprep.subr.mxu0 0.0
    %4219 = vmatpush1.msra.mxu0 0.0
    %4220 = vmatprep.subr.mxu0 0.0
    %4221 = vmatpush1.msra.mxu0 0.0
    %4222 = vmatprep.subr.mxu0 0.0
    %4223 = vmatpush1.msra.mxu0 0.0
    %4224 = vmatprep.subr.mxu0 0.0
    %4225 = vmatpush1.msra.mxu0 0.0
    %4226 = vmatprep.subr.mxu0 0.0
    %4227 = vmatpush1.msra.mxu0 0.0
    %4228 = vmatprep.subr.mxu0 0.0
    %4229 = vmatpush1.msra.mxu0 0.0
    %4230 = vmatprep.subr.mxu0 0.0
    %4231 = vmatpush1.msra.mxu0 0.0
    %4232 = vmatprep.subr.mxu0 0.0
    %4233 = vmatpush1.msra.mxu0 0.0
    %4234 = vmatprep.subr.mxu0 0.0
    %4235 = vmatpush1.msra.mxu0 0.0
    %4236 = vmatprep.subr.mxu0 0.0
    %4237 = vmatpush1.msra.mxu0 0.0
    %4238 = vmatprep.subr.mxu0 0.0
    %4239 = vmatpush1.msra.mxu0 0.0
    %4240 = vmatprep.mubr.f32.mxu0 0.0
    %4241 = vmatmul.mubr.f32.gmra.mrb[0].mxu0 %v4107
    %v4242 = vpop.f32.mrb[0].mxu0
    %v4243 = vadd.f32 %v4164, %v4242
    %v4244 = vpop.f32.mrb[0].mxu0
    %v4245 = vadd.f32 %v4168, %v4244
    %4246 = vmatprep.mubr.f32.mxu0 0.0
    %4247 = vmatmul.mubr.f32.gmra.mrb[0].mxu0 %v4108
    %v4248 = vpop.f32.mrb[0].mxu0
    %v4249 = vadd.f32 %v4164, %v4248
    %v4250 = vpop.f32.mrb[0].mxu0
    %v4251 = vadd.f32 %v4168, %v4250
    %4252 = vdwg.mxu0
    %4253 = vmatprep.subr.mxu0 0.0
    %4254 = vmatpush1.msra.mxu0 %v4112
    %4255 = vmatprep.subr.mxu0 0.0
    %4256 = vmatpush1.msra.mxu0 %v4115
    %4257 = vmatprep.subr.mxu0 0.0
    %4258 = vmatpush1.msra.mxu0 %v4118
    %4259 = vmatprep.subr.mxu0 0.0
    %4260 = vmatpush1.msra.mxu0 %v4121
    %4261 = vmatprep.subr.mxu0 0.0
    %4262 = vmatpush1.msra.mxu0 %v4124
    %4263 = vmatprep.subr.mxu0 0.0
    %4264 = vmatpush1.msra.mxu0 %v4127
    %4265 = vmatprep.subr.mxu0 0.0
    %4266 = vmatpush1.msra.mxu0 %v4130
    %4267 = vmatprep.subr.mxu0 0.0
    %4268 = vmatpush1.msra.mxu0 %v4133
    %4269 = vmatprep.subr.mxu0 0.0
    %4270 = vmatpush1.msra.mxu0 %v4136
    %4271 = vmatprep.subr.mxu0 0.0
    %4272 = vmatpush1.msra.mxu0 %v4139
    %4273 = vmatprep.subr.mxu0 0.0
    %4274 = vmatpush1.msra.mxu0 %v4142
    %4275 = vmatprep.subr.mxu0 0.0
    %4276 = vmatpush1.msra.mxu0 %v4145
    %4277 = vmatprep.subr.mxu0 0.0
    %4278 = vmatpush1.msra.mxu0 %v4148
    %4279 = vmatprep.subr.mxu0 0.0
    %4280 = vmatpush1.msra.mxu0 %v4151
    %4281 = vmatprep.subr.mxu0 0.0
    %4282 = vmatpush1.msra.mxu0 %v4154
    %4283 = vmatprep.subr.mxu0 0.0
    %4284 = vmatpush1.msra.mxu0 %v4157
    %4285 = vmatprep.subr.mxu0 0.0
    %4286 = vmatpush1.msra.mxu0 0.0
    %4287 = vmatprep.subr.mxu0 0.0
    %4288 = vmatpush1.msra.mxu0 0.0
    %4289 = vmatprep.subr.mxu0 0.0
    %4290 = vmatpush1.msra.mxu0 0.0
    %4291 = vmatprep.subr.mxu0 0.0
    %4292 = vmatpush1.msra.mxu0 0.0
    %4293 = vmatprep.subr.mxu0 0.0
    %4294 = vmatpush1.msra.mxu0 0.0
    %4295 = vmatprep.subr.mxu0 0.0
    %4296 = vmatpush1.msra.mxu0 0.0
    %4297 = vmatprep.subr.mxu0 0.0
    %4298 = vmatpush1.msra.mxu0 0.0
    %4299 = vmatprep.subr.mxu0 0.0
    %4300 = vmatpush1.msra.mxu0 0.0
    %4301 = vmatprep.subr.mxu0 0.0
    %4302 = vmatpush1.msra.mxu0 0.0
    %4303 = vmatprep.subr.mxu0 0.0
    %4304 = vmatpush1.msra.mxu0 0.0
    %4305 = vmatprep.subr.mxu0 0.0
    %4306 = vmatpush1.msra.mxu0 0.0
    %4307 = vmatprep.subr.mxu0 0.0
    %4308 = vmatpush1.msra.mxu0 0.0
    %4309 = vmatprep.subr.mxu0 0.0
    %4310 = vmatpush1.msra.mxu0 0.0
    %4311 = vmatprep.subr.mxu0 0.0
    %4312 = vmatpush1.msra.mxu0 0.0
    %4313 = vmatprep.subr.mxu0 0.0
    %4314 = vmatpush1.msra.mxu0 0.0
    %4315 = vmatprep.subr.mxu0 0.0
    %4316 = vmatpush1.msra.mxu0 0.0
    %4317 = vmatprep.mubr.f32.mxu0 0.0
    %4318 = vmatmul.mubr.f32.gmra.mrb[0].mxu0 %v4107
    %v4319 = vpop.f32.mrb[0].mxu0
    %v4320 = vadd.f32 %v4172, %v4319
    %v4321 = vpop.f32.mrb[0].mxu0
    %4322 = vmatprep.mubr.f32.mxu0 0.0
    %4323 = vmatmul.mubr.f32.gmra.mrb[0].mxu0 %v4108
    %v4324 = vpop.f32.mrb[0].mxu0
    %v4325 = vadd.f32 %v4172, %v4324
    %v4326 = vpop.f32.mrb[0].mxu0
    %4327 = vdwg.mxu0
    %s4328 = scalar_lea.vmem [#allocation29], 128
    %v4329 = vld [vmem:[%s4328] sm:$0xff]
    %v4330 = vld [vmem:[%s4328 + $0x8] sm:$0xff]
    %v4331 = vld [vmem:[%s4328 + $0x10] sm:$0xff]
    %v4332 = vld [vmem:[%s4328 + $0x18] sm:$0xff]
    %v4333 = vld [vmem:[%s4328 + $0x20] sm:$0xff]
    %v4334 = vld [vmem:[%s4328 + $0x28] sm:$0xff]
    %v4335 = vld [vmem:[%s4328 + $0x30] sm:$0xff]
    %v4336 = vld [vmem:[%s4328 + $0x38] sm:$0xff]
    %v4337 = vld [vmem:[%s4328 + $0x40] sm:$0xff]
    %v4338 = vld [vmem:[%s4328 + $0x48] sm:$0xff]
    %v4339 = vld [vmem:[%s4328 + $0x50] sm:$0xff]
    %v4340 = vld [vmem:[%s4328 + $0x58] sm:$0xff]
    %v4341 = vld [vmem:[%s4328 + $0x60] sm:$0xff]
    %v4342 = vld [vmem:[%s4328 + $0x68] sm:$0xff]
    %v4343 = vld [vmem:[%s4328 + $0x70] sm:$0xff]
    %v4344 = vld [vmem:[%s4328 + $0x78] sm:$0xff]
    %s4345 = scalar_lea.vmem [#allocation31], 1
    %v4346 = vld [vmem:[%s4345] sm:$0x1]
    %v4347 = vmul.f32 %v4245, %v980
    %v4348 = vmul.f32 %v4251, %v980
    %v4349 = vmul.f32 %v4245, %v984
    %v4350 = vmul.f32 %v4251, %v984
    %v4351 = vmul.f32 %v4245, %v988
    %v4352 = vmul.f32 %v4251, %v988
    %v4353 = vmul.f32 %v4245, %v992
    %v4354 = vmul.f32 %v4251, %v992
    %v4355 = vmul.f32 %v4320, %v980
    %v4356 = vmul.f32 %v4325, %v980
    %v4357 = vmul.f32 %v4320, %v984
    %v4358 = vmul.f32 %v4325, %v984
    %v4359 = vmul.f32 %v4320, %v988
    %v4360 = vmul.f32 %v4325, %v988
    %v4361 = vmul.f32 %v4320, %v992
    %v4362 = vmul.f32 %v4325, %v992
    %4363 = vmatprep.subr.mxu0 0.0
    %4364 = vmatpush1.xpose.msra.mxu0 %v4347
    %4365 = vmatprep.subr.mxu0 0.0
    %4366 = vmatpush1.xpose.msra.mxu0 %v4348
    %4367 = vmatprep.subr.mxu0 0.0
    %4368 = vmatpush1.xpose.msra.mxu0 %v4349
    %4369 = vmatprep.subr.mxu0 0.0
    %4370 = vmatpush1.xpose.msra.mxu0 %v4350
    %4371 = vmatprep.subr.mxu0 0.0
    %4372 = vmatpush1.xpose.msra.mxu0 %v4351
    %4373 = vmatprep.subr.mxu0 0.0
    %4374 = vmatpush1.xpose.msra.mxu0 %v4352
    %4375 = vmatprep.subr.mxu0 0.0
    %4376 = vmatpush1.xpose.msra.mxu0 %v4353
    %4377 = vmatprep.subr.mxu0 0.0
    %4378 = vmatpush1.xpose.msra.mxu0 %v4354
    %4379 = vmatprep.subr.mxu0 0.0
    %4380 = vmatpush1.xpose.msra.mxu0 0.0
    %4381 = vmatprep.subr.mxu0 0.0
    %4382 = vmatpush1.xpose.msra.mxu0 0.0
    %4383 = vmatprep.subr.mxu0 0.0
    %4384 = vmatpush1.xpose.msra.mxu0 0.0
    %4385 = vmatprep.subr.mxu0 0.0
    %4386 = vmatpush1.xpose.msra.mxu0 0.0
    %4387 = vmatprep.subr.mxu0 0.0
    %4388 = vmatpush1.xpose.msra.mxu0 0.0
    %4389 = vmatprep.subr.mxu0 0.0
    %4390 = vmatpush1.xpose.msra.mxu0 0.0
    %4391 = vmatprep.subr.mxu0 0.0
    %4392 = vmatpush1.xpose.msra.mxu0 0.0
    %4393 = vmatprep.subr.mxu0 0.0
    %4394 = vmatpush1.xpose.msra.mxu0 0.0
    %4395 = vmatprep.subr.mxu0 0.0
    %4396 = vmatpush1.xpose.msra.mxu0 0.0
    %4397 = vmatprep.subr.mxu0 0.0
    %4398 = vmatpush1.xpose.msra.mxu0 0.0
    %4399 = vmatprep.subr.mxu0 0.0
    %4400 = vmatpush1.xpose.msra.mxu0 0.0
    %4401 = vmatprep.subr.mxu0 0.0
    %4402 = vmatpush1.xpose.msra.mxu0 0.0
    %4403 = vmatprep.subr.mxu0 0.0
    %4404 = vmatpush1.xpose.msra.mxu0 0.0
    %4405 = vmatprep.subr.mxu0 0.0
    %4406 = vmatpush1.xpose.msra.mxu0 0.0
    %4407 = vmatprep.subr.mxu0 0.0
    %4408 = vmatpush1.xpose.msra.mxu0 0.0
    %4409 = vmatprep.subr.mxu0 0.0
    %4410 = vmatpush1.xpose.msra.mxu0 0.0
    %4411 = vmatprep.subr.mxu0 0.0
    %4412 = vmatpush1.xpose.msra.mxu0 0.0
    %4413 = vmatprep.subr.mxu0 0.0
    %4414 = vmatpush1.xpose.msra.mxu0 0.0
    %4415 = vmatprep.subr.mxu0 0.0
    %4416 = vmatpush1.xpose.msra.mxu0 0.0
    %4417 = vmatprep.subr.mxu0 0.0
    %4418 = vmatpush1.xpose.msra.mxu0 0.0
    %4419 = vmatprep.subr.mxu0 0.0
    %4420 = vmatpush1.xpose.msra.mxu0 0.0
    %4421 = vmatprep.subr.mxu0 0.0
    %4422 = vmatpush1.xpose.msra.mxu0 0.0
    %4423 = vmatprep.subr.mxu0 0.0
    %4424 = vmatpush1.xpose.msra.mxu0 0.0
    %4425 = vmatprep.subr.mxu0 0.0
    %4426 = vmatpush1.xpose.msra.mxu0 0.0
    %4427 = vmatprep.mubr.f32.mxu0 0.0
    %4428 = vmatmul.mubr.f32.gmra.mrb[0].mxu0 %v4243
    %v4429 = vpop.f32.mrb[0].mxu0
    %v4430 = vadd.f32 0.0, %v4429
    %v4431 = vpop.f32.mrb[0].mxu0
    %4432 = vmatprep.mubr.f32.mxu0 0.0
    %4433 = vmatmul.mubr.f32.gmra.mrb[0].mxu0 %v4249
    %v4434 = vpop.f32.mrb[0].mxu0
    %v4435 = vadd.f32 0.0, %v4434
    %v4436 = vpop.f32.mrb[0].mxu0
    %4437 = vdwg.mxu0
    %v4438 = vmul.f32 %v4430, 0.4082483
    %v4439 = vmul.f32 %v4435, 0.4082483
    %v4440 = vadd.f32 %v4438, %v686
    %v4441 = vadd.f32 %v4439, %v687
    %v4442 = vsel %vm1093, %v4440, -1e+30
    %v4443 = vsel %vm1093, %v4441, -1e+30
    %v4444 = vsel %vm1096, %v4442, -inf
    %4445 = vmax.xlane.f32.xlu0 %v4444
    %v4446 = vpop.xlane.xlu0 %4445
    %v4447 = vsel %vm1096, %v4443, -inf
    %4448 = vmax.xlane.f32.xlu0 %v4447
    %v4449 = vpop.xlane.xlu0 %4448
    %v4450 = vsel %vm1093, %v4446, 0.0
    %v4451 = vsel %vm1093, %v4449, 0.0
    %v4452 = vsel %vm1106, %v4440, -1e+30
    %v4453 = vsel %vm1106, %v4441, -1e+30
    %v4454 = vsel %vm1096, %v4452, -inf
    %4455 = vmax.xlane.f32.xlu0 %v4454
    %v4456 = vpop.xlane.xlu0 %4455
    %v4457 = vsel %vm1096, %v4453, -inf
    %4458 = vmax.xlane.f32.xlu0 %v4457
    %v4459 = vpop.xlane.xlu0 %4458
    %v4460 = vsel %vm1106, %v4456, %v4450
    %v4461 = vsel %vm1106, %v4459, %v4451
    %v4462 = vsel %vm1118, %v4440, -1e+30
    %v4463 = vsel %vm1118, %v4441, -1e+30
    %v4464 = vsel %vm1096, %v4462, -inf
    %4465 = vmax.xlane.f32.xlu0 %v4464
    %v4466 = vpop.xlane.xlu0 %4465
    %v4467 = vsel %vm1096, %v4463, -inf
    %4468 = vmax.xlane.f32.xlu0 %v4467
    %v4469 = vpop.xlane.xlu0 %4468
    %v4470 = vsel %vm1118, %v4466, %v4460
    %v4471 = vsel %vm1118, %v4469, %v4461
    %v4472 = vsel %vm1130, %v4440, -1e+30
    %v4473 = vsel %vm1130, %v4441, -1e+30
    %v4474 = vsel %vm1096, %v4472, -inf
    %4475 = vmax.xlane.f32.xlu0 %v4474
    %v4476 = vpop.xlane.xlu0 %4475
    %v4477 = vsel %vm1096, %v4473, -inf
    %4478 = vmax.xlane.f32.xlu0 %v4477
    %v4479 = vpop.xlane.xlu0 %4478
    %v4480 = vsel %vm1130, %v4476, %v4470
    %v4481 = vsel %vm1130, %v4479, %v4471
    %v4482 = vsub.f32 %v4440, %v4480
    %v4483 = vsub.f32 %v4441, %v4481
    %v4484 = vmul.f32 %v4482, 1.442695
    %v4485 = vpow.pop %v4484
    %v4486 = vmul.f32 %v4483, 1.442695
    %v4487 = vpow.pop %v4486
    %v4488 = vsel %vm1093, %v4485, 0.0
    %v4489 = vsel %vm1093, %v4487, 0.0
    %v4490 = vsel %vm1096, %v4488, 0.0
    %4491 = vadd.xlane.f32.xlu0 %v4490
    %v4492 = vpop.xlane.xlu0 %4491
    %v4493 = vsel %vm1096, %v4489, 0.0
    %4494 = vadd.xlane.f32.xlu0 %v4493
    %v4495 = vpop.xlane.xlu0 %4494
    %v4496 = vmax.f32 %v4492, 1e-30
    %v4497 = vmax.f32 %v4495, 1e-30
    %v4498 = vrcp.pop %v4496
    %v4499 = vrcp.pop %v4497
    %v4500 = vsel %vm1093, %v4498, 0.0
    %v4501 = vsel %vm1093, %v4499, 0.0
    %v4502 = vsel %vm1106, %v4485, 0.0
    %v4503 = vsel %vm1106, %v4487, 0.0
    %v4504 = vsel %vm1096, %v4502, 0.0
    %4505 = vadd.xlane.f32.xlu0 %v4504
    %v4506 = vpop.xlane.xlu0 %4505
    %v4507 = vsel %vm1096, %v4503, 0.0
    %4508 = vadd.xlane.f32.xlu0 %v4507
    %v4509 = vpop.xlane.xlu0 %4508
    %v4510 = vmax.f32 %v4506, 1e-30
    %v4511 = vmax.f32 %v4509, 1e-30
    %v4512 = vrcp.pop %v4510
    %v4513 = vrcp.pop %v4511
    %v4514 = vsel %vm1106, %v4512, %v4500
    %v4515 = vsel %vm1106, %v4513, %v4501
    %v4516 = vsel %vm1118, %v4485, 0.0
    %v4517 = vsel %vm1118, %v4487, 0.0
    %v4518 = vsel %vm1096, %v4516, 0.0
    %4519 = vadd.xlane.f32.xlu0 %v4518
    %v4520 = vpop.xlane.xlu0 %4519
    %v4521 = vsel %vm1096, %v4517, 0.0
    %4522 = vadd.xlane.f32.xlu0 %v4521
    %v4523 = vpop.xlane.xlu0 %4522
    %v4524 = vmax.f32 %v4520, 1e-30
    %v4525 = vmax.f32 %v4523, 1e-30
    %v4526 = vrcp.pop %v4524
    %v4527 = vrcp.pop %v4525
    %v4528 = vsel %vm1118, %v4526, %v4514
    %v4529 = vsel %vm1118, %v4527, %v4515
    %v4530 = vsel %vm1130, %v4485, 0.0
    %v4531 = vsel %vm1130, %v4487, 0.0
    %v4532 = vsel %vm1096, %v4530, 0.0
    %4533 = vadd.xlane.f32.xlu0 %v4532
    %v4534 = vpop.xlane.xlu0 %4533
    %v4535 = vsel %vm1096, %v4531, 0.0
    %4536 = vadd.xlane.f32.xlu0 %v4535
    %v4537 = vpop.xlane.xlu0 %4536
    %v4538 = vmax.f32 %v4534, 1e-30
    %v4539 = vmax.f32 %v4537, 1e-30
    %v4540 = vrcp.pop %v4538
    %v4541 = vrcp.pop %v4539
    %v4542 = vsel %vm1130, %v4540, %v4528
    %v4543 = vsel %vm1130, %v4541, %v4529
    %v4544 = vmul.f32 %v4485, %v4542
    %v4545 = vmul.f32 %v4487, %v4543
    %v4547 = vsel %vm1096, %v4544, 0
    %v4550 = vsel %vm1096, %v4545, 0
    %4552 = vmatprep.subr.mxu0 0.0
    %4553 = vmatpush1.msra.mxu0 %v4355
    %4554 = vmatprep.subr.mxu0 0.0
    %4555 = vmatpush1.msra.mxu0 %v4356
    %4556 = vmatprep.subr.mxu0 0.0
    %4557 = vmatpush1.msra.mxu0 %v4357
    %4558 = vmatprep.subr.mxu0 0.0
    %4559 = vmatpush1.msra.mxu0 %v4358
    %4560 = vmatprep.subr.mxu0 0.0
    %4561 = vmatpush1.msra.mxu0 %v4359
    %4562 = vmatprep.subr.mxu0 0.0
    %4563 = vmatpush1.msra.mxu0 %v4360
    %4564 = vmatprep.subr.mxu0 0.0
    %4565 = vmatpush1.msra.mxu0 %v4361
    %4566 = vmatprep.subr.mxu0 0.0
    %4567 = vmatpush1.msra.mxu0 %v4362
    %4568 = vmatprep.subr.mxu0 0.0
    %4569 = vmatpush1.msra.mxu0 0.0
    %4570 = vmatprep.subr.mxu0 0.0
    %4571 = vmatpush1.msra.mxu0 0.0
    %4572 = vmatprep.subr.mxu0 0.0
    %4573 = vmatpush1.msra.mxu0 0.0
    %4574 = vmatprep.subr.mxu0 0.0
    %4575 = vmatpush1.msra.mxu0 0.0
    %4576 = vmatprep.subr.mxu0 0.0
    %4577 = vmatpush1.msra.mxu0 0.0
    %4578 = vmatprep.subr.mxu0 0.0
    %4579 = vmatpush1.msra.mxu0 0.0
    %4580 = vmatprep.subr.mxu0 0.0
    %4581 = vmatpush1.msra.mxu0 0.0
    %4582 = vmatprep.subr.mxu0 0.0
    %4583 = vmatpush1.msra.mxu0 0.0
    %4584 = vmatprep.subr.mxu0 0.0
    %4585 = vmatpush1.msra.mxu0 0.0
    %4586 = vmatprep.subr.mxu0 0.0
    %4587 = vmatpush1.msra.mxu0 0.0
    %4588 = vmatprep.subr.mxu0 0.0
    %4589 = vmatpush1.msra.mxu0 0.0
    %4590 = vmatprep.subr.mxu0 0.0
    %4591 = vmatpush1.msra.mxu0 0.0
    %4592 = vmatprep.subr.mxu0 0.0
    %4593 = vmatpush1.msra.mxu0 0.0
    %4594 = vmatprep.subr.mxu0 0.0
    %4595 = vmatpush1.msra.mxu0 0.0
    %4596 = vmatprep.subr.mxu0 0.0
    %4597 = vmatpush1.msra.mxu0 0.0
    %4598 = vmatprep.subr.mxu0 0.0
    %4599 = vmatpush1.msra.mxu0 0.0
    %4600 = vmatprep.subr.mxu0 0.0
    %4601 = vmatpush1.msra.mxu0 0.0
    %4602 = vmatprep.subr.mxu0 0.0
    %4603 = vmatpush1.msra.mxu0 0.0
    %4604 = vmatprep.subr.mxu0 0.0
    %4605 = vmatpush1.msra.mxu0 0.0
    %4606 = vmatprep.subr.mxu0 0.0
    %4607 = vmatpush1.msra.mxu0 0.0
    %4608 = vmatprep.subr.mxu0 0.0
    %4609 = vmatpush1.msra.mxu0 0.0
    %4610 = vmatprep.subr.mxu0 0.0
    %4611 = vmatpush1.msra.mxu0 0.0
    %4612 = vmatprep.subr.mxu0 0.0
    %4613 = vmatpush1.msra.mxu0 0.0
    %4614 = vmatprep.subr.mxu0 0.0
    %4615 = vmatpush1.msra.mxu0 0.0
    %4616 = vmatprep.mubr.f32.mxu0 0.0
    %4617 = vmatmul.mubr.f32.gmra.mrb[0].mxu0 %v4547
    %v4618 = vpop.f32.mrb[0].mxu0
    %v4619 = vadd.f32 0.0, %v4618
    %v4620 = vpop.f32.mrb[0].mxu0
    %4621 = vmatprep.mubr.f32.mxu0 0.0
    %4622 = vmatmul.mubr.f32.gmra.mrb[0].mxu0 %v4550
    %v4623 = vpop.f32.mrb[0].mxu0
    %v4624 = vadd.f32 0.0, %v4623
    %v4625 = vpop.f32.mrb[0].mxu0
    %4626 = vdwg.mxu0
    %v4628 = vlaneseq
    %v4629 = vshrl.u32 %v4628, 7
    %v4630 = vsub.s32 0, %v4629
    %v4631 = vrot.slane %v4346, %v4630
    %4633 = vmatprep.subr.mxu0 0.0
    %4634 = vmatpush1.msra.mxu0 %v4329
    %4635 = vmatprep.subr.mxu0 0.0
    %4636 = vmatpush1.msra.mxu0 %v4330
    %4637 = vmatprep.subr.mxu0 0.0
    %4638 = vmatpush1.msra.mxu0 %v4331
    %4639 = vmatprep.subr.mxu0 0.0
    %4640 = vmatpush1.msra.mxu0 %v4332
    %4641 = vmatprep.subr.mxu0 0.0
    %4642 = vmatpush1.msra.mxu0 %v4333
    %4643 = vmatprep.subr.mxu0 0.0
    %4644 = vmatpush1.msra.mxu0 %v4334
    %4645 = vmatprep.subr.mxu0 0.0
    %4646 = vmatpush1.msra.mxu0 %v4335
    %4647 = vmatprep.subr.mxu0 0.0
    %4648 = vmatpush1.msra.mxu0 %v4336
    %4649 = vmatprep.subr.mxu0 0.0
    %4650 = vmatpush1.msra.mxu0 %v4337
    %4651 = vmatprep.subr.mxu0 0.0
    %4652 = vmatpush1.msra.mxu0 %v4338
    %4653 = vmatprep.subr.mxu0 0.0
    %4654 = vmatpush1.msra.mxu0 %v4339
    %4655 = vmatprep.subr.mxu0 0.0
    %4656 = vmatpush1.msra.mxu0 %v4340
    %4657 = vmatprep.subr.mxu0 0.0
    %4658 = vmatpush1.msra.mxu0 %v4341
    %4659 = vmatprep.subr.mxu0 0.0
    %4660 = vmatpush1.msra.mxu0 %v4342
    %4661 = vmatprep.subr.mxu0 0.0
    %4662 = vmatpush1.msra.mxu0 %v4343
    %4663 = vmatprep.subr.mxu0 0.0
    %4664 = vmatpush1.msra.mxu0 %v4344
    %4665 = vmatprep.subr.mxu0 0.0
    %4666 = vmatpush1.msra.mxu0 0.0
    %4667 = vmatprep.subr.mxu0 0.0
    %4668 = vmatpush1.msra.mxu0 0.0
    %4669 = vmatprep.subr.mxu0 0.0
    %4670 = vmatpush1.msra.mxu0 0.0
    %4671 = vmatprep.subr.mxu0 0.0
    %4672 = vmatpush1.msra.mxu0 0.0
    %4673 = vmatprep.subr.mxu0 0.0
    %4674 = vmatpush1.msra.mxu0 0.0
    %4675 = vmatprep.subr.mxu0 0.0
    %4676 = vmatpush1.msra.mxu0 0.0
    %4677 = vmatprep.subr.mxu0 0.0
    %4678 = vmatpush1.msra.mxu0 0.0
    %4679 = vmatprep.subr.mxu0 0.0
    %4680 = vmatpush1.msra.mxu0 0.0
    %4681 = vmatprep.subr.mxu0 0.0
    %4682 = vmatpush1.msra.mxu0 0.0
    %4683 = vmatprep.subr.mxu0 0.0
    %4684 = vmatpush1.msra.mxu0 0.0
    %4685 = vmatprep.subr.mxu0 0.0
    %4686 = vmatpush1.msra.mxu0 0.0
    %4687 = vmatprep.subr.mxu0 0.0
    %4688 = vmatpush1.msra.mxu0 0.0
    %4689 = vmatprep.subr.mxu0 0.0
    %4690 = vmatpush1.msra.mxu0 0.0
    %4691 = vmatprep.subr.mxu0 0.0
    %4692 = vmatpush1.msra.mxu0 0.0
    %4693 = vmatprep.subr.mxu0 0.0
    %4694 = vmatpush1.msra.mxu0 0.0
    %4695 = vmatprep.subr.mxu0 0.0
    %4696 = vmatpush1.msra.mxu0 0.0
    %4697 = vmatprep.mubr.f32.mxu0 0.0
    %4698 = vmatmul.mubr.f32.gmra.mrb[0].mxu0 %v4619
    %v4699 = vpop.f32.mrb[0].mxu0
    %v4700 = vadd.f32 %v4631, %v4699
    %v4701 = vpop.f32.mrb[0].mxu0
    %4702 = vmatprep.mubr.f32.mxu0 0.0
    %4703 = vmatmul.mubr.f32.gmra.mrb[0].mxu0 %v4624
    %v4704 = vpop.f32.mrb[0].mxu0
    %v4705 = vadd.f32 %v4631, %v4704
    %v4706 = vpop.f32.mrb[0].mxu0
    %4707 = vdwg.mxu0
    %s4708 = scalar_lea.vmem [#allocation32], 2
    %v4709 = vld [vmem:[%s4708] sm:$0x3]
    %v4710 = vadd.f32 %v4107, %v4700
    %v4711 = vadd.f32 %v4108, %v4705
    %4712 = vadd.xlane.f32.xlu0 %v4710
    %v4713 = vpop.xlane.xlu0 %4712
    %4714 = vadd.xlane.f32.xlu0 %v4711
    %v4715 = vpop.xlane.xlu0 %4714
    %v4716 = vmul.f32 %v4713, 0.041666668
    %v4717 = vmul.f32 %v4715, 0.041666668
    %v4718 = vmul.f32 %v4710, %v4710
    %v4719 = vmul.f32 %v4711, %v4711
    %4720 = vadd.xlane.f32.xlu0 %v4718
    %v4721 = vpop.xlane.xlu0 %4720
    %4722 = vadd.xlane.f32.xlu0 %v4719
    %v4723 = vpop.xlane.xlu0 %4722
    %v4724 = vmul.f32 %v4721, 0.041666668
    %v4725 = vmul.f32 %v4723, 0.041666668
    %v4726 = vmul.f32 %v4716, %v4716
    %v4727 = vmul.f32 %v4717, %v4717
    %v4728 = vsub.f32 %v4724, %v4726
    %v4729 = vsub.f32 %v4725, %v4727
    %v4730 = vmax.f32 %v4728, 0.0
    %v4731 = vmax.f32 %v4729, 0.0
    %v4732 = vsub.f32 %v4710, %v4716
    %v4733 = vsub.f32 %v4711, %v4717
    %v4734 = vadd.f32 %v4730, 1e-12
    %v4735 = vadd.f32 %v4731, 1e-12
    %v4736 = vrsqrt.pop %v4734
    %v4737 = vrsqrt.pop %v4735
    %v4738 = vmul.f32 %v4732, %v4736
    %v4739 = vmul.f32 %v4733, %v4737
    %v4740 = vlaneseq
    %v4741 = vshrl.u32 %v4740, 7
    %v4742 = vsub.s32 0, %v4741
    %v4743 = vrot.slane %v4709, %v4742
    %v4744 = vmul.f32 %v4738, %v4743
    %v4745 = vmul.f32 %v4739, %v4743
    %v4746 = vlaneseq
    %v4747 = vshrl.u32 %v4746, 7
    %v4748 = vsub.s32 1, %v4747
    %v4749 = vrot.slane %v4709, %v4748
    %v4750 = vadd.f32 %v4744, %v4749
    %v4751 = vadd.f32 %v4745, %v4749
    %s4752 = scalar_lea.vmem [#allocation34], 128
    %v4753 = vld [vmem:[%s4752] sm:$0xff]
    %v4754 = vld [vmem:[%s4752 + $0x8] sm:$0xff]
    %v4755 = vld [vmem:[%s4752 + $0x10] sm:$0xff]
    %v4756 = vld [vmem:[%s4752 + $0x18] sm:$0xff]
    %v4757 = vld [vmem:[%s4752 + $0x20] sm:$0xff]
    %v4758 = vld [vmem:[%s4752 + $0x28] sm:$0xff]
    %v4759 = vld [vmem:[%s4752 + $0x30] sm:$0xff]
    %v4760 = vld [vmem:[%s4752 + $0x38] sm:$0xff]
    %v4761 = vld [vmem:[%s4752 + $0x40] sm:$0xff]
    %v4762 = vld [vmem:[%s4752 + $0x48] sm:$0xff]
    %v4763 = vld [vmem:[%s4752 + $0x50] sm:$0xff]
    %v4764 = vld [vmem:[%s4752 + $0x58] sm:$0xff]
    %v4765 = vld [vmem:[%s4752 + $0x60] sm:$0xff]
    %v4766 = vld [vmem:[%s4752 + $0x68] sm:$0xff]
    %v4767 = vld [vmem:[%s4752 + $0x70] sm:$0xff]
    %v4768 = vld [vmem:[%s4752 + $0x78] sm:$0xff]
    %s4769 = scalar_lea.vmem [#allocation35], 1
    %v4770 = vld [vmem:[%s4769] sm:$0x1]
    %v4772 = vlaneseq
    %v4773 = vshrl.u32 %v4772, 7
    %v4774 = vsub.s32 0, %v4773
    %v4775 = vrot.slane %v4770, %v4774
    %4777 = vmatprep.subr.mxu0 0.0
    %4778 = vmatpush1.msra.mxu0 %v4753
    %4779 = vmatprep.subr.mxu0 0.0
    %4780 = vmatpush1.msra.mxu0 %v4754
    %4781 = vmatprep.subr.mxu0 0.0
    %4782 = vmatpush1.msra.mxu0 %v4755
    %4783 = vmatprep.subr.mxu0 0.0
    %4784 = vmatpush1.msra.mxu0 %v4756
    %4785 = vmatprep.subr.mxu0 0.0
    %4786 = vmatpush1.msra.mxu0 %v4757
    %4787 = vmatprep.subr.mxu0 0.0
    %4788 = vmatpush1.msra.mxu0 %v4758
    %4789 = vmatprep.subr.mxu0 0.0
    %4790 = vmatpush1.msra.mxu0 %v4759
    %4791 = vmatprep.subr.mxu0 0.0
    %4792 = vmatpush1.msra.mxu0 %v4760
    %4793 = vmatprep.subr.mxu0 0.0
    %4794 = vmatpush1.msra.mxu0 %v4761
    %4795 = vmatprep.subr.mxu0 0.0
    %4796 = vmatpush1.msra.mxu0 %v4762
    %4797 = vmatprep.subr.mxu0 0.0
    %4798 = vmatpush1.msra.mxu0 %v4763
    %4799 = vmatprep.subr.mxu0 0.0
    %4800 = vmatpush1.msra.mxu0 %v4764
    %4801 = vmatprep.subr.mxu0 0.0
    %4802 = vmatpush1.msra.mxu0 %v4765
    %4803 = vmatprep.subr.mxu0 0.0
    %4804 = vmatpush1.msra.mxu0 %v4766
    %4805 = vmatprep.subr.mxu0 0.0
    %4806 = vmatpush1.msra.mxu0 %v4767
    %4807 = vmatprep.subr.mxu0 0.0
    %4808 = vmatpush1.msra.mxu0 %v4768
    %4809 = vmatprep.subr.mxu0 0.0
    %4810 = vmatpush1.msra.mxu0 0.0
    %4811 = vmatprep.subr.mxu0 0.0
    %4812 = vmatpush1.msra.mxu0 0.0
    %4813 = vmatprep.subr.mxu0 0.0
    %4814 = vmatpush1.msra.mxu0 0.0
    %4815 = vmatprep.subr.mxu0 0.0
    %4816 = vmatpush1.msra.mxu0 0.0
    %4817 = vmatprep.subr.mxu0 0.0
    %4818 = vmatpush1.msra.mxu0 0.0
    %4819 = vmatprep.subr.mxu0 0.0
    %4820 = vmatpush1.msra.mxu0 0.0
    %4821 = vmatprep.subr.mxu0 0.0
    %4822 = vmatpush1.msra.mxu0 0.0
    %4823 = vmatprep.subr.mxu0 0.0
    %4824 = vmatpush1.msra.mxu0 0.0
    %4825 = vmatprep.subr.mxu0 0.0
    %4826 = vmatpush1.msra.mxu0 0.0
    %4827 = vmatprep.subr.mxu0 0.0
    %4828 = vmatpush1.msra.mxu0 0.0
    %4829 = vmatprep.subr.mxu0 0.0
    %4830 = vmatpush1.msra.mxu0 0.0
    %4831 = vmatprep.subr.mxu0 0.0
    %4832 = vmatpush1.msra.mxu0 0.0
    %4833 = vmatprep.subr.mxu0 0.0
    %4834 = vmatpush1.msra.mxu0 0.0
    %4835 = vmatprep.subr.mxu0 0.0
    %4836 = vmatpush1.msra.mxu0 0.0
    %4837 = vmatprep.subr.mxu0 0.0
    %4838 = vmatpush1.msra.mxu0 0.0
    %4839 = vmatprep.subr.mxu0 0.0
    %4840 = vmatpush1.msra.mxu0 0.0
    %4841 = vmatprep.mubr.f32.mxu0 0.0
    %4842 = vmatmul.mubr.f32.gmra.mrb[0].mxu0 %v4750
    %v4843 = vpop.f32.mrb[0].mxu0
    %v4844 = vadd.f32 %v4775, %v4843
    %v4845 = vpop.f32.mrb[0].mxu0
    %4846 = vmatprep.mubr.f32.mxu0 0.0
    %4847 = vmatmul.mubr.f32.gmra.mrb[0].mxu0 %v4751
    %v4848 = vpop.f32.mrb[0].mxu0
    %v4849 = vadd.f32 %v4775, %v4848
    %v4850 = vpop.f32.mrb[0].mxu0
    %4851 = vdwg.mxu0
    %s4852 = scalar_lea.vmem [#allocation37], 256
    %v4853 = vld [vmem:[%s4852] sm:$0xff]
    %v4854 = vld [vmem:[%s4852 + $0x8] sm:$0xff]
    %v4855 = vld [vmem:[%s4852 + $0x10] sm:$0xff]
    %v4856 = vld [vmem:[%s4852 + $0x18] sm:$0xff]
    %v4857 = vld [vmem:[%s4852 + $0x20] sm:$0xff]
    %v4858 = vld [vmem:[%s4852 + $0x28] sm:$0xff]
    %v4859 = vld [vmem:[%s4852 + $0x30] sm:$0xff]
    %v4860 = vld [vmem:[%s4852 + $0x38] sm:$0xff]
    %v4861 = vld [vmem:[%s4852 + $0x40] sm:$0xff]
    %v4862 = vld [vmem:[%s4852 + $0x48] sm:$0xff]
    %v4863 = vld [vmem:[%s4852 + $0x50] sm:$0xff]
    %v4864 = vld [vmem:[%s4852 + $0x58] sm:$0xff]
    %v4865 = vld [vmem:[%s4852 + $0x60] sm:$0xff]
    %v4866 = vld [vmem:[%s4852 + $0x68] sm:$0xff]
    %v4867 = vld [vmem:[%s4852 + $0x70] sm:$0xff]
    %v4868 = vld [vmem:[%s4852 + $0x78] sm:$0xff]
    %v4869 = vld [vmem:[%s4852 + $0x80] sm:$0xff]
    %v4870 = vld [vmem:[%s4852 + $0x88] sm:$0xff]
    %v4871 = vld [vmem:[%s4852 + $0x90] sm:$0xff]
    %v4872 = vld [vmem:[%s4852 + $0x98] sm:$0xff]
    %v4873 = vld [vmem:[%s4852 + $0xa0] sm:$0xff]
    %v4874 = vld [vmem:[%s4852 + $0xa8] sm:$0xff]
    %v4875 = vld [vmem:[%s4852 + $0xb0] sm:$0xff]
    %v4876 = vld [vmem:[%s4852 + $0xb8] sm:$0xff]
    %v4877 = vld [vmem:[%s4852 + $0xc0] sm:$0xff]
    %v4878 = vld [vmem:[%s4852 + $0xc8] sm:$0xff]
    %v4879 = vld [vmem:[%s4852 + $0xd0] sm:$0xff]
    %v4880 = vld [vmem:[%s4852 + $0xd8] sm:$0xff]
    %v4881 = vld [vmem:[%s4852 + $0xe0] sm:$0xff]
    %v4882 = vld [vmem:[%s4852 + $0xe8] sm:$0xff]
    %v4883 = vld [vmem:[%s4852 + $0xf0] sm:$0xff]
    %v4884 = vld [vmem:[%s4852 + $0xf8] sm:$0xff]
    %s4885 = scalar_lea.vmem [#allocation38], 2
    %v4886 = vld [vmem:[%s4885] sm:$0x3]
    %v4888 = vlaneseq
    %v4889 = vshrl.u32 %v4888, 7
    %v4890 = vsub.s32 0, %v4889
    %v4891 = vrot.slane %v4886, %v4890
    %v4892 = vlaneseq
    %v4893 = vshrl.u32 %v4892, 7
    %v4894 = vsub.s32 1, %v4893
    %v4895 = vrot.slane %v4886, %v4894
    %4898 = vmatprep.subr.mxu0 %v4854
    %4899 = vmatpush1.msra.mxu0 %v4853
    %4900 = vmatprep.subr.mxu0 %v4856
    %4901 = vmatpush1.msra.mxu0 %v4855
    %4902 = vmatprep.subr.mxu0 %v4858
    %4903 = vmatpush1.msra.mxu0 %v4857
    %4904 = vmatprep.subr.mxu0 %v4860
    %4905 = vmatpush1.msra.mxu0 %v4859
    %4906 = vmatprep.subr.mxu0 %v4862
    %4907 = vmatpush1.msra.mxu0 %v4861
    %4908 = vmatprep.subr.mxu0 %v4864
    %4909 = vmatpush1.msra.mxu0 %v4863
    %4910 = vmatprep.subr.mxu0 %v4866
    %4911 = vmatpush1.msra.mxu0 %v4865
    %4912 = vmatprep.subr.mxu0 %v4868
    %4913 = vmatpush1.msra.mxu0 %v4867
    %4914 = vmatprep.subr.mxu0 %v4870
    %4915 = vmatpush1.msra.mxu0 %v4869
    %4916 = vmatprep.subr.mxu0 %v4872
    %4917 = vmatpush1.msra.mxu0 %v4871
    %4918 = vmatprep.subr.mxu0 %v4874
    %4919 = vmatpush1.msra.mxu0 %v4873
    %4920 = vmatprep.subr.mxu0 %v4876
    %4921 = vmatpush1.msra.mxu0 %v4875
    %4922 = vmatprep.subr.mxu0 %v4878
    %4923 = vmatpush1.msra.mxu0 %v4877
    %4924 = vmatprep.subr.mxu0 %v4880
    %4925 = vmatpush1.msra.mxu0 %v4879
    %4926 = vmatprep.subr.mxu0 %v4882
    %4927 = vmatpush1.msra.mxu0 %v4881
    %4928 = vmatprep.subr.mxu0 %v4884
    %4929 = vmatpush1.msra.mxu0 %v4883
    %4930 = vmatprep.subr.mxu0 0.0
    %4931 = vmatpush1.msra.mxu0 0.0
    %4932 = vmatprep.subr.mxu0 0.0
    %4933 = vmatpush1.msra.mxu0 0.0
    %4934 = vmatprep.subr.mxu0 0.0
    %4935 = vmatpush1.msra.mxu0 0.0
    %4936 = vmatprep.subr.mxu0 0.0
    %4937 = vmatpush1.msra.mxu0 0.0
    %4938 = vmatprep.subr.mxu0 0.0
    %4939 = vmatpush1.msra.mxu0 0.0
    %4940 = vmatprep.subr.mxu0 0.0
    %4941 = vmatpush1.msra.mxu0 0.0
    %4942 = vmatprep.subr.mxu0 0.0
    %4943 = vmatpush1.msra.mxu0 0.0
    %4944 = vmatprep.subr.mxu0 0.0
    %4945 = vmatpush1.msra.mxu0 0.0
    %4946 = vmatprep.subr.mxu0 0.0
    %4947 = vmatpush1.msra.mxu0 0.0
    %4948 = vmatprep.subr.mxu0 0.0
    %4949 = vmatpush1.msra.mxu0 0.0
    %4950 = vmatprep.subr.mxu0 0.0
    %4951 = vmatpush1.msra.mxu0 0.0
    %4952 = vmatprep.subr.mxu0 0.0
    %4953 = vmatpush1.msra.mxu0 0.0
    %4954 = vmatprep.subr.mxu0 0.0
    %4955 = vmatpush1.msra.mxu0 0.0
    %4956 = vmatprep.subr.mxu0 0.0
    %4957 = vmatpush1.msra.mxu0 0.0
    %4958 = vmatprep.subr.mxu0 0.0
    %4959 = vmatpush1.msra.mxu0 0.0
    %4960 = vmatprep.subr.mxu0 0.0
    %4961 = vmatpush1.msra.mxu0 0.0
    %4962 = vmatprep.mubr.f32.mxu0 0.0
    %4963 = vmatmul.mubr.f32.gmra.mrb[0].mxu0 %v2570
    %v4964 = vpop.f32.mrb[0].mxu0
    %v4965 = vadd.f32 %v4891, %v4964
    %v4966 = vpop.f32.mrb[0].mxu0
    %v4967 = vadd.f32 %v4895, %v4966
    %4968 = vmatprep.mubr.f32.mxu0 0.0
    %4969 = vmatmul.mubr.f32.gmra.mrb[0].mxu0 %v2571
    %v4970 = vpop.f32.mrb[0].mxu0
    %v4971 = vadd.f32 %v4891, %v4970
    %v4972 = vpop.f32.mrb[0].mxu0
    %v4973 = vadd.f32 %v4895, %v4972
    %4974 = vdwg.mxu0
    %s4975 = scalar_lea.vmem [#allocation40], 128
    %v4976 = vld [vmem:[%s4975] sm:$0xff]
    %v4977 = vld [vmem:[%s4975 + $0x8] sm:$0xff]
    %v4978 = vld [vmem:[%s4975 + $0x10] sm:$0xff]
    %v4979 = vld [vmem:[%s4975 + $0x18] sm:$0xff]
    %v4980 = vld [vmem:[%s4975 + $0x20] sm:$0xff]
    %v4981 = vld [vmem:[%s4975 + $0x28] sm:$0xff]
    %v4982 = vld [vmem:[%s4975 + $0x30] sm:$0xff]
    %v4983 = vld [vmem:[%s4975 + $0x38] sm:$0xff]
    %v4984 = vld [vmem:[%s4975 + $0x40] sm:$0xff]
    %v4985 = vld [vmem:[%s4975 + $0x48] sm:$0xff]
    %v4986 = vld [vmem:[%s4975 + $0x50] sm:$0xff]
    %v4987 = vld [vmem:[%s4975 + $0x58] sm:$0xff]
    %v4988 = vld [vmem:[%s4975 + $0x60] sm:$0xff]
    %v4989 = vld [vmem:[%s4975 + $0x68] sm:$0xff]
    %v4990 = vld [vmem:[%s4975 + $0x70] sm:$0xff]
    %v4991 = vld [vmem:[%s4975 + $0x78] sm:$0xff]
    %s4992 = scalar_lea.vmem [#allocation41], 1
    %v4993 = vld [vmem:[%s4992] sm:$0x1]
    %v4994 = vmul.f32 %v4965, %v980
    %v4995 = vmul.f32 %v4971, %v980
    %v4996 = vmul.f32 %v4965, %v984
    %v4997 = vmul.f32 %v4971, %v984
    %v4998 = vmul.f32 %v4965, %v988
    %v4999 = vmul.f32 %v4971, %v988
    %v5000 = vmul.f32 %v4965, %v992
    %v5001 = vmul.f32 %v4971, %v992
    %v5002 = vmul.f32 %v4967, %v980
    %v5003 = vmul.f32 %v4973, %v980
    %v5004 = vmul.f32 %v4967, %v984
    %v5005 = vmul.f32 %v4973, %v984
    %v5006 = vmul.f32 %v4967, %v988
    %v5007 = vmul.f32 %v4973, %v988
    %v5008 = vmul.f32 %v4967, %v992
    %v5009 = vmul.f32 %v4973, %v992
    %5010 = vmatprep.subr.mxu0 0.0
    %5011 = vmatpush1.xpose.msra.mxu0 %v4994
    %5012 = vmatprep.subr.mxu0 0.0
    %5013 = vmatpush1.xpose.msra.mxu0 %v4995
    %5014 = vmatprep.subr.mxu0 0.0
    %5015 = vmatpush1.xpose.msra.mxu0 %v4996
    %5016 = vmatprep.subr.mxu0 0.0
    %5017 = vmatpush1.xpose.msra.mxu0 %v4997
    %5018 = vmatprep.subr.mxu0 0.0
    %5019 = vmatpush1.xpose.msra.mxu0 %v4998
    %5020 = vmatprep.subr.mxu0 0.0
    %5021 = vmatpush1.xpose.msra.mxu0 %v4999
    %5022 = vmatprep.subr.mxu0 0.0
    %5023 = vmatpush1.xpose.msra.mxu0 %v5000
    %5024 = vmatprep.subr.mxu0 0.0
    %5025 = vmatpush1.xpose.msra.mxu0 %v5001
    %5026 = vmatprep.subr.mxu0 0.0
    %5027 = vmatpush1.xpose.msra.mxu0 0.0
    %5028 = vmatprep.subr.mxu0 0.0
    %5029 = vmatpush1.xpose.msra.mxu0 0.0
    %5030 = vmatprep.subr.mxu0 0.0
    %5031 = vmatpush1.xpose.msra.mxu0 0.0
    %5032 = vmatprep.subr.mxu0 0.0
    %5033 = vmatpush1.xpose.msra.mxu0 0.0
    %5034 = vmatprep.subr.mxu0 0.0
    %5035 = vmatpush1.xpose.msra.mxu0 0.0
    %5036 = vmatprep.subr.mxu0 0.0
    %5037 = vmatpush1.xpose.msra.mxu0 0.0
    %5038 = vmatprep.subr.mxu0 0.0
    %5039 = vmatpush1.xpose.msra.mxu0 0.0
    %5040 = vmatprep.subr.mxu0 0.0
    %5041 = vmatpush1.xpose.msra.mxu0 0.0
    %5042 = vmatprep.subr.mxu0 0.0
    %5043 = vmatpush1.xpose.msra.mxu0 0.0
    %5044 = vmatprep.subr.mxu0 0.0
    %5045 = vmatpush1.xpose.msra.mxu0 0.0
    %5046 = vmatprep.subr.mxu0 0.0
    %5047 = vmatpush1.xpose.msra.mxu0 0.0
    %5048 = vmatprep.subr.mxu0 0.0
    %5049 = vmatpush1.xpose.msra.mxu0 0.0
    %5050 = vmatprep.subr.mxu0 0.0
    %5051 = vmatpush1.xpose.msra.mxu0 0.0
    %5052 = vmatprep.subr.mxu0 0.0
    %5053 = vmatpush1.xpose.msra.mxu0 0.0
    %5054 = vmatprep.subr.mxu0 0.0
    %5055 = vmatpush1.xpose.msra.mxu0 0.0
    %5056 = vmatprep.subr.mxu0 0.0
    %5057 = vmatpush1.xpose.msra.mxu0 0.0
    %5058 = vmatprep.subr.mxu0 0.0
    %5059 = vmatpush1.xpose.msra.mxu0 0.0
    %5060 = vmatprep.subr.mxu0 0.0
    %5061 = vmatpush1.xpose.msra.mxu0 0.0
    %5062 = vmatprep.subr.mxu0 0.0
    %5063 = vmatpush1.xpose.msra.mxu0 0.0
    %5064 = vmatprep.subr.mxu0 0.0
    %5065 = vmatpush1.xpose.msra.mxu0 0.0
    %5066 = vmatprep.subr.mxu0 0.0
    %5067 = vmatpush1.xpose.msra.mxu0 0.0
    %5068 = vmatprep.subr.mxu0 0.0
    %5069 = vmatpush1.xpose.msra.mxu0 0.0
    %5070 = vmatprep.subr.mxu0 0.0
    %5071 = vmatpush1.xpose.msra.mxu0 0.0
    %5072 = vmatprep.subr.mxu0 0.0
    %5073 = vmatpush1.xpose.msra.mxu0 0.0
    %5074 = vmatprep.mubr.f32.mxu0 0.0
    %5075 = vmatmul.mubr.f32.gmra.mrb[0].mxu0 %v4844
    %v5076 = vpop.f32.mrb[0].mxu0
    %v5077 = vadd.f32 0.0, %v5076
    %v5078 = vpop.f32.mrb[0].mxu0
    %5079 = vmatprep.mubr.f32.mxu0 0.0
    %5080 = vmatmul.mubr.f32.gmra.mrb[0].mxu0 %v4849
    %v5081 = vpop.f32.mrb[0].mxu0
    %v5082 = vadd.f32 0.0, %v5081
    %v5083 = vpop.f32.mrb[0].mxu0
    %5084 = vdwg.mxu0
    %v5085 = vmul.f32 %v5077, 0.4082483
    %v5086 = vmul.f32 %v5082, 0.4082483
    %v5087 = vadd.f32 %v5085, %v714
    %v5088 = vadd.f32 %v5086, %v715
    %v5089 = vsel %vm1093, %v5087, -1e+30
    %v5090 = vsel %vm1093, %v5088, -1e+30
    %v5091 = vsel %vm1096, %v5089, -inf
    %5092 = vmax.xlane.f32.xlu0 %v5091
    %v5093 = vpop.xlane.xlu0 %5092
    %v5094 = vsel %vm1096, %v5090, -inf
    %5095 = vmax.xlane.f32.xlu0 %v5094
    %v5096 = vpop.xlane.xlu0 %5095
    %v5097 = vsel %vm1093, %v5093, 0.0
    %v5098 = vsel %vm1093, %v5096, 0.0
    %v5099 = vsel %vm1106, %v5087, -1e+30
    %v5100 = vsel %vm1106, %v5088, -1e+30
    %v5101 = vsel %vm1096, %v5099, -inf
    %5102 = vmax.xlane.f32.xlu0 %v5101
    %v5103 = vpop.xlane.xlu0 %5102
    %v5104 = vsel %vm1096, %v5100, -inf
    %5105 = vmax.xlane.f32.xlu0 %v5104
    %v5106 = vpop.xlane.xlu0 %5105
    %v5107 = vsel %vm1106, %v5103, %v5097
    %v5108 = vsel %vm1106, %v5106, %v5098
    %v5109 = vsel %vm1118, %v5087, -1e+30
    %v5110 = vsel %vm1118, %v5088, -1e+30
    %v5111 = vsel %vm1096, %v5109, -inf
    %5112 = vmax.xlane.f32.xlu0 %v5111
    %v5113 = vpop.xlane.xlu0 %5112
    %v5114 = vsel %vm1096, %v5110, -inf
    %5115 = vmax.xlane.f32.xlu0 %v5114
    %v5116 = vpop.xlane.xlu0 %5115
    %v5117 = vsel %vm1118, %v5113, %v5107
    %v5118 = vsel %vm1118, %v5116, %v5108
    %v5119 = vsel %vm1130, %v5087, -1e+30
    %v5120 = vsel %vm1130, %v5088, -1e+30
    %v5121 = vsel %vm1096, %v5119, -inf
    %5122 = vmax.xlane.f32.xlu0 %v5121
    %v5123 = vpop.xlane.xlu0 %5122
    %v5124 = vsel %vm1096, %v5120, -inf
    %5125 = vmax.xlane.f32.xlu0 %v5124
    %v5126 = vpop.xlane.xlu0 %5125
    %v5127 = vsel %vm1130, %v5123, %v5117
    %v5128 = vsel %vm1130, %v5126, %v5118
    %v5129 = vsub.f32 %v5087, %v5127
    %v5130 = vsub.f32 %v5088, %v5128
    %v5131 = vmul.f32 %v5129, 1.442695
    %v5132 = vpow.pop %v5131
    %v5133 = vmul.f32 %v5130, 1.442695
    %v5134 = vpow.pop %v5133
    %v5135 = vsel %vm1093, %v5132, 0.0
    %v5136 = vsel %vm1093, %v5134, 0.0
    %v5137 = vsel %vm1096, %v5135, 0.0
    %5138 = vadd.xlane.f32.xlu0 %v5137
    %v5139 = vpop.xlane.xlu0 %5138
    %v5140 = vsel %vm1096, %v5136, 0.0
    %5141 = vadd.xlane.f32.xlu0 %v5140
    %v5142 = vpop.xlane.xlu0 %5141
    %v5143 = vmax.f32 %v5139, 1e-30
    %v5144 = vmax.f32 %v5142, 1e-30
    %v5145 = vrcp.pop %v5143
    %v5146 = vrcp.pop %v5144
    %v5147 = vsel %vm1093, %v5145, 0.0
    %v5148 = vsel %vm1093, %v5146, 0.0
    %v5149 = vsel %vm1106, %v5132, 0.0
    %v5150 = vsel %vm1106, %v5134, 0.0
    %v5151 = vsel %vm1096, %v5149, 0.0
    %5152 = vadd.xlane.f32.xlu0 %v5151
    %v5153 = vpop.xlane.xlu0 %5152
    %v5154 = vsel %vm1096, %v5150, 0.0
    %5155 = vadd.xlane.f32.xlu0 %v5154
    %v5156 = vpop.xlane.xlu0 %5155
    %v5157 = vmax.f32 %v5153, 1e-30
    %v5158 = vmax.f32 %v5156, 1e-30
    %v5159 = vrcp.pop %v5157
    %v5160 = vrcp.pop %v5158
    %v5161 = vsel %vm1106, %v5159, %v5147
    %v5162 = vsel %vm1106, %v5160, %v5148
    %v5163 = vsel %vm1118, %v5132, 0.0
    %v5164 = vsel %vm1118, %v5134, 0.0
    %v5165 = vsel %vm1096, %v5163, 0.0
    %5166 = vadd.xlane.f32.xlu0 %v5165
    %v5167 = vpop.xlane.xlu0 %5166
    %v5168 = vsel %vm1096, %v5164, 0.0
    %5169 = vadd.xlane.f32.xlu0 %v5168
    %v5170 = vpop.xlane.xlu0 %5169
    %v5171 = vmax.f32 %v5167, 1e-30
    %v5172 = vmax.f32 %v5170, 1e-30
    %v5173 = vrcp.pop %v5171
    %v5174 = vrcp.pop %v5172
    %v5175 = vsel %vm1118, %v5173, %v5161
    %v5176 = vsel %vm1118, %v5174, %v5162
    %v5177 = vsel %vm1130, %v5132, 0.0
    %v5178 = vsel %vm1130, %v5134, 0.0
    %v5179 = vsel %vm1096, %v5177, 0.0
    %5180 = vadd.xlane.f32.xlu0 %v5179
    %v5181 = vpop.xlane.xlu0 %5180
    %v5182 = vsel %vm1096, %v5178, 0.0
    %5183 = vadd.xlane.f32.xlu0 %v5182
    %v5184 = vpop.xlane.xlu0 %5183
    %v5185 = vmax.f32 %v5181, 1e-30
    %v5186 = vmax.f32 %v5184, 1e-30
    %v5187 = vrcp.pop %v5185
    %v5188 = vrcp.pop %v5186
    %v5189 = vsel %vm1130, %v5187, %v5175
    %v5190 = vsel %vm1130, %v5188, %v5176
    %v5191 = vmul.f32 %v5132, %v5189
    %v5192 = vmul.f32 %v5134, %v5190
    %v5194 = vsel %vm1096, %v5191, 0
    %v5197 = vsel %vm1096, %v5192, 0
    %5199 = vmatprep.subr.mxu0 0.0
    %5200 = vmatpush1.msra.mxu0 %v5002
    %5201 = vmatprep.subr.mxu0 0.0
    %5202 = vmatpush1.msra.mxu0 %v5003
    %5203 = vmatprep.subr.mxu0 0.0
    %5204 = vmatpush1.msra.mxu0 %v5004
    %5205 = vmatprep.subr.mxu0 0.0
    %5206 = vmatpush1.msra.mxu0 %v5005
    %5207 = vmatprep.subr.mxu0 0.0
    %5208 = vmatpush1.msra.mxu0 %v5006
    %5209 = vmatprep.subr.mxu0 0.0
    %5210 = vmatpush1.msra.mxu0 %v5007
    %5211 = vmatprep.subr.mxu0 0.0
    %5212 = vmatpush1.msra.mxu0 %v5008
    %5213 = vmatprep.subr.mxu0 0.0
    %5214 = vmatpush1.msra.mxu0 %v5009
    %5215 = vmatprep.subr.mxu0 0.0
    %5216 = vmatpush1.msra.mxu0 0.0
    %5217 = vmatprep.subr.mxu0 0.0
    %5218 = vmatpush1.msra.mxu0 0.0
    %5219 = vmatprep.subr.mxu0 0.0
    %5220 = vmatpush1.msra.mxu0 0.0
    %5221 = vmatprep.subr.mxu0 0.0
    %5222 = vmatpush1.msra.mxu0 0.0
    %5223 = vmatprep.subr.mxu0 0.0
    %5224 = vmatpush1.msra.mxu0 0.0
    %5225 = vmatprep.subr.mxu0 0.0
    %5226 = vmatpush1.msra.mxu0 0.0
    %5227 = vmatprep.subr.mxu0 0.0
    %5228 = vmatpush1.msra.mxu0 0.0
    %5229 = vmatprep.subr.mxu0 0.0
    %5230 = vmatpush1.msra.mxu0 0.0
    %5231 = vmatprep.subr.mxu0 0.0
    %5232 = vmatpush1.msra.mxu0 0.0
    %5233 = vmatprep.subr.mxu0 0.0
    %5234 = vmatpush1.msra.mxu0 0.0
    %5235 = vmatprep.subr.mxu0 0.0
    %5236 = vmatpush1.msra.mxu0 0.0
    %5237 = vmatprep.subr.mxu0 0.0
    %5238 = vmatpush1.msra.mxu0 0.0
    %5239 = vmatprep.subr.mxu0 0.0
    %5240 = vmatpush1.msra.mxu0 0.0
    %5241 = vmatprep.subr.mxu0 0.0
    %5242 = vmatpush1.msra.mxu0 0.0
    %5243 = vmatprep.subr.mxu0 0.0
    %5244 = vmatpush1.msra.mxu0 0.0
    %5245 = vmatprep.subr.mxu0 0.0
    %5246 = vmatpush1.msra.mxu0 0.0
    %5247 = vmatprep.subr.mxu0 0.0
    %5248 = vmatpush1.msra.mxu0 0.0
    %5249 = vmatprep.subr.mxu0 0.0
    %5250 = vmatpush1.msra.mxu0 0.0
    %5251 = vmatprep.subr.mxu0 0.0
    %5252 = vmatpush1.msra.mxu0 0.0
    %5253 = vmatprep.subr.mxu0 0.0
    %5254 = vmatpush1.msra.mxu0 0.0
    %5255 = vmatprep.subr.mxu0 0.0
    %5256 = vmatpush1.msra.mxu0 0.0
    %5257 = vmatprep.subr.mxu0 0.0
    %5258 = vmatpush1.msra.mxu0 0.0
    %5259 = vmatprep.subr.mxu0 0.0
    %5260 = vmatpush1.msra.mxu0 0.0
    %5261 = vmatprep.subr.mxu0 0.0
    %5262 = vmatpush1.msra.mxu0 0.0
    %5263 = vmatprep.mubr.f32.mxu0 0.0
    %5264 = vmatmul.mubr.f32.gmra.mrb[0].mxu0 %v5194
    %v5265 = vpop.f32.mrb[0].mxu0
    %v5266 = vadd.f32 0.0, %v5265
    %v5267 = vpop.f32.mrb[0].mxu0
    %5268 = vmatprep.mubr.f32.mxu0 0.0
    %5269 = vmatmul.mubr.f32.gmra.mrb[0].mxu0 %v5197
    %v5270 = vpop.f32.mrb[0].mxu0
    %v5271 = vadd.f32 0.0, %v5270
    %v5272 = vpop.f32.mrb[0].mxu0
    %5273 = vdwg.mxu0
    %v5275 = vlaneseq
    %v5276 = vshrl.u32 %v5275, 7
    %v5277 = vsub.s32 0, %v5276
    %v5278 = vrot.slane %v4993, %v5277
    %5280 = vmatprep.subr.mxu0 0.0
    %5281 = vmatpush1.msra.mxu0 %v4976
    %5282 = vmatprep.subr.mxu0 0.0
    %5283 = vmatpush1.msra.mxu0 %v4977
    %5284 = vmatprep.subr.mxu0 0.0
    %5285 = vmatpush1.msra.mxu0 %v4978
    %5286 = vmatprep.subr.mxu0 0.0
    %5287 = vmatpush1.msra.mxu0 %v4979
    %5288 = vmatprep.subr.mxu0 0.0
    %5289 = vmatpush1.msra.mxu0 %v4980
    %5290 = vmatprep.subr.mxu0 0.0
    %5291 = vmatpush1.msra.mxu0 %v4981
    %5292 = vmatprep.subr.mxu0 0.0
    %5293 = vmatpush1.msra.mxu0 %v4982
    %5294 = vmatprep.subr.mxu0 0.0
    %5295 = vmatpush1.msra.mxu0 %v4983
    %5296 = vmatprep.subr.mxu0 0.0
    %5297 = vmatpush1.msra.mxu0 %v4984
    %5298 = vmatprep.subr.mxu0 0.0
    %5299 = vmatpush1.msra.mxu0 %v4985
    %5300 = vmatprep.subr.mxu0 0.0
    %5301 = vmatpush1.msra.mxu0 %v4986
    %5302 = vmatprep.subr.mxu0 0.0
    %5303 = vmatpush1.msra.mxu0 %v4987
    %5304 = vmatprep.subr.mxu0 0.0
    %5305 = vmatpush1.msra.mxu0 %v4988
    %5306 = vmatprep.subr.mxu0 0.0
    %5307 = vmatpush1.msra.mxu0 %v4989
    %5308 = vmatprep.subr.mxu0 0.0
    %5309 = vmatpush1.msra.mxu0 %v4990
    %5310 = vmatprep.subr.mxu0 0.0
    %5311 = vmatpush1.msra.mxu0 %v4991
    %5312 = vmatprep.subr.mxu0 0.0
    %5313 = vmatpush1.msra.mxu0 0.0
    %5314 = vmatprep.subr.mxu0 0.0
    %5315 = vmatpush1.msra.mxu0 0.0
    %5316 = vmatprep.subr.mxu0 0.0
    %5317 = vmatpush1.msra.mxu0 0.0
    %5318 = vmatprep.subr.mxu0 0.0
    %5319 = vmatpush1.msra.mxu0 0.0
    %5320 = vmatprep.subr.mxu0 0.0
    %5321 = vmatpush1.msra.mxu0 0.0
    %5322 = vmatprep.subr.mxu0 0.0
    %5323 = vmatpush1.msra.mxu0 0.0
    %5324 = vmatprep.subr.mxu0 0.0
    %5325 = vmatpush1.msra.mxu0 0.0
    %5326 = vmatprep.subr.mxu0 0.0
    %5327 = vmatpush1.msra.mxu0 0.0
    %5328 = vmatprep.subr.mxu0 0.0
    %5329 = vmatpush1.msra.mxu0 0.0
    %5330 = vmatprep.subr.mxu0 0.0
    %5331 = vmatpush1.msra.mxu0 0.0
    %5332 = vmatprep.subr.mxu0 0.0
    %5333 = vmatpush1.msra.mxu0 0.0
    %5334 = vmatprep.subr.mxu0 0.0
    %5335 = vmatpush1.msra.mxu0 0.0
    %5336 = vmatprep.subr.mxu0 0.0
    %5337 = vmatpush1.msra.mxu0 0.0
    %5338 = vmatprep.subr.mxu0 0.0
    %5339 = vmatpush1.msra.mxu0 0.0
    %5340 = vmatprep.subr.mxu0 0.0
    %5341 = vmatpush1.msra.mxu0 0.0
    %5342 = vmatprep.subr.mxu0 0.0
    %5343 = vmatpush1.msra.mxu0 0.0
    %5344 = vmatprep.mubr.f32.mxu0 0.0
    %5345 = vmatmul.mubr.f32.gmra.mrb[0].mxu0 %v5266
    %v5346 = vpop.f32.mrb[0].mxu0
    %v5347 = vadd.f32 %v5278, %v5346
    %v5348 = vpop.f32.mrb[0].mxu0
    %5349 = vmatprep.mubr.f32.mxu0 0.0
    %5350 = vmatmul.mubr.f32.gmra.mrb[0].mxu0 %v5271
    %v5351 = vpop.f32.mrb[0].mxu0
    %v5352 = vadd.f32 %v5278, %v5351
    %v5353 = vpop.f32.mrb[0].mxu0
    %5354 = vdwg.mxu0
    %s5355 = scalar_lea.vmem [#allocation43], 2
    %v5356 = vld [vmem:[%s5355] sm:$0x3]
    %v5357 = vadd.f32 %v4750, %v5347
    %v5358 = vadd.f32 %v4751, %v5352
    %5359 = vadd.xlane.f32.xlu0 %v5357
    %v5360 = vpop.xlane.xlu0 %5359
    %5361 = vadd.xlane.f32.xlu0 %v5358
    %v5362 = vpop.xlane.xlu0 %5361
    %v5363 = vmul.f32 %v5360, 0.041666668
    %v5364 = vmul.f32 %v5362, 0.041666668
    %v5365 = vmul.f32 %v5357, %v5357
    %v5366 = vmul.f32 %v5358, %v5358
    %5367 = vadd.xlane.f32.xlu0 %v5365
    %v5368 = vpop.xlane.xlu0 %5367
    %5369 = vadd.xlane.f32.xlu0 %v5366
    %v5370 = vpop.xlane.xlu0 %5369
    %v5371 = vmul.f32 %v5368, 0.041666668
    %v5372 = vmul.f32 %v5370, 0.041666668
    %v5373 = vmul.f32 %v5363, %v5363
    %v5374 = vmul.f32 %v5364, %v5364
    %v5375 = vsub.f32 %v5371, %v5373
    %v5376 = vsub.f32 %v5372, %v5374
    %v5377 = vmax.f32 %v5375, 0.0
    %v5378 = vmax.f32 %v5376, 0.0
    %v5379 = vsub.f32 %v5357, %v5363
    %v5380 = vsub.f32 %v5358, %v5364
    %v5381 = vadd.f32 %v5377, 1e-12
    %v5382 = vadd.f32 %v5378, 1e-12
    %v5383 = vrsqrt.pop %v5381
    %v5384 = vrsqrt.pop %v5382
    %v5385 = vmul.f32 %v5379, %v5383
    %v5386 = vmul.f32 %v5380, %v5384
    %v5387 = vlaneseq
    %v5388 = vshrl.u32 %v5387, 7
    %v5389 = vsub.s32 0, %v5388
    %v5390 = vrot.slane %v5356, %v5389
    %v5391 = vmul.f32 %v5385, %v5390
    %v5392 = vmul.f32 %v5386, %v5390
    %v5393 = vlaneseq
    %v5394 = vshrl.u32 %v5393, 7
    %v5395 = vsub.s32 1, %v5394
    %v5396 = vrot.slane %v5356, %v5395
    %v5397 = vadd.f32 %v5391, %v5396
    %v5398 = vadd.f32 %v5392, %v5396
    %s5399 = scalar_lea.vmem [#allocation44], 128
    %v5400 = vld [vmem:[%s5399] sm:$0xff]
    %v5401 = vld [vmem:[%s5399 + $0x8] sm:$0xff]
    %v5402 = vld [vmem:[%s5399 + $0x10] sm:$0xff]
    %v5403 = vld [vmem:[%s5399 + $0x18] sm:$0xff]
    %v5404 = vld [vmem:[%s5399 + $0x20] sm:$0xff]
    %v5405 = vld [vmem:[%s5399 + $0x28] sm:$0xff]
    %v5406 = vld [vmem:[%s5399 + $0x30] sm:$0xff]
    %v5407 = vld [vmem:[%s5399 + $0x38] sm:$0xff]
    %v5408 = vld [vmem:[%s5399 + $0x40] sm:$0xff]
    %v5409 = vld [vmem:[%s5399 + $0x48] sm:$0xff]
    %v5410 = vld [vmem:[%s5399 + $0x50] sm:$0xff]
    %v5411 = vld [vmem:[%s5399 + $0x58] sm:$0xff]
    %v5412 = vld [vmem:[%s5399 + $0x60] sm:$0xff]
    %v5413 = vld [vmem:[%s5399 + $0x68] sm:$0xff]
    %v5414 = vld [vmem:[%s5399 + $0x70] sm:$0xff]
    %v5415 = vld [vmem:[%s5399 + $0x78] sm:$0xff]
    %s5416 = scalar_lea.vmem [#allocation46], 1
    %v5417 = vld [vmem:[%s5416] sm:$0x1]
    %v5419 = vlaneseq
    %v5420 = vshrl.u32 %v5419, 7
    %v5421 = vsub.s32 0, %v5420
    %v5422 = vrot.slane %v5417, %v5421
    %5424 = vmatprep.subr.mxu0 0.0
    %5425 = vmatpush1.msra.mxu0 %v5400
    %5426 = vmatprep.subr.mxu0 0.0
    %5427 = vmatpush1.msra.mxu0 %v5401
    %5428 = vmatprep.subr.mxu0 0.0
    %5429 = vmatpush1.msra.mxu0 %v5402
    %5430 = vmatprep.subr.mxu0 0.0
    %5431 = vmatpush1.msra.mxu0 %v5403
    %5432 = vmatprep.subr.mxu0 0.0
    %5433 = vmatpush1.msra.mxu0 %v5404
    %5434 = vmatprep.subr.mxu0 0.0
    %5435 = vmatpush1.msra.mxu0 %v5405
    %5436 = vmatprep.subr.mxu0 0.0
    %5437 = vmatpush1.msra.mxu0 %v5406
    %5438 = vmatprep.subr.mxu0 0.0
    %5439 = vmatpush1.msra.mxu0 %v5407
    %5440 = vmatprep.subr.mxu0 0.0
    %5441 = vmatpush1.msra.mxu0 %v5408
    %5442 = vmatprep.subr.mxu0 0.0
    %5443 = vmatpush1.msra.mxu0 %v5409
    %5444 = vmatprep.subr.mxu0 0.0
    %5445 = vmatpush1.msra.mxu0 %v5410
    %5446 = vmatprep.subr.mxu0 0.0
    %5447 = vmatpush1.msra.mxu0 %v5411
    %5448 = vmatprep.subr.mxu0 0.0
    %5449 = vmatpush1.msra.mxu0 %v5412
    %5450 = vmatprep.subr.mxu0 0.0
    %5451 = vmatpush1.msra.mxu0 %v5413
    %5452 = vmatprep.subr.mxu0 0.0
    %5453 = vmatpush1.msra.mxu0 %v5414
    %5454 = vmatprep.subr.mxu0 0.0
    %5455 = vmatpush1.msra.mxu0 %v5415
    %5456 = vmatprep.subr.mxu0 0.0
    %5457 = vmatpush1.msra.mxu0 0.0
    %5458 = vmatprep.subr.mxu0 0.0
    %5459 = vmatpush1.msra.mxu0 0.0
    %5460 = vmatprep.subr.mxu0 0.0
    %5461 = vmatpush1.msra.mxu0 0.0
    %5462 = vmatprep.subr.mxu0 0.0
    %5463 = vmatpush1.msra.mxu0 0.0
    %5464 = vmatprep.subr.mxu0 0.0
    %5465 = vmatpush1.msra.mxu0 0.0
    %5466 = vmatprep.subr.mxu0 0.0
    %5467 = vmatpush1.msra.mxu0 0.0
    %5468 = vmatprep.subr.mxu0 0.0
    %5469 = vmatpush1.msra.mxu0 0.0
    %5470 = vmatprep.subr.mxu0 0.0
    %5471 = vmatpush1.msra.mxu0 0.0
    %5472 = vmatprep.subr.mxu0 0.0
    %5473 = vmatpush1.msra.mxu0 0.0
    %5474 = vmatprep.subr.mxu0 0.0
    %5475 = vmatpush1.msra.mxu0 0.0
    %5476 = vmatprep.subr.mxu0 0.0
    %5477 = vmatpush1.msra.mxu0 0.0
    %5478 = vmatprep.subr.mxu0 0.0
    %5479 = vmatpush1.msra.mxu0 0.0
    %5480 = vmatprep.subr.mxu0 0.0
    %5481 = vmatpush1.msra.mxu0 0.0
    %5482 = vmatprep.subr.mxu0 0.0
    %5483 = vmatpush1.msra.mxu0 0.0
    %5484 = vmatprep.subr.mxu0 0.0
    %5485 = vmatpush1.msra.mxu0 0.0
    %5486 = vmatprep.subr.mxu0 0.0
    %5487 = vmatpush1.msra.mxu0 0.0
    %5488 = vmatprep.mubr.f32.mxu0 0.0
    %5489 = vmatmul.mubr.f32.gmra.mrb[0].mxu0 %v5397
    %v5490 = vpop.f32.mrb[0].mxu0
    %v5491 = vadd.f32 %v5422, %v5490
    %v5492 = vpop.f32.mrb[0].mxu0
    %5493 = vmatprep.mubr.f32.mxu0 0.0
    %5494 = vmatmul.mubr.f32.gmra.mrb[0].mxu0 %v5398
    %v5495 = vpop.f32.mrb[0].mxu0
    %v5496 = vadd.f32 %v5422, %v5495
    %v5497 = vpop.f32.mrb[0].mxu0
    %5498 = vdwg.mxu0
    %v5499 = vmul.f32 %v5491, 0.5
    %v5500 = vmul.f32 %v5496, 0.5
    %v5501 = vmul.f32 %v5491, 0.044715
    %v5502 = vmul.f32 %v5496, 0.044715
    %v5503 = vmul.f32 %v5501, %v5491
    %v5504 = vmul.f32 %v5502, %v5496
    %v5505 = vmul.f32 %v5503, %v5491
    %v5506 = vmul.f32 %v5504, %v5496
    %v5507 = vadd.f32 %v5491, %v5505
    %v5508 = vadd.f32 %v5496, %v5506
    %v5509 = vmul.f32 %v5507, 0.7978846
    %v5510 = vmul.f32 %v5508, 0.7978846
    %v5511 = vtanh.pop %v5509
    %v5512 = vtanh.pop %v5510
    %v5513 = vadd.f32 %v5511, 1.0
    %v5514 = vadd.f32 %v5512, 1.0
    %v5515 = vmul.f32 %v5499, %v5513
    %v5516 = vmul.f32 %v5500, %v5514
    %s5517 = scalar_lea.vmem [#allocation47], 128
    %v5518 = vld [vmem:[%s5517] sm:$0xff]
    %v5519 = vld [vmem:[%s5517 + $0x8] sm:$0xff]
    %v5520 = vld [vmem:[%s5517 + $0x10] sm:$0xff]
    %v5521 = vld [vmem:[%s5517 + $0x18] sm:$0xff]
    %v5522 = vld [vmem:[%s5517 + $0x20] sm:$0xff]
    %v5523 = vld [vmem:[%s5517 + $0x28] sm:$0xff]
    %v5524 = vld [vmem:[%s5517 + $0x30] sm:$0xff]
    %v5525 = vld [vmem:[%s5517 + $0x38] sm:$0xff]
    %v5526 = vld [vmem:[%s5517 + $0x40] sm:$0xff]
    %v5527 = vld [vmem:[%s5517 + $0x48] sm:$0xff]
    %v5528 = vld [vmem:[%s5517 + $0x50] sm:$0xff]
    %v5529 = vld [vmem:[%s5517 + $0x58] sm:$0xff]
    %v5530 = vld [vmem:[%s5517 + $0x60] sm:$0xff]
    %v5531 = vld [vmem:[%s5517 + $0x68] sm:$0xff]
    %v5532 = vld [vmem:[%s5517 + $0x70] sm:$0xff]
    %v5533 = vld [vmem:[%s5517 + $0x78] sm:$0xff]
    %s5534 = scalar_lea.vmem [#allocation49], 1
    %v5535 = vld [vmem:[%s5534] sm:$0x1]
    %v5537 = vlaneseq
    %v5538 = vshrl.u32 %v5537, 7
    %v5539 = vsub.s32 0, %v5538
    %v5540 = vrot.slane %v5535, %v5539
    %5542 = vmatprep.subr.mxu0 0.0
    %5543 = vmatpush1.msra.mxu0 %v5518
    %5544 = vmatprep.subr.mxu0 0.0
    %5545 = vmatpush1.msra.mxu0 %v5519
    %5546 = vmatprep.subr.mxu0 0.0
    %5547 = vmatpush1.msra.mxu0 %v5520
    %5548 = vmatprep.subr.mxu0 0.0
    %5549 = vmatpush1.msra.mxu0 %v5521
    %5550 = vmatprep.subr.mxu0 0.0
    %5551 = vmatpush1.msra.mxu0 %v5522
    %5552 = vmatprep.subr.mxu0 0.0
    %5553 = vmatpush1.msra.mxu0 %v5523
    %5554 = vmatprep.subr.mxu0 0.0
    %5555 = vmatpush1.msra.mxu0 %v5524
    %5556 = vmatprep.subr.mxu0 0.0
    %5557 = vmatpush1.msra.mxu0 %v5525
    %5558 = vmatprep.subr.mxu0 0.0
    %5559 = vmatpush1.msra.mxu0 %v5526
    %5560 = vmatprep.subr.mxu0 0.0
    %5561 = vmatpush1.msra.mxu0 %v5527
    %5562 = vmatprep.subr.mxu0 0.0
    %5563 = vmatpush1.msra.mxu0 %v5528
    %5564 = vmatprep.subr.mxu0 0.0
    %5565 = vmatpush1.msra.mxu0 %v5529
    %5566 = vmatprep.subr.mxu0 0.0
    %5567 = vmatpush1.msra.mxu0 %v5530
    %5568 = vmatprep.subr.mxu0 0.0
    %5569 = vmatpush1.msra.mxu0 %v5531
    %5570 = vmatprep.subr.mxu0 0.0
    %5571 = vmatpush1.msra.mxu0 %v5532
    %5572 = vmatprep.subr.mxu0 0.0
    %5573 = vmatpush1.msra.mxu0 %v5533
    %5574 = vmatprep.subr.mxu0 0.0
    %5575 = vmatpush1.msra.mxu0 0.0
    %5576 = vmatprep.subr.mxu0 0.0
    %5577 = vmatpush1.msra.mxu0 0.0
    %5578 = vmatprep.subr.mxu0 0.0
    %5579 = vmatpush1.msra.mxu0 0.0
    %5580 = vmatprep.subr.mxu0 0.0
    %5581 = vmatpush1.msra.mxu0 0.0
    %5582 = vmatprep.subr.mxu0 0.0
    %5583 = vmatpush1.msra.mxu0 0.0
    %5584 = vmatprep.subr.mxu0 0.0
    %5585 = vmatpush1.msra.mxu0 0.0
    %5586 = vmatprep.subr.mxu0 0.0
    %5587 = vmatpush1.msra.mxu0 0.0
    %5588 = vmatprep.subr.mxu0 0.0
    %5589 = vmatpush1.msra.mxu0 0.0
    %5590 = vmatprep.subr.mxu0 0.0
    %5591 = vmatpush1.msra.mxu0 0.0
    %5592 = vmatprep.subr.mxu0 0.0
    %5593 = vmatpush1.msra.mxu0 0.0
    %5594 = vmatprep.subr.mxu0 0.0
    %5595 = vmatpush1.msra.mxu0 0.0
    %5596 = vmatprep.subr.mxu0 0.0
    %5597 = vmatpush1.msra.mxu0 0.0
    %5598 = vmatprep.subr.mxu0 0.0
    %5599 = vmatpush1.msra.mxu0 0.0
    %5600 = vmatprep.subr.mxu0 0.0
    %5601 = vmatpush1.msra.mxu0 0.0
    %5602 = vmatprep.subr.mxu0 0.0
    %5603 = vmatpush1.msra.mxu0 0.0
    %5604 = vmatprep.subr.mxu0 0.0
    %5605 = vmatpush1.msra.mxu0 0.0
    %5606 = vmatprep.mubr.f32.mxu0 0.0
    %5607 = vmatmul.mubr.f32.gmra.mrb[0].mxu0 %v5515
    %v5608 = vpop.f32.mrb[0].mxu0
    %v5609 = vadd.f32 %v5540, %v5608
    %v5610 = vpop.f32.mrb[0].mxu0
    %5611 = vmatprep.mubr.f32.mxu0 0.0
    %5612 = vmatmul.mubr.f32.gmra.mrb[0].mxu0 %v5516
    %v5613 = vpop.f32.mrb[0].mxu0
    %v5614 = vadd.f32 %v5540, %v5613
    %v5615 = vpop.f32.mrb[0].mxu0
    %5616 = vdwg.mxu0
    %s5617 = scalar_lea.vmem [#allocation50], 2
    %v5618 = vld [vmem:[%s5617] sm:$0x3]
    %v5619 = vadd.f32 %v5397, %v5609
    %v5620 = vadd.f32 %v5398, %v5614
    %5621 = vadd.xlane.f32.xlu0 %v5619
    %v5622 = vpop.xlane.xlu0 %5621
    %5623 = vadd.xlane.f32.xlu0 %v5620
    %v5624 = vpop.xlane.xlu0 %5623
    %v5625 = vmul.f32 %v5622, 0.041666668
    %v5626 = vmul.f32 %v5624, 0.041666668
    %v5627 = vmul.f32 %v5619, %v5619
    %v5628 = vmul.f32 %v5620, %v5620
    %5629 = vadd.xlane.f32.xlu0 %v5627
    %v5630 = vpop.xlane.xlu0 %5629
    %5631 = vadd.xlane.f32.xlu0 %v5628
    %v5632 = vpop.xlane.xlu0 %5631
    %v5633 = vmul.f32 %v5630, 0.041666668
    %v5634 = vmul.f32 %v5632, 0.041666668
    %v5635 = vmul.f32 %v5625, %v5625
    %v5636 = vmul.f32 %v5626, %v5626
    %v5637 = vsub.f32 %v5633, %v5635
    %v5638 = vsub.f32 %v5634, %v5636
    %v5639 = vmax.f32 %v5637, 0.0
    %v5640 = vmax.f32 %v5638, 0.0
    %v5641 = vsub.f32 %v5619, %v5625
    %v5642 = vsub.f32 %v5620, %v5626
    %v5643 = vadd.f32 %v5639, 1e-12
    %v5644 = vadd.f32 %v5640, 1e-12
    %v5645 = vrsqrt.pop %v5643
    %v5646 = vrsqrt.pop %v5644
    %v5647 = vmul.f32 %v5641, %v5645
    %v5648 = vmul.f32 %v5642, %v5646
    %v5649 = vlaneseq
    %v5650 = vshrl.u32 %v5649, 7
    %v5651 = vsub.s32 0, %v5650
    %v5652 = vrot.slane %v5618, %v5651
    %v5653 = vmul.f32 %v5647, %v5652
    %v5654 = vmul.f32 %v5648, %v5652
    %v5655 = vlaneseq
    %v5656 = vshrl.u32 %v5655, 7
    %v5657 = vsub.s32 1, %v5656
    %v5658 = vrot.slane %v5618, %v5657
    %v5659 = vadd.f32 %v5653, %v5658
    %v5660 = vadd.f32 %v5654, %v5658
    %5661 = vst [vmem:[#allocation55] sm:$0xff] %v5659
    %5662 = vst [vmem:[#allocation55 + $0x8] sm:$0xff] %v5660
    %v5663 = vmul.u32 %v606, 8
    %v5664 = vadd.s32 %v5663, 3
    %vm5665 = vcmp.eq.s32.totalorder %v608, %v5664
    %v5666 = vsel %vm5665, 1, 0
    %v5667 = vcvt.s32.f32 %v5666
    %v5669 = vsel %vm651, %v5667, 0
    %5671 = vmatprep.subr.mxu0 0.0
    %5672 = vmatpush1.msra.mxu0 %v5659
    %5673 = vmatprep.subr.mxu0 0.0
    %5674 = vmatpush1.msra.mxu0 %v5660
    %5675 = vmatprep.subr.mxu0 0.0
    %5676 = vmatpush1.msra.mxu0 0.0
    %5677 = vmatprep.subr.mxu0 0.0
    %5678 = vmatpush1.msra.mxu0 0.0
    %5679 = vmatprep.subr.mxu0 0.0
    %5680 = vmatpush1.msra.mxu0 0.0
    %5681 = vmatprep.subr.mxu0 0.0
    %5682 = vmatpush1.msra.mxu0 0.0
    %5683 = vmatprep.subr.mxu0 0.0
    %5684 = vmatpush1.msra.mxu0 0.0
    %5685 = vmatprep.subr.mxu0 0.0
    %5686 = vmatpush1.msra.mxu0 0.0
    %5687 = vmatprep.subr.mxu0 0.0
    %5688 = vmatpush1.msra.mxu0 0.0
    %5689 = vmatprep.subr.mxu0 0.0
    %5690 = vmatpush1.msra.mxu0 0.0
    %5691 = vmatprep.subr.mxu0 0.0
    %5692 = vmatpush1.msra.mxu0 0.0
    %5693 = vmatprep.subr.mxu0 0.0
    %5694 = vmatpush1.msra.mxu0 0.0
    %5695 = vmatprep.subr.mxu0 0.0
    %5696 = vmatpush1.msra.mxu0 0.0
    %5697 = vmatprep.subr.mxu0 0.0
    %5698 = vmatpush1.msra.mxu0 0.0
    %5699 = vmatprep.subr.mxu0 0.0
    %5700 = vmatpush1.msra.mxu0 0.0
    %5701 = vmatprep.subr.mxu0 0.0
    %5702 = vmatpush1.msra.mxu0 0.0
    %5703 = vmatprep.subr.mxu0 0.0
    %5704 = vmatpush1.msra.mxu0 0.0
    %5705 = vmatprep.subr.mxu0 0.0
    %5706 = vmatpush1.msra.mxu0 0.0
    %5707 = vmatprep.subr.mxu0 0.0
    %5708 = vmatpush1.msra.mxu0 0.0
    %5709 = vmatprep.subr.mxu0 0.0
    %5710 = vmatpush1.msra.mxu0 0.0
    %5711 = vmatprep.subr.mxu0 0.0
    %5712 = vmatpush1.msra.mxu0 0.0
    %5713 = vmatprep.subr.mxu0 0.0
    %5714 = vmatpush1.msra.mxu0 0.0
    %5715 = vmatprep.subr.mxu0 0.0
    %5716 = vmatpush1.msra.mxu0 0.0
    %5717 = vmatprep.subr.mxu0 0.0
    %5718 = vmatpush1.msra.mxu0 0.0
    %5719 = vmatprep.subr.mxu0 0.0
    %5720 = vmatpush1.msra.mxu0 0.0
    %5721 = vmatprep.subr.mxu0 0.0
    %5722 = vmatpush1.msra.mxu0 0.0
    %5723 = vmatprep.subr.mxu0 0.0
    %5724 = vmatpush1.msra.mxu0 0.0
    %5725 = vmatprep.subr.mxu0 0.0
    %5726 = vmatpush1.msra.mxu0 0.0
    %5727 = vmatprep.subr.mxu0 0.0
    %5728 = vmatpush1.msra.mxu0 0.0
    %5729 = vmatprep.subr.mxu0 0.0
    %5730 = vmatpush1.msra.mxu0 0.0
    %5731 = vmatprep.subr.mxu0 0.0
    %5732 = vmatpush1.msra.mxu0 0.0
    %5733 = vmatprep.subr.mxu0 0.0
    %5734 = vmatpush1.msra.mxu0 0.0
    %5735 = vmatprep.mubr.f32.mxu0 0.0
    %5736 = vmatmul.mubr.f32.gmra.mrb[0].mxu0 %v5669
    %v5737 = vpop.f32.mrb[0].mxu0
    %v5738 = vadd.f32 0.0, %v5737
    %v5739 = vpop.f32.mrb[0].mxu0
    %5740 = vdwg.mxu0
    %v5741 = vmul.f32 %v5738, %v5738
    %vm5742 = vcmask 1041408
    %v5743 = vsel %vm5742, %v5741, 0.0
    %5744 = vadd.xlane.f32.xlu0 %v5743
    %v5745 = vpop.xlane.xlu0 %5744
    %v5746 = vmax.f32 %v5745, 1e-24
    %v5747 = vrsqrt.pop %v5746
    %v5748 = vmul.f32 %v5738, %v5747
    %v5749 = vld [vmem:[#allocation52] sm:$0xff]
    %v5750 = vld [vmem:[#allocation52 + $0x8] sm:$0xff]
    %v5751 = vld [vmem:[#allocation52 + $0x10] sm:$0xff]
    %v5752 = vld [vmem:[#allocation52 + $0x18] sm:$0xff]
    %v5753 = vld [vmem:[#allocation52 + $0x20] sm:$0xff]
    %v5754 = vld [vmem:[#allocation52 + $0x28] sm:$0xff]
    %v5755 = vld [vmem:[#allocation52 + $0x30] sm:$0xff]
    %v5756 = vld [vmem:[#allocation52 + $0x38] sm:$0xff]
    %v5757 = vld [vmem:[#allocation52 + $0x40] sm:$0xff]
    %v5758 = vld [vmem:[#allocation52 + $0x48] sm:$0xff]
    %v5759 = vld [vmem:[#allocation52 + $0x50] sm:$0xff]
    %v5760 = vld [vmem:[#allocation52 + $0x58] sm:$0xff]
    %v5761 = vld [vmem:[#allocation52 + $0x60] sm:$0xff]
    %v5762 = vld [vmem:[#allocation52 + $0x68] sm:$0xff]
    %v5763 = vld [vmem:[#allocation52 + $0x70] sm:$0xff]
    %v5764 = vld [vmem:[#allocation52 + $0x78] sm:$0xff]
    %v5765 = vld [vmem:[#allocation53] sm:$0x1]
    %v5767 = vlaneseq
    %v5768 = vshrl.u32 %v5767, 7
    %v5769 = vsub.s32 0, %v5768
    %v5770 = vrot.slane %v5765, %v5769
    %5772 = vmatprep.subr.mxu0 0.0
    %5773 = vmatpush1.msra.mxu0 %v5749
    %5774 = vmatprep.subr.mxu0 0.0
    %5775 = vmatpush1.msra.mxu0 %v5750
    %5776 = vmatprep.subr.mxu0 0.0
    %5777 = vmatpush1.msra.mxu0 %v5751
    %5778 = vmatprep.subr.mxu0 0.0
    %5779 = vmatpush1.msra.mxu0 %v5752
    %5780 = vmatprep.subr.mxu0 0.0
    %5781 = vmatpush1.msra.mxu0 %v5753
    %5782 = vmatprep.subr.mxu0 0.0
    %5783 = vmatpush1.msra.mxu0 %v5754
    %5784 = vmatprep.subr.mxu0 0.0
    %5785 = vmatpush1.msra.mxu0 %v5755
    %5786 = vmatprep.subr.mxu0 0.0
    %5787 = vmatpush1.msra.mxu0 %v5756
    %5788 = vmatprep.subr.mxu0 0.0
    %5789 = vmatpush1.msra.mxu0 %v5757
    %5790 = vmatprep.subr.mxu0 0.0
    %5791 = vmatpush1.msra.mxu0 %v5758
    %5792 = vmatprep.subr.mxu0 0.0
    %5793 = vmatpush1.msra.mxu0 %v5759
    %5794 = vmatprep.subr.mxu0 0.0
    %5795 = vmatpush1.msra.mxu0 %v5760
    %5796 = vmatprep.subr.mxu0 0.0
    %5797 = vmatpush1.msra.mxu0 %v5761
    %5798 = vmatprep.subr.mxu0 0.0
    %5799 = vmatpush1.msra.mxu0 %v5762
    %5800 = vmatprep.subr.mxu0 0.0
    %5801 = vmatpush1.msra.mxu0 %v5763
    %5802 = vmatprep.subr.mxu0 0.0
    %5803 = vmatpush1.msra.mxu0 %v5764
    %5804 = vmatprep.subr.mxu0 0.0
    %5805 = vmatpush1.msra.mxu0 0.0
    %5806 = vmatprep.subr.mxu0 0.0
    %5807 = vmatpush1.msra.mxu0 0.0
    %5808 = vmatprep.subr.mxu0 0.0
    %5809 = vmatpush1.msra.mxu0 0.0
    %5810 = vmatprep.subr.mxu0 0.0
    %5811 = vmatpush1.msra.mxu0 0.0
    %5812 = vmatprep.subr.mxu0 0.0
    %5813 = vmatpush1.msra.mxu0 0.0
    %5814 = vmatprep.subr.mxu0 0.0
    %5815 = vmatpush1.msra.mxu0 0.0
    %5816 = vmatprep.subr.mxu0 0.0
    %5817 = vmatpush1.msra.mxu0 0.0
    %5818 = vmatprep.subr.mxu0 0.0
    %5819 = vmatpush1.msra.mxu0 0.0
    %5820 = vmatprep.subr.mxu0 0.0
    %5821 = vmatpush1.msra.mxu0 0.0
    %5822 = vmatprep.subr.mxu0 0.0
    %5823 = vmatpush1.msra.mxu0 0.0
    %5824 = vmatprep.subr.mxu0 0.0
    %5825 = vmatpush1.msra.mxu0 0.0
    %5826 = vmatprep.subr.mxu0 0.0
    %5827 = vmatpush1.msra.mxu0 0.0
    %5828 = vmatprep.subr.mxu0 0.0
    %5829 = vmatpush1.msra.mxu0 0.0
    %5830 = vmatprep.subr.mxu0 0.0
    %5831 = vmatpush1.msra.mxu0 0.0
    %5832 = vmatprep.subr.mxu0 0.0
    %5833 = vmatpush1.msra.mxu0 0.0
    %5834 = vmatprep.subr.mxu0 0.0
    %5835 = vmatpush1.msra.mxu0 0.0
    %5836 = vmatprep.mubr.f32.mxu0 0.0
    %5837 = vmatmul.mubr.f32.gmra.mrb[0].mxu0 %v5748
    %v5838 = vpop.f32.mrb[0].mxu0
    %v5839 = vadd.f32 %v5770, %v5838
    %v5840 = vpop.f32.mrb[0].mxu0
    %5841 = vdwg.mxu0
    %5842 = vst [vmem:[#allocation56] sm:$0x3] %v5839
    // Predicated region
    $region274: #{hf_transformer_forward.1} parent=1 // pred_check
      _
    $region275: #{hf_transformer_forward.1} parent=1 // pred_check_branch
      %5844 = sbr.rel (0) target = $region277
    $region276: #{hf_transformer_forward.1} parent=1 // pred_region
      %s5846 = ssub.s32 256, 256
      %5847 = vsyncadd [#allocation4], %s5846
      %s5848 = sshll.u32 [#allocation55], 4
      %s5849 = int_to_ptr.vmem [resolvable:$true] %s5848
      %5854 = dma.vmem_to_hbm [thread:$0]  %s5849, 256, %s69, [#allocation4], 128, 128, 8
    $region277: #{hf_transformer_forward.1} parent=1 // pred_fallthru
      _
    // Predicated region
    $region278: #{hf_transformer_forward.1} parent=1 // pred_check
      _
    $region279: #{hf_transformer_forward.1} parent=1 // pred_check_branch
      %5856 = sbr.rel (0) target = $region281
    $region280: #{hf_transformer_forward.1} parent=1 // pred_region
      %s5858 = ssub.s32 32, 32
      %5859 = vsyncadd [#allocation57], %s5858
      %s5861 = sshll.u32 [#allocation56], 4
      %s5862 = int_to_ptr.vmem [resolvable:$true] %s5861
      %5864 = dma.vmem_to_hbm [thread:$0]  %s5862, 32, %s71, [#allocation57]
    $region281: #{hf_transformer_forward.1} parent=1 // pred_fallthru
      _
    // Predicated region
    $region282: #{hf_transformer_forward.1} parent=1 // pred_check
      _
    $region283: #{hf_transformer_forward.1} parent=1 // pred_check_branch
      %5866 = sbr.rel (0) target = $region285
    $region284: #{hf_transformer_forward.1} parent=1 // pred_region
      %5867 = dma.done [#allocation4], 256
    $region285: #{hf_transformer_forward.1} parent=1 // pred_fallthru
      _
    // Predicated region
    $region286: #{hf_transformer_forward.1} parent=1 // pred_check
      _
    $region287: #{hf_transformer_forward.1} parent=1 // pred_check_branch
      %5869 = sbr.rel (0) target = $region289
    $region288: #{hf_transformer_forward.1} parent=1 // pred_region
      %5870 = dma.done [#allocation57], 32
    $region289: #{hf_transformer_forward.1} parent=1 // pred_fallthru
      _
    %5871 = vsyncpa [#allocation3], 1
    %5872 = vsyncpa [#allocation6], 1
    %5873 = vsyncpa [#allocation9], 1
    %5874 = vsyncpa [#allocation12], 1
    %5875 = vsyncpa [#allocation15], 1
    %5876 = vsyncpa [#allocation18], 1
    %5877 = vsyncpa [#allocation21], 1
    %5878 = vsyncpa [#allocation24], 1
    %5879 = vsyncpa [#allocation27], 1
    %5880 = vsyncpa [#allocation30], 1
    %5881 = vsyncpa [#allocation33], 1
    %5882 = vsyncpa [#allocation36], 1
    %5883 = vsyncpa [#allocation39], 1
    %5884 = vsyncpa [#allocation42], 1
    %5885 = vsyncpa [#allocation45], 1
    %5886 = vsyncpa [#allocation48], 1
    %5887 = vsyncpa [#allocation51], 1
    %5888 = vsyncpa [#allocation54], 1
    %5889 = vsyncpa [#allocation4], 1
    %5890 = vsyncpa [#allocation57], 1

</llo_original>
